<compile_context>
chip_gen: v5e
topology: v5e:2x2
jax: 0.10.0
libtpu: 0.0.40
codegen_flags: <defaults>
</compile_context>

<pallas_src>
import functools

import jax
import jax.numpy as jnp
import numpy as np
from jax import lax
from jax.experimental import pallas as pl
from jax.experimental.pallas import tpu as pltpu

COMMITMENT_COST = 0.25
NUM_EMBEDDINGS = 512
EMBEDDING_DIM = 64


def _round_up(x, m):
    return ((x + m - 1) // m) * m


def _default_ncores():
    """2 grid-parallel cores on megacore chips (v4/v5p/v7x), else 1."""
    try:
        kind = jax.devices()[0].device_kind.lower()
    except Exception:  # pragma: no cover - defensive
        return 1
    if any(tag in kind for tag in ("v4", "v5p", "v7", "7x")):
        return 2
    return 1


def _vq_kernel(flat_ref, emb_ref, half_e2_ref,
               quant_ref, idx_ref, loss_ref, counts_ref,
               loss_acc, counts_acc,
               *, m_actual, m_padded, tm, steps_per_core):
    """One grid step handles a (TM, D) tile of flat_input.

    Inputs:
      flat_ref:    (TM, D)  input rows tile
      emb_ref:     (K, D)   full codebook (loop invariant)
      half_e2_ref: (1, K)   0.5 * ||e_k||^2 precomputed in the wrapper
    Outputs:
      quant_ref:   (TM, D)  quantized rows tile
      idx_ref:     (1, TM)  int32 nearest-code indices (lane-dense)
      loss_ref:    (1, 1)   per-core sum of (quantized - input)^2
      counts_ref:  (1, K)   per-core per-code assignment counts
    Scratch:
      loss_acc:    (1, D)   VMEM accumulator (per-lane partial SSE)
      counts_acc:  (1, K)   VMEM accumulator
    """
    p = pl.program_id(0)   # core-parallel axis
    i = pl.program_id(1)   # row-tile axis (sequential per core)

    @pl.when(i == 0)
    def _():
        loss_acc[...] = jnp.zeros_like(loss_acc)
        counts_acc[...] = jnp.zeros_like(counts_acc)

    x = flat_ref[...]                                    # (TM, D) f32
    e = emb_ref[...]                                     # (K, D)  f32
    k = e.shape[0]

    # argmin_k ||x - e_k||^2  ==  argmax_k ( x . e_k - 0.5*||e_k||^2 )
    # (the ||x||^2 term is a per-row constant and is dropped).
    xe = lax.dot_general(x, e, (((1,), (1,)), ((), ())),
                         preferred_element_type=jnp.float32)   # (TM, K) MXU
    score = xe - half_e2_ref[...]                              # (TM, K)

    # argmax with first-index tie-breaking, then one-hot (for the MXU gather).
    # TODO(synk): replace with jnp.argmax (single cross-lane reduce) once its
    # Mosaic lowering is confirmed.
    max_s = jnp.max(score, axis=1, keepdims=True)              # (TM, 1)
    iota = lax.broadcasted_iota(jnp.int32, score.shape, 1)     # (TM, K)
    idx = jnp.min(jnp.where(score >= max_s, iota, k),
                  axis=1, keepdims=True)                       # (TM, 1) int32
    enc = (iota == idx).astype(jnp.float32)                    # (TM, K)

    # quantized = one_hot @ codebook   (MXU row gather)
    q = jnp.dot(enc, e, preferred_element_type=jnp.float32)    # (TM, D)

    quant_ref[...] = q
    # Lane-dense index row: (TM,1) -> (1,TM) relayout, unmasked stores.
    idx_ref[...] = jnp.reshape(idx, (1, tm))

    err2 = (q - x) * (q - x)                                   # (TM, D)

    def _accumulate(w_row):
        # Row-sum reductions expressed as (1,TM) matmuls -> MXU (has slack),
        # instead of large sublane XLU reductions every step.
        loss_acc[...] = loss_acc[...] + jnp.dot(
            w_row, err2, preferred_element_type=jnp.float32)      # (1, D)
        counts_acc[...] = counts_acc[...] + jnp.dot(
            w_row, enc, preferred_element_type=jnp.float32)       # (1, K)

    if m_padded != m_actual:
        start = (p * steps_per_core + i) * tm
        needs_mask = start + tm > m_actual

        @pl.when(needs_mask)
        def _():
            # Only the tile(s) crossing m_actual pay for the mask; it is
            # folded into the matmul weights row (no (TM,K) mask multiply).
            row_ids = start + lax.broadcasted_iota(jnp.int32, (1, tm), 1)
            _accumulate((row_ids < m_actual).astype(jnp.float32))

        @pl.when(jnp.logical_not(needs_mask))
        def _():
            _accumulate(jnp.ones((1, tm), jnp.float32))
    else:
        _accumulate(jnp.ones((1, tm), jnp.float32))

    @pl.when(i == pl.num_programs(1) - 1)
    def _():
        # Single small cross-lane reduce per core, once.
        loss_ref[...] = jnp.sum(loss_acc[...], axis=1, keepdims=True)
        counts_ref[...] = counts_acc[...]


@functools.partial(jax.jit, static_argnames=("tm", "ncores"))
def _vq_forward(x_nchw, embedding_w, *, tm, ncores):
    n, c, h, w = x_nchw.shape
    k, d = embedding_w.shape
    assert c == d

    inputs_nhwc = jnp.transpose(x_nchw, (0, 2, 3, 1))          # NHWC
    flat_input = inputs_nhwc.reshape(-1, d)                    # (M, D)
    m = flat_input.shape[0]

    # Effective row-tile: multiple of 128 (lane-dense idx output), shrunk for
    # small M so we do not manufacture fully-padded tiles.
    tm_eff = max(128, min(_round_up(tm, 128),
                          _round_up(pl.cdiv(m, ncores), 128)))
    steps_per_core = pl.cdiv(m, ncores * tm_eff)               # python int
    m_padded = ncores * tm_eff * steps_per_core
    num_tiles = ncores * steps_per_core

    if m_padded != m:
        flat_in = jnp.pad(flat_input, ((0, m_padded - m), (0, 0)))
    else:
        flat_in = flat_input

    # Loop-invariant codebook half-norms, computed once outside the kernel.
    half_e2 = (0.5 * jnp.sum(embedding_w * embedding_w, axis=1)).reshape(1, k)

    kernel = functools.partial(_vq_kernel, m_actual=m, m_padded=m_padded,
                               tm=tm_eff, steps_per_core=steps_per_core)

    quant_flat, idx_tiles, loss_parts, counts_parts = pl.pallas_call(
        kernel,
        out_shape=(
            jax.ShapeDtypeStruct((m_padded, d), jnp.float32),        # quantized
            jax.ShapeDtypeStruct((num_tiles, 1, tm_eff), jnp.int32), # indices
            jax.ShapeDtypeStruct((ncores, 1, 1), jnp.float32),       # per-core sse
            jax.ShapeDtypeStruct((ncores, 1, k), jnp.float32),       # per-core counts
        ),
        grid_spec=pltpu.PrefetchScalarGridSpec(
            num_scalar_prefetch=0,
            grid=(ncores, steps_per_core),
            in_specs=[
                pl.BlockSpec((tm_eff, d),
                             lambda p, i: (p * steps_per_core + i, 0)),
                pl.BlockSpec((k, d), lambda p, i: (0, 0)),     # codebook
                pl.BlockSpec((1, k), lambda p, i: (0, 0)),     # 0.5*||e||^2
            ],
            out_specs=[
                pl.BlockSpec((tm_eff, d),
                             lambda p, i: (p * steps_per_core + i, 0)),
                pl.BlockSpec((None, 1, tm_eff),
                             lambda p, i: (p * steps_per_core + i, 0, 0)),
                pl.BlockSpec((None, 1, 1), lambda p, i: (p, 0, 0)),
                pl.BlockSpec((None, 1, k), lambda p, i: (p, 0, 0)),
            ],
            scratch_shapes=[
                pltpu.VMEM((1, d), jnp.float32),
                pltpu.VMEM((1, k), jnp.float32),
            ],
        ),
        compiler_params=pltpu.CompilerParams(
            dimension_semantics=("parallel", "arbitrary"),
            vmem_limit_bytes=32 * 1024 * 1024,
        ),
    )(flat_in, embedding_w, half_e2)

    # Cheap scalar / reshape glue in plain JAX.
    loss_sum = jnp.sum(loss_parts)                             # sum sq error
    counts = jnp.sum(counts_parts, axis=(0, 1))                # (K,)

    mse = loss_sum / jnp.float32(m * d)
    # Forward values: q_latent_loss == e_latent_loss == mse (detach is a
    # gradient-only distinction), so loss = q_latent + cc * e_latent.
    loss = (1.0 + COMMITMENT_COST) * mse

    quantized = quant_flat[:m].reshape(n, h, w, d)
    # straight-through estimator (numerically a no-op in the forward pass)
    quantized = inputs_nhwc + lax.stop_gradient(quantized - inputs_nhwc)
    quantized_nchw = jnp.transpose(quantized, (0, 3, 1, 2))

    encoding_indices = idx_tiles.reshape(-1)[:m]               # (M,)
    # Kept fp32 to match the module's `encodings` return; for large M a
    # narrower dtype (bf16/int8) or indices-only return halves/quarters the
    # epilogue HBM traffic if the caller allows it.
    encodings = jax.nn.one_hot(encoding_indices, k, dtype=jnp.float32)

    avg_probs = counts / jnp.float32(m)
    perplexity = jnp.exp(-jnp.sum(avg_probs * jnp.log(avg_probs + 1e-10)))

    return loss, quantized_nchw, perplexity, encodings


def vector_quantizer_forward(x_nchw, embedding_w, *, tm=512, ncores=None):
    """Forward of VectorQuantizer.

    Args:
      x_nchw:      (N, C, H, W) float32 with C == embedding_dim.
      embedding_w: (num_embeddings, embedding_dim) float32 codebook.
      tm:          row-tile size hint (rounded to a multiple of 128).
      ncores:      grid-parallel cores; None = auto (2 on megacore chips).
    Returns:
      (loss, quantized_nchw, perplexity, encodings) matching PyTorch forward.
    """
    if ncores is None:
        ncores = _default_ncores()
    return _vq_forward(x_nchw, embedding_w, tm=tm, ncores=ncores)


def _reference_forward(x_nchw, embedding_w):
    """Pure-JAX reference replicating the PyTorch forward."""
    n, c, h, w = x_nchw.shape
    k, d = embedding_w.shape
    inputs = jnp.transpose(x_nchw, (0, 2, 3, 1))
    flat = inputs.reshape(-1, d)
    # argmin of ||x||^2 + ||e||^2 - 2 x.e^T  ==  argmax of x.e^T - 0.5||e||^2
    # (same reduced form as the kernel so fp rounding cannot flip near-ties).
    score = (jnp.dot(flat, embedding_w.T, precision=lax.Precision.HIGHEST)
             - 0.5 * jnp.sum(embedding_w ** 2, axis=1))
    idx = jnp.argmax(score, axis=1)
    enc = jax.nn.one_hot(idx, k, dtype=jnp.float32)
    q = jnp.dot(enc, embedding_w,
                precision=lax.Precision.HIGHEST).reshape(n, h, w, d)
    e_latent_loss = jnp.mean((lax.stop_gradient(q) - inputs) ** 2)
    q_latent_loss = jnp.mean((q - lax.stop_gradient(inputs)) ** 2)
    loss = q_latent_loss + COMMITMENT_COST * e_latent_loss
    q_st = inputs + lax.stop_gradient(q - inputs)
    avg_probs = jnp.mean(enc, axis=0)
    perplexity = jnp.exp(-jnp.sum(avg_probs * jnp.log(avg_probs + 1e-10)))
    return loss, jnp.transpose(q_st, (0, 3, 1, 2)), perplexity, enc


if __name__ == "__main__":
    key = jax.random.PRNGKey(0)
    k_x, k_e = jax.random.split(key)

    # N=2, C=embedding_dim=64, H=W=16  ->  M = 2*16*16 = 512 flat rows
    x = jax.random.normal(k_x, (2, EMBEDDING_DIM, 16, 16), dtype=jnp.float32)
    # embedding.weight.data.uniform_(-1/K, 1/K)  (deterministic synthetic init)
    emb_w = jax.random.uniform(
        k_e, (NUM_EMBEDDINGS, EMBEDDING_DIM), dtype=jnp.float32,
        minval=-1.0 / NUM_EMBEDDINGS, maxval=1.0 / NUM_EMBEDDINGS)

    loss, quant, perplexity, encodings = vector_quantizer_forward(x, emb_w)
    jax.block_until_ready((loss, quant, perplexity, encodings))

    # correctness sanity check vs pure-JAX reference
    r_loss, r_quant, r_perp, r_enc = _reference_forward(x, emb_w)
    np.testing.assert_allclose(np.asarray(loss), np.asarray(r_loss),
                               rtol=1e-5, atol=1e-5)
    np.testing.assert_allclose(np.asarray(quant), np.asarray(r_quant),
                               rtol=1e-5, atol=1e-5)
    np.testing.assert_allclose(np.asarray(perplexity), np.asarray(r_perp),
                               rtol=1e-5, atol=1e-5)
    np.testing.assert_allclose(np.asarray(encodings), np.asarray(r_enc),
                               rtol=0, atol=0)

    print("KERNEL_OK")
</pallas_src>

<mosaic_0001>
module attributes {stable_mosaic.version = 11 : i64} {
  func.func @_vq_kernel(%arg0: i32, %arg1: i32, %arg2: memref<512x64xf32, #tpu.memory_space<vmem>>, %arg3: memref<512x64xf32, #tpu.memory_space<vmem>>, %arg4: memref<1x512xf32, #tpu.memory_space<vmem>>, %arg5: memref<512x64xf32, #tpu.memory_space<vmem>>, %arg6: memref<1x1x512xi32, #tpu.memory_space<vmem>>, %arg7: memref<1x1x1xf32, #tpu.memory_space<vmem>>, %arg8: memref<1x1x512xf32, #tpu.memory_space<vmem>>, %arg9: memref<1x64xf32, #tpu.memory_space<vmem>>, %arg10: memref<1x512xf32, #tpu.memory_space<vmem>>) attributes {dimension_semantics = [#tpu.dimension_semantics<parallel>, #tpu.dimension_semantics<arbitrary>], iteration_bounds = array<i64: 1, 1>, scalar_prefetch = 0 : i64, scratch_operands = 2 : i64, tpu.core_type = #tpu.core_type<tc>, window_params = [{transform_indices = @transform_0, window_bounds = array<i64: 512, 64>}, {pipeline_mode = #tpu.pipeline_mode<synchronous>, transform_indices = @transform_1, window_bounds = array<i64: 512, 64>}, {pipeline_mode = #tpu.pipeline_mode<synchronous>, transform_indices = @transform_2, window_bounds = array<i64: 1, 512>}, {transform_indices = @transform_3, window_bounds = array<i64: 512, 64>}, {transform_indices = @transform_4, window_bounds = array<i64: 1, 1, 512>}, {transform_indices = @transform_5, window_bounds = array<i64: 1, 1, 1>}, {transform_indices = @transform_6, window_bounds = array<i64: 1, 1, 512>}]} {
    %c0_i32 = arith.constant 0 : i32
    %0 = arith.cmpi eq, %arg1, %c0_i32 : i32
    %1 = arith.extui %0 : i1 to i32
    %c0_i32_0 = arith.constant 0 : i32
    %2 = arith.cmpi ne, %1, %c0_i32_0 : i32
    scf.if %2 {
      %cst_27 = arith.constant 0.000000e+00 : f32
      %43 = vector.broadcast %cst_27 : f32 to vector<1x64xf32>
      %c0_28 = arith.constant 0 : index
      %c0_29 = arith.constant 0 : index
      %44 = vector.load %arg9[%c0_28, %c0_29] : memref<1x64xf32, #tpu.memory_space<vmem>>, vector<1x64xf32>
      tpu.vector_store %arg9[%c0_28, %c0_29], %43 {strides = array<i32>} : memref<1x64xf32, #tpu.memory_space<vmem>>, vector<1x64xf32>,
      %cst_30 = arith.constant 0.000000e+00 : f32
      %45 = vector.broadcast %cst_30 : f32 to vector<1x512xf32>
      %c0_31 = arith.constant 0 : index
      %c0_32 = arith.constant 0 : index
      %46 = vector.load %arg10[%c0_31, %c0_32] : memref<1x512xf32, #tpu.memory_space<vmem>>, vector<1x512xf32>
      tpu.vector_store %arg10[%c0_31, %c0_32], %45 {strides = array<i32>} : memref<1x512xf32, #tpu.memory_space<vmem>>, vector<1x512xf32>,
    } else {
    }
    %c0 = arith.constant 0 : index
    %c0_1 = arith.constant 0 : index
    %3 = vector.load %arg2[%c0, %c0_1] : memref<512x64xf32, #tpu.memory_space<vmem>>, vector<512x64xf32>
    %c0_2 = arith.constant 0 : index
    %c0_3 = arith.constant 0 : index
    %4 = vector.load %arg3[%c0_2, %c0_3] : memref<512x64xf32, #tpu.memory_space<vmem>>, vector<512x64xf32>
    %cst = arith.constant dense<0.000000e+00> : vector<512x512xf32>
    %5 = tpu.matmul %3, %4, %cst {dimension_numbers = #tpu.dot_dimension_numbers<[1], [1], [0], [0], [0, 0, 1, 0], [], []>} : vector<512x64xf32>, vector<512x64xf32>, vector<512x512xf32> -> vector<512x512xf32>
    %c0_4 = arith.constant 0 : index
    %c0_5 = arith.constant 0 : index
    %6 = vector.load %arg4[%c0_4, %c0_5] : memref<1x512xf32, #tpu.memory_space<vmem>>, vector<1x512xf32>
    %7 = vector.broadcast %6 : vector<1x512xf32> to vector<512x512xf32>
    %8 = arith.subf %5, %7 : vector<512x512xf32>
    %cst_6 = arith.constant dense<0xFF800000> : vector<512xf32>
    %9 = vector.multi_reduction <maximumf>, %8, %cst_6 [1] : vector<512x512xf32> to vector<512xf32>
    %10 = vector.shape_cast %9 : vector<512xf32> to vector<512x1xf32>
    %11 = tpu.iota {dimensions = array<i32: 1>} : vector<512x512xi32>
    %12 = vector.broadcast %10 : vector<512x1xf32> to vector<512x512xf32>
    %13 = arith.cmpf oge, %8, %12 : vector<512x512xf32>
    %c512_i32 = arith.constant 512 : i32
    %14 = vector.broadcast %c512_i32 : i32 to vector<512x512xi32>
    %15 = arith.select %13, %11, %14 : vector<512x512xi1>, vector<512x512xi32>
    %cst_7 = arith.constant dense<2147483647> : vector<512xi32>
    %16 = vector.multi_reduction <minsi>, %15, %cst_7 [1] : vector<512x512xi32> to vector<512xi32>
    %17 = vector.shape_cast %16 : vector<512xi32> to vector<512x1xi32>
    %18 = vector.broadcast %17 : vector<512x1xi32> to vector<512x512xi32>
    %19 = arith.cmpi eq, %11, %18 : vector<512x512xi32>
    %20 = arith.extui %19 : vector<512x512xi1> to vector<512x512xi32>
    %21 = arith.sitofp %20 : vector<512x512xi32> to vector<512x512xf32>
    %cst_8 = arith.constant dense<0.000000e+00> : vector<512x64xf32>
    %22 = tpu.matmul %21, %4, %cst_8 {dimension_numbers = #tpu.dot_dimension_numbers<[1], [0], [0], [1], [0, 0, 1, 1], [], []>} : vector<512x512xf32>, vector<512x64xf32>, vector<512x64xf32> -> vector<512x64xf32>
    %c0_9 = arith.constant 0 : index
    %c0_10 = arith.constant 0 : index
    %23 = vector.load %arg5[%c0_9, %c0_10] : memref<512x64xf32, #tpu.memory_space<vmem>>, vector<512x64xf32>
    tpu.vector_store %arg5[%c0_9, %c0_10], %22 {strides = array<i32>} : memref<512x64xf32, #tpu.memory_space<vmem>>, vector<512x64xf32>,
    %24 = vector.shape_cast %17 : vector<512x1xi32> to vector<1x512xi32>
    %c0_11 = arith.constant 0 : index
    %c0_12 = arith.constant 0 : index
    %c0_13 = arith.constant 0 : index
    %25 = vector.load %arg6[%c0_11, %c0_12, %c0_13] : memref<1x1x512xi32, #tpu.memory_space<vmem>>, vector<1x1x512xi32>
    %26 = vector.shape_cast %25 : vector<1x1x512xi32> to vector<1x512xi32>
    %27 = vector.shape_cast %24 : vector<1x512xi32> to vector<1x1x512xi32>
    tpu.vector_store %arg6[%c0_11, %c0_12, %c0_13], %27 {strides = array<i32>} : memref<1x1x512xi32, #tpu.memory_space<vmem>>, vector<1x1x512xi32>,
    %28 = arith.subf %22, %3 : vector<512x64xf32>
    %29 = arith.subf %22, %3 : vector<512x64xf32>
    %30 = arith.mulf %28, %29 : vector<512x64xf32>
    %cst_14 = arith.constant 1.000000e+00 : f32
    %31 = vector.broadcast %cst_14 : f32 to vector<1x512xf32>
    %c0_15 = arith.constant 0 : index
    %c0_16 = arith.constant 0 : index
    %32 = vector.load %arg9[%c0_15, %c0_16] : memref<1x64xf32, #tpu.memory_space<vmem>>, vector<1x64xf32>
    %cst_17 = arith.constant dense<0.000000e+00> : vector<1x64xf32>
    %33 = tpu.matmul %31, %30, %cst_17 {dimension_numbers = #tpu.dot_dimension_numbers<[1], [0], [0], [1], [0, 0, 1, 1], [], []>} : vector<1x512xf32>, vector<512x64xf32>, vector<1x64xf32> -> vector<1x64xf32>
    %34 = arith.addf %32, %33 : vector<1x64xf32>
    %c0_18 = arith.constant 0 : index
    %c0_19 = arith.constant 0 : index
    %35 = vector.load %arg9[%c0_18, %c0_19] : memref<1x64xf32, #tpu.memory_space<vmem>>, vector<1x64xf32>
    tpu.vector_store %arg9[%c0_18, %c0_19], %34 {strides = array<i32>} : memref<1x64xf32, #tpu.memory_space<vmem>>, vector<1x64xf32>,
    %c0_20 = arith.constant 0 : index
    %c0_21 = arith.constant 0 : index
    %36 = vector.load %arg10[%c0_20, %c0_21] : memref<1x512xf32, #tpu.memory_space<vmem>>, vector<1x512xf32>
    %cst_22 = arith.constant dense<0.000000e+00> : vector<1x512xf32>
    %37 = tpu.matmul %31, %21, %cst_22 {dimension_numbers = #tpu.dot_dimension_numbers<[1], [0], [0], [1], [0, 0, 1, 1], [], []>} : vector<1x512xf32>, vector<512x512xf32>, vector<1x512xf32> -> vector<1x512xf32>
    %38 = arith.addf %36, %37 : vector<1x512xf32>
    %c0_23 = arith.constant 0 : index
    %c0_24 = arith.constant 0 : index
    %39 = vector.load %arg10[%c0_23, %c0_24] : memref<1x512xf32, #tpu.memory_space<vmem>>, vector<1x512xf32>
    tpu.vector_store %arg10[%c0_23, %c0_24], %38 {strides = array<i32>} : memref<1x512xf32, #tpu.memory_space<vmem>>, vector<1x512xf32>,
    %c0_i32_25 = arith.constant 0 : i32
    %40 = arith.cmpi eq, %arg1, %c0_i32_25 : i32
    %41 = arith.extui %40 : i1 to i32
    %c0_i32_26 = arith.constant 0 : i32
    %42 = arith.cmpi ne, %41, %c0_i32_26 : i32
    scf.if %42 {
      %c0_27 = arith.constant 0 : index
      %c0_28 = arith.constant 0 : index
      %43 = vector.load %arg9[%c0_27, %c0_28] : memref<1x64xf32, #tpu.memory_space<vmem>>, vector<1x64xf32>
      %cst_29 = arith.constant dense<0.000000e+00> : vector<1xf32>
      %44 = vector.multi_reduction <add>, %43, %cst_29 [1] : vector<1x64xf32> to vector<1xf32>
      %45 = vector.shape_cast %44 : vector<1xf32> to vector<1x1xf32>
      %c0_30 = arith.constant 0 : index
      %c0_31 = arith.constant 0 : index
      %c0_32 = arith.constant 0 : index
      %46 = vector.load %arg7[%c0_30, %c0_31, %c0_32] : memref<1x1x1xf32, #tpu.memory_space<vmem>>, vector<1x1x1xf32>
      %47 = vector.shape_cast %46 : vector<1x1x1xf32> to vector<1x1xf32>
      %48 = vector.shape_cast %45 : vector<1x1xf32> to vector<1x1x1xf32>
      tpu.vector_store %arg7[%c0_30, %c0_31, %c0_32], %48 {strides = array<i32>} : memref<1x1x1xf32, #tpu.memory_space<vmem>>, vector<1x1x1xf32>,
      %c0_33 = arith.constant 0 : index
      %c0_34 = arith.constant 0 : index
      %49 = vector.load %arg10[%c0_33, %c0_34] : memref<1x512xf32, #tpu.memory_space<vmem>>, vector<1x512xf32>
      %c0_35 = arith.constant 0 : index
      %c0_36 = arith.constant 0 : index
      %c0_37 = arith.constant 0 : index
      %50 = vector.load %arg8[%c0_35, %c0_36, %c0_37] : memref<1x1x512xf32, #tpu.memory_space<vmem>>, vector<1x1x512xf32>
      %51 = vector.shape_cast %50 : vector<1x1x512xf32> to vector<1x512xf32>
      %52 = vector.shape_cast %49 : vector<1x512xf32> to vector<1x1x512xf32>
      tpu.vector_store %arg8[%c0_35, %c0_36, %c0_37], %52 {strides = array<i32>} : memref<1x1x512xf32, #tpu.memory_space<vmem>>, vector<1x1x512xf32>,
    } else {
    }
    return
  }
  func.func @transform_0(%arg0: i32, %arg1: i32) -> (i32, i32) {
    %c1_i32 = arith.constant 1 : i32
    %0 = arith.muli %arg0, %c1_i32 : i32
    %1 = arith.addi %0, %arg1 : i32
    %c0_i32 = arith.constant 0 : i32
    %c0_i32_0 = arith.constant 0 : i32
    return %1, %c0_i32 : i32, i32
  }
  func.func @transform_1(%arg0: i32, %arg1: i32) -> (i32, i32) {
    %c0_i32 = arith.constant 0 : i32
    %c0_i32_0 = arith.constant 0 : i32
    %c0_i32_1 = arith.constant 0 : i32
    return %c0_i32, %c0_i32_0 : i32, i32
  }
  func.func @transform_2(%arg0: i32, %arg1: i32) -> (i32, i32) {
    %c0_i32 = arith.constant 0 : i32
    %c0_i32_0 = arith.constant 0 : i32
    %c0_i32_1 = arith.constant 0 : i32
    return %c0_i32, %c0_i32_0 : i32, i32
  }
  func.func @transform_3(%arg0: i32, %arg1: i32) -> (i32, i32) {
    %c1_i32 = arith.constant 1 : i32
    %0 = arith.muli %arg0, %c1_i32 : i32
    %1 = arith.addi %0, %arg1 : i32
    %c0_i32 = arith.constant 0 : i32
    %c0_i32_0 = arith.constant 0 : i32
    return %1, %c0_i32 : i32, i32
  }
  func.func @transform_4(%arg0: i32, %arg1: i32) -> (i32, i32, i32) {
    %c1_i32 = arith.constant 1 : i32
    %0 = arith.muli %arg0, %c1_i32 : i32
    %1 = arith.addi %0, %arg1 : i32
    %c0_i32 = arith.constant 0 : i32
    %c0_i32_0 = arith.constant 0 : i32
    %c0_i32_1 = arith.constant 0 : i32
    return %1, %c0_i32, %c0_i32_0 : i32, i32, i32
  }
  func.func @transform_5(%arg0: i32, %arg1: i32) -> (i32, i32, i32) {
    %c0_i32 = arith.constant 0 : i32
    %c0_i32_0 = arith.constant 0 : i32
    %c0_i32_1 = arith.constant 0 : i32
    return %arg0, %c0_i32, %c0_i32_0 : i32, i32, i32
  }
  func.func @transform_6(%arg0: i32, %arg1: i32) -> (i32, i32, i32) {
    %c0_i32 = arith.constant 0 : i32
    %c0_i32_0 = arith.constant 0 : i32
    %c0_i32_1 = arith.constant 0 : i32
    return %arg0, %c0_i32, %c0_i32_0 : i32, i32, i32
  }
}

</mosaic_0001>

<llo_original>
// kernel: _vq_forward.1
$region0: #{_vq_forward.1}
  #allocation0 [shape = 'u32[]', space=smem, size = 0x4, offset = 0x4, fixed_abs, tag = 'smem constant byte address 0x4 - core index']
  #allocation1 [shape = 'u32[72,128]{1,0:T(1,128)}', space=vmem, size = 0x9000, scoped, tag = 'internal scratch']
  #allocation2 [shape = 'f32[1,64]{1,0:T(1,128)}', space=vmem, size = 0x200, scoped, tag = 'scratch operand']
  #allocation3 [shape = 'f32[1,512]{1,0:T(1,128)}', space=vmem, size = 0x800, scoped, tag = 'scratch operand']
  %s0 = inlined_call_operand.vmem [shape: f32[512,64], index: 0, kind: input, shape index: {}]
  %s1 = inlined_call_operand.vmem [shape: f32[512,64], index: 1, kind: input, shape index: {}]
  %s2 = inlined_call_operand.vmem [shape: f32[1,512], index: 2, kind: input, shape index: {}]
  %s3 = inlined_call_operand.vmem [shape: f32[512,64], index: 3, kind: output, shape index: {0}]
  %s4 = inlined_call_operand.vmem [shape: s32[1,1,512], index: 4, kind: output, shape index: {1}]
  %s5 = inlined_call_operand.hbm [shape: f32[1,1,1], index: 5, kind: output, shape index: {2}]
  %s6 = inlined_call_operand.vmem [shape: f32[1,1,512], index: 6, kind: output, shape index: {3}]
  %7 = xla_tuple %s3, %s4, %s5, %s6
  %s8 = sld [smem:[#allocation0]]
  $region54: #{_vq_forward.1} parent=0
    _
  %s10 = ssub.s32 1, %s8
  %s11 = scalar_select 0, %s10, %s8
  $region1: #{_vq_forward.1} parent=0
    #allocation4 [shape = 'u8[512]{0}', space=vmem, size = 0x400, scoped, tag = 'output window, operand 2, single buffered']
    #allocation5 [shape = 's32[1]{0}', space=sflag, size = 0x4, scoped, tag = 'scoped memory for _vq_forward.1']
    %12 = vsyncpa [#allocation5], 0
    // Predicated region
    $region2: #{_vq_forward.1} parent=1 // pred_check
      _
    $region3: #{_vq_forward.1} parent=1 // pred_check_branch
      %14 = sbr.rel (0) target = $region5
    $region4: #{_vq_forward.1} parent=1 // pred_region
      %s15 = sadd.s32 0, 0
      %s16 = smul.u32 64, %s15
      %p17 = scmp.lt.s32.totalorder %s16, 63
      %s18 = scalar_select %p17, %s16, 63
      %s19 = smul.addr %s18, 8
      %s20 = scalar_lea.vmem %s0, %s19
      %s21 = sadd.s32 0, 0
      %s22 = smul.u32 64, %s21
    $region5: #{_vq_forward.1} parent=1 // pred_fallthru
      _
    // Predicated region
    $region6: #{_vq_forward.1} parent=1 // pred_check
      _
    $region7: #{_vq_forward.1} parent=1 // pred_check_branch
      %24 = sbr.rel (0) target = $region9
    $region8: #{_vq_forward.1} parent=1 // pred_region
      _
    $region9: #{_vq_forward.1} parent=1 // pred_fallthru
      _
    // Predicated region
    $region10: #{_vq_forward.1} parent=1 // pred_check
      _
    $region11: #{_vq_forward.1} parent=1 // pred_check_branch
      %26 = sbr.rel (0) target = $region13
    $region12: #{_vq_forward.1} parent=1 // pred_region
      _
    $region13: #{_vq_forward.1} parent=1 // pred_fallthru
      _
    %s27 = sadd.s32 0, 0
    %s28 = smul.u32 64, %s27
    %p29 = scmp.lt.s32.totalorder %s28, 63
    %s30 = scalar_select %p29, %s28, 63
    %s31 = smul.addr %s30, 8
    %s32 = scalar_lea.vmem %s0, %s31
    %s33 = sadd.s32 0, 0
    %s34 = smul.u32 64, %s33
    %p35 = scmp.lt.s32.totalorder %s34, 63
    %s36 = scalar_select %p35, %s34, 63
    %s37 = smul.addr %s36, 8
    %s38 = scalar_lea.vmem %s3, %s37
    %s39 = sadd.s32 0, 0
    %p40 = scmp.lt.s32.totalorder %s39, 0
    %s41 = scalar_select %p40, %s39, 0
    %s42 = smul.addr %s41, 4
    %s43 = scalar_lea.vmem %s4, %s42
    %s44 = sadd.s32 0, 0
    %s45 = smul.u32 64, %s44
    %p46 = scmp.lt.s32.totalorder %s45, 63
    %s47 = scalar_select %p46, %s45, 63
    %s48 = smul.addr %s47, 8
    %s49 = scalar_lea.vmem %s0, %s48
    %s50 = sadd.s32 0, 0
    %s51 = smul.u32 64, %s50
    %s52 = sadd.s32 0, 0
    %s53 = smul.u32 64, %s52
    %p54 = scmp.lt.s32.totalorder %s53, 63
    %s55 = scalar_select %p54, %s53, 63
    %s56 = smul.addr %s55, 8
    %s57 = scalar_lea.vmem %s3, %s56
    %s58 = sadd.s32 0, 0
    %s59 = smul.u32 64, %s58
    %s60 = sadd.s32 0, 0
    %p61 = scmp.lt.s32.totalorder %s60, 0
    %s62 = scalar_select %p61, %s60, 0
    %s63 = smul.addr %s62, 4
    %s64 = scalar_lea.vmem %s4, %s63
    %s65 = sadd.s32 0, 0
    %p66 = scmp.eq.s32.totalorder 0, 0
    // Predicated region
    $region14: #{_vq_forward.1} parent=1 // pred_check
      %p67 = pneg %p66
    $region15: #{_vq_forward.1} parent=1 // pred_check_branch
      %69 = sbr.rel (%p67) target = $region17
    $region16: #{_vq_forward.1} parent=1 // pred_region
      %vm70 = vcmask 516096
      %71 = vst.msk [vmem:[#allocation2] sm:$0x1] %vm70, 0.0
      %v72 = vlaneseq
      %vm73 = vcmp.ge.s32.totalorder %v72, 0
      %vm74 = vcmp.lt.s32.totalorder %v72, 512
      %vm75 = vmand %vm73, %vm74
      %76 = vst.msk [vmem:[#allocation3] sm:$0xf] %vm75, 0.0
    $region17: #{_vq_forward.1} parent=1 // pred_fallthru
      _
    %v77 = vld [vmem:[%s49] sm:$0xff]
    %v78 = vld [vmem:[%s49 + $0x8] sm:$0xff]
    %v79 = vld [vmem:[%s49 + $0x10] sm:$0xff]
    %v80 = vld [vmem:[%s49 + $0x18] sm:$0xff]
    %v81 = vld [vmem:[%s49 + $0x20] sm:$0xff]
    %v82 = vld [vmem:[%s49 + $0x28] sm:$0xff]
    %v83 = vld [vmem:[%s49 + $0x30] sm:$0xff]
    %v84 = vld [vmem:[%s49 + $0x38] sm:$0xff]
    %v85 = vld [vmem:[%s49 + $0x40] sm:$0xff]
    %v86 = vld [vmem:[%s49 + $0x48] sm:$0xff]
    %v87 = vld [vmem:[%s49 + $0x50] sm:$0xff]
    %v88 = vld [vmem:[%s49 + $0x58] sm:$0xff]
    %v89 = vld [vmem:[%s49 + $0x60] sm:$0xff]
    %v90 = vld [vmem:[%s49 + $0x68] sm:$0xff]
    %v91 = vld [vmem:[%s49 + $0x70] sm:$0xff]
    %v92 = vld [vmem:[%s49 + $0x78] sm:$0xff]
    %v93 = vld [vmem:[%s49 + $0x80] sm:$0xff]
    %v94 = vld [vmem:[%s49 + $0x88] sm:$0xff]
    %v95 = vld [vmem:[%s49 + $0x90] sm:$0xff]
    %v96 = vld [vmem:[%s49 + $0x98] sm:$0xff]
    %v97 = vld [vmem:[%s49 + $0xa0] sm:$0xff]
    %v98 = vld [vmem:[%s49 + $0xa8] sm:$0xff]
    %v99 = vld [vmem:[%s49 + $0xb0] sm:$0xff]
    %v100 = vld [vmem:[%s49 + $0xb8] sm:$0xff]
    %v101 = vld [vmem:[%s49 + $0xc0] sm:$0xff]
    %v102 = vld [vmem:[%s49 + $0xc8] sm:$0xff]
    %v103 = vld [vmem:[%s49 + $0xd0] sm:$0xff]
    %v104 = vld [vmem:[%s49 + $0xd8] sm:$0xff]
    %v105 = vld [vmem:[%s49 + $0xe0] sm:$0xff]
    %v106 = vld [vmem:[%s49 + $0xe8] sm:$0xff]
    %v107 = vld [vmem:[%s49 + $0xf0] sm:$0xff]
    %v108 = vld [vmem:[%s49 + $0xf8] sm:$0xff]
    %v109 = vld [vmem:[%s49 + $0x100] sm:$0xff]
    %v110 = vld [vmem:[%s49 + $0x108] sm:$0xff]
    %v111 = vld [vmem:[%s49 + $0x110] sm:$0xff]
    %v112 = vld [vmem:[%s49 + $0x118] sm:$0xff]
    %v113 = vld [vmem:[%s49 + $0x120] sm:$0xff]
    %v114 = vld [vmem:[%s49 + $0x128] sm:$0xff]
    %v115 = vld [vmem:[%s49 + $0x130] sm:$0xff]
    %v116 = vld [vmem:[%s49 + $0x138] sm:$0xff]
    %v117 = vld [vmem:[%s49 + $0x140] sm:$0xff]
    %v118 = vld [vmem:[%s49 + $0x148] sm:$0xff]
    %v119 = vld [vmem:[%s49 + $0x150] sm:$0xff]
    %v120 = vld [vmem:[%s49 + $0x158] sm:$0xff]
    %v121 = vld [vmem:[%s49 + $0x160] sm:$0xff]
    %v122 = vld [vmem:[%s49 + $0x168] sm:$0xff]
    %v123 = vld [vmem:[%s49 + $0x170] sm:$0xff]
    %v124 = vld [vmem:[%s49 + $0x178] sm:$0xff]
    %v125 = vld [vmem:[%s49 + $0x180] sm:$0xff]
    %v126 = vld [vmem:[%s49 + $0x188] sm:$0xff]
    %v127 = vld [vmem:[%s49 + $0x190] sm:$0xff]
    %v128 = vld [vmem:[%s49 + $0x198] sm:$0xff]
    %v129 = vld [vmem:[%s49 + $0x1a0] sm:$0xff]
    %v130 = vld [vmem:[%s49 + $0x1a8] sm:$0xff]
    %v131 = vld [vmem:[%s49 + $0x1b0] sm:$0xff]
    %v132 = vld [vmem:[%s49 + $0x1b8] sm:$0xff]
    %v133 = vld [vmem:[%s49 + $0x1c0] sm:$0xff]
    %v134 = vld [vmem:[%s49 + $0x1c8] sm:$0xff]
    %v135 = vld [vmem:[%s49 + $0x1d0] sm:$0xff]
    %v136 = vld [vmem:[%s49 + $0x1d8] sm:$0xff]
    %v137 = vld [vmem:[%s49 + $0x1e0] sm:$0xff]
    %v138 = vld [vmem:[%s49 + $0x1e8] sm:$0xff]
    %v139 = vld [vmem:[%s49 + $0x1f0] sm:$0xff]
    %v140 = vld [vmem:[%s49 + $0x1f8] sm:$0xff]
    %v141 = vld [vmem:[%s1] sm:$0xff]
    %v142 = vld [vmem:[%s1 + $0x8] sm:$0xff]
    %v143 = vld [vmem:[%s1 + $0x10] sm:$0xff]
    %v144 = vld [vmem:[%s1 + $0x18] sm:$0xff]
    %v145 = vld [vmem:[%s1 + $0x20] sm:$0xff]
    %v146 = vld [vmem:[%s1 + $0x28] sm:$0xff]
    %v147 = vld [vmem:[%s1 + $0x30] sm:$0xff]
    %v148 = vld [vmem:[%s1 + $0x38] sm:$0xff]
    %v149 = vld [vmem:[%s1 + $0x40] sm:$0xff]
    %v150 = vld [vmem:[%s1 + $0x48] sm:$0xff]
    %v151 = vld [vmem:[%s1 + $0x50] sm:$0xff]
    %v152 = vld [vmem:[%s1 + $0x58] sm:$0xff]
    %v153 = vld [vmem:[%s1 + $0x60] sm:$0xff]
    %v154 = vld [vmem:[%s1 + $0x68] sm:$0xff]
    %v155 = vld [vmem:[%s1 + $0x70] sm:$0xff]
    %v156 = vld [vmem:[%s1 + $0x78] sm:$0xff]
    %v157 = vld [vmem:[%s1 + $0x80] sm:$0xff]
    %v158 = vld [vmem:[%s1 + $0x88] sm:$0xff]
    %v159 = vld [vmem:[%s1 + $0x90] sm:$0xff]
    %v160 = vld [vmem:[%s1 + $0x98] sm:$0xff]
    %v161 = vld [vmem:[%s1 + $0xa0] sm:$0xff]
    %v162 = vld [vmem:[%s1 + $0xa8] sm:$0xff]
    %v163 = vld [vmem:[%s1 + $0xb0] sm:$0xff]
    %v164 = vld [vmem:[%s1 + $0xb8] sm:$0xff]
    %v165 = vld [vmem:[%s1 + $0xc0] sm:$0xff]
    %v166 = vld [vmem:[%s1 + $0xc8] sm:$0xff]
    %v167 = vld [vmem:[%s1 + $0xd0] sm:$0xff]
    %v168 = vld [vmem:[%s1 + $0xd8] sm:$0xff]
    %v169 = vld [vmem:[%s1 + $0xe0] sm:$0xff]
    %v170 = vld [vmem:[%s1 + $0xe8] sm:$0xff]
    %v171 = vld [vmem:[%s1 + $0xf0] sm:$0xff]
    %v172 = vld [vmem:[%s1 + $0xf8] sm:$0xff]
    %v173 = vld [vmem:[%s1 + $0x100] sm:$0xff]
    %v174 = vld [vmem:[%s1 + $0x108] sm:$0xff]
    %v175 = vld [vmem:[%s1 + $0x110] sm:$0xff]
    %v176 = vld [vmem:[%s1 + $0x118] sm:$0xff]
    %v177 = vld [vmem:[%s1 + $0x120] sm:$0xff]
    %v178 = vld [vmem:[%s1 + $0x128] sm:$0xff]
    %v179 = vld [vmem:[%s1 + $0x130] sm:$0xff]
    %v180 = vld [vmem:[%s1 + $0x138] sm:$0xff]
    %v181 = vld [vmem:[%s1 + $0x140] sm:$0xff]
    %v182 = vld [vmem:[%s1 + $0x148] sm:$0xff]
    %v183 = vld [vmem:[%s1 + $0x150] sm:$0xff]
    %v184 = vld [vmem:[%s1 + $0x158] sm:$0xff]
    %v185 = vld [vmem:[%s1 + $0x160] sm:$0xff]
    %v186 = vld [vmem:[%s1 + $0x168] sm:$0xff]
    %v187 = vld [vmem:[%s1 + $0x170] sm:$0xff]
    %v188 = vld [vmem:[%s1 + $0x178] sm:$0xff]
    %v189 = vld [vmem:[%s1 + $0x180] sm:$0xff]
    %v190 = vld [vmem:[%s1 + $0x188] sm:$0xff]
    %v191 = vld [vmem:[%s1 + $0x190] sm:$0xff]
    %v192 = vld [vmem:[%s1 + $0x198] sm:$0xff]
    %v193 = vld [vmem:[%s1 + $0x1a0] sm:$0xff]
    %v194 = vld [vmem:[%s1 + $0x1a8] sm:$0xff]
    %v195 = vld [vmem:[%s1 + $0x1b0] sm:$0xff]
    %v196 = vld [vmem:[%s1 + $0x1b8] sm:$0xff]
    %v197 = vld [vmem:[%s1 + $0x1c0] sm:$0xff]
    %v198 = vld [vmem:[%s1 + $0x1c8] sm:$0xff]
    %v199 = vld [vmem:[%s1 + $0x1d0] sm:$0xff]
    %v200 = vld [vmem:[%s1 + $0x1d8] sm:$0xff]
    %v201 = vld [vmem:[%s1 + $0x1e0] sm:$0xff]
    %v202 = vld [vmem:[%s1 + $0x1e8] sm:$0xff]
    %v203 = vld [vmem:[%s1 + $0x1f0] sm:$0xff]
    %v204 = vld [vmem:[%s1 + $0x1f8] sm:$0xff]
    %vm205 = vcmask 523264
    %v207 = vsel %vm205, %v77, 0
    %v210 = vsel %vm205, %v78, 0
    %v213 = vsel %vm205, %v79, 0
    %v216 = vsel %vm205, %v80, 0
    %v219 = vsel %vm205, %v81, 0
    %v222 = vsel %vm205, %v82, 0
    %v225 = vsel %vm205, %v83, 0
    %v228 = vsel %vm205, %v84, 0
    %v231 = vsel %vm205, %v85, 0
    %v234 = vsel %vm205, %v86, 0
    %v237 = vsel %vm205, %v87, 0
    %v240 = vsel %vm205, %v88, 0
    %v243 = vsel %vm205, %v89, 0
    %v246 = vsel %vm205, %v90, 0
    %v249 = vsel %vm205, %v91, 0
    %v252 = vsel %vm205, %v92, 0
    %v255 = vsel %vm205, %v93, 0
    %v258 = vsel %vm205, %v94, 0
    %v261 = vsel %vm205, %v95, 0
    %v264 = vsel %vm205, %v96, 0
    %v267 = vsel %vm205, %v97, 0
    %v270 = vsel %vm205, %v98, 0
    %v273 = vsel %vm205, %v99, 0
    %v276 = vsel %vm205, %v100, 0
    %v279 = vsel %vm205, %v101, 0
    %v282 = vsel %vm205, %v102, 0
    %v285 = vsel %vm205, %v103, 0
    %v288 = vsel %vm205, %v104, 0
    %v291 = vsel %vm205, %v105, 0
    %v294 = vsel %vm205, %v106, 0
    %v297 = vsel %vm205, %v107, 0
    %v300 = vsel %vm205, %v108, 0
    %v303 = vsel %vm205, %v109, 0
    %v306 = vsel %vm205, %v110, 0
    %v309 = vsel %vm205, %v111, 0
    %v312 = vsel %vm205, %v112, 0
    %v315 = vsel %vm205, %v113, 0
    %v318 = vsel %vm205, %v114, 0
    %v321 = vsel %vm205, %v115, 0
    %v324 = vsel %vm205, %v116, 0
    %v327 = vsel %vm205, %v117, 0
    %v330 = vsel %vm205, %v118, 0
    %v333 = vsel %vm205, %v119, 0
    %v336 = vsel %vm205, %v120, 0
    %v339 = vsel %vm205, %v121, 0
    %v342 = vsel %vm205, %v122, 0
    %v345 = vsel %vm205, %v123, 0
    %v348 = vsel %vm205, %v124, 0
    %v351 = vsel %vm205, %v125, 0
    %v354 = vsel %vm205, %v126, 0
    %v357 = vsel %vm205, %v127, 0
    %v360 = vsel %vm205, %v128, 0
    %v363 = vsel %vm205, %v129, 0
    %v366 = vsel %vm205, %v130, 0
    %v369 = vsel %vm205, %v131, 0
    %v372 = vsel %vm205, %v132, 0
    %v375 = vsel %vm205, %v133, 0
    %v378 = vsel %vm205, %v134, 0
    %v381 = vsel %vm205, %v135, 0
    %v384 = vsel %vm205, %v136, 0
    %v387 = vsel %vm205, %v137, 0
    %v390 = vsel %vm205, %v138, 0
    %v393 = vsel %vm205, %v139, 0
    %v396 = vsel %vm205, %v140, 0
    %v399 = vsel %vm205, %v141, 0
    %v402 = vsel %vm205, %v142, 0
    %v405 = vsel %vm205, %v143, 0
    %v408 = vsel %vm205, %v144, 0
    %v411 = vsel %vm205, %v145, 0
    %v414 = vsel %vm205, %v146, 0
    %v417 = vsel %vm205, %v147, 0
    %v420 = vsel %vm205, %v148, 0
    %v423 = vsel %vm205, %v149, 0
    %v426 = vsel %vm205, %v150, 0
    %v429 = vsel %vm205, %v151, 0
    %v432 = vsel %vm205, %v152, 0
    %v435 = vsel %vm205, %v153, 0
    %v438 = vsel %vm205, %v154, 0
    %v441 = vsel %vm205, %v155, 0
    %v444 = vsel %vm205, %v156, 0
    %v447 = vsel %vm205, %v157, 0
    %v450 = vsel %vm205, %v158, 0
    %v453 = vsel %vm205, %v159, 0
    %v456 = vsel %vm205, %v160, 0
    %v459 = vsel %vm205, %v161, 0
    %v462 = vsel %vm205, %v162, 0
    %v465 = vsel %vm205, %v163, 0
    %v468 = vsel %vm205, %v164, 0
    %v471 = vsel %vm205, %v165, 0
    %v474 = vsel %vm205, %v166, 0
    %v477 = vsel %vm205, %v167, 0
    %v480 = vsel %vm205, %v168, 0
    %v483 = vsel %vm205, %v169, 0
    %v486 = vsel %vm205, %v170, 0
    %v489 = vsel %vm205, %v171, 0
    %v492 = vsel %vm205, %v172, 0
    %v495 = vsel %vm205, %v173, 0
    %v498 = vsel %vm205, %v174, 0
    %v501 = vsel %vm205, %v175, 0
    %v504 = vsel %vm205, %v176, 0
    %v507 = vsel %vm205, %v177, 0
    %v510 = vsel %vm205, %v178, 0
    %v513 = vsel %vm205, %v179, 0
    %v516 = vsel %vm205, %v180, 0
    %v519 = vsel %vm205, %v181, 0
    %v522 = vsel %vm205, %v182, 0
    %v525 = vsel %vm205, %v183, 0
    %v528 = vsel %vm205, %v184, 0
    %v531 = vsel %vm205, %v185, 0
    %v534 = vsel %vm205, %v186, 0
    %v537 = vsel %vm205, %v187, 0
    %v540 = vsel %vm205, %v188, 0
    %v543 = vsel %vm205, %v189, 0
    %v546 = vsel %vm205, %v190, 0
    %v549 = vsel %vm205, %v191, 0
    %v552 = vsel %vm205, %v192, 0
    %v555 = vsel %vm205, %v193, 0
    %v558 = vsel %vm205, %v194, 0
    %v561 = vsel %vm205, %v195, 0
    %v564 = vsel %vm205, %v196, 0
    %v567 = vsel %vm205, %v197, 0
    %v570 = vsel %vm205, %v198, 0
    %v573 = vsel %vm205, %v199, 0
    %v576 = vsel %vm205, %v200, 0
    %v579 = vsel %vm205, %v201, 0
    %v582 = vsel %vm205, %v202, 0
    %v585 = vsel %vm205, %v203, 0
    %v588 = vsel %vm205, %v204, 0
    %590 = vmatpush.xpose.msra.mxu0 %v444
    %591 = vmatpush.xpose.msra.mxu0 %v441
    %592 = vmatpush.xpose.msra.mxu0 %v438
    %593 = vmatpush.xpose.msra.mxu0 %v435
    %594 = vmatpush.xpose.msra.mxu0 %v432
    %595 = vmatpush.xpose.msra.mxu0 %v429
    %596 = vmatpush.xpose.msra.mxu0 %v426
    %597 = vmatpush.xpose.msra.mxu0 %v423
    %598 = vmatpush.xpose.msra.mxu0 %v420
    %599 = vmatpush.xpose.msra.mxu0 %v417
    %600 = vmatpush.xpose.msra.mxu0 %v414
    %601 = vmatpush.xpose.msra.mxu0 %v411
    %602 = vmatpush.xpose.msra.mxu0 %v408
    %603 = vmatpush.xpose.msra.mxu0 %v405
    %604 = vmatpush.xpose.msra.mxu0 %v402
    %605 = vmatpush.xpose.msra.mxu0 %v399
    %606 = vmatmul.f32.gmra.mxu0 %v207
    %v607 = vpop.f32.mrf.mxu0
    %v608 = vadd.f32 0.0, %v607
    %609 = vmatmul.f32.gmra.mxu0 %v210
    %v610 = vpop.f32.mrf.mxu0
    %v611 = vadd.f32 0.0, %v610
    %612 = vmatmul.f32.gmra.mxu0 %v213
    %v613 = vpop.f32.mrf.mxu0
    %v614 = vadd.f32 0.0, %v613
    %615 = vmatmul.f32.gmra.mxu0 %v216
    %v616 = vpop.f32.mrf.mxu0
    %v617 = vadd.f32 0.0, %v616
    %618 = vmatmul.f32.gmra.mxu0 %v219
    %v619 = vpop.f32.mrf.mxu0
    %v620 = vadd.f32 0.0, %v619
    %621 = vmatmul.f32.gmra.mxu0 %v222
    %v622 = vpop.f32.mrf.mxu0
    %v623 = vadd.f32 0.0, %v622
    %624 = vmatmul.f32.gmra.mxu0 %v225
    %v625 = vpop.f32.mrf.mxu0
    %v626 = vadd.f32 0.0, %v625
    %627 = vmatmul.f32.gmra.mxu0 %v228
    %v628 = vpop.f32.mrf.mxu0
    %v629 = vadd.f32 0.0, %v628
    %630 = vmatmul.f32.gmra.mxu0 %v231
    %v631 = vpop.f32.mrf.mxu0
    %v632 = vadd.f32 0.0, %v631
    %633 = vmatmul.f32.gmra.mxu0 %v234
    %v634 = vpop.f32.mrf.mxu0
    %v635 = vadd.f32 0.0, %v634
    %636 = vmatmul.f32.gmra.mxu0 %v237
    %v637 = vpop.f32.mrf.mxu0
    %v638 = vadd.f32 0.0, %v637
    %639 = vmatmul.f32.gmra.mxu0 %v240
    %v640 = vpop.f32.mrf.mxu0
    %v641 = vadd.f32 0.0, %v640
    %642 = vmatmul.f32.gmra.mxu0 %v243
    %v643 = vpop.f32.mrf.mxu0
    %v644 = vadd.f32 0.0, %v643
    %645 = vmatmul.f32.gmra.mxu0 %v246
    %v646 = vpop.f32.mrf.mxu0
    %v647 = vadd.f32 0.0, %v646
    %648 = vmatmul.f32.gmra.mxu0 %v249
    %v649 = vpop.f32.mrf.mxu0
    %v650 = vadd.f32 0.0, %v649
    %651 = vmatmul.f32.gmra.mxu0 %v252
    %v652 = vpop.f32.mrf.mxu0
    %v653 = vadd.f32 0.0, %v652
    %654 = vmatmul.f32.gmra.mxu0 %v255
    %v655 = vpop.f32.mrf.mxu0
    %v656 = vadd.f32 0.0, %v655
    %657 = vmatmul.f32.gmra.mxu0 %v258
    %v658 = vpop.f32.mrf.mxu0
    %v659 = vadd.f32 0.0, %v658
    %660 = vmatmul.f32.gmra.mxu0 %v261
    %v661 = vpop.f32.mrf.mxu0
    %v662 = vadd.f32 0.0, %v661
    %663 = vmatmul.f32.gmra.mxu0 %v264
    %v664 = vpop.f32.mrf.mxu0
    %v665 = vadd.f32 0.0, %v664
    %666 = vmatmul.f32.gmra.mxu0 %v267
    %v667 = vpop.f32.mrf.mxu0
    %v668 = vadd.f32 0.0, %v667
    %669 = vmatmul.f32.gmra.mxu0 %v270
    %v670 = vpop.f32.mrf.mxu0
    %v671 = vadd.f32 0.0, %v670
    %672 = vmatmul.f32.gmra.mxu0 %v273
    %v673 = vpop.f32.mrf.mxu0
    %v674 = vadd.f32 0.0, %v673
    %675 = vmatmul.f32.gmra.mxu0 %v276
    %v676 = vpop.f32.mrf.mxu0
    %v677 = vadd.f32 0.0, %v676
    %678 = vmatmul.f32.gmra.mxu0 %v279
    %v679 = vpop.f32.mrf.mxu0
    %v680 = vadd.f32 0.0, %v679
    %681 = vmatmul.f32.gmra.mxu0 %v282
    %v682 = vpop.f32.mrf.mxu0
    %v683 = vadd.f32 0.0, %v682
    %684 = vmatmul.f32.gmra.mxu0 %v285
    %v685 = vpop.f32.mrf.mxu0
    %v686 = vadd.f32 0.0, %v685
    %687 = vmatmul.f32.gmra.mxu0 %v288
    %v688 = vpop.f32.mrf.mxu0
    %v689 = vadd.f32 0.0, %v688
    %690 = vmatmul.f32.gmra.mxu0 %v291
    %v691 = vpop.f32.mrf.mxu0
    %v692 = vadd.f32 0.0, %v691
    %693 = vmatmul.f32.gmra.mxu0 %v294
    %v694 = vpop.f32.mrf.mxu0
    %v695 = vadd.f32 0.0, %v694
    %696 = vmatmul.f32.gmra.mxu0 %v297
    %v697 = vpop.f32.mrf.mxu0
    %v698 = vadd.f32 0.0, %v697
    %699 = vmatmul.f32.gmra.mxu0 %v300
    %v700 = vpop.f32.mrf.mxu0
    %v701 = vadd.f32 0.0, %v700
    %702 = vmatmul.f32.gmra.mxu0 %v303
    %v703 = vpop.f32.mrf.mxu0
    %v704 = vadd.f32 0.0, %v703
    %705 = vmatmul.f32.gmra.mxu0 %v306
    %v706 = vpop.f32.mrf.mxu0
    %v707 = vadd.f32 0.0, %v706
    %708 = vmatmul.f32.gmra.mxu0 %v309
    %v709 = vpop.f32.mrf.mxu0
    %v710 = vadd.f32 0.0, %v709
    %711 = vmatmul.f32.gmra.mxu0 %v312
    %v712 = vpop.f32.mrf.mxu0
    %v713 = vadd.f32 0.0, %v712
    %714 = vmatmul.f32.gmra.mxu0 %v315
    %v715 = vpop.f32.mrf.mxu0
    %v716 = vadd.f32 0.0, %v715
    %717 = vmatmul.f32.gmra.mxu0 %v318
    %v718 = vpop.f32.mrf.mxu0
    %v719 = vadd.f32 0.0, %v718
    %720 = vmatmul.f32.gmra.mxu0 %v321
    %v721 = vpop.f32.mrf.mxu0
    %v722 = vadd.f32 0.0, %v721
    %723 = vmatmul.f32.gmra.mxu0 %v324
    %v724 = vpop.f32.mrf.mxu0
    %v725 = vadd.f32 0.0, %v724
    %726 = vmatmul.f32.gmra.mxu0 %v327
    %v727 = vpop.f32.mrf.mxu0
    %v728 = vadd.f32 0.0, %v727
    %729 = vmatmul.f32.gmra.mxu0 %v330
    %v730 = vpop.f32.mrf.mxu0
    %v731 = vadd.f32 0.0, %v730
    %732 = vmatmul.f32.gmra.mxu0 %v333
    %v733 = vpop.f32.mrf.mxu0
    %v734 = vadd.f32 0.0, %v733
    %735 = vmatmul.f32.gmra.mxu0 %v336
    %v736 = vpop.f32.mrf.mxu0
    %v737 = vadd.f32 0.0, %v736
    %738 = vmatmul.f32.gmra.mxu0 %v339
    %v739 = vpop.f32.mrf.mxu0
    %v740 = vadd.f32 0.0, %v739
    %741 = vmatmul.f32.gmra.mxu0 %v342
    %v742 = vpop.f32.mrf.mxu0
    %v743 = vadd.f32 0.0, %v742
    %744 = vmatmul.f32.gmra.mxu0 %v345
    %v745 = vpop.f32.mrf.mxu0
    %v746 = vadd.f32 0.0, %v745
    %747 = vmatmul.f32.gmra.mxu0 %v348
    %v748 = vpop.f32.mrf.mxu0
    %v749 = vadd.f32 0.0, %v748
    %750 = vmatmul.f32.gmra.mxu0 %v351
    %v751 = vpop.f32.mrf.mxu0
    %v752 = vadd.f32 0.0, %v751
    %753 = vmatmul.f32.gmra.mxu0 %v354
    %v754 = vpop.f32.mrf.mxu0
    %v755 = vadd.f32 0.0, %v754
    %756 = vmatmul.f32.gmra.mxu0 %v357
    %v757 = vpop.f32.mrf.mxu0
    %v758 = vadd.f32 0.0, %v757
    %759 = vmatmul.f32.gmra.mxu0 %v360
    %v760 = vpop.f32.mrf.mxu0
    %v761 = vadd.f32 0.0, %v760
    %762 = vmatmul.f32.gmra.mxu0 %v363
    %v763 = vpop.f32.mrf.mxu0
    %v764 = vadd.f32 0.0, %v763
    %765 = vmatmul.f32.gmra.mxu0 %v366
    %v766 = vpop.f32.mrf.mxu0
    %v767 = vadd.f32 0.0, %v766
    %768 = vmatmul.f32.gmra.mxu0 %v369
    %v769 = vpop.f32.mrf.mxu0
    %v770 = vadd.f32 0.0, %v769
    %771 = vmatmul.f32.gmra.mxu0 %v372
    %v772 = vpop.f32.mrf.mxu0
    %v773 = vadd.f32 0.0, %v772
    %774 = vmatmul.f32.gmra.mxu0 %v375
    %v775 = vpop.f32.mrf.mxu0
    %v776 = vadd.f32 0.0, %v775
    %777 = vmatmul.f32.gmra.mxu0 %v378
    %v778 = vpop.f32.mrf.mxu0
    %v779 = vadd.f32 0.0, %v778
    %780 = vmatmul.f32.gmra.mxu0 %v381
    %v781 = vpop.f32.mrf.mxu0
    %v782 = vadd.f32 0.0, %v781
    %783 = vmatmul.f32.gmra.mxu0 %v384
    %v784 = vpop.f32.mrf.mxu0
    %v785 = vadd.f32 0.0, %v784
    %786 = vmatmul.f32.gmra.mxu0 %v387
    %v787 = vpop.f32.mrf.mxu0
    %v788 = vadd.f32 0.0, %v787
    %789 = vmatmul.f32.gmra.mxu0 %v390
    %v790 = vpop.f32.mrf.mxu0
    %v791 = vadd.f32 0.0, %v790
    %792 = vmatmul.f32.gmra.mxu0 %v393
    %v793 = vpop.f32.mrf.mxu0
    %v794 = vadd.f32 0.0, %v793
    %795 = vmatmul.f32.gmra.mxu0 %v396
    %v796 = vpop.f32.mrf.mxu0
    %v797 = vadd.f32 0.0, %v796
    %798 = vdwg.mxu0
    %799 = vmatpush.xpose.msra.mxu0 %v492
    %800 = vmatpush.xpose.msra.mxu0 %v489
    %801 = vmatpush.xpose.msra.mxu0 %v486
    %802 = vmatpush.xpose.msra.mxu0 %v483
    %803 = vmatpush.xpose.msra.mxu0 %v480
    %804 = vmatpush.xpose.msra.mxu0 %v477
    %805 = vmatpush.xpose.msra.mxu0 %v474
    %806 = vmatpush.xpose.msra.mxu0 %v471
    %807 = vmatpush.xpose.msra.mxu0 %v468
    %808 = vmatpush.xpose.msra.mxu0 %v465
    %809 = vmatpush.xpose.msra.mxu0 %v462
    %810 = vmatpush.xpose.msra.mxu0 %v459
    %811 = vmatpush.xpose.msra.mxu0 %v456
    %812 = vmatpush.xpose.msra.mxu0 %v453
    %813 = vmatpush.xpose.msra.mxu0 %v450
    %814 = vmatpush.xpose.msra.mxu0 %v447
    %815 = vmatmul.f32.gmra.mxu0 %v207
    %v816 = vpop.f32.mrf.mxu0
    %v817 = vadd.f32 0.0, %v816
    %818 = vmatmul.f32.gmra.mxu0 %v210
    %v819 = vpop.f32.mrf.mxu0
    %v820 = vadd.f32 0.0, %v819
    %821 = vmatmul.f32.gmra.mxu0 %v213
    %v822 = vpop.f32.mrf.mxu0
    %v823 = vadd.f32 0.0, %v822
    %824 = vmatmul.f32.gmra.mxu0 %v216
    %v825 = vpop.f32.mrf.mxu0
    %v826 = vadd.f32 0.0, %v825
    %827 = vmatmul.f32.gmra.mxu0 %v219
    %v828 = vpop.f32.mrf.mxu0
    %v829 = vadd.f32 0.0, %v828
    %830 = vmatmul.f32.gmra.mxu0 %v222
    %v831 = vpop.f32.mrf.mxu0
    %v832 = vadd.f32 0.0, %v831
    %833 = vmatmul.f32.gmra.mxu0 %v225
    %v834 = vpop.f32.mrf.mxu0
    %v835 = vadd.f32 0.0, %v834
    %836 = vmatmul.f32.gmra.mxu0 %v228
    %v837 = vpop.f32.mrf.mxu0
    %v838 = vadd.f32 0.0, %v837
    %839 = vmatmul.f32.gmra.mxu0 %v231
    %v840 = vpop.f32.mrf.mxu0
    %v841 = vadd.f32 0.0, %v840
    %842 = vmatmul.f32.gmra.mxu0 %v234
    %v843 = vpop.f32.mrf.mxu0
    %v844 = vadd.f32 0.0, %v843
    %845 = vmatmul.f32.gmra.mxu0 %v237
    %v846 = vpop.f32.mrf.mxu0
    %v847 = vadd.f32 0.0, %v846
    %848 = vmatmul.f32.gmra.mxu0 %v240
    %v849 = vpop.f32.mrf.mxu0
    %v850 = vadd.f32 0.0, %v849
    %851 = vmatmul.f32.gmra.mxu0 %v243
    %v852 = vpop.f32.mrf.mxu0
    %v853 = vadd.f32 0.0, %v852
    %854 = vmatmul.f32.gmra.mxu0 %v246
    %v855 = vpop.f32.mrf.mxu0
    %v856 = vadd.f32 0.0, %v855
    %857 = vmatmul.f32.gmra.mxu0 %v249
    %v858 = vpop.f32.mrf.mxu0
    %v859 = vadd.f32 0.0, %v858
    %860 = vmatmul.f32.gmra.mxu0 %v252
    %v861 = vpop.f32.mrf.mxu0
    %v862 = vadd.f32 0.0, %v861
    %863 = vmatmul.f32.gmra.mxu0 %v255
    %v864 = vpop.f32.mrf.mxu0
    %v865 = vadd.f32 0.0, %v864
    %866 = vmatmul.f32.gmra.mxu0 %v258
    %v867 = vpop.f32.mrf.mxu0
    %v868 = vadd.f32 0.0, %v867
    %869 = vmatmul.f32.gmra.mxu0 %v261
    %v870 = vpop.f32.mrf.mxu0
    %v871 = vadd.f32 0.0, %v870
    %872 = vmatmul.f32.gmra.mxu0 %v264
    %v873 = vpop.f32.mrf.mxu0
    %v874 = vadd.f32 0.0, %v873
    %875 = vmatmul.f32.gmra.mxu0 %v267
    %v876 = vpop.f32.mrf.mxu0
    %v877 = vadd.f32 0.0, %v876
    %878 = vmatmul.f32.gmra.mxu0 %v270
    %v879 = vpop.f32.mrf.mxu0
    %v880 = vadd.f32 0.0, %v879
    %881 = vmatmul.f32.gmra.mxu0 %v273
    %v882 = vpop.f32.mrf.mxu0
    %v883 = vadd.f32 0.0, %v882
    %884 = vmatmul.f32.gmra.mxu0 %v276
    %v885 = vpop.f32.mrf.mxu0
    %v886 = vadd.f32 0.0, %v885
    %887 = vmatmul.f32.gmra.mxu0 %v279
    %v888 = vpop.f32.mrf.mxu0
    %v889 = vadd.f32 0.0, %v888
    %890 = vmatmul.f32.gmra.mxu0 %v282
    %v891 = vpop.f32.mrf.mxu0
    %v892 = vadd.f32 0.0, %v891
    %893 = vmatmul.f32.gmra.mxu0 %v285
    %v894 = vpop.f32.mrf.mxu0
    %v895 = vadd.f32 0.0, %v894
    %896 = vmatmul.f32.gmra.mxu0 %v288
    %v897 = vpop.f32.mrf.mxu0
    %v898 = vadd.f32 0.0, %v897
    %899 = vmatmul.f32.gmra.mxu0 %v291
    %v900 = vpop.f32.mrf.mxu0
    %v901 = vadd.f32 0.0, %v900
    %902 = vmatmul.f32.gmra.mxu0 %v294
    %v903 = vpop.f32.mrf.mxu0
    %v904 = vadd.f32 0.0, %v903
    %905 = vmatmul.f32.gmra.mxu0 %v297
    %v906 = vpop.f32.mrf.mxu0
    %v907 = vadd.f32 0.0, %v906
    %908 = vmatmul.f32.gmra.mxu0 %v300
    %v909 = vpop.f32.mrf.mxu0
    %v910 = vadd.f32 0.0, %v909
    %911 = vmatmul.f32.gmra.mxu0 %v303
    %v912 = vpop.f32.mrf.mxu0
    %v913 = vadd.f32 0.0, %v912
    %914 = vmatmul.f32.gmra.mxu0 %v306
    %v915 = vpop.f32.mrf.mxu0
    %v916 = vadd.f32 0.0, %v915
    %917 = vmatmul.f32.gmra.mxu0 %v309
    %v918 = vpop.f32.mrf.mxu0
    %v919 = vadd.f32 0.0, %v918
    %920 = vmatmul.f32.gmra.mxu0 %v312
    %v921 = vpop.f32.mrf.mxu0
    %v922 = vadd.f32 0.0, %v921
    %923 = vmatmul.f32.gmra.mxu0 %v315
    %v924 = vpop.f32.mrf.mxu0
    %v925 = vadd.f32 0.0, %v924
    %926 = vmatmul.f32.gmra.mxu0 %v318
    %v927 = vpop.f32.mrf.mxu0
    %v928 = vadd.f32 0.0, %v927
    %929 = vmatmul.f32.gmra.mxu0 %v321
    %v930 = vpop.f32.mrf.mxu0
    %v931 = vadd.f32 0.0, %v930
    %932 = vmatmul.f32.gmra.mxu0 %v324
    %v933 = vpop.f32.mrf.mxu0
    %v934 = vadd.f32 0.0, %v933
    %935 = vmatmul.f32.gmra.mxu0 %v327
    %v936 = vpop.f32.mrf.mxu0
    %v937 = vadd.f32 0.0, %v936
    %938 = vmatmul.f32.gmra.mxu0 %v330
    %v939 = vpop.f32.mrf.mxu0
    %v940 = vadd.f32 0.0, %v939
    %941 = vmatmul.f32.gmra.mxu0 %v333
    %v942 = vpop.f32.mrf.mxu0
    %v943 = vadd.f32 0.0, %v942
    %944 = vmatmul.f32.gmra.mxu0 %v336
    %v945 = vpop.f32.mrf.mxu0
    %v946 = vadd.f32 0.0, %v945
    %947 = vmatmul.f32.gmra.mxu0 %v339
    %v948 = vpop.f32.mrf.mxu0
    %v949 = vadd.f32 0.0, %v948
    %950 = vmatmul.f32.gmra.mxu0 %v342
    %v951 = vpop.f32.mrf.mxu0
    %v952 = vadd.f32 0.0, %v951
    %953 = vmatmul.f32.gmra.mxu0 %v345
    %v954 = vpop.f32.mrf.mxu0
    %v955 = vadd.f32 0.0, %v954
    %956 = vmatmul.f32.gmra.mxu0 %v348
    %v957 = vpop.f32.mrf.mxu0
    %v958 = vadd.f32 0.0, %v957
    %959 = vmatmul.f32.gmra.mxu0 %v351
    %v960 = vpop.f32.mrf.mxu0
    %v961 = vadd.f32 0.0, %v960
    %962 = vmatmul.f32.gmra.mxu0 %v354
    %v963 = vpop.f32.mrf.mxu0
    %v964 = vadd.f32 0.0, %v963
    %965 = vmatmul.f32.gmra.mxu0 %v357
    %v966 = vpop.f32.mrf.mxu0
    %v967 = vadd.f32 0.0, %v966
    %968 = vmatmul.f32.gmra.mxu0 %v360
    %v969 = vpop.f32.mrf.mxu0
    %v970 = vadd.f32 0.0, %v969
    %971 = vmatmul.f32.gmra.mxu0 %v363
    %v972 = vpop.f32.mrf.mxu0
    %v973 = vadd.f32 0.0, %v972
    %974 = vmatmul.f32.gmra.mxu0 %v366
    %v975 = vpop.f32.mrf.mxu0
    %v976 = vadd.f32 0.0, %v975
    %977 = vmatmul.f32.gmra.mxu0 %v369
    %v978 = vpop.f32.mrf.mxu0
    %v979 = vadd.f32 0.0, %v978
    %980 = vmatmul.f32.gmra.mxu0 %v372
    %v981 = vpop.f32.mrf.mxu0
    %v982 = vadd.f32 0.0, %v981
    %983 = vmatmul.f32.gmra.mxu0 %v375
    %v984 = vpop.f32.mrf.mxu0
    %v985 = vadd.f32 0.0, %v984
    %986 = vmatmul.f32.gmra.mxu0 %v378
    %v987 = vpop.f32.mrf.mxu0
    %v988 = vadd.f32 0.0, %v987
    %989 = vmatmul.f32.gmra.mxu0 %v381
    %v990 = vpop.f32.mrf.mxu0
    %v991 = vadd.f32 0.0, %v990
    %992 = vmatmul.f32.gmra.mxu0 %v384
    %v993 = vpop.f32.mrf.mxu0
    %v994 = vadd.f32 0.0, %v993
    %995 = vmatmul.f32.gmra.mxu0 %v387
    %v996 = vpop.f32.mrf.mxu0
    %v997 = vadd.f32 0.0, %v996
    %998 = vmatmul.f32.gmra.mxu0 %v390
    %v999 = vpop.f32.mrf.mxu0
    %v1000 = vadd.f32 0.0, %v999
    %1001 = vmatmul.f32.gmra.mxu0 %v393
    %v1002 = vpop.f32.mrf.mxu0
    %v1003 = vadd.f32 0.0, %v1002
    %1004 = vmatmul.f32.gmra.mxu0 %v396
    %v1005 = vpop.f32.mrf.mxu0
    %v1006 = vadd.f32 0.0, %v1005
    %1007 = vdwg.mxu0
    %1008 = vmatpush.xpose.msra.mxu0 %v540
    %1009 = vmatpush.xpose.msra.mxu0 %v537
    %1010 = vmatpush.xpose.msra.mxu0 %v534
    %1011 = vmatpush.xpose.msra.mxu0 %v531
    %1012 = vmatpush.xpose.msra.mxu0 %v528
    %1013 = vmatpush.xpose.msra.mxu0 %v525
    %1014 = vmatpush.xpose.msra.mxu0 %v522
    %1015 = vmatpush.xpose.msra.mxu0 %v519
    %1016 = vmatpush.xpose.msra.mxu0 %v516
    %1017 = vmatpush.xpose.msra.mxu0 %v513
    %1018 = vmatpush.xpose.msra.mxu0 %v510
    %1019 = vmatpush.xpose.msra.mxu0 %v507
    %1020 = vmatpush.xpose.msra.mxu0 %v504
    %1021 = vmatpush.xpose.msra.mxu0 %v501
    %1022 = vmatpush.xpose.msra.mxu0 %v498
    %1023 = vmatpush.xpose.msra.mxu0 %v495
    %1024 = vmatmul.f32.gmra.mxu0 %v207
    %v1025 = vpop.f32.mrf.mxu0
    %v1026 = vadd.f32 0.0, %v1025
    %1027 = vmatmul.f32.gmra.mxu0 %v210
    %v1028 = vpop.f32.mrf.mxu0
    %v1029 = vadd.f32 0.0, %v1028
    %1030 = vmatmul.f32.gmra.mxu0 %v213
    %v1031 = vpop.f32.mrf.mxu0
    %v1032 = vadd.f32 0.0, %v1031
    %1033 = vmatmul.f32.gmra.mxu0 %v216
    %v1034 = vpop.f32.mrf.mxu0
    %v1035 = vadd.f32 0.0, %v1034
    %1036 = vmatmul.f32.gmra.mxu0 %v219
    %v1037 = vpop.f32.mrf.mxu0
    %v1038 = vadd.f32 0.0, %v1037
    %1039 = vmatmul.f32.gmra.mxu0 %v222
    %v1040 = vpop.f32.mrf.mxu0
    %v1041 = vadd.f32 0.0, %v1040
    %1042 = vmatmul.f32.gmra.mxu0 %v225
    %v1043 = vpop.f32.mrf.mxu0
    %v1044 = vadd.f32 0.0, %v1043
    %1045 = vmatmul.f32.gmra.mxu0 %v228
    %v1046 = vpop.f32.mrf.mxu0
    %v1047 = vadd.f32 0.0, %v1046
    %1048 = vmatmul.f32.gmra.mxu0 %v231
    %v1049 = vpop.f32.mrf.mxu0
    %v1050 = vadd.f32 0.0, %v1049
    %1051 = vmatmul.f32.gmra.mxu0 %v234
    %v1052 = vpop.f32.mrf.mxu0
    %v1053 = vadd.f32 0.0, %v1052
    %1054 = vmatmul.f32.gmra.mxu0 %v237
    %v1055 = vpop.f32.mrf.mxu0
    %v1056 = vadd.f32 0.0, %v1055
    %1057 = vmatmul.f32.gmra.mxu0 %v240
    %v1058 = vpop.f32.mrf.mxu0
    %v1059 = vadd.f32 0.0, %v1058
    %1060 = vmatmul.f32.gmra.mxu0 %v243
    %v1061 = vpop.f32.mrf.mxu0
    %v1062 = vadd.f32 0.0, %v1061
    %1063 = vmatmul.f32.gmra.mxu0 %v246
    %v1064 = vpop.f32.mrf.mxu0
    %v1065 = vadd.f32 0.0, %v1064
    %1066 = vmatmul.f32.gmra.mxu0 %v249
    %v1067 = vpop.f32.mrf.mxu0
    %v1068 = vadd.f32 0.0, %v1067
    %1069 = vmatmul.f32.gmra.mxu0 %v252
    %v1070 = vpop.f32.mrf.mxu0
    %v1071 = vadd.f32 0.0, %v1070
    %1072 = vmatmul.f32.gmra.mxu0 %v255
    %v1073 = vpop.f32.mrf.mxu0
    %v1074 = vadd.f32 0.0, %v1073
    %1075 = vmatmul.f32.gmra.mxu0 %v258
    %v1076 = vpop.f32.mrf.mxu0
    %v1077 = vadd.f32 0.0, %v1076
    %1078 = vmatmul.f32.gmra.mxu0 %v261
    %v1079 = vpop.f32.mrf.mxu0
    %v1080 = vadd.f32 0.0, %v1079
    %1081 = vmatmul.f32.gmra.mxu0 %v264
    %v1082 = vpop.f32.mrf.mxu0
    %v1083 = vadd.f32 0.0, %v1082
    %1084 = vmatmul.f32.gmra.mxu0 %v267
    %v1085 = vpop.f32.mrf.mxu0
    %v1086 = vadd.f32 0.0, %v1085
    %1087 = vmatmul.f32.gmra.mxu0 %v270
    %v1088 = vpop.f32.mrf.mxu0
    %v1089 = vadd.f32 0.0, %v1088
    %1090 = vmatmul.f32.gmra.mxu0 %v273
    %v1091 = vpop.f32.mrf.mxu0
    %v1092 = vadd.f32 0.0, %v1091
    %1093 = vmatmul.f32.gmra.mxu0 %v276
    %v1094 = vpop.f32.mrf.mxu0
    %v1095 = vadd.f32 0.0, %v1094
    %1096 = vmatmul.f32.gmra.mxu0 %v279
    %v1097 = vpop.f32.mrf.mxu0
    %v1098 = vadd.f32 0.0, %v1097
    %1099 = vmatmul.f32.gmra.mxu0 %v282
    %v1100 = vpop.f32.mrf.mxu0
    %v1101 = vadd.f32 0.0, %v1100
    %1102 = vmatmul.f32.gmra.mxu0 %v285
    %v1103 = vpop.f32.mrf.mxu0
    %v1104 = vadd.f32 0.0, %v1103
    %1105 = vmatmul.f32.gmra.mxu0 %v288
    %v1106 = vpop.f32.mrf.mxu0
    %v1107 = vadd.f32 0.0, %v1106
    %1108 = vmatmul.f32.gmra.mxu0 %v291
    %v1109 = vpop.f32.mrf.mxu0
    %v1110 = vadd.f32 0.0, %v1109
    %1111 = vmatmul.f32.gmra.mxu0 %v294
    %v1112 = vpop.f32.mrf.mxu0
    %v1113 = vadd.f32 0.0, %v1112
    %1114 = vmatmul.f32.gmra.mxu0 %v297
    %v1115 = vpop.f32.mrf.mxu0
    %v1116 = vadd.f32 0.0, %v1115
    %1117 = vmatmul.f32.gmra.mxu0 %v300
    %v1118 = vpop.f32.mrf.mxu0
    %v1119 = vadd.f32 0.0, %v1118
    %1120 = vmatmul.f32.gmra.mxu0 %v303
    %v1121 = vpop.f32.mrf.mxu0
    %v1122 = vadd.f32 0.0, %v1121
    %1123 = vmatmul.f32.gmra.mxu0 %v306
    %v1124 = vpop.f32.mrf.mxu0
    %v1125 = vadd.f32 0.0, %v1124
    %1126 = vmatmul.f32.gmra.mxu0 %v309
    %v1127 = vpop.f32.mrf.mxu0
    %v1128 = vadd.f32 0.0, %v1127
    %1129 = vmatmul.f32.gmra.mxu0 %v312
    %v1130 = vpop.f32.mrf.mxu0
    %v1131 = vadd.f32 0.0, %v1130
    %1132 = vmatmul.f32.gmra.mxu0 %v315
    %v1133 = vpop.f32.mrf.mxu0
    %v1134 = vadd.f32 0.0, %v1133
    %1135 = vmatmul.f32.gmra.mxu0 %v318
    %v1136 = vpop.f32.mrf.mxu0
    %v1137 = vadd.f32 0.0, %v1136
    %1138 = vmatmul.f32.gmra.mxu0 %v321
    %v1139 = vpop.f32.mrf.mxu0
    %v1140 = vadd.f32 0.0, %v1139
    %1141 = vmatmul.f32.gmra.mxu0 %v324
    %v1142 = vpop.f32.mrf.mxu0
    %v1143 = vadd.f32 0.0, %v1142
    %1144 = vmatmul.f32.gmra.mxu0 %v327
    %v1145 = vpop.f32.mrf.mxu0
    %v1146 = vadd.f32 0.0, %v1145
    %1147 = vmatmul.f32.gmra.mxu0 %v330
    %v1148 = vpop.f32.mrf.mxu0
    %v1149 = vadd.f32 0.0, %v1148
    %1150 = vmatmul.f32.gmra.mxu0 %v333
    %v1151 = vpop.f32.mrf.mxu0
    %v1152 = vadd.f32 0.0, %v1151
    %1153 = vmatmul.f32.gmra.mxu0 %v336
    %v1154 = vpop.f32.mrf.mxu0
    %v1155 = vadd.f32 0.0, %v1154
    %1156 = vmatmul.f32.gmra.mxu0 %v339
    %v1157 = vpop.f32.mrf.mxu0
    %v1158 = vadd.f32 0.0, %v1157
    %1159 = vmatmul.f32.gmra.mxu0 %v342
    %v1160 = vpop.f32.mrf.mxu0
    %v1161 = vadd.f32 0.0, %v1160
    %1162 = vmatmul.f32.gmra.mxu0 %v345
    %v1163 = vpop.f32.mrf.mxu0
    %v1164 = vadd.f32 0.0, %v1163
    %1165 = vmatmul.f32.gmra.mxu0 %v348
    %v1166 = vpop.f32.mrf.mxu0
    %v1167 = vadd.f32 0.0, %v1166
    %1168 = vmatmul.f32.gmra.mxu0 %v351
    %v1169 = vpop.f32.mrf.mxu0
    %v1170 = vadd.f32 0.0, %v1169
    %1171 = vmatmul.f32.gmra.mxu0 %v354
    %v1172 = vpop.f32.mrf.mxu0
    %v1173 = vadd.f32 0.0, %v1172
    %1174 = vmatmul.f32.gmra.mxu0 %v357
    %v1175 = vpop.f32.mrf.mxu0
    %v1176 = vadd.f32 0.0, %v1175
    %1177 = vmatmul.f32.gmra.mxu0 %v360
    %v1178 = vpop.f32.mrf.mxu0
    %v1179 = vadd.f32 0.0, %v1178
    %1180 = vmatmul.f32.gmra.mxu0 %v363
    %v1181 = vpop.f32.mrf.mxu0
    %v1182 = vadd.f32 0.0, %v1181
    %1183 = vmatmul.f32.gmra.mxu0 %v366
    %v1184 = vpop.f32.mrf.mxu0
    %v1185 = vadd.f32 0.0, %v1184
    %1186 = vmatmul.f32.gmra.mxu0 %v369
    %v1187 = vpop.f32.mrf.mxu0
    %v1188 = vadd.f32 0.0, %v1187
    %1189 = vmatmul.f32.gmra.mxu0 %v372
    %v1190 = vpop.f32.mrf.mxu0
    %v1191 = vadd.f32 0.0, %v1190
    %1192 = vmatmul.f32.gmra.mxu0 %v375
    %v1193 = vpop.f32.mrf.mxu0
    %v1194 = vadd.f32 0.0, %v1193
    %1195 = vmatmul.f32.gmra.mxu0 %v378
    %v1196 = vpop.f32.mrf.mxu0
    %v1197 = vadd.f32 0.0, %v1196
    %1198 = vmatmul.f32.gmra.mxu0 %v381
    %v1199 = vpop.f32.mrf.mxu0
    %v1200 = vadd.f32 0.0, %v1199
    %1201 = vmatmul.f32.gmra.mxu0 %v384
    %v1202 = vpop.f32.mrf.mxu0
    %v1203 = vadd.f32 0.0, %v1202
    %1204 = vmatmul.f32.gmra.mxu0 %v387
    %v1205 = vpop.f32.mrf.mxu0
    %v1206 = vadd.f32 0.0, %v1205
    %1207 = vmatmul.f32.gmra.mxu0 %v390
    %v1208 = vpop.f32.mrf.mxu0
    %v1209 = vadd.f32 0.0, %v1208
    %1210 = vmatmul.f32.gmra.mxu0 %v393
    %v1211 = vpop.f32.mrf.mxu0
    %v1212 = vadd.f32 0.0, %v1211
    %1213 = vmatmul.f32.gmra.mxu0 %v396
    %v1214 = vpop.f32.mrf.mxu0
    %v1215 = vadd.f32 0.0, %v1214
    %1216 = vdwg.mxu0
    %1217 = vmatpush.xpose.msra.mxu0 %v588
    %1218 = vmatpush.xpose.msra.mxu0 %v585
    %1219 = vmatpush.xpose.msra.mxu0 %v582
    %1220 = vmatpush.xpose.msra.mxu0 %v579
    %1221 = vmatpush.xpose.msra.mxu0 %v576
    %1222 = vmatpush.xpose.msra.mxu0 %v573
    %1223 = vmatpush.xpose.msra.mxu0 %v570
    %1224 = vmatpush.xpose.msra.mxu0 %v567
    %1225 = vmatpush.xpose.msra.mxu0 %v564
    %1226 = vmatpush.xpose.msra.mxu0 %v561
    %1227 = vmatpush.xpose.msra.mxu0 %v558
    %1228 = vmatpush.xpose.msra.mxu0 %v555
    %1229 = vmatpush.xpose.msra.mxu0 %v552
    %1230 = vmatpush.xpose.msra.mxu0 %v549
    %1231 = vmatpush.xpose.msra.mxu0 %v546
    %1232 = vmatpush.xpose.msra.mxu0 %v543
    %1233 = vmatmul.f32.gmra.mxu0 %v207
    %v1234 = vpop.f32.mrf.mxu0
    %v1235 = vadd.f32 0.0, %v1234
    %1236 = vmatmul.f32.gmra.mxu0 %v210
    %v1237 = vpop.f32.mrf.mxu0
    %v1238 = vadd.f32 0.0, %v1237
    %1239 = vmatmul.f32.gmra.mxu0 %v213
    %v1240 = vpop.f32.mrf.mxu0
    %v1241 = vadd.f32 0.0, %v1240
    %1242 = vmatmul.f32.gmra.mxu0 %v216
    %v1243 = vpop.f32.mrf.mxu0
    %v1244 = vadd.f32 0.0, %v1243
    %1245 = vmatmul.f32.gmra.mxu0 %v219
    %v1246 = vpop.f32.mrf.mxu0
    %v1247 = vadd.f32 0.0, %v1246
    %1248 = vmatmul.f32.gmra.mxu0 %v222
    %v1249 = vpop.f32.mrf.mxu0
    %v1250 = vadd.f32 0.0, %v1249
    %1251 = vmatmul.f32.gmra.mxu0 %v225
    %v1252 = vpop.f32.mrf.mxu0
    %v1253 = vadd.f32 0.0, %v1252
    %1254 = vmatmul.f32.gmra.mxu0 %v228
    %v1255 = vpop.f32.mrf.mxu0
    %v1256 = vadd.f32 0.0, %v1255
    %1257 = vmatmul.f32.gmra.mxu0 %v231
    %v1258 = vpop.f32.mrf.mxu0
    %v1259 = vadd.f32 0.0, %v1258
    %1260 = vmatmul.f32.gmra.mxu0 %v234
    %v1261 = vpop.f32.mrf.mxu0
    %v1262 = vadd.f32 0.0, %v1261
    %1263 = vmatmul.f32.gmra.mxu0 %v237
    %v1264 = vpop.f32.mrf.mxu0
    %v1265 = vadd.f32 0.0, %v1264
    %1266 = vmatmul.f32.gmra.mxu0 %v240
    %v1267 = vpop.f32.mrf.mxu0
    %v1268 = vadd.f32 0.0, %v1267
    %1269 = vmatmul.f32.gmra.mxu0 %v243
    %v1270 = vpop.f32.mrf.mxu0
    %v1271 = vadd.f32 0.0, %v1270
    %1272 = vmatmul.f32.gmra.mxu0 %v246
    %v1273 = vpop.f32.mrf.mxu0
    %v1274 = vadd.f32 0.0, %v1273
    %1275 = vmatmul.f32.gmra.mxu0 %v249
    %v1276 = vpop.f32.mrf.mxu0
    %v1277 = vadd.f32 0.0, %v1276
    %1278 = vmatmul.f32.gmra.mxu0 %v252
    %v1279 = vpop.f32.mrf.mxu0
    %v1280 = vadd.f32 0.0, %v1279
    %1281 = vmatmul.f32.gmra.mxu0 %v255
    %v1282 = vpop.f32.mrf.mxu0
    %v1283 = vadd.f32 0.0, %v1282
    %1284 = vmatmul.f32.gmra.mxu0 %v258
    %v1285 = vpop.f32.mrf.mxu0
    %v1286 = vadd.f32 0.0, %v1285
    %1287 = vmatmul.f32.gmra.mxu0 %v261
    %v1288 = vpop.f32.mrf.mxu0
    %v1289 = vadd.f32 0.0, %v1288
    %1290 = vmatmul.f32.gmra.mxu0 %v264
    %v1291 = vpop.f32.mrf.mxu0
    %v1292 = vadd.f32 0.0, %v1291
    %1293 = vmatmul.f32.gmra.mxu0 %v267
    %v1294 = vpop.f32.mrf.mxu0
    %v1295 = vadd.f32 0.0, %v1294
    %1296 = vmatmul.f32.gmra.mxu0 %v270
    %v1297 = vpop.f32.mrf.mxu0
    %v1298 = vadd.f32 0.0, %v1297
    %1299 = vmatmul.f32.gmra.mxu0 %v273
    %v1300 = vpop.f32.mrf.mxu0
    %v1301 = vadd.f32 0.0, %v1300
    %1302 = vmatmul.f32.gmra.mxu0 %v276
    %v1303 = vpop.f32.mrf.mxu0
    %v1304 = vadd.f32 0.0, %v1303
    %1305 = vmatmul.f32.gmra.mxu0 %v279
    %v1306 = vpop.f32.mrf.mxu0
    %v1307 = vadd.f32 0.0, %v1306
    %1308 = vmatmul.f32.gmra.mxu0 %v282
    %v1309 = vpop.f32.mrf.mxu0
    %v1310 = vadd.f32 0.0, %v1309
    %1311 = vmatmul.f32.gmra.mxu0 %v285
    %v1312 = vpop.f32.mrf.mxu0
    %v1313 = vadd.f32 0.0, %v1312
    %1314 = vmatmul.f32.gmra.mxu0 %v288
    %v1315 = vpop.f32.mrf.mxu0
    %v1316 = vadd.f32 0.0, %v1315
    %1317 = vmatmul.f32.gmra.mxu0 %v291
    %v1318 = vpop.f32.mrf.mxu0
    %v1319 = vadd.f32 0.0, %v1318
    %1320 = vmatmul.f32.gmra.mxu0 %v294
    %v1321 = vpop.f32.mrf.mxu0
    %v1322 = vadd.f32 0.0, %v1321
    %1323 = vmatmul.f32.gmra.mxu0 %v297
    %v1324 = vpop.f32.mrf.mxu0
    %v1325 = vadd.f32 0.0, %v1324
    %1326 = vmatmul.f32.gmra.mxu0 %v300
    %v1327 = vpop.f32.mrf.mxu0
    %v1328 = vadd.f32 0.0, %v1327
    %1329 = vmatmul.f32.gmra.mxu0 %v303
    %v1330 = vpop.f32.mrf.mxu0
    %v1331 = vadd.f32 0.0, %v1330
    %1332 = vmatmul.f32.gmra.mxu0 %v306
    %v1333 = vpop.f32.mrf.mxu0
    %v1334 = vadd.f32 0.0, %v1333
    %1335 = vmatmul.f32.gmra.mxu0 %v309
    %v1336 = vpop.f32.mrf.mxu0
    %v1337 = vadd.f32 0.0, %v1336
    %1338 = vmatmul.f32.gmra.mxu0 %v312
    %v1339 = vpop.f32.mrf.mxu0
    %v1340 = vadd.f32 0.0, %v1339
    %1341 = vmatmul.f32.gmra.mxu0 %v315
    %v1342 = vpop.f32.mrf.mxu0
    %v1343 = vadd.f32 0.0, %v1342
    %1344 = vmatmul.f32.gmra.mxu0 %v318
    %v1345 = vpop.f32.mrf.mxu0
    %v1346 = vadd.f32 0.0, %v1345
    %1347 = vmatmul.f32.gmra.mxu0 %v321
    %v1348 = vpop.f32.mrf.mxu0
    %v1349 = vadd.f32 0.0, %v1348
    %1350 = vmatmul.f32.gmra.mxu0 %v324
    %v1351 = vpop.f32.mrf.mxu0
    %v1352 = vadd.f32 0.0, %v1351
    %1353 = vmatmul.f32.gmra.mxu0 %v327
    %v1354 = vpop.f32.mrf.mxu0
    %v1355 = vadd.f32 0.0, %v1354
    %1356 = vmatmul.f32.gmra.mxu0 %v330
    %v1357 = vpop.f32.mrf.mxu0
    %v1358 = vadd.f32 0.0, %v1357
    %1359 = vmatmul.f32.gmra.mxu0 %v333
    %v1360 = vpop.f32.mrf.mxu0
    %v1361 = vadd.f32 0.0, %v1360
    %1362 = vmatmul.f32.gmra.mxu0 %v336
    %v1363 = vpop.f32.mrf.mxu0
    %v1364 = vadd.f32 0.0, %v1363
    %1365 = vmatmul.f32.gmra.mxu0 %v339
    %v1366 = vpop.f32.mrf.mxu0
    %v1367 = vadd.f32 0.0, %v1366
    %1368 = vmatmul.f32.gmra.mxu0 %v342
    %v1369 = vpop.f32.mrf.mxu0
    %v1370 = vadd.f32 0.0, %v1369
    %1371 = vmatmul.f32.gmra.mxu0 %v345
    %v1372 = vpop.f32.mrf.mxu0
    %v1373 = vadd.f32 0.0, %v1372
    %1374 = vmatmul.f32.gmra.mxu0 %v348
    %v1375 = vpop.f32.mrf.mxu0
    %v1376 = vadd.f32 0.0, %v1375
    %1377 = vmatmul.f32.gmra.mxu0 %v351
    %v1378 = vpop.f32.mrf.mxu0
    %v1379 = vadd.f32 0.0, %v1378
    %1380 = vmatmul.f32.gmra.mxu0 %v354
    %v1381 = vpop.f32.mrf.mxu0
    %v1382 = vadd.f32 0.0, %v1381
    %1383 = vmatmul.f32.gmra.mxu0 %v357
    %v1384 = vpop.f32.mrf.mxu0
    %v1385 = vadd.f32 0.0, %v1384
    %1386 = vmatmul.f32.gmra.mxu0 %v360
    %v1387 = vpop.f32.mrf.mxu0
    %v1388 = vadd.f32 0.0, %v1387
    %1389 = vmatmul.f32.gmra.mxu0 %v363
    %v1390 = vpop.f32.mrf.mxu0
    %v1391 = vadd.f32 0.0, %v1390
    %1392 = vmatmul.f32.gmra.mxu0 %v366
    %v1393 = vpop.f32.mrf.mxu0
    %v1394 = vadd.f32 0.0, %v1393
    %1395 = vmatmul.f32.gmra.mxu0 %v369
    %v1396 = vpop.f32.mrf.mxu0
    %v1397 = vadd.f32 0.0, %v1396
    %1398 = vmatmul.f32.gmra.mxu0 %v372
    %v1399 = vpop.f32.mrf.mxu0
    %v1400 = vadd.f32 0.0, %v1399
    %1401 = vmatmul.f32.gmra.mxu0 %v375
    %v1402 = vpop.f32.mrf.mxu0
    %v1403 = vadd.f32 0.0, %v1402
    %1404 = vmatmul.f32.gmra.mxu0 %v378
    %v1405 = vpop.f32.mrf.mxu0
    %v1406 = vadd.f32 0.0, %v1405
    %1407 = vmatmul.f32.gmra.mxu0 %v381
    %v1408 = vpop.f32.mrf.mxu0
    %v1409 = vadd.f32 0.0, %v1408
    %1410 = vmatmul.f32.gmra.mxu0 %v384
    %v1411 = vpop.f32.mrf.mxu0
    %v1412 = vadd.f32 0.0, %v1411
    %1413 = vmatmul.f32.gmra.mxu0 %v387
    %v1414 = vpop.f32.mrf.mxu0
    %v1415 = vadd.f32 0.0, %v1414
    %1416 = vmatmul.f32.gmra.mxu0 %v390
    %v1417 = vpop.f32.mrf.mxu0
    %v1418 = vadd.f32 0.0, %v1417
    %1419 = vmatmul.f32.gmra.mxu0 %v393
    %v1420 = vpop.f32.mrf.mxu0
    %v1421 = vadd.f32 0.0, %v1420
    %1422 = vmatmul.f32.gmra.mxu0 %v396
    %v1423 = vpop.f32.mrf.mxu0
    %v1424 = vadd.f32 0.0, %v1423
    %1425 = vdwg.mxu0
    %v1426 = vld [vmem:[%s2] sm:$0xf]
    %v1428 = vperm.slane %v1426, 0
    %v1429 = vperm.slane %v1426, 1
    %v1430 = vperm.slane %v1426, 2
    %v1431 = vperm.slane %v1426, 3
    %v1436 = vsub.f32 %v608, %v1428
    %v1437 = vsub.f32 %v817, %v1429
    %v1438 = vsub.f32 %v1026, %v1430
    %v1439 = vsub.f32 %v1235, %v1431
    %v1440 = vsub.f32 %v611, %v1428
    %v1441 = vsub.f32 %v820, %v1429
    %v1442 = vsub.f32 %v1029, %v1430
    %v1443 = vsub.f32 %v1238, %v1431
    %v1444 = vsub.f32 %v614, %v1428
    %v1445 = vsub.f32 %v823, %v1429
    %v1446 = vsub.f32 %v1032, %v1430
    %v1447 = vsub.f32 %v1241, %v1431
    %v1448 = vsub.f32 %v617, %v1428
    %v1449 = vsub.f32 %v826, %v1429
    %v1450 = vsub.f32 %v1035, %v1430
    %v1451 = vsub.f32 %v1244, %v1431
    %v1452 = vsub.f32 %v620, %v1428
    %v1453 = vsub.f32 %v829, %v1429
    %v1454 = vsub.f32 %v1038, %v1430
    %v1455 = vsub.f32 %v1247, %v1431
    %v1456 = vsub.f32 %v623, %v1428
    %v1457 = vsub.f32 %v832, %v1429
    %v1458 = vsub.f32 %v1041, %v1430
    %v1459 = vsub.f32 %v1250, %v1431
    %v1460 = vsub.f32 %v626, %v1428
    %v1461 = vsub.f32 %v835, %v1429
    %v1462 = vsub.f32 %v1044, %v1430
    %v1463 = vsub.f32 %v1253, %v1431
    %v1464 = vsub.f32 %v629, %v1428
    %v1465 = vsub.f32 %v838, %v1429
    %v1466 = vsub.f32 %v1047, %v1430
    %v1467 = vsub.f32 %v1256, %v1431
    %v1468 = vsub.f32 %v632, %v1428
    %v1469 = vsub.f32 %v841, %v1429
    %v1470 = vsub.f32 %v1050, %v1430
    %v1471 = vsub.f32 %v1259, %v1431
    %v1472 = vsub.f32 %v635, %v1428
    %v1473 = vsub.f32 %v844, %v1429
    %v1474 = vsub.f32 %v1053, %v1430
    %v1475 = vsub.f32 %v1262, %v1431
    %v1476 = vsub.f32 %v638, %v1428
    %v1477 = vsub.f32 %v847, %v1429
    %v1478 = vsub.f32 %v1056, %v1430
    %v1479 = vsub.f32 %v1265, %v1431
    %v1480 = vsub.f32 %v641, %v1428
    %v1481 = vsub.f32 %v850, %v1429
    %v1482 = vsub.f32 %v1059, %v1430
    %v1483 = vsub.f32 %v1268, %v1431
    %v1484 = vsub.f32 %v644, %v1428
    %v1485 = vsub.f32 %v853, %v1429
    %v1486 = vsub.f32 %v1062, %v1430
    %v1487 = vsub.f32 %v1271, %v1431
    %v1488 = vsub.f32 %v647, %v1428
    %v1489 = vsub.f32 %v856, %v1429
    %v1490 = vsub.f32 %v1065, %v1430
    %v1491 = vsub.f32 %v1274, %v1431
    %v1492 = vsub.f32 %v650, %v1428
    %v1493 = vsub.f32 %v859, %v1429
    %v1494 = vsub.f32 %v1068, %v1430
    %v1495 = vsub.f32 %v1277, %v1431
    %v1496 = vsub.f32 %v653, %v1428
    %v1497 = vsub.f32 %v862, %v1429
    %v1498 = vsub.f32 %v1071, %v1430
    %v1499 = vsub.f32 %v1280, %v1431
    %v1500 = vsub.f32 %v656, %v1428
    %v1501 = vsub.f32 %v865, %v1429
    %v1502 = vsub.f32 %v1074, %v1430
    %v1503 = vsub.f32 %v1283, %v1431
    %v1504 = vsub.f32 %v659, %v1428
    %v1505 = vsub.f32 %v868, %v1429
    %v1506 = vsub.f32 %v1077, %v1430
    %v1507 = vsub.f32 %v1286, %v1431
    %v1508 = vsub.f32 %v662, %v1428
    %v1509 = vsub.f32 %v871, %v1429
    %v1510 = vsub.f32 %v1080, %v1430
    %v1511 = vsub.f32 %v1289, %v1431
    %v1512 = vsub.f32 %v665, %v1428
    %v1513 = vsub.f32 %v874, %v1429
    %v1514 = vsub.f32 %v1083, %v1430
    %v1515 = vsub.f32 %v1292, %v1431
    %v1516 = vsub.f32 %v668, %v1428
    %v1517 = vsub.f32 %v877, %v1429
    %v1518 = vsub.f32 %v1086, %v1430
    %v1519 = vsub.f32 %v1295, %v1431
    %v1520 = vsub.f32 %v671, %v1428
    %v1521 = vsub.f32 %v880, %v1429
    %v1522 = vsub.f32 %v1089, %v1430
    %v1523 = vsub.f32 %v1298, %v1431
    %v1524 = vsub.f32 %v674, %v1428
    %v1525 = vsub.f32 %v883, %v1429
    %v1526 = vsub.f32 %v1092, %v1430
    %v1527 = vsub.f32 %v1301, %v1431
    %v1528 = vsub.f32 %v677, %v1428
    %v1529 = vsub.f32 %v886, %v1429
    %v1530 = vsub.f32 %v1095, %v1430
    %v1531 = vsub.f32 %v1304, %v1431
    %v1532 = vsub.f32 %v680, %v1428
    %v1533 = vsub.f32 %v889, %v1429
    %v1534 = vsub.f32 %v1098, %v1430
    %v1535 = vsub.f32 %v1307, %v1431
    %v1536 = vsub.f32 %v683, %v1428
    %v1537 = vsub.f32 %v892, %v1429
    %v1538 = vsub.f32 %v1101, %v1430
    %v1539 = vsub.f32 %v1310, %v1431
    %v1540 = vsub.f32 %v686, %v1428
    %v1541 = vsub.f32 %v895, %v1429
    %v1542 = vsub.f32 %v1104, %v1430
    %v1543 = vsub.f32 %v1313, %v1431
    %v1544 = vsub.f32 %v689, %v1428
    %v1545 = vsub.f32 %v898, %v1429
    %v1546 = vsub.f32 %v1107, %v1430
    %v1547 = vsub.f32 %v1316, %v1431
    %v1548 = vsub.f32 %v692, %v1428
    %v1549 = vsub.f32 %v901, %v1429
    %v1550 = vsub.f32 %v1110, %v1430
    %v1551 = vsub.f32 %v1319, %v1431
    %v1552 = vsub.f32 %v695, %v1428
    %v1553 = vsub.f32 %v904, %v1429
    %v1554 = vsub.f32 %v1113, %v1430
    %v1555 = vsub.f32 %v1322, %v1431
    %v1556 = vsub.f32 %v698, %v1428
    %v1557 = vsub.f32 %v907, %v1429
    %v1558 = vsub.f32 %v1116, %v1430
    %v1559 = vsub.f32 %v1325, %v1431
    %v1560 = vsub.f32 %v701, %v1428
    %v1561 = vsub.f32 %v910, %v1429
    %v1562 = vsub.f32 %v1119, %v1430
    %v1563 = vsub.f32 %v1328, %v1431
    %v1564 = vsub.f32 %v704, %v1428
    %v1565 = vsub.f32 %v913, %v1429
    %v1566 = vsub.f32 %v1122, %v1430
    %v1567 = vsub.f32 %v1331, %v1431
    %v1568 = vsub.f32 %v707, %v1428
    %v1569 = vsub.f32 %v916, %v1429
    %v1570 = vsub.f32 %v1125, %v1430
    %v1571 = vsub.f32 %v1334, %v1431
    %v1572 = vsub.f32 %v710, %v1428
    %v1573 = vsub.f32 %v919, %v1429
    %v1574 = vsub.f32 %v1128, %v1430
    %v1575 = vsub.f32 %v1337, %v1431
    %v1576 = vsub.f32 %v713, %v1428
    %v1577 = vsub.f32 %v922, %v1429
    %v1578 = vsub.f32 %v1131, %v1430
    %v1579 = vsub.f32 %v1340, %v1431
    %v1580 = vsub.f32 %v716, %v1428
    %v1581 = vsub.f32 %v925, %v1429
    %v1582 = vsub.f32 %v1134, %v1430
    %v1583 = vsub.f32 %v1343, %v1431
    %v1584 = vsub.f32 %v719, %v1428
    %v1585 = vsub.f32 %v928, %v1429
    %v1586 = vsub.f32 %v1137, %v1430
    %v1587 = vsub.f32 %v1346, %v1431
    %v1588 = vsub.f32 %v722, %v1428
    %v1589 = vsub.f32 %v931, %v1429
    %v1590 = vsub.f32 %v1140, %v1430
    %v1591 = vsub.f32 %v1349, %v1431
    %v1592 = vsub.f32 %v725, %v1428
    %v1593 = vsub.f32 %v934, %v1429
    %v1594 = vsub.f32 %v1143, %v1430
    %v1595 = vsub.f32 %v1352, %v1431
    %v1596 = vsub.f32 %v728, %v1428
    %v1597 = vsub.f32 %v937, %v1429
    %v1598 = vsub.f32 %v1146, %v1430
    %v1599 = vsub.f32 %v1355, %v1431
    %v1600 = vsub.f32 %v731, %v1428
    %v1601 = vsub.f32 %v940, %v1429
    %v1602 = vsub.f32 %v1149, %v1430
    %v1603 = vsub.f32 %v1358, %v1431
    %v1604 = vsub.f32 %v734, %v1428
    %v1605 = vsub.f32 %v943, %v1429
    %v1606 = vsub.f32 %v1152, %v1430
    %v1607 = vsub.f32 %v1361, %v1431
    %v1608 = vsub.f32 %v737, %v1428
    %v1609 = vsub.f32 %v946, %v1429
    %v1610 = vsub.f32 %v1155, %v1430
    %v1611 = vsub.f32 %v1364, %v1431
    %v1612 = vsub.f32 %v740, %v1428
    %v1613 = vsub.f32 %v949, %v1429
    %v1614 = vsub.f32 %v1158, %v1430
    %v1615 = vsub.f32 %v1367, %v1431
    %v1616 = vsub.f32 %v743, %v1428
    %v1617 = vsub.f32 %v952, %v1429
    %v1618 = vsub.f32 %v1161, %v1430
    %v1619 = vsub.f32 %v1370, %v1431
    %v1620 = vsub.f32 %v746, %v1428
    %v1621 = vsub.f32 %v955, %v1429
    %v1622 = vsub.f32 %v1164, %v1430
    %v1623 = vsub.f32 %v1373, %v1431
    %v1624 = vsub.f32 %v749, %v1428
    %v1625 = vsub.f32 %v958, %v1429
    %v1626 = vsub.f32 %v1167, %v1430
    %v1627 = vsub.f32 %v1376, %v1431
    %v1628 = vsub.f32 %v752, %v1428
    %v1629 = vsub.f32 %v961, %v1429
    %v1630 = vsub.f32 %v1170, %v1430
    %v1631 = vsub.f32 %v1379, %v1431
    %v1632 = vsub.f32 %v755, %v1428
    %v1633 = vsub.f32 %v964, %v1429
    %v1634 = vsub.f32 %v1173, %v1430
    %v1635 = vsub.f32 %v1382, %v1431
    %v1636 = vsub.f32 %v758, %v1428
    %v1637 = vsub.f32 %v967, %v1429
    %v1638 = vsub.f32 %v1176, %v1430
    %v1639 = vsub.f32 %v1385, %v1431
    %v1640 = vsub.f32 %v761, %v1428
    %v1641 = vsub.f32 %v970, %v1429
    %v1642 = vsub.f32 %v1179, %v1430
    %v1643 = vsub.f32 %v1388, %v1431
    %v1644 = vsub.f32 %v764, %v1428
    %v1645 = vsub.f32 %v973, %v1429
    %v1646 = vsub.f32 %v1182, %v1430
    %v1647 = vsub.f32 %v1391, %v1431
    %v1648 = vsub.f32 %v767, %v1428
    %v1649 = vsub.f32 %v976, %v1429
    %v1650 = vsub.f32 %v1185, %v1430
    %v1651 = vsub.f32 %v1394, %v1431
    %v1652 = vsub.f32 %v770, %v1428
    %v1653 = vsub.f32 %v979, %v1429
    %v1654 = vsub.f32 %v1188, %v1430
    %v1655 = vsub.f32 %v1397, %v1431
    %v1656 = vsub.f32 %v773, %v1428
    %v1657 = vsub.f32 %v982, %v1429
    %v1658 = vsub.f32 %v1191, %v1430
    %v1659 = vsub.f32 %v1400, %v1431
    %v1660 = vsub.f32 %v776, %v1428
    %v1661 = vsub.f32 %v985, %v1429
    %v1662 = vsub.f32 %v1194, %v1430
    %v1663 = vsub.f32 %v1403, %v1431
    %v1664 = vsub.f32 %v779, %v1428
    %v1665 = vsub.f32 %v988, %v1429
    %v1666 = vsub.f32 %v1197, %v1430
    %v1667 = vsub.f32 %v1406, %v1431
    %v1668 = vsub.f32 %v782, %v1428
    %v1669 = vsub.f32 %v991, %v1429
    %v1670 = vsub.f32 %v1200, %v1430
    %v1671 = vsub.f32 %v1409, %v1431
    %v1672 = vsub.f32 %v785, %v1428
    %v1673 = vsub.f32 %v994, %v1429
    %v1674 = vsub.f32 %v1203, %v1430
    %v1675 = vsub.f32 %v1412, %v1431
    %v1676 = vsub.f32 %v788, %v1428
    %v1677 = vsub.f32 %v997, %v1429
    %v1678 = vsub.f32 %v1206, %v1430
    %v1679 = vsub.f32 %v1415, %v1431
    %v1680 = vsub.f32 %v791, %v1428
    %v1681 = vsub.f32 %v1000, %v1429
    %v1682 = vsub.f32 %v1209, %v1430
    %v1683 = vsub.f32 %v1418, %v1431
    %v1684 = vsub.f32 %v794, %v1428
    %v1685 = vsub.f32 %v1003, %v1429
    %v1686 = vsub.f32 %v1212, %v1430
    %v1687 = vsub.f32 %v1421, %v1431
    %v1688 = vsub.f32 %v797, %v1428
    %v1689 = vsub.f32 %v1006, %v1429
    %v1690 = vsub.f32 %v1215, %v1430
    %v1691 = vsub.f32 %v1424, %v1431
    %v1692 = vmax.f32 %v1436, %v1437
    %v1693 = vmax.f32 %v1692, %v1438
    %v1694 = vmax.f32 %v1693, %v1439
    %1695 = vmax.xlane.f32.xlu0 %v1694
    %v1696 = vpop.xlane.xlu0 %1695
    %v1697 = vmax.f32 %v1440, %v1441
    %v1698 = vmax.f32 %v1697, %v1442
    %v1699 = vmax.f32 %v1698, %v1443
    %1700 = vmax.xlane.f32.xlu0 %v1699
    %v1701 = vpop.xlane.xlu0 %1700
    %v1702 = vmax.f32 %v1444, %v1445
    %v1703 = vmax.f32 %v1702, %v1446
    %v1704 = vmax.f32 %v1703, %v1447
    %1705 = vmax.xlane.f32.xlu0 %v1704
    %v1706 = vpop.xlane.xlu0 %1705
    %v1707 = vmax.f32 %v1448, %v1449
    %v1708 = vmax.f32 %v1707, %v1450
    %v1709 = vmax.f32 %v1708, %v1451
    %1710 = vmax.xlane.f32.xlu0 %v1709
    %v1711 = vpop.xlane.xlu0 %1710
    %v1712 = vmax.f32 %v1452, %v1453
    %v1713 = vmax.f32 %v1712, %v1454
    %v1714 = vmax.f32 %v1713, %v1455
    %1715 = vmax.xlane.f32.xlu0 %v1714
    %v1716 = vpop.xlane.xlu0 %1715
    %v1717 = vmax.f32 %v1456, %v1457
    %v1718 = vmax.f32 %v1717, %v1458
    %v1719 = vmax.f32 %v1718, %v1459
    %1720 = vmax.xlane.f32.xlu0 %v1719
    %v1721 = vpop.xlane.xlu0 %1720
    %v1722 = vmax.f32 %v1460, %v1461
    %v1723 = vmax.f32 %v1722, %v1462
    %v1724 = vmax.f32 %v1723, %v1463
    %1725 = vmax.xlane.f32.xlu0 %v1724
    %v1726 = vpop.xlane.xlu0 %1725
    %v1727 = vmax.f32 %v1464, %v1465
    %v1728 = vmax.f32 %v1727, %v1466
    %v1729 = vmax.f32 %v1728, %v1467
    %1730 = vmax.xlane.f32.xlu0 %v1729
    %v1731 = vpop.xlane.xlu0 %1730
    %v1732 = vmax.f32 %v1468, %v1469
    %v1733 = vmax.f32 %v1732, %v1470
    %v1734 = vmax.f32 %v1733, %v1471
    %1735 = vmax.xlane.f32.xlu0 %v1734
    %v1736 = vpop.xlane.xlu0 %1735
    %v1737 = vmax.f32 %v1472, %v1473
    %v1738 = vmax.f32 %v1737, %v1474
    %v1739 = vmax.f32 %v1738, %v1475
    %1740 = vmax.xlane.f32.xlu0 %v1739
    %v1741 = vpop.xlane.xlu0 %1740
    %v1742 = vmax.f32 %v1476, %v1477
    %v1743 = vmax.f32 %v1742, %v1478
    %v1744 = vmax.f32 %v1743, %v1479
    %1745 = vmax.xlane.f32.xlu0 %v1744
    %v1746 = vpop.xlane.xlu0 %1745
    %v1747 = vmax.f32 %v1480, %v1481
    %v1748 = vmax.f32 %v1747, %v1482
    %v1749 = vmax.f32 %v1748, %v1483
    %1750 = vmax.xlane.f32.xlu0 %v1749
    %v1751 = vpop.xlane.xlu0 %1750
    %v1752 = vmax.f32 %v1484, %v1485
    %v1753 = vmax.f32 %v1752, %v1486
    %v1754 = vmax.f32 %v1753, %v1487
    %1755 = vmax.xlane.f32.xlu0 %v1754
    %v1756 = vpop.xlane.xlu0 %1755
    %v1757 = vmax.f32 %v1488, %v1489
    %v1758 = vmax.f32 %v1757, %v1490
    %v1759 = vmax.f32 %v1758, %v1491
    %1760 = vmax.xlane.f32.xlu0 %v1759
    %v1761 = vpop.xlane.xlu0 %1760
    %v1762 = vmax.f32 %v1492, %v1493
    %v1763 = vmax.f32 %v1762, %v1494
    %v1764 = vmax.f32 %v1763, %v1495
    %1765 = vmax.xlane.f32.xlu0 %v1764
    %v1766 = vpop.xlane.xlu0 %1765
    %v1767 = vmax.f32 %v1496, %v1497
    %v1768 = vmax.f32 %v1767, %v1498
    %v1769 = vmax.f32 %v1768, %v1499
    %1770 = vmax.xlane.f32.xlu0 %v1769
    %v1771 = vpop.xlane.xlu0 %1770
    %v1772 = vmax.f32 %v1500, %v1501
    %v1773 = vmax.f32 %v1772, %v1502
    %v1774 = vmax.f32 %v1773, %v1503
    %1775 = vmax.xlane.f32.xlu0 %v1774
    %v1776 = vpop.xlane.xlu0 %1775
    %v1777 = vmax.f32 %v1504, %v1505
    %v1778 = vmax.f32 %v1777, %v1506
    %v1779 = vmax.f32 %v1778, %v1507
    %1780 = vmax.xlane.f32.xlu0 %v1779
    %v1781 = vpop.xlane.xlu0 %1780
    %v1782 = vmax.f32 %v1508, %v1509
    %v1783 = vmax.f32 %v1782, %v1510
    %v1784 = vmax.f32 %v1783, %v1511
    %1785 = vmax.xlane.f32.xlu0 %v1784
    %v1786 = vpop.xlane.xlu0 %1785
    %v1787 = vmax.f32 %v1512, %v1513
    %v1788 = vmax.f32 %v1787, %v1514
    %v1789 = vmax.f32 %v1788, %v1515
    %1790 = vmax.xlane.f32.xlu0 %v1789
    %v1791 = vpop.xlane.xlu0 %1790
    %v1792 = vmax.f32 %v1516, %v1517
    %v1793 = vmax.f32 %v1792, %v1518
    %v1794 = vmax.f32 %v1793, %v1519
    %1795 = vmax.xlane.f32.xlu0 %v1794
    %v1796 = vpop.xlane.xlu0 %1795
    %v1797 = vmax.f32 %v1520, %v1521
    %v1798 = vmax.f32 %v1797, %v1522
    %v1799 = vmax.f32 %v1798, %v1523
    %1800 = vmax.xlane.f32.xlu0 %v1799
    %v1801 = vpop.xlane.xlu0 %1800
    %v1802 = vmax.f32 %v1524, %v1525
    %v1803 = vmax.f32 %v1802, %v1526
    %v1804 = vmax.f32 %v1803, %v1527
    %1805 = vmax.xlane.f32.xlu0 %v1804
    %v1806 = vpop.xlane.xlu0 %1805
    %v1807 = vmax.f32 %v1528, %v1529
    %v1808 = vmax.f32 %v1807, %v1530
    %v1809 = vmax.f32 %v1808, %v1531
    %1810 = vmax.xlane.f32.xlu0 %v1809
    %v1811 = vpop.xlane.xlu0 %1810
    %v1812 = vmax.f32 %v1532, %v1533
    %v1813 = vmax.f32 %v1812, %v1534
    %v1814 = vmax.f32 %v1813, %v1535
    %1815 = vmax.xlane.f32.xlu0 %v1814
    %v1816 = vpop.xlane.xlu0 %1815
    %v1817 = vmax.f32 %v1536, %v1537
    %v1818 = vmax.f32 %v1817, %v1538
    %v1819 = vmax.f32 %v1818, %v1539
    %1820 = vmax.xlane.f32.xlu0 %v1819
    %v1821 = vpop.xlane.xlu0 %1820
    %v1822 = vmax.f32 %v1540, %v1541
    %v1823 = vmax.f32 %v1822, %v1542
    %v1824 = vmax.f32 %v1823, %v1543
    %1825 = vmax.xlane.f32.xlu0 %v1824
    %v1826 = vpop.xlane.xlu0 %1825
    %v1827 = vmax.f32 %v1544, %v1545
    %v1828 = vmax.f32 %v1827, %v1546
    %v1829 = vmax.f32 %v1828, %v1547
    %1830 = vmax.xlane.f32.xlu0 %v1829
    %v1831 = vpop.xlane.xlu0 %1830
    %v1832 = vmax.f32 %v1548, %v1549
    %v1833 = vmax.f32 %v1832, %v1550
    %v1834 = vmax.f32 %v1833, %v1551
    %1835 = vmax.xlane.f32.xlu0 %v1834
    %v1836 = vpop.xlane.xlu0 %1835
    %v1837 = vmax.f32 %v1552, %v1553
    %v1838 = vmax.f32 %v1837, %v1554
    %v1839 = vmax.f32 %v1838, %v1555
    %1840 = vmax.xlane.f32.xlu0 %v1839
    %v1841 = vpop.xlane.xlu0 %1840
    %v1842 = vmax.f32 %v1556, %v1557
    %v1843 = vmax.f32 %v1842, %v1558
    %v1844 = vmax.f32 %v1843, %v1559
    %1845 = vmax.xlane.f32.xlu0 %v1844
    %v1846 = vpop.xlane.xlu0 %1845
    %v1847 = vmax.f32 %v1560, %v1561
    %v1848 = vmax.f32 %v1847, %v1562
    %v1849 = vmax.f32 %v1848, %v1563
    %1850 = vmax.xlane.f32.xlu0 %v1849
    %v1851 = vpop.xlane.xlu0 %1850
    %v1852 = vmax.f32 %v1564, %v1565
    %v1853 = vmax.f32 %v1852, %v1566
    %v1854 = vmax.f32 %v1853, %v1567
    %1855 = vmax.xlane.f32.xlu0 %v1854
    %v1856 = vpop.xlane.xlu0 %1855
    %v1857 = vmax.f32 %v1568, %v1569
    %v1858 = vmax.f32 %v1857, %v1570
    %v1859 = vmax.f32 %v1858, %v1571
    %1860 = vmax.xlane.f32.xlu0 %v1859
    %v1861 = vpop.xlane.xlu0 %1860
    %v1862 = vmax.f32 %v1572, %v1573
    %v1863 = vmax.f32 %v1862, %v1574
    %v1864 = vmax.f32 %v1863, %v1575
    %1865 = vmax.xlane.f32.xlu0 %v1864
    %v1866 = vpop.xlane.xlu0 %1865
    %v1867 = vmax.f32 %v1576, %v1577
    %v1868 = vmax.f32 %v1867, %v1578
    %v1869 = vmax.f32 %v1868, %v1579
    %1870 = vmax.xlane.f32.xlu0 %v1869
    %v1871 = vpop.xlane.xlu0 %1870
    %v1872 = vmax.f32 %v1580, %v1581
    %v1873 = vmax.f32 %v1872, %v1582
    %v1874 = vmax.f32 %v1873, %v1583
    %1875 = vmax.xlane.f32.xlu0 %v1874
    %v1876 = vpop.xlane.xlu0 %1875
    %v1877 = vmax.f32 %v1584, %v1585
    %v1878 = vmax.f32 %v1877, %v1586
    %v1879 = vmax.f32 %v1878, %v1587
    %1880 = vmax.xlane.f32.xlu0 %v1879
    %v1881 = vpop.xlane.xlu0 %1880
    %v1882 = vmax.f32 %v1588, %v1589
    %v1883 = vmax.f32 %v1882, %v1590
    %v1884 = vmax.f32 %v1883, %v1591
    %1885 = vmax.xlane.f32.xlu0 %v1884
    %v1886 = vpop.xlane.xlu0 %1885
    %v1887 = vmax.f32 %v1592, %v1593
    %v1888 = vmax.f32 %v1887, %v1594
    %v1889 = vmax.f32 %v1888, %v1595
    %1890 = vmax.xlane.f32.xlu0 %v1889
    %v1891 = vpop.xlane.xlu0 %1890
    %v1892 = vmax.f32 %v1596, %v1597
    %v1893 = vmax.f32 %v1892, %v1598
    %v1894 = vmax.f32 %v1893, %v1599
    %1895 = vmax.xlane.f32.xlu0 %v1894
    %v1896 = vpop.xlane.xlu0 %1895
    %v1897 = vmax.f32 %v1600, %v1601
    %v1898 = vmax.f32 %v1897, %v1602
    %v1899 = vmax.f32 %v1898, %v1603
    %1900 = vmax.xlane.f32.xlu0 %v1899
    %v1901 = vpop.xlane.xlu0 %1900
    %v1902 = vmax.f32 %v1604, %v1605
    %v1903 = vmax.f32 %v1902, %v1606
    %v1904 = vmax.f32 %v1903, %v1607
    %1905 = vmax.xlane.f32.xlu0 %v1904
    %v1906 = vpop.xlane.xlu0 %1905
    %v1907 = vmax.f32 %v1608, %v1609
    %v1908 = vmax.f32 %v1907, %v1610
    %v1909 = vmax.f32 %v1908, %v1611
    %1910 = vmax.xlane.f32.xlu0 %v1909
    %v1911 = vpop.xlane.xlu0 %1910
    %v1912 = vmax.f32 %v1612, %v1613
    %v1913 = vmax.f32 %v1912, %v1614
    %v1914 = vmax.f32 %v1913, %v1615
    %1915 = vmax.xlane.f32.xlu0 %v1914
    %v1916 = vpop.xlane.xlu0 %1915
    %v1917 = vmax.f32 %v1616, %v1617
    %v1918 = vmax.f32 %v1917, %v1618
    %v1919 = vmax.f32 %v1918, %v1619
    %1920 = vmax.xlane.f32.xlu0 %v1919
    %v1921 = vpop.xlane.xlu0 %1920
    %v1922 = vmax.f32 %v1620, %v1621
    %v1923 = vmax.f32 %v1922, %v1622
    %v1924 = vmax.f32 %v1923, %v1623
    %1925 = vmax.xlane.f32.xlu0 %v1924
    %v1926 = vpop.xlane.xlu0 %1925
    %v1927 = vmax.f32 %v1624, %v1625
    %v1928 = vmax.f32 %v1927, %v1626
    %v1929 = vmax.f32 %v1928, %v1627
    %1930 = vmax.xlane.f32.xlu0 %v1929
    %v1931 = vpop.xlane.xlu0 %1930
    %v1932 = vmax.f32 %v1628, %v1629
    %v1933 = vmax.f32 %v1932, %v1630
    %v1934 = vmax.f32 %v1933, %v1631
    %1935 = vmax.xlane.f32.xlu0 %v1934
    %v1936 = vpop.xlane.xlu0 %1935
    %v1937 = vmax.f32 %v1632, %v1633
    %v1938 = vmax.f32 %v1937, %v1634
    %v1939 = vmax.f32 %v1938, %v1635
    %1940 = vmax.xlane.f32.xlu0 %v1939
    %v1941 = vpop.xlane.xlu0 %1940
    %v1942 = vmax.f32 %v1636, %v1637
    %v1943 = vmax.f32 %v1942, %v1638
    %v1944 = vmax.f32 %v1943, %v1639
    %1945 = vmax.xlane.f32.xlu0 %v1944
    %v1946 = vpop.xlane.xlu0 %1945
    %v1947 = vmax.f32 %v1640, %v1641
    %v1948 = vmax.f32 %v1947, %v1642
    %v1949 = vmax.f32 %v1948, %v1643
    %1950 = vmax.xlane.f32.xlu0 %v1949
    %v1951 = vpop.xlane.xlu0 %1950
    %v1952 = vmax.f32 %v1644, %v1645
    %v1953 = vmax.f32 %v1952, %v1646
    %v1954 = vmax.f32 %v1953, %v1647
    %1955 = vmax.xlane.f32.xlu0 %v1954
    %v1956 = vpop.xlane.xlu0 %1955
    %v1957 = vmax.f32 %v1648, %v1649
    %v1958 = vmax.f32 %v1957, %v1650
    %v1959 = vmax.f32 %v1958, %v1651
    %1960 = vmax.xlane.f32.xlu0 %v1959
    %v1961 = vpop.xlane.xlu0 %1960
    %v1962 = vmax.f32 %v1652, %v1653
    %v1963 = vmax.f32 %v1962, %v1654
    %v1964 = vmax.f32 %v1963, %v1655
    %1965 = vmax.xlane.f32.xlu0 %v1964
    %v1966 = vpop.xlane.xlu0 %1965
    %v1967 = vmax.f32 %v1656, %v1657
    %v1968 = vmax.f32 %v1967, %v1658
    %v1969 = vmax.f32 %v1968, %v1659
    %1970 = vmax.xlane.f32.xlu0 %v1969
    %v1971 = vpop.xlane.xlu0 %1970
    %v1972 = vmax.f32 %v1660, %v1661
    %v1973 = vmax.f32 %v1972, %v1662
    %v1974 = vmax.f32 %v1973, %v1663
    %1975 = vmax.xlane.f32.xlu0 %v1974
    %v1976 = vpop.xlane.xlu0 %1975
    %v1977 = vmax.f32 %v1664, %v1665
    %v1978 = vmax.f32 %v1977, %v1666
    %v1979 = vmax.f32 %v1978, %v1667
    %1980 = vmax.xlane.f32.xlu0 %v1979
    %v1981 = vpop.xlane.xlu0 %1980
    %v1982 = vmax.f32 %v1668, %v1669
    %v1983 = vmax.f32 %v1982, %v1670
    %v1984 = vmax.f32 %v1983, %v1671
    %1985 = vmax.xlane.f32.xlu0 %v1984
    %v1986 = vpop.xlane.xlu0 %1985
    %v1987 = vmax.f32 %v1672, %v1673
    %v1988 = vmax.f32 %v1987, %v1674
    %v1989 = vmax.f32 %v1988, %v1675
    %1990 = vmax.xlane.f32.xlu0 %v1989
    %v1991 = vpop.xlane.xlu0 %1990
    %v1992 = vmax.f32 %v1676, %v1677
    %v1993 = vmax.f32 %v1992, %v1678
    %v1994 = vmax.f32 %v1993, %v1679
    %1995 = vmax.xlane.f32.xlu0 %v1994
    %v1996 = vpop.xlane.xlu0 %1995
    %v1997 = vmax.f32 %v1680, %v1681
    %v1998 = vmax.f32 %v1997, %v1682
    %v1999 = vmax.f32 %v1998, %v1683
    %2000 = vmax.xlane.f32.xlu0 %v1999
    %v2001 = vpop.xlane.xlu0 %2000
    %v2002 = vmax.f32 %v1684, %v1685
    %v2003 = vmax.f32 %v2002, %v1686
    %v2004 = vmax.f32 %v2003, %v1687
    %2005 = vmax.xlane.f32.xlu0 %v2004
    %v2006 = vpop.xlane.xlu0 %2005
    %v2007 = vmax.f32 %v1688, %v1689
    %v2008 = vmax.f32 %v2007, %v1690
    %v2009 = vmax.f32 %v2008, %v1691
    %2010 = vmax.xlane.f32.xlu0 %v2009
    %v2011 = vpop.xlane.xlu0 %2010
    %v2012 = vlaneseq
    %v2013 = vand.u32 %v2012, 127
    %v2014 = vadd.s32 %v2013, 128
    %v2015 = vadd.s32 %v2013, 256
    %v2016 = vadd.s32 %v2013, 384
    %vm2017 = vcmp.ge.f32.partialorder %v1436, %v1696
    %vm2018 = vcmp.ge.f32.partialorder %v1437, %v1696
    %vm2019 = vcmp.ge.f32.partialorder %v1438, %v1696
    %vm2020 = vcmp.ge.f32.partialorder %v1439, %v1696
    %vm2021 = vcmp.ge.f32.partialorder %v1440, %v1701
    %vm2022 = vcmp.ge.f32.partialorder %v1441, %v1701
    %vm2023 = vcmp.ge.f32.partialorder %v1442, %v1701
    %vm2024 = vcmp.ge.f32.partialorder %v1443, %v1701
    %vm2025 = vcmp.ge.f32.partialorder %v1444, %v1706
    %vm2026 = vcmp.ge.f32.partialorder %v1445, %v1706
    %vm2027 = vcmp.ge.f32.partialorder %v1446, %v1706
    %vm2028 = vcmp.ge.f32.partialorder %v1447, %v1706
    %vm2029 = vcmp.ge.f32.partialorder %v1448, %v1711
    %vm2030 = vcmp.ge.f32.partialorder %v1449, %v1711
    %vm2031 = vcmp.ge.f32.partialorder %v1450, %v1711
    %vm2032 = vcmp.ge.f32.partialorder %v1451, %v1711
    %vm2033 = vcmp.ge.f32.partialorder %v1452, %v1716
    %vm2034 = vcmp.ge.f32.partialorder %v1453, %v1716
    %vm2035 = vcmp.ge.f32.partialorder %v1454, %v1716
    %vm2036 = vcmp.ge.f32.partialorder %v1455, %v1716
    %vm2037 = vcmp.ge.f32.partialorder %v1456, %v1721
    %vm2038 = vcmp.ge.f32.partialorder %v1457, %v1721
    %vm2039 = vcmp.ge.f32.partialorder %v1458, %v1721
    %vm2040 = vcmp.ge.f32.partialorder %v1459, %v1721
    %vm2041 = vcmp.ge.f32.partialorder %v1460, %v1726
    %vm2042 = vcmp.ge.f32.partialorder %v1461, %v1726
    %vm2043 = vcmp.ge.f32.partialorder %v1462, %v1726
    %vm2044 = vcmp.ge.f32.partialorder %v1463, %v1726
    %vm2045 = vcmp.ge.f32.partialorder %v1464, %v1731
    %vm2046 = vcmp.ge.f32.partialorder %v1465, %v1731
    %vm2047 = vcmp.ge.f32.partialorder %v1466, %v1731
    %vm2048 = vcmp.ge.f32.partialorder %v1467, %v1731
    %vm2049 = vcmp.ge.f32.partialorder %v1468, %v1736
    %vm2050 = vcmp.ge.f32.partialorder %v1469, %v1736
    %vm2051 = vcmp.ge.f32.partialorder %v1470, %v1736
    %vm2052 = vcmp.ge.f32.partialorder %v1471, %v1736
    %vm2053 = vcmp.ge.f32.partialorder %v1472, %v1741
    %vm2054 = vcmp.ge.f32.partialorder %v1473, %v1741
    %vm2055 = vcmp.ge.f32.partialorder %v1474, %v1741
    %vm2056 = vcmp.ge.f32.partialorder %v1475, %v1741
    %vm2057 = vcmp.ge.f32.partialorder %v1476, %v1746
    %vm2058 = vcmp.ge.f32.partialorder %v1477, %v1746
    %vm2059 = vcmp.ge.f32.partialorder %v1478, %v1746
    %vm2060 = vcmp.ge.f32.partialorder %v1479, %v1746
    %vm2061 = vcmp.ge.f32.partialorder %v1480, %v1751
    %vm2062 = vcmp.ge.f32.partialorder %v1481, %v1751
    %vm2063 = vcmp.ge.f32.partialorder %v1482, %v1751
    %vm2064 = vcmp.ge.f32.partialorder %v1483, %v1751
    %vm2065 = vcmp.ge.f32.partialorder %v1484, %v1756
    %vm2066 = vcmp.ge.f32.partialorder %v1485, %v1756
    %vm2067 = vcmp.ge.f32.partialorder %v1486, %v1756
    %vm2068 = vcmp.ge.f32.partialorder %v1487, %v1756
    %vm2069 = vcmp.ge.f32.partialorder %v1488, %v1761
    %vm2070 = vcmp.ge.f32.partialorder %v1489, %v1761
    %vm2071 = vcmp.ge.f32.partialorder %v1490, %v1761
    %vm2072 = vcmp.ge.f32.partialorder %v1491, %v1761
    %vm2073 = vcmp.ge.f32.partialorder %v1492, %v1766
    %vm2074 = vcmp.ge.f32.partialorder %v1493, %v1766
    %vm2075 = vcmp.ge.f32.partialorder %v1494, %v1766
    %vm2076 = vcmp.ge.f32.partialorder %v1495, %v1766
    %vm2077 = vcmp.ge.f32.partialorder %v1496, %v1771
    %vm2078 = vcmp.ge.f32.partialorder %v1497, %v1771
    %vm2079 = vcmp.ge.f32.partialorder %v1498, %v1771
    %vm2080 = vcmp.ge.f32.partialorder %v1499, %v1771
    %vm2081 = vcmp.ge.f32.partialorder %v1500, %v1776
    %vm2082 = vcmp.ge.f32.partialorder %v1501, %v1776
    %vm2083 = vcmp.ge.f32.partialorder %v1502, %v1776
    %vm2084 = vcmp.ge.f32.partialorder %v1503, %v1776
    %vm2085 = vcmp.ge.f32.partialorder %v1504, %v1781
    %vm2086 = vcmp.ge.f32.partialorder %v1505, %v1781
    %vm2087 = vcmp.ge.f32.partialorder %v1506, %v1781
    %vm2088 = vcmp.ge.f32.partialorder %v1507, %v1781
    %vm2089 = vcmp.ge.f32.partialorder %v1508, %v1786
    %vm2090 = vcmp.ge.f32.partialorder %v1509, %v1786
    %vm2091 = vcmp.ge.f32.partialorder %v1510, %v1786
    %vm2092 = vcmp.ge.f32.partialorder %v1511, %v1786
    %vm2093 = vcmp.ge.f32.partialorder %v1512, %v1791
    %vm2094 = vcmp.ge.f32.partialorder %v1513, %v1791
    %vm2095 = vcmp.ge.f32.partialorder %v1514, %v1791
    %vm2096 = vcmp.ge.f32.partialorder %v1515, %v1791
    %vm2097 = vcmp.ge.f32.partialorder %v1516, %v1796
    %vm2098 = vcmp.ge.f32.partialorder %v1517, %v1796
    %vm2099 = vcmp.ge.f32.partialorder %v1518, %v1796
    %vm2100 = vcmp.ge.f32.partialorder %v1519, %v1796
    %vm2101 = vcmp.ge.f32.partialorder %v1520, %v1801
    %vm2102 = vcmp.ge.f32.partialorder %v1521, %v1801
    %vm2103 = vcmp.ge.f32.partialorder %v1522, %v1801
    %vm2104 = vcmp.ge.f32.partialorder %v1523, %v1801
    %vm2105 = vcmp.ge.f32.partialorder %v1524, %v1806
    %vm2106 = vcmp.ge.f32.partialorder %v1525, %v1806
    %vm2107 = vcmp.ge.f32.partialorder %v1526, %v1806
    %vm2108 = vcmp.ge.f32.partialorder %v1527, %v1806
    %vm2109 = vcmp.ge.f32.partialorder %v1528, %v1811
    %vm2110 = vcmp.ge.f32.partialorder %v1529, %v1811
    %vm2111 = vcmp.ge.f32.partialorder %v1530, %v1811
    %vm2112 = vcmp.ge.f32.partialorder %v1531, %v1811
    %vm2113 = vcmp.ge.f32.partialorder %v1532, %v1816
    %vm2114 = vcmp.ge.f32.partialorder %v1533, %v1816
    %vm2115 = vcmp.ge.f32.partialorder %v1534, %v1816
    %vm2116 = vcmp.ge.f32.partialorder %v1535, %v1816
    %vm2117 = vcmp.ge.f32.partialorder %v1536, %v1821
    %vm2118 = vcmp.ge.f32.partialorder %v1537, %v1821
    %vm2119 = vcmp.ge.f32.partialorder %v1538, %v1821
    %vm2120 = vcmp.ge.f32.partialorder %v1539, %v1821
    %vm2121 = vcmp.ge.f32.partialorder %v1540, %v1826
    %vm2122 = vcmp.ge.f32.partialorder %v1541, %v1826
    %vm2123 = vcmp.ge.f32.partialorder %v1542, %v1826
    %vm2124 = vcmp.ge.f32.partialorder %v1543, %v1826
    %vm2125 = vcmp.ge.f32.partialorder %v1544, %v1831
    %vm2126 = vcmp.ge.f32.partialorder %v1545, %v1831
    %vm2127 = vcmp.ge.f32.partialorder %v1546, %v1831
    %vm2128 = vcmp.ge.f32.partialorder %v1547, %v1831
    %vm2129 = vcmp.ge.f32.partialorder %v1548, %v1836
    %vm2130 = vcmp.ge.f32.partialorder %v1549, %v1836
    %vm2131 = vcmp.ge.f32.partialorder %v1550, %v1836
    %vm2132 = vcmp.ge.f32.partialorder %v1551, %v1836
    %vm2133 = vcmp.ge.f32.partialorder %v1552, %v1841
    %vm2134 = vcmp.ge.f32.partialorder %v1553, %v1841
    %vm2135 = vcmp.ge.f32.partialorder %v1554, %v1841
    %vm2136 = vcmp.ge.f32.partialorder %v1555, %v1841
    %vm2137 = vcmp.ge.f32.partialorder %v1556, %v1846
    %vm2138 = vcmp.ge.f32.partialorder %v1557, %v1846
    %vm2139 = vcmp.ge.f32.partialorder %v1558, %v1846
    %vm2140 = vcmp.ge.f32.partialorder %v1559, %v1846
    %vm2141 = vcmp.ge.f32.partialorder %v1560, %v1851
    %vm2142 = vcmp.ge.f32.partialorder %v1561, %v1851
    %vm2143 = vcmp.ge.f32.partialorder %v1562, %v1851
    %vm2144 = vcmp.ge.f32.partialorder %v1563, %v1851
    %vm2145 = vcmp.ge.f32.partialorder %v1564, %v1856
    %vm2146 = vcmp.ge.f32.partialorder %v1565, %v1856
    %vm2147 = vcmp.ge.f32.partialorder %v1566, %v1856
    %vm2148 = vcmp.ge.f32.partialorder %v1567, %v1856
    %vm2149 = vcmp.ge.f32.partialorder %v1568, %v1861
    %vm2150 = vcmp.ge.f32.partialorder %v1569, %v1861
    %vm2151 = vcmp.ge.f32.partialorder %v1570, %v1861
    %vm2152 = vcmp.ge.f32.partialorder %v1571, %v1861
    %vm2153 = vcmp.ge.f32.partialorder %v1572, %v1866
    %vm2154 = vcmp.ge.f32.partialorder %v1573, %v1866
    %vm2155 = vcmp.ge.f32.partialorder %v1574, %v1866
    %vm2156 = vcmp.ge.f32.partialorder %v1575, %v1866
    %vm2157 = vcmp.ge.f32.partialorder %v1576, %v1871
    %vm2158 = vcmp.ge.f32.partialorder %v1577, %v1871
    %vm2159 = vcmp.ge.f32.partialorder %v1578, %v1871
    %vm2160 = vcmp.ge.f32.partialorder %v1579, %v1871
    %vm2161 = vcmp.ge.f32.partialorder %v1580, %v1876
    %vm2162 = vcmp.ge.f32.partialorder %v1581, %v1876
    %vm2163 = vcmp.ge.f32.partialorder %v1582, %v1876
    %vm2164 = vcmp.ge.f32.partialorder %v1583, %v1876
    %vm2165 = vcmp.ge.f32.partialorder %v1584, %v1881
    %vm2166 = vcmp.ge.f32.partialorder %v1585, %v1881
    %vm2167 = vcmp.ge.f32.partialorder %v1586, %v1881
    %vm2168 = vcmp.ge.f32.partialorder %v1587, %v1881
    %vm2169 = vcmp.ge.f32.partialorder %v1588, %v1886
    %vm2170 = vcmp.ge.f32.partialorder %v1589, %v1886
    %vm2171 = vcmp.ge.f32.partialorder %v1590, %v1886
    %vm2172 = vcmp.ge.f32.partialorder %v1591, %v1886
    %vm2173 = vcmp.ge.f32.partialorder %v1592, %v1891
    %vm2174 = vcmp.ge.f32.partialorder %v1593, %v1891
    %vm2175 = vcmp.ge.f32.partialorder %v1594, %v1891
    %vm2176 = vcmp.ge.f32.partialorder %v1595, %v1891
    %vm2177 = vcmp.ge.f32.partialorder %v1596, %v1896
    %vm2178 = vcmp.ge.f32.partialorder %v1597, %v1896
    %vm2179 = vcmp.ge.f32.partialorder %v1598, %v1896
    %vm2180 = vcmp.ge.f32.partialorder %v1599, %v1896
    %vm2181 = vcmp.ge.f32.partialorder %v1600, %v1901
    %vm2182 = vcmp.ge.f32.partialorder %v1601, %v1901
    %vm2183 = vcmp.ge.f32.partialorder %v1602, %v1901
    %vm2184 = vcmp.ge.f32.partialorder %v1603, %v1901
    %vm2185 = vcmp.ge.f32.partialorder %v1604, %v1906
    %vm2186 = vcmp.ge.f32.partialorder %v1605, %v1906
    %vm2187 = vcmp.ge.f32.partialorder %v1606, %v1906
    %vm2188 = vcmp.ge.f32.partialorder %v1607, %v1906
    %vm2189 = vcmp.ge.f32.partialorder %v1608, %v1911
    %vm2190 = vcmp.ge.f32.partialorder %v1609, %v1911
    %vm2191 = vcmp.ge.f32.partialorder %v1610, %v1911
    %vm2192 = vcmp.ge.f32.partialorder %v1611, %v1911
    %vm2193 = vcmp.ge.f32.partialorder %v1612, %v1916
    %vm2194 = vcmp.ge.f32.partialorder %v1613, %v1916
    %vm2195 = vcmp.ge.f32.partialorder %v1614, %v1916
    %vm2196 = vcmp.ge.f32.partialorder %v1615, %v1916
    %vm2197 = vcmp.ge.f32.partialorder %v1616, %v1921
    %vm2198 = vcmp.ge.f32.partialorder %v1617, %v1921
    %vm2199 = vcmp.ge.f32.partialorder %v1618, %v1921
    %vm2200 = vcmp.ge.f32.partialorder %v1619, %v1921
    %vm2201 = vcmp.ge.f32.partialorder %v1620, %v1926
    %vm2202 = vcmp.ge.f32.partialorder %v1621, %v1926
    %vm2203 = vcmp.ge.f32.partialorder %v1622, %v1926
    %vm2204 = vcmp.ge.f32.partialorder %v1623, %v1926
    %vm2205 = vcmp.ge.f32.partialorder %v1624, %v1931
    %vm2206 = vcmp.ge.f32.partialorder %v1625, %v1931
    %vm2207 = vcmp.ge.f32.partialorder %v1626, %v1931
    %vm2208 = vcmp.ge.f32.partialorder %v1627, %v1931
    %vm2209 = vcmp.ge.f32.partialorder %v1628, %v1936
    %vm2210 = vcmp.ge.f32.partialorder %v1629, %v1936
    %vm2211 = vcmp.ge.f32.partialorder %v1630, %v1936
    %vm2212 = vcmp.ge.f32.partialorder %v1631, %v1936
    %vm2213 = vcmp.ge.f32.partialorder %v1632, %v1941
    %vm2214 = vcmp.ge.f32.partialorder %v1633, %v1941
    %vm2215 = vcmp.ge.f32.partialorder %v1634, %v1941
    %vm2216 = vcmp.ge.f32.partialorder %v1635, %v1941
    %vm2217 = vcmp.ge.f32.partialorder %v1636, %v1946
    %vm2218 = vcmp.ge.f32.partialorder %v1637, %v1946
    %vm2219 = vcmp.ge.f32.partialorder %v1638, %v1946
    %vm2220 = vcmp.ge.f32.partialorder %v1639, %v1946
    %vm2221 = vcmp.ge.f32.partialorder %v1640, %v1951
    %vm2222 = vcmp.ge.f32.partialorder %v1641, %v1951
    %vm2223 = vcmp.ge.f32.partialorder %v1642, %v1951
    %vm2224 = vcmp.ge.f32.partialorder %v1643, %v1951
    %vm2225 = vcmp.ge.f32.partialorder %v1644, %v1956
    %vm2226 = vcmp.ge.f32.partialorder %v1645, %v1956
    %vm2227 = vcmp.ge.f32.partialorder %v1646, %v1956
    %vm2228 = vcmp.ge.f32.partialorder %v1647, %v1956
    %vm2229 = vcmp.ge.f32.partialorder %v1648, %v1961
    %vm2230 = vcmp.ge.f32.partialorder %v1649, %v1961
    %vm2231 = vcmp.ge.f32.partialorder %v1650, %v1961
    %vm2232 = vcmp.ge.f32.partialorder %v1651, %v1961
    %vm2233 = vcmp.ge.f32.partialorder %v1652, %v1966
    %vm2234 = vcmp.ge.f32.partialorder %v1653, %v1966
    %vm2235 = vcmp.ge.f32.partialorder %v1654, %v1966
    %vm2236 = vcmp.ge.f32.partialorder %v1655, %v1966
    %vm2237 = vcmp.ge.f32.partialorder %v1656, %v1971
    %vm2238 = vcmp.ge.f32.partialorder %v1657, %v1971
    %vm2239 = vcmp.ge.f32.partialorder %v1658, %v1971
    %vm2240 = vcmp.ge.f32.partialorder %v1659, %v1971
    %vm2241 = vcmp.ge.f32.partialorder %v1660, %v1976
    %vm2242 = vcmp.ge.f32.partialorder %v1661, %v1976
    %vm2243 = vcmp.ge.f32.partialorder %v1662, %v1976
    %vm2244 = vcmp.ge.f32.partialorder %v1663, %v1976
    %vm2245 = vcmp.ge.f32.partialorder %v1664, %v1981
    %vm2246 = vcmp.ge.f32.partialorder %v1665, %v1981
    %vm2247 = vcmp.ge.f32.partialorder %v1666, %v1981
    %vm2248 = vcmp.ge.f32.partialorder %v1667, %v1981
    %vm2249 = vcmp.ge.f32.partialorder %v1668, %v1986
    %vm2250 = vcmp.ge.f32.partialorder %v1669, %v1986
    %vm2251 = vcmp.ge.f32.partialorder %v1670, %v1986
    %vm2252 = vcmp.ge.f32.partialorder %v1671, %v1986
    %vm2253 = vcmp.ge.f32.partialorder %v1672, %v1991
    %vm2254 = vcmp.ge.f32.partialorder %v1673, %v1991
    %vm2255 = vcmp.ge.f32.partialorder %v1674, %v1991
    %vm2256 = vcmp.ge.f32.partialorder %v1675, %v1991
    %vm2257 = vcmp.ge.f32.partialorder %v1676, %v1996
    %vm2258 = vcmp.ge.f32.partialorder %v1677, %v1996
    %vm2259 = vcmp.ge.f32.partialorder %v1678, %v1996
    %vm2260 = vcmp.ge.f32.partialorder %v1679, %v1996
    %vm2261 = vcmp.ge.f32.partialorder %v1680, %v2001
    %vm2262 = vcmp.ge.f32.partialorder %v1681, %v2001
    %vm2263 = vcmp.ge.f32.partialorder %v1682, %v2001
    %vm2264 = vcmp.ge.f32.partialorder %v1683, %v2001
    %vm2265 = vcmp.ge.f32.partialorder %v1684, %v2006
    %vm2266 = vcmp.ge.f32.partialorder %v1685, %v2006
    %vm2267 = vcmp.ge.f32.partialorder %v1686, %v2006
    %vm2268 = vcmp.ge.f32.partialorder %v1687, %v2006
    %vm2269 = vcmp.ge.f32.partialorder %v1688, %v2011
    %vm2270 = vcmp.ge.f32.partialorder %v1689, %v2011
    %vm2271 = vcmp.ge.f32.partialorder %v1690, %v2011
    %vm2272 = vcmp.ge.f32.partialorder %v1691, %v2011
    %v2273 = vsel %vm2017, %v2013, 512
    %v2274 = vsel %vm2018, %v2014, 512
    %v2275 = vsel %vm2019, %v2015, 512
    %v2276 = vsel %vm2020, %v2016, 512
    %v2277 = vsel %vm2021, %v2013, 512
    %v2278 = vsel %vm2022, %v2014, 512
    %v2279 = vsel %vm2023, %v2015, 512
    %v2280 = vsel %vm2024, %v2016, 512
    %v2281 = vsel %vm2025, %v2013, 512
    %v2282 = vsel %vm2026, %v2014, 512
    %v2283 = vsel %vm2027, %v2015, 512
    %v2284 = vsel %vm2028, %v2016, 512
    %v2285 = vsel %vm2029, %v2013, 512
    %v2286 = vsel %vm2030, %v2014, 512
    %v2287 = vsel %vm2031, %v2015, 512
    %v2288 = vsel %vm2032, %v2016, 512
    %v2289 = vsel %vm2033, %v2013, 512
    %v2290 = vsel %vm2034, %v2014, 512
    %v2291 = vsel %vm2035, %v2015, 512
    %v2292 = vsel %vm2036, %v2016, 512
    %v2293 = vsel %vm2037, %v2013, 512
    %v2294 = vsel %vm2038, %v2014, 512
    %v2295 = vsel %vm2039, %v2015, 512
    %v2296 = vsel %vm2040, %v2016, 512
    %v2297 = vsel %vm2041, %v2013, 512
    %v2298 = vsel %vm2042, %v2014, 512
    %v2299 = vsel %vm2043, %v2015, 512
    %v2300 = vsel %vm2044, %v2016, 512
    %v2301 = vsel %vm2045, %v2013, 512
    %v2302 = vsel %vm2046, %v2014, 512
    %v2303 = vsel %vm2047, %v2015, 512
    %v2304 = vsel %vm2048, %v2016, 512
    %v2305 = vsel %vm2049, %v2013, 512
    %v2306 = vsel %vm2050, %v2014, 512
    %v2307 = vsel %vm2051, %v2015, 512
    %v2308 = vsel %vm2052, %v2016, 512
    %v2309 = vsel %vm2053, %v2013, 512
    %v2310 = vsel %vm2054, %v2014, 512
    %v2311 = vsel %vm2055, %v2015, 512
    %v2312 = vsel %vm2056, %v2016, 512
    %v2313 = vsel %vm2057, %v2013, 512
    %v2314 = vsel %vm2058, %v2014, 512
    %v2315 = vsel %vm2059, %v2015, 512
    %v2316 = vsel %vm2060, %v2016, 512
    %v2317 = vsel %vm2061, %v2013, 512
    %v2318 = vsel %vm2062, %v2014, 512
    %v2319 = vsel %vm2063, %v2015, 512
    %v2320 = vsel %vm2064, %v2016, 512
    %v2321 = vsel %vm2065, %v2013, 512
    %v2322 = vsel %vm2066, %v2014, 512
    %v2323 = vsel %vm2067, %v2015, 512
    %v2324 = vsel %vm2068, %v2016, 512
    %v2325 = vsel %vm2069, %v2013, 512
    %v2326 = vsel %vm2070, %v2014, 512
    %v2327 = vsel %vm2071, %v2015, 512
    %v2328 = vsel %vm2072, %v2016, 512
    %v2329 = vsel %vm2073, %v2013, 512
    %v2330 = vsel %vm2074, %v2014, 512
    %v2331 = vsel %vm2075, %v2015, 512
    %v2332 = vsel %vm2076, %v2016, 512
    %v2333 = vsel %vm2077, %v2013, 512
    %v2334 = vsel %vm2078, %v2014, 512
    %v2335 = vsel %vm2079, %v2015, 512
    %v2336 = vsel %vm2080, %v2016, 512
    %v2337 = vsel %vm2081, %v2013, 512
    %v2338 = vsel %vm2082, %v2014, 512
    %v2339 = vsel %vm2083, %v2015, 512
    %v2340 = vsel %vm2084, %v2016, 512
    %v2341 = vsel %vm2085, %v2013, 512
    %v2342 = vsel %vm2086, %v2014, 512
    %v2343 = vsel %vm2087, %v2015, 512
    %v2344 = vsel %vm2088, %v2016, 512
    %v2345 = vsel %vm2089, %v2013, 512
    %v2346 = vsel %vm2090, %v2014, 512
    %v2347 = vsel %vm2091, %v2015, 512
    %v2348 = vsel %vm2092, %v2016, 512
    %v2349 = vsel %vm2093, %v2013, 512
    %v2350 = vsel %vm2094, %v2014, 512
    %v2351 = vsel %vm2095, %v2015, 512
    %v2352 = vsel %vm2096, %v2016, 512
    %v2353 = vsel %vm2097, %v2013, 512
    %v2354 = vsel %vm2098, %v2014, 512
    %v2355 = vsel %vm2099, %v2015, 512
    %v2356 = vsel %vm2100, %v2016, 512
    %v2357 = vsel %vm2101, %v2013, 512
    %v2358 = vsel %vm2102, %v2014, 512
    %v2359 = vsel %vm2103, %v2015, 512
    %v2360 = vsel %vm2104, %v2016, 512
    %v2361 = vsel %vm2105, %v2013, 512
    %v2362 = vsel %vm2106, %v2014, 512
    %v2363 = vsel %vm2107, %v2015, 512
    %v2364 = vsel %vm2108, %v2016, 512
    %v2365 = vsel %vm2109, %v2013, 512
    %v2366 = vsel %vm2110, %v2014, 512
    %v2367 = vsel %vm2111, %v2015, 512
    %v2368 = vsel %vm2112, %v2016, 512
    %v2369 = vsel %vm2113, %v2013, 512
    %v2370 = vsel %vm2114, %v2014, 512
    %v2371 = vsel %vm2115, %v2015, 512
    %v2372 = vsel %vm2116, %v2016, 512
    %v2373 = vsel %vm2117, %v2013, 512
    %v2374 = vsel %vm2118, %v2014, 512
    %v2375 = vsel %vm2119, %v2015, 512
    %v2376 = vsel %vm2120, %v2016, 512
    %v2377 = vsel %vm2121, %v2013, 512
    %v2378 = vsel %vm2122, %v2014, 512
    %v2379 = vsel %vm2123, %v2015, 512
    %v2380 = vsel %vm2124, %v2016, 512
    %v2381 = vsel %vm2125, %v2013, 512
    %v2382 = vsel %vm2126, %v2014, 512
    %v2383 = vsel %vm2127, %v2015, 512
    %v2384 = vsel %vm2128, %v2016, 512
    %v2385 = vsel %vm2129, %v2013, 512
    %v2386 = vsel %vm2130, %v2014, 512
    %v2387 = vsel %vm2131, %v2015, 512
    %v2388 = vsel %vm2132, %v2016, 512
    %v2389 = vsel %vm2133, %v2013, 512
    %v2390 = vsel %vm2134, %v2014, 512
    %v2391 = vsel %vm2135, %v2015, 512
    %v2392 = vsel %vm2136, %v2016, 512
    %v2393 = vsel %vm2137, %v2013, 512
    %v2394 = vsel %vm2138, %v2014, 512
    %v2395 = vsel %vm2139, %v2015, 512
    %v2396 = vsel %vm2140, %v2016, 512
    %v2397 = vsel %vm2141, %v2013, 512
    %v2398 = vsel %vm2142, %v2014, 512
    %v2399 = vsel %vm2143, %v2015, 512
    %v2400 = vsel %vm2144, %v2016, 512
    %v2401 = vsel %vm2145, %v2013, 512
    %v2402 = vsel %vm2146, %v2014, 512
    %v2403 = vsel %vm2147, %v2015, 512
    %v2404 = vsel %vm2148, %v2016, 512
    %v2405 = vsel %vm2149, %v2013, 512
    %v2406 = vsel %vm2150, %v2014, 512
    %v2407 = vsel %vm2151, %v2015, 512
    %v2408 = vsel %vm2152, %v2016, 512
    %v2409 = vsel %vm2153, %v2013, 512
    %v2410 = vsel %vm2154, %v2014, 512
    %v2411 = vsel %vm2155, %v2015, 512
    %v2412 = vsel %vm2156, %v2016, 512
    %v2413 = vsel %vm2157, %v2013, 512
    %v2414 = vsel %vm2158, %v2014, 512
    %v2415 = vsel %vm2159, %v2015, 512
    %v2416 = vsel %vm2160, %v2016, 512
    %v2417 = vsel %vm2161, %v2013, 512
    %v2418 = vsel %vm2162, %v2014, 512
    %v2419 = vsel %vm2163, %v2015, 512
    %v2420 = vsel %vm2164, %v2016, 512
    %v2421 = vsel %vm2165, %v2013, 512
    %v2422 = vsel %vm2166, %v2014, 512
    %v2423 = vsel %vm2167, %v2015, 512
    %v2424 = vsel %vm2168, %v2016, 512
    %v2425 = vsel %vm2169, %v2013, 512
    %v2426 = vsel %vm2170, %v2014, 512
    %v2427 = vsel %vm2171, %v2015, 512
    %v2428 = vsel %vm2172, %v2016, 512
    %v2429 = vsel %vm2173, %v2013, 512
    %v2430 = vsel %vm2174, %v2014, 512
    %v2431 = vsel %vm2175, %v2015, 512
    %v2432 = vsel %vm2176, %v2016, 512
    %v2433 = vsel %vm2177, %v2013, 512
    %v2434 = vsel %vm2178, %v2014, 512
    %v2435 = vsel %vm2179, %v2015, 512
    %v2436 = vsel %vm2180, %v2016, 512
    %v2437 = vsel %vm2181, %v2013, 512
    %v2438 = vsel %vm2182, %v2014, 512
    %v2439 = vsel %vm2183, %v2015, 512
    %v2440 = vsel %vm2184, %v2016, 512
    %v2441 = vsel %vm2185, %v2013, 512
    %v2442 = vsel %vm2186, %v2014, 512
    %v2443 = vsel %vm2187, %v2015, 512
    %v2444 = vsel %vm2188, %v2016, 512
    %v2445 = vsel %vm2189, %v2013, 512
    %v2446 = vsel %vm2190, %v2014, 512
    %v2447 = vsel %vm2191, %v2015, 512
    %v2448 = vsel %vm2192, %v2016, 512
    %v2449 = vsel %vm2193, %v2013, 512
    %v2450 = vsel %vm2194, %v2014, 512
    %v2451 = vsel %vm2195, %v2015, 512
    %v2452 = vsel %vm2196, %v2016, 512
    %v2453 = vsel %vm2197, %v2013, 512
    %v2454 = vsel %vm2198, %v2014, 512
    %v2455 = vsel %vm2199, %v2015, 512
    %v2456 = vsel %vm2200, %v2016, 512
    %v2457 = vsel %vm2201, %v2013, 512
    %v2458 = vsel %vm2202, %v2014, 512
    %v2459 = vsel %vm2203, %v2015, 512
    %v2460 = vsel %vm2204, %v2016, 512
    %v2461 = vsel %vm2205, %v2013, 512
    %v2462 = vsel %vm2206, %v2014, 512
    %v2463 = vsel %vm2207, %v2015, 512
    %v2464 = vsel %vm2208, %v2016, 512
    %v2465 = vsel %vm2209, %v2013, 512
    %v2466 = vsel %vm2210, %v2014, 512
    %v2467 = vsel %vm2211, %v2015, 512
    %v2468 = vsel %vm2212, %v2016, 512
    %v2469 = vsel %vm2213, %v2013, 512
    %v2470 = vsel %vm2214, %v2014, 512
    %v2471 = vsel %vm2215, %v2015, 512
    %v2472 = vsel %vm2216, %v2016, 512
    %v2473 = vsel %vm2217, %v2013, 512
    %v2474 = vsel %vm2218, %v2014, 512
    %v2475 = vsel %vm2219, %v2015, 512
    %v2476 = vsel %vm2220, %v2016, 512
    %v2477 = vsel %vm2221, %v2013, 512
    %v2478 = vsel %vm2222, %v2014, 512
    %v2479 = vsel %vm2223, %v2015, 512
    %v2480 = vsel %vm2224, %v2016, 512
    %v2481 = vsel %vm2225, %v2013, 512
    %v2482 = vsel %vm2226, %v2014, 512
    %v2483 = vsel %vm2227, %v2015, 512
    %v2484 = vsel %vm2228, %v2016, 512
    %v2485 = vsel %vm2229, %v2013, 512
    %v2486 = vsel %vm2230, %v2014, 512
    %v2487 = vsel %vm2231, %v2015, 512
    %v2488 = vsel %vm2232, %v2016, 512
    %v2489 = vsel %vm2233, %v2013, 512
    %v2490 = vsel %vm2234, %v2014, 512
    %v2491 = vsel %vm2235, %v2015, 512
    %v2492 = vsel %vm2236, %v2016, 512
    %v2493 = vsel %vm2237, %v2013, 512
    %v2494 = vsel %vm2238, %v2014, 512
    %v2495 = vsel %vm2239, %v2015, 512
    %v2496 = vsel %vm2240, %v2016, 512
    %v2497 = vsel %vm2241, %v2013, 512
    %v2498 = vsel %vm2242, %v2014, 512
    %v2499 = vsel %vm2243, %v2015, 512
    %v2500 = vsel %vm2244, %v2016, 512
    %v2501 = vsel %vm2245, %v2013, 512
    %v2502 = vsel %vm2246, %v2014, 512
    %v2503 = vsel %vm2247, %v2015, 512
    %v2504 = vsel %vm2248, %v2016, 512
    %v2505 = vsel %vm2249, %v2013, 512
    %v2506 = vsel %vm2250, %v2014, 512
    %v2507 = vsel %vm2251, %v2015, 512
    %v2508 = vsel %vm2252, %v2016, 512
    %v2509 = vsel %vm2253, %v2013, 512
    %v2510 = vsel %vm2254, %v2014, 512
    %v2511 = vsel %vm2255, %v2015, 512
    %v2512 = vsel %vm2256, %v2016, 512
    %v2513 = vsel %vm2257, %v2013, 512
    %v2514 = vsel %vm2258, %v2014, 512
    %v2515 = vsel %vm2259, %v2015, 512
    %v2516 = vsel %vm2260, %v2016, 512
    %v2517 = vsel %vm2261, %v2013, 512
    %v2518 = vsel %vm2262, %v2014, 512
    %v2519 = vsel %vm2263, %v2015, 512
    %v2520 = vsel %vm2264, %v2016, 512
    %v2521 = vsel %vm2265, %v2013, 512
    %v2522 = vsel %vm2266, %v2014, 512
    %v2523 = vsel %vm2267, %v2015, 512
    %v2524 = vsel %vm2268, %v2016, 512
    %v2525 = vsel %vm2269, %v2013, 512
    %v2526 = vsel %vm2270, %v2014, 512
    %v2527 = vsel %vm2271, %v2015, 512
    %v2528 = vsel %vm2272, %v2016, 512
    %vm2529 = vcmp.lt.s32.totalorder %v2273, %v2274
    %v2530 = vsel %vm2529, %v2273, %v2274
    %vm2531 = vcmp.lt.s32.totalorder %v2530, %v2275
    %v2532 = vsel %vm2531, %v2530, %v2275
    %vm2533 = vcmp.lt.s32.totalorder %v2532, %v2276
    %v2534 = vsel %vm2533, %v2532, %v2276
    %v2535 = vand.u32 %v2534, 65535
    %v2536 = vshra.s32 %v2534, 16
    %v2537 = vcvt.s32.f32 %v2535
    %v2538 = vcvt.s32.f32 %v2536
    %2539 = vmin.xlane.f32.xlu0 %v2538
    %v2540 = vpop.xlane.xlu0 %2539
    %vm2541 = vcmp.eq.f32.partialorder %v2538, %v2540
    %v2542 = vsel %vm2541, %v2537, inf
    %2543 = vmin.xlane.f32.xlu0 %v2542
    %v2544 = vpop.xlane.xlu0 %2543
    %v2545 = vcvt.f32.s32 %v2544
    %v2546 = vcvt.f32.s32 %v2540
    %v2547 = vshll.u32 %v2546, 16
    %v2548 = vadd.s32 %v2547, %v2545
    %vm2549 = vcmp.lt.s32.totalorder %v2277, %v2278
    %v2550 = vsel %vm2549, %v2277, %v2278
    %vm2551 = vcmp.lt.s32.totalorder %v2550, %v2279
    %v2552 = vsel %vm2551, %v2550, %v2279
    %vm2553 = vcmp.lt.s32.totalorder %v2552, %v2280
    %v2554 = vsel %vm2553, %v2552, %v2280
    %v2555 = vand.u32 %v2554, 65535
    %v2556 = vshra.s32 %v2554, 16
    %v2557 = vcvt.s32.f32 %v2555
    %v2558 = vcvt.s32.f32 %v2556
    %2559 = vmin.xlane.f32.xlu0 %v2558
    %v2560 = vpop.xlane.xlu0 %2559
    %vm2561 = vcmp.eq.f32.partialorder %v2558, %v2560
    %v2562 = vsel %vm2561, %v2557, inf
    %2563 = vmin.xlane.f32.xlu0 %v2562
    %v2564 = vpop.xlane.xlu0 %2563
    %v2565 = vcvt.f32.s32 %v2564
    %v2566 = vcvt.f32.s32 %v2560
    %v2567 = vshll.u32 %v2566, 16
    %v2568 = vadd.s32 %v2567, %v2565
    %vm2569 = vcmp.lt.s32.totalorder %v2281, %v2282
    %v2570 = vsel %vm2569, %v2281, %v2282
    %vm2571 = vcmp.lt.s32.totalorder %v2570, %v2283
    %v2572 = vsel %vm2571, %v2570, %v2283
    %vm2573 = vcmp.lt.s32.totalorder %v2572, %v2284
    %v2574 = vsel %vm2573, %v2572, %v2284
    %v2575 = vand.u32 %v2574, 65535
    %v2576 = vshra.s32 %v2574, 16
    %v2577 = vcvt.s32.f32 %v2575
    %v2578 = vcvt.s32.f32 %v2576
    %2579 = vmin.xlane.f32.xlu0 %v2578
    %v2580 = vpop.xlane.xlu0 %2579
    %vm2581 = vcmp.eq.f32.partialorder %v2578, %v2580
    %v2582 = vsel %vm2581, %v2577, inf
    %2583 = vmin.xlane.f32.xlu0 %v2582
    %v2584 = vpop.xlane.xlu0 %2583
    %v2585 = vcvt.f32.s32 %v2584
    %v2586 = vcvt.f32.s32 %v2580
    %v2587 = vshll.u32 %v2586, 16
    %v2588 = vadd.s32 %v2587, %v2585
    %vm2589 = vcmp.lt.s32.totalorder %v2285, %v2286
    %v2590 = vsel %vm2589, %v2285, %v2286
    %vm2591 = vcmp.lt.s32.totalorder %v2590, %v2287
    %v2592 = vsel %vm2591, %v2590, %v2287
    %vm2593 = vcmp.lt.s32.totalorder %v2592, %v2288
    %v2594 = vsel %vm2593, %v2592, %v2288
    %v2595 = vand.u32 %v2594, 65535
    %v2596 = vshra.s32 %v2594, 16
    %v2597 = vcvt.s32.f32 %v2595
    %v2598 = vcvt.s32.f32 %v2596
    %2599 = vmin.xlane.f32.xlu0 %v2598
    %v2600 = vpop.xlane.xlu0 %2599
    %vm2601 = vcmp.eq.f32.partialorder %v2598, %v2600
    %v2602 = vsel %vm2601, %v2597, inf
    %2603 = vmin.xlane.f32.xlu0 %v2602
    %v2604 = vpop.xlane.xlu0 %2603
    %v2605 = vcvt.f32.s32 %v2604
    %v2606 = vcvt.f32.s32 %v2600
    %v2607 = vshll.u32 %v2606, 16
    %v2608 = vadd.s32 %v2607, %v2605
    %vm2609 = vcmp.lt.s32.totalorder %v2289, %v2290
    %v2610 = vsel %vm2609, %v2289, %v2290
    %vm2611 = vcmp.lt.s32.totalorder %v2610, %v2291
    %v2612 = vsel %vm2611, %v2610, %v2291
    %vm2613 = vcmp.lt.s32.totalorder %v2612, %v2292
    %v2614 = vsel %vm2613, %v2612, %v2292
    %v2615 = vand.u32 %v2614, 65535
    %v2616 = vshra.s32 %v2614, 16
    %v2617 = vcvt.s32.f32 %v2615
    %v2618 = vcvt.s32.f32 %v2616
    %2619 = vmin.xlane.f32.xlu0 %v2618
    %v2620 = vpop.xlane.xlu0 %2619
    %vm2621 = vcmp.eq.f32.partialorder %v2618, %v2620
    %v2622 = vsel %vm2621, %v2617, inf
    %2623 = vmin.xlane.f32.xlu0 %v2622
    %v2624 = vpop.xlane.xlu0 %2623
    %v2625 = vcvt.f32.s32 %v2624
    %v2626 = vcvt.f32.s32 %v2620
    %v2627 = vshll.u32 %v2626, 16
    %v2628 = vadd.s32 %v2627, %v2625
    %vm2629 = vcmp.lt.s32.totalorder %v2293, %v2294
    %v2630 = vsel %vm2629, %v2293, %v2294
    %vm2631 = vcmp.lt.s32.totalorder %v2630, %v2295
    %v2632 = vsel %vm2631, %v2630, %v2295
    %vm2633 = vcmp.lt.s32.totalorder %v2632, %v2296
    %v2634 = vsel %vm2633, %v2632, %v2296
    %v2635 = vand.u32 %v2634, 65535
    %v2636 = vshra.s32 %v2634, 16
    %v2637 = vcvt.s32.f32 %v2635
    %v2638 = vcvt.s32.f32 %v2636
    %2639 = vmin.xlane.f32.xlu0 %v2638
    %v2640 = vpop.xlane.xlu0 %2639
    %vm2641 = vcmp.eq.f32.partialorder %v2638, %v2640
    %v2642 = vsel %vm2641, %v2637, inf
    %2643 = vmin.xlane.f32.xlu0 %v2642
    %v2644 = vpop.xlane.xlu0 %2643
    %v2645 = vcvt.f32.s32 %v2644
    %v2646 = vcvt.f32.s32 %v2640
    %v2647 = vshll.u32 %v2646, 16
    %v2648 = vadd.s32 %v2647, %v2645
    %vm2649 = vcmp.lt.s32.totalorder %v2297, %v2298
    %v2650 = vsel %vm2649, %v2297, %v2298
    %vm2651 = vcmp.lt.s32.totalorder %v2650, %v2299
    %v2652 = vsel %vm2651, %v2650, %v2299
    %vm2653 = vcmp.lt.s32.totalorder %v2652, %v2300
    %v2654 = vsel %vm2653, %v2652, %v2300
    %v2655 = vand.u32 %v2654, 65535
    %v2656 = vshra.s32 %v2654, 16
    %v2657 = vcvt.s32.f32 %v2655
    %v2658 = vcvt.s32.f32 %v2656
    %2659 = vmin.xlane.f32.xlu0 %v2658
    %v2660 = vpop.xlane.xlu0 %2659
    %vm2661 = vcmp.eq.f32.partialorder %v2658, %v2660
    %v2662 = vsel %vm2661, %v2657, inf
    %2663 = vmin.xlane.f32.xlu0 %v2662
    %v2664 = vpop.xlane.xlu0 %2663
    %v2665 = vcvt.f32.s32 %v2664
    %v2666 = vcvt.f32.s32 %v2660
    %v2667 = vshll.u32 %v2666, 16
    %v2668 = vadd.s32 %v2667, %v2665
    %vm2669 = vcmp.lt.s32.totalorder %v2301, %v2302
    %v2670 = vsel %vm2669, %v2301, %v2302
    %vm2671 = vcmp.lt.s32.totalorder %v2670, %v2303
    %v2672 = vsel %vm2671, %v2670, %v2303
    %vm2673 = vcmp.lt.s32.totalorder %v2672, %v2304
    %v2674 = vsel %vm2673, %v2672, %v2304
    %v2675 = vand.u32 %v2674, 65535
    %v2676 = vshra.s32 %v2674, 16
    %v2677 = vcvt.s32.f32 %v2675
    %v2678 = vcvt.s32.f32 %v2676
    %2679 = vmin.xlane.f32.xlu0 %v2678
    %v2680 = vpop.xlane.xlu0 %2679
    %vm2681 = vcmp.eq.f32.partialorder %v2678, %v2680
    %v2682 = vsel %vm2681, %v2677, inf
    %2683 = vmin.xlane.f32.xlu0 %v2682
    %v2684 = vpop.xlane.xlu0 %2683
    %v2685 = vcvt.f32.s32 %v2684
    %v2686 = vcvt.f32.s32 %v2680
    %v2687 = vshll.u32 %v2686, 16
    %v2688 = vadd.s32 %v2687, %v2685
    %vm2689 = vcmp.lt.s32.totalorder %v2305, %v2306
    %v2690 = vsel %vm2689, %v2305, %v2306
    %vm2691 = vcmp.lt.s32.totalorder %v2690, %v2307
    %v2692 = vsel %vm2691, %v2690, %v2307
    %vm2693 = vcmp.lt.s32.totalorder %v2692, %v2308
    %v2694 = vsel %vm2693, %v2692, %v2308
    %v2695 = vand.u32 %v2694, 65535
    %v2696 = vshra.s32 %v2694, 16
    %v2697 = vcvt.s32.f32 %v2695
    %v2698 = vcvt.s32.f32 %v2696
    %2699 = vmin.xlane.f32.xlu0 %v2698
    %v2700 = vpop.xlane.xlu0 %2699
    %vm2701 = vcmp.eq.f32.partialorder %v2698, %v2700
    %v2702 = vsel %vm2701, %v2697, inf
    %2703 = vmin.xlane.f32.xlu0 %v2702
    %v2704 = vpop.xlane.xlu0 %2703
    %v2705 = vcvt.f32.s32 %v2704
    %v2706 = vcvt.f32.s32 %v2700
    %v2707 = vshll.u32 %v2706, 16
    %v2708 = vadd.s32 %v2707, %v2705
    %vm2709 = vcmp.lt.s32.totalorder %v2309, %v2310
    %v2710 = vsel %vm2709, %v2309, %v2310
    %vm2711 = vcmp.lt.s32.totalorder %v2710, %v2311
    %v2712 = vsel %vm2711, %v2710, %v2311
    %vm2713 = vcmp.lt.s32.totalorder %v2712, %v2312
    %v2714 = vsel %vm2713, %v2712, %v2312
    %v2715 = vand.u32 %v2714, 65535
    %v2716 = vshra.s32 %v2714, 16
    %v2717 = vcvt.s32.f32 %v2715
    %v2718 = vcvt.s32.f32 %v2716
    %2719 = vmin.xlane.f32.xlu0 %v2718
    %v2720 = vpop.xlane.xlu0 %2719
    %vm2721 = vcmp.eq.f32.partialorder %v2718, %v2720
    %v2722 = vsel %vm2721, %v2717, inf
    %2723 = vmin.xlane.f32.xlu0 %v2722
    %v2724 = vpop.xlane.xlu0 %2723
    %v2725 = vcvt.f32.s32 %v2724
    %v2726 = vcvt.f32.s32 %v2720
    %v2727 = vshll.u32 %v2726, 16
    %v2728 = vadd.s32 %v2727, %v2725
    %vm2729 = vcmp.lt.s32.totalorder %v2313, %v2314
    %v2730 = vsel %vm2729, %v2313, %v2314
    %vm2731 = vcmp.lt.s32.totalorder %v2730, %v2315
    %v2732 = vsel %vm2731, %v2730, %v2315
    %vm2733 = vcmp.lt.s32.totalorder %v2732, %v2316
    %v2734 = vsel %vm2733, %v2732, %v2316
    %v2735 = vand.u32 %v2734, 65535
    %v2736 = vshra.s32 %v2734, 16
    %v2737 = vcvt.s32.f32 %v2735
    %v2738 = vcvt.s32.f32 %v2736
    %2739 = vmin.xlane.f32.xlu0 %v2738
    %v2740 = vpop.xlane.xlu0 %2739
    %vm2741 = vcmp.eq.f32.partialorder %v2738, %v2740
    %v2742 = vsel %vm2741, %v2737, inf
    %2743 = vmin.xlane.f32.xlu0 %v2742
    %v2744 = vpop.xlane.xlu0 %2743
    %v2745 = vcvt.f32.s32 %v2744
    %v2746 = vcvt.f32.s32 %v2740
    %v2747 = vshll.u32 %v2746, 16
    %v2748 = vadd.s32 %v2747, %v2745
    %vm2749 = vcmp.lt.s32.totalorder %v2317, %v2318
    %v2750 = vsel %vm2749, %v2317, %v2318
    %vm2751 = vcmp.lt.s32.totalorder %v2750, %v2319
    %v2752 = vsel %vm2751, %v2750, %v2319
    %vm2753 = vcmp.lt.s32.totalorder %v2752, %v2320
    %v2754 = vsel %vm2753, %v2752, %v2320
    %v2755 = vand.u32 %v2754, 65535
    %v2756 = vshra.s32 %v2754, 16
    %v2757 = vcvt.s32.f32 %v2755
    %v2758 = vcvt.s32.f32 %v2756
    %2759 = vmin.xlane.f32.xlu0 %v2758
    %v2760 = vpop.xlane.xlu0 %2759
    %vm2761 = vcmp.eq.f32.partialorder %v2758, %v2760
    %v2762 = vsel %vm2761, %v2757, inf
    %2763 = vmin.xlane.f32.xlu0 %v2762
    %v2764 = vpop.xlane.xlu0 %2763
    %v2765 = vcvt.f32.s32 %v2764
    %v2766 = vcvt.f32.s32 %v2760
    %v2767 = vshll.u32 %v2766, 16
    %v2768 = vadd.s32 %v2767, %v2765
    %vm2769 = vcmp.lt.s32.totalorder %v2321, %v2322
    %v2770 = vsel %vm2769, %v2321, %v2322
    %vm2771 = vcmp.lt.s32.totalorder %v2770, %v2323
    %v2772 = vsel %vm2771, %v2770, %v2323
    %vm2773 = vcmp.lt.s32.totalorder %v2772, %v2324
    %v2774 = vsel %vm2773, %v2772, %v2324
    %v2775 = vand.u32 %v2774, 65535
    %v2776 = vshra.s32 %v2774, 16
    %v2777 = vcvt.s32.f32 %v2775
    %v2778 = vcvt.s32.f32 %v2776
    %2779 = vmin.xlane.f32.xlu0 %v2778
    %v2780 = vpop.xlane.xlu0 %2779
    %vm2781 = vcmp.eq.f32.partialorder %v2778, %v2780
    %v2782 = vsel %vm2781, %v2777, inf
    %2783 = vmin.xlane.f32.xlu0 %v2782
    %v2784 = vpop.xlane.xlu0 %2783
    %v2785 = vcvt.f32.s32 %v2784
    %v2786 = vcvt.f32.s32 %v2780
    %v2787 = vshll.u32 %v2786, 16
    %v2788 = vadd.s32 %v2787, %v2785
    %vm2789 = vcmp.lt.s32.totalorder %v2325, %v2326
    %v2790 = vsel %vm2789, %v2325, %v2326
    %vm2791 = vcmp.lt.s32.totalorder %v2790, %v2327
    %v2792 = vsel %vm2791, %v2790, %v2327
    %vm2793 = vcmp.lt.s32.totalorder %v2792, %v2328
    %v2794 = vsel %vm2793, %v2792, %v2328
    %v2795 = vand.u32 %v2794, 65535
    %v2796 = vshra.s32 %v2794, 16
    %v2797 = vcvt.s32.f32 %v2795
    %v2798 = vcvt.s32.f32 %v2796
    %2799 = vmin.xlane.f32.xlu0 %v2798
    %v2800 = vpop.xlane.xlu0 %2799
    %vm2801 = vcmp.eq.f32.partialorder %v2798, %v2800
    %v2802 = vsel %vm2801, %v2797, inf
    %2803 = vmin.xlane.f32.xlu0 %v2802
    %v2804 = vpop.xlane.xlu0 %2803
    %v2805 = vcvt.f32.s32 %v2804
    %v2806 = vcvt.f32.s32 %v2800
    %v2807 = vshll.u32 %v2806, 16
    %v2808 = vadd.s32 %v2807, %v2805
    %vm2809 = vcmp.lt.s32.totalorder %v2329, %v2330
    %v2810 = vsel %vm2809, %v2329, %v2330
    %vm2811 = vcmp.lt.s32.totalorder %v2810, %v2331
    %v2812 = vsel %vm2811, %v2810, %v2331
    %vm2813 = vcmp.lt.s32.totalorder %v2812, %v2332
    %v2814 = vsel %vm2813, %v2812, %v2332
    %v2815 = vand.u32 %v2814, 65535
    %v2816 = vshra.s32 %v2814, 16
    %v2817 = vcvt.s32.f32 %v2815
    %v2818 = vcvt.s32.f32 %v2816
    %2819 = vmin.xlane.f32.xlu0 %v2818
    %v2820 = vpop.xlane.xlu0 %2819
    %vm2821 = vcmp.eq.f32.partialorder %v2818, %v2820
    %v2822 = vsel %vm2821, %v2817, inf
    %2823 = vmin.xlane.f32.xlu0 %v2822
    %v2824 = vpop.xlane.xlu0 %2823
    %v2825 = vcvt.f32.s32 %v2824
    %v2826 = vcvt.f32.s32 %v2820
    %v2827 = vshll.u32 %v2826, 16
    %v2828 = vadd.s32 %v2827, %v2825
    %vm2829 = vcmp.lt.s32.totalorder %v2333, %v2334
    %v2830 = vsel %vm2829, %v2333, %v2334
    %vm2831 = vcmp.lt.s32.totalorder %v2830, %v2335
    %v2832 = vsel %vm2831, %v2830, %v2335
    %vm2833 = vcmp.lt.s32.totalorder %v2832, %v2336
    %v2834 = vsel %vm2833, %v2832, %v2336
    %v2835 = vand.u32 %v2834, 65535
    %v2836 = vshra.s32 %v2834, 16
    %v2837 = vcvt.s32.f32 %v2835
    %v2838 = vcvt.s32.f32 %v2836
    %2839 = vmin.xlane.f32.xlu0 %v2838
    %v2840 = vpop.xlane.xlu0 %2839
    %vm2841 = vcmp.eq.f32.partialorder %v2838, %v2840
    %v2842 = vsel %vm2841, %v2837, inf
    %2843 = vmin.xlane.f32.xlu0 %v2842
    %v2844 = vpop.xlane.xlu0 %2843
    %v2845 = vcvt.f32.s32 %v2844
    %v2846 = vcvt.f32.s32 %v2840
    %v2847 = vshll.u32 %v2846, 16
    %v2848 = vadd.s32 %v2847, %v2845
    %vm2849 = vcmp.lt.s32.totalorder %v2337, %v2338
    %v2850 = vsel %vm2849, %v2337, %v2338
    %vm2851 = vcmp.lt.s32.totalorder %v2850, %v2339
    %v2852 = vsel %vm2851, %v2850, %v2339
    %vm2853 = vcmp.lt.s32.totalorder %v2852, %v2340
    %v2854 = vsel %vm2853, %v2852, %v2340
    %v2855 = vand.u32 %v2854, 65535
    %v2856 = vshra.s32 %v2854, 16
    %v2857 = vcvt.s32.f32 %v2855
    %v2858 = vcvt.s32.f32 %v2856
    %2859 = vmin.xlane.f32.xlu0 %v2858
    %v2860 = vpop.xlane.xlu0 %2859
    %vm2861 = vcmp.eq.f32.partialorder %v2858, %v2860
    %v2862 = vsel %vm2861, %v2857, inf
    %2863 = vmin.xlane.f32.xlu0 %v2862
    %v2864 = vpop.xlane.xlu0 %2863
    %v2865 = vcvt.f32.s32 %v2864
    %v2866 = vcvt.f32.s32 %v2860
    %v2867 = vshll.u32 %v2866, 16
    %v2868 = vadd.s32 %v2867, %v2865
    %vm2869 = vcmp.lt.s32.totalorder %v2341, %v2342
    %v2870 = vsel %vm2869, %v2341, %v2342
    %vm2871 = vcmp.lt.s32.totalorder %v2870, %v2343
    %v2872 = vsel %vm2871, %v2870, %v2343
    %vm2873 = vcmp.lt.s32.totalorder %v2872, %v2344
    %v2874 = vsel %vm2873, %v2872, %v2344
    %v2875 = vand.u32 %v2874, 65535
    %v2876 = vshra.s32 %v2874, 16
    %v2877 = vcvt.s32.f32 %v2875
    %v2878 = vcvt.s32.f32 %v2876
    %2879 = vmin.xlane.f32.xlu0 %v2878
    %v2880 = vpop.xlane.xlu0 %2879
    %vm2881 = vcmp.eq.f32.partialorder %v2878, %v2880
    %v2882 = vsel %vm2881, %v2877, inf
    %2883 = vmin.xlane.f32.xlu0 %v2882
    %v2884 = vpop.xlane.xlu0 %2883
    %v2885 = vcvt.f32.s32 %v2884
    %v2886 = vcvt.f32.s32 %v2880
    %v2887 = vshll.u32 %v2886, 16
    %v2888 = vadd.s32 %v2887, %v2885
    %vm2889 = vcmp.lt.s32.totalorder %v2345, %v2346
    %v2890 = vsel %vm2889, %v2345, %v2346
    %vm2891 = vcmp.lt.s32.totalorder %v2890, %v2347
    %v2892 = vsel %vm2891, %v2890, %v2347
    %vm2893 = vcmp.lt.s32.totalorder %v2892, %v2348
    %v2894 = vsel %vm2893, %v2892, %v2348
    %v2895 = vand.u32 %v2894, 65535
    %v2896 = vshra.s32 %v2894, 16
    %v2897 = vcvt.s32.f32 %v2895
    %v2898 = vcvt.s32.f32 %v2896
    %2899 = vmin.xlane.f32.xlu0 %v2898
    %v2900 = vpop.xlane.xlu0 %2899
    %vm2901 = vcmp.eq.f32.partialorder %v2898, %v2900
    %v2902 = vsel %vm2901, %v2897, inf
    %2903 = vmin.xlane.f32.xlu0 %v2902
    %v2904 = vpop.xlane.xlu0 %2903
    %v2905 = vcvt.f32.s32 %v2904
    %v2906 = vcvt.f32.s32 %v2900
    %v2907 = vshll.u32 %v2906, 16
    %v2908 = vadd.s32 %v2907, %v2905
    %vm2909 = vcmp.lt.s32.totalorder %v2349, %v2350
    %v2910 = vsel %vm2909, %v2349, %v2350
    %vm2911 = vcmp.lt.s32.totalorder %v2910, %v2351
    %v2912 = vsel %vm2911, %v2910, %v2351
    %vm2913 = vcmp.lt.s32.totalorder %v2912, %v2352
    %v2914 = vsel %vm2913, %v2912, %v2352
    %v2915 = vand.u32 %v2914, 65535
    %v2916 = vshra.s32 %v2914, 16
    %v2917 = vcvt.s32.f32 %v2915
    %v2918 = vcvt.s32.f32 %v2916
    %2919 = vmin.xlane.f32.xlu0 %v2918
    %v2920 = vpop.xlane.xlu0 %2919
    %vm2921 = vcmp.eq.f32.partialorder %v2918, %v2920
    %v2922 = vsel %vm2921, %v2917, inf
    %2923 = vmin.xlane.f32.xlu0 %v2922
    %v2924 = vpop.xlane.xlu0 %2923
    %v2925 = vcvt.f32.s32 %v2924
    %v2926 = vcvt.f32.s32 %v2920
    %v2927 = vshll.u32 %v2926, 16
    %v2928 = vadd.s32 %v2927, %v2925
    %vm2929 = vcmp.lt.s32.totalorder %v2353, %v2354
    %v2930 = vsel %vm2929, %v2353, %v2354
    %vm2931 = vcmp.lt.s32.totalorder %v2930, %v2355
    %v2932 = vsel %vm2931, %v2930, %v2355
    %vm2933 = vcmp.lt.s32.totalorder %v2932, %v2356
    %v2934 = vsel %vm2933, %v2932, %v2356
    %v2935 = vand.u32 %v2934, 65535
    %v2936 = vshra.s32 %v2934, 16
    %v2937 = vcvt.s32.f32 %v2935
    %v2938 = vcvt.s32.f32 %v2936
    %2939 = vmin.xlane.f32.xlu0 %v2938
    %v2940 = vpop.xlane.xlu0 %2939
    %vm2941 = vcmp.eq.f32.partialorder %v2938, %v2940
    %v2942 = vsel %vm2941, %v2937, inf
    %2943 = vmin.xlane.f32.xlu0 %v2942
    %v2944 = vpop.xlane.xlu0 %2943
    %v2945 = vcvt.f32.s32 %v2944
    %v2946 = vcvt.f32.s32 %v2940
    %v2947 = vshll.u32 %v2946, 16
    %v2948 = vadd.s32 %v2947, %v2945
    %vm2949 = vcmp.lt.s32.totalorder %v2357, %v2358
    %v2950 = vsel %vm2949, %v2357, %v2358
    %vm2951 = vcmp.lt.s32.totalorder %v2950, %v2359
    %v2952 = vsel %vm2951, %v2950, %v2359
    %vm2953 = vcmp.lt.s32.totalorder %v2952, %v2360
    %v2954 = vsel %vm2953, %v2952, %v2360
    %v2955 = vand.u32 %v2954, 65535
    %v2956 = vshra.s32 %v2954, 16
    %v2957 = vcvt.s32.f32 %v2955
    %v2958 = vcvt.s32.f32 %v2956
    %2959 = vmin.xlane.f32.xlu0 %v2958
    %v2960 = vpop.xlane.xlu0 %2959
    %vm2961 = vcmp.eq.f32.partialorder %v2958, %v2960
    %v2962 = vsel %vm2961, %v2957, inf
    %2963 = vmin.xlane.f32.xlu0 %v2962
    %v2964 = vpop.xlane.xlu0 %2963
    %v2965 = vcvt.f32.s32 %v2964
    %v2966 = vcvt.f32.s32 %v2960
    %v2967 = vshll.u32 %v2966, 16
    %v2968 = vadd.s32 %v2967, %v2965
    %vm2969 = vcmp.lt.s32.totalorder %v2361, %v2362
    %v2970 = vsel %vm2969, %v2361, %v2362
    %vm2971 = vcmp.lt.s32.totalorder %v2970, %v2363
    %v2972 = vsel %vm2971, %v2970, %v2363
    %vm2973 = vcmp.lt.s32.totalorder %v2972, %v2364
    %v2974 = vsel %vm2973, %v2972, %v2364
    %v2975 = vand.u32 %v2974, 65535
    %v2976 = vshra.s32 %v2974, 16
    %v2977 = vcvt.s32.f32 %v2975
    %v2978 = vcvt.s32.f32 %v2976
    %2979 = vmin.xlane.f32.xlu0 %v2978
    %v2980 = vpop.xlane.xlu0 %2979
    %vm2981 = vcmp.eq.f32.partialorder %v2978, %v2980
    %v2982 = vsel %vm2981, %v2977, inf
    %2983 = vmin.xlane.f32.xlu0 %v2982
    %v2984 = vpop.xlane.xlu0 %2983
    %v2985 = vcvt.f32.s32 %v2984
    %v2986 = vcvt.f32.s32 %v2980
    %v2987 = vshll.u32 %v2986, 16
    %v2988 = vadd.s32 %v2987, %v2985
    %vm2989 = vcmp.lt.s32.totalorder %v2365, %v2366
    %v2990 = vsel %vm2989, %v2365, %v2366
    %vm2991 = vcmp.lt.s32.totalorder %v2990, %v2367
    %v2992 = vsel %vm2991, %v2990, %v2367
    %vm2993 = vcmp.lt.s32.totalorder %v2992, %v2368
    %v2994 = vsel %vm2993, %v2992, %v2368
    %v2995 = vand.u32 %v2994, 65535
    %v2996 = vshra.s32 %v2994, 16
    %v2997 = vcvt.s32.f32 %v2995
    %v2998 = vcvt.s32.f32 %v2996
    %2999 = vmin.xlane.f32.xlu0 %v2998
    %v3000 = vpop.xlane.xlu0 %2999
    %vm3001 = vcmp.eq.f32.partialorder %v2998, %v3000
    %v3002 = vsel %vm3001, %v2997, inf
    %3003 = vmin.xlane.f32.xlu0 %v3002
    %v3004 = vpop.xlane.xlu0 %3003
    %v3005 = vcvt.f32.s32 %v3004
    %v3006 = vcvt.f32.s32 %v3000
    %v3007 = vshll.u32 %v3006, 16
    %v3008 = vadd.s32 %v3007, %v3005
    %vm3009 = vcmp.lt.s32.totalorder %v2369, %v2370
    %v3010 = vsel %vm3009, %v2369, %v2370
    %vm3011 = vcmp.lt.s32.totalorder %v3010, %v2371
    %v3012 = vsel %vm3011, %v3010, %v2371
    %vm3013 = vcmp.lt.s32.totalorder %v3012, %v2372
    %v3014 = vsel %vm3013, %v3012, %v2372
    %v3015 = vand.u32 %v3014, 65535
    %v3016 = vshra.s32 %v3014, 16
    %v3017 = vcvt.s32.f32 %v3015
    %v3018 = vcvt.s32.f32 %v3016
    %3019 = vmin.xlane.f32.xlu0 %v3018
    %v3020 = vpop.xlane.xlu0 %3019
    %vm3021 = vcmp.eq.f32.partialorder %v3018, %v3020
    %v3022 = vsel %vm3021, %v3017, inf
    %3023 = vmin.xlane.f32.xlu0 %v3022
    %v3024 = vpop.xlane.xlu0 %3023
    %v3025 = vcvt.f32.s32 %v3024
    %v3026 = vcvt.f32.s32 %v3020
    %v3027 = vshll.u32 %v3026, 16
    %v3028 = vadd.s32 %v3027, %v3025
    %vm3029 = vcmp.lt.s32.totalorder %v2373, %v2374
    %v3030 = vsel %vm3029, %v2373, %v2374
    %vm3031 = vcmp.lt.s32.totalorder %v3030, %v2375
    %v3032 = vsel %vm3031, %v3030, %v2375
    %vm3033 = vcmp.lt.s32.totalorder %v3032, %v2376
    %v3034 = vsel %vm3033, %v3032, %v2376
    %v3035 = vand.u32 %v3034, 65535
    %v3036 = vshra.s32 %v3034, 16
    %v3037 = vcvt.s32.f32 %v3035
    %v3038 = vcvt.s32.f32 %v3036
    %3039 = vmin.xlane.f32.xlu0 %v3038
    %v3040 = vpop.xlane.xlu0 %3039
    %vm3041 = vcmp.eq.f32.partialorder %v3038, %v3040
    %v3042 = vsel %vm3041, %v3037, inf
    %3043 = vmin.xlane.f32.xlu0 %v3042
    %v3044 = vpop.xlane.xlu0 %3043
    %v3045 = vcvt.f32.s32 %v3044
    %v3046 = vcvt.f32.s32 %v3040
    %v3047 = vshll.u32 %v3046, 16
    %v3048 = vadd.s32 %v3047, %v3045
    %vm3049 = vcmp.lt.s32.totalorder %v2377, %v2378
    %v3050 = vsel %vm3049, %v2377, %v2378
    %vm3051 = vcmp.lt.s32.totalorder %v3050, %v2379
    %v3052 = vsel %vm3051, %v3050, %v2379
    %vm3053 = vcmp.lt.s32.totalorder %v3052, %v2380
    %v3054 = vsel %vm3053, %v3052, %v2380
    %v3055 = vand.u32 %v3054, 65535
    %v3056 = vshra.s32 %v3054, 16
    %v3057 = vcvt.s32.f32 %v3055
    %v3058 = vcvt.s32.f32 %v3056
    %3059 = vmin.xlane.f32.xlu0 %v3058
    %v3060 = vpop.xlane.xlu0 %3059
    %vm3061 = vcmp.eq.f32.partialorder %v3058, %v3060
    %v3062 = vsel %vm3061, %v3057, inf
    %3063 = vmin.xlane.f32.xlu0 %v3062
    %v3064 = vpop.xlane.xlu0 %3063
    %v3065 = vcvt.f32.s32 %v3064
    %v3066 = vcvt.f32.s32 %v3060
    %v3067 = vshll.u32 %v3066, 16
    %v3068 = vadd.s32 %v3067, %v3065
    %vm3069 = vcmp.lt.s32.totalorder %v2381, %v2382
    %v3070 = vsel %vm3069, %v2381, %v2382
    %vm3071 = vcmp.lt.s32.totalorder %v3070, %v2383
    %v3072 = vsel %vm3071, %v3070, %v2383
    %vm3073 = vcmp.lt.s32.totalorder %v3072, %v2384
    %v3074 = vsel %vm3073, %v3072, %v2384
    %v3075 = vand.u32 %v3074, 65535
    %v3076 = vshra.s32 %v3074, 16
    %v3077 = vcvt.s32.f32 %v3075
    %v3078 = vcvt.s32.f32 %v3076
    %3079 = vmin.xlane.f32.xlu0 %v3078
    %v3080 = vpop.xlane.xlu0 %3079
    %vm3081 = vcmp.eq.f32.partialorder %v3078, %v3080
    %v3082 = vsel %vm3081, %v3077, inf
    %3083 = vmin.xlane.f32.xlu0 %v3082
    %v3084 = vpop.xlane.xlu0 %3083
    %v3085 = vcvt.f32.s32 %v3084
    %v3086 = vcvt.f32.s32 %v3080
    %v3087 = vshll.u32 %v3086, 16
    %v3088 = vadd.s32 %v3087, %v3085
    %vm3089 = vcmp.lt.s32.totalorder %v2385, %v2386
    %v3090 = vsel %vm3089, %v2385, %v2386
    %vm3091 = vcmp.lt.s32.totalorder %v3090, %v2387
    %v3092 = vsel %vm3091, %v3090, %v2387
    %vm3093 = vcmp.lt.s32.totalorder %v3092, %v2388
    %v3094 = vsel %vm3093, %v3092, %v2388
    %v3095 = vand.u32 %v3094, 65535
    %v3096 = vshra.s32 %v3094, 16
    %v3097 = vcvt.s32.f32 %v3095
    %v3098 = vcvt.s32.f32 %v3096
    %3099 = vmin.xlane.f32.xlu0 %v3098
    %v3100 = vpop.xlane.xlu0 %3099
    %vm3101 = vcmp.eq.f32.partialorder %v3098, %v3100
    %v3102 = vsel %vm3101, %v3097, inf
    %3103 = vmin.xlane.f32.xlu0 %v3102
    %v3104 = vpop.xlane.xlu0 %3103
    %v3105 = vcvt.f32.s32 %v3104
    %v3106 = vcvt.f32.s32 %v3100
    %v3107 = vshll.u32 %v3106, 16
    %v3108 = vadd.s32 %v3107, %v3105
    %vm3109 = vcmp.lt.s32.totalorder %v2389, %v2390
    %v3110 = vsel %vm3109, %v2389, %v2390
    %vm3111 = vcmp.lt.s32.totalorder %v3110, %v2391
    %v3112 = vsel %vm3111, %v3110, %v2391
    %vm3113 = vcmp.lt.s32.totalorder %v3112, %v2392
    %v3114 = vsel %vm3113, %v3112, %v2392
    %v3115 = vand.u32 %v3114, 65535
    %v3116 = vshra.s32 %v3114, 16
    %v3117 = vcvt.s32.f32 %v3115
    %v3118 = vcvt.s32.f32 %v3116
    %3119 = vmin.xlane.f32.xlu0 %v3118
    %v3120 = vpop.xlane.xlu0 %3119
    %vm3121 = vcmp.eq.f32.partialorder %v3118, %v3120
    %v3122 = vsel %vm3121, %v3117, inf
    %3123 = vmin.xlane.f32.xlu0 %v3122
    %v3124 = vpop.xlane.xlu0 %3123
    %v3125 = vcvt.f32.s32 %v3124
    %v3126 = vcvt.f32.s32 %v3120
    %v3127 = vshll.u32 %v3126, 16
    %v3128 = vadd.s32 %v3127, %v3125
    %vm3129 = vcmp.lt.s32.totalorder %v2393, %v2394
    %v3130 = vsel %vm3129, %v2393, %v2394
    %vm3131 = vcmp.lt.s32.totalorder %v3130, %v2395
    %v3132 = vsel %vm3131, %v3130, %v2395
    %vm3133 = vcmp.lt.s32.totalorder %v3132, %v2396
    %v3134 = vsel %vm3133, %v3132, %v2396
    %v3135 = vand.u32 %v3134, 65535
    %v3136 = vshra.s32 %v3134, 16
    %v3137 = vcvt.s32.f32 %v3135
    %v3138 = vcvt.s32.f32 %v3136
    %3139 = vmin.xlane.f32.xlu0 %v3138
    %v3140 = vpop.xlane.xlu0 %3139
    %vm3141 = vcmp.eq.f32.partialorder %v3138, %v3140
    %v3142 = vsel %vm3141, %v3137, inf
    %3143 = vmin.xlane.f32.xlu0 %v3142
    %v3144 = vpop.xlane.xlu0 %3143
    %v3145 = vcvt.f32.s32 %v3144
    %v3146 = vcvt.f32.s32 %v3140
    %v3147 = vshll.u32 %v3146, 16
    %v3148 = vadd.s32 %v3147, %v3145
    %vm3149 = vcmp.lt.s32.totalorder %v2397, %v2398
    %v3150 = vsel %vm3149, %v2397, %v2398
    %vm3151 = vcmp.lt.s32.totalorder %v3150, %v2399
    %v3152 = vsel %vm3151, %v3150, %v2399
    %vm3153 = vcmp.lt.s32.totalorder %v3152, %v2400
    %v3154 = vsel %vm3153, %v3152, %v2400
    %v3155 = vand.u32 %v3154, 65535
    %v3156 = vshra.s32 %v3154, 16
    %v3157 = vcvt.s32.f32 %v3155
    %v3158 = vcvt.s32.f32 %v3156
    %3159 = vmin.xlane.f32.xlu0 %v3158
    %v3160 = vpop.xlane.xlu0 %3159
    %vm3161 = vcmp.eq.f32.partialorder %v3158, %v3160
    %v3162 = vsel %vm3161, %v3157, inf
    %3163 = vmin.xlane.f32.xlu0 %v3162
    %v3164 = vpop.xlane.xlu0 %3163
    %v3165 = vcvt.f32.s32 %v3164
    %v3166 = vcvt.f32.s32 %v3160
    %v3167 = vshll.u32 %v3166, 16
    %v3168 = vadd.s32 %v3167, %v3165
    %vm3169 = vcmp.lt.s32.totalorder %v2401, %v2402
    %v3170 = vsel %vm3169, %v2401, %v2402
    %vm3171 = vcmp.lt.s32.totalorder %v3170, %v2403
    %v3172 = vsel %vm3171, %v3170, %v2403
    %vm3173 = vcmp.lt.s32.totalorder %v3172, %v2404
    %v3174 = vsel %vm3173, %v3172, %v2404
    %v3175 = vand.u32 %v3174, 65535
    %v3176 = vshra.s32 %v3174, 16
    %v3177 = vcvt.s32.f32 %v3175
    %v3178 = vcvt.s32.f32 %v3176
    %3179 = vmin.xlane.f32.xlu0 %v3178
    %v3180 = vpop.xlane.xlu0 %3179
    %vm3181 = vcmp.eq.f32.partialorder %v3178, %v3180
    %v3182 = vsel %vm3181, %v3177, inf
    %3183 = vmin.xlane.f32.xlu0 %v3182
    %v3184 = vpop.xlane.xlu0 %3183
    %v3185 = vcvt.f32.s32 %v3184
    %v3186 = vcvt.f32.s32 %v3180
    %v3187 = vshll.u32 %v3186, 16
    %v3188 = vadd.s32 %v3187, %v3185
    %vm3189 = vcmp.lt.s32.totalorder %v2405, %v2406
    %v3190 = vsel %vm3189, %v2405, %v2406
    %vm3191 = vcmp.lt.s32.totalorder %v3190, %v2407
    %v3192 = vsel %vm3191, %v3190, %v2407
    %vm3193 = vcmp.lt.s32.totalorder %v3192, %v2408
    %v3194 = vsel %vm3193, %v3192, %v2408
    %v3195 = vand.u32 %v3194, 65535
    %v3196 = vshra.s32 %v3194, 16
    %v3197 = vcvt.s32.f32 %v3195
    %v3198 = vcvt.s32.f32 %v3196
    %3199 = vmin.xlane.f32.xlu0 %v3198
    %v3200 = vpop.xlane.xlu0 %3199
    %vm3201 = vcmp.eq.f32.partialorder %v3198, %v3200
    %v3202 = vsel %vm3201, %v3197, inf
    %3203 = vmin.xlane.f32.xlu0 %v3202
    %v3204 = vpop.xlane.xlu0 %3203
    %v3205 = vcvt.f32.s32 %v3204
    %v3206 = vcvt.f32.s32 %v3200
    %v3207 = vshll.u32 %v3206, 16
    %v3208 = vadd.s32 %v3207, %v3205
    %vm3209 = vcmp.lt.s32.totalorder %v2409, %v2410
    %v3210 = vsel %vm3209, %v2409, %v2410
    %vm3211 = vcmp.lt.s32.totalorder %v3210, %v2411
    %v3212 = vsel %vm3211, %v3210, %v2411
    %vm3213 = vcmp.lt.s32.totalorder %v3212, %v2412
    %v3214 = vsel %vm3213, %v3212, %v2412
    %v3215 = vand.u32 %v3214, 65535
    %v3216 = vshra.s32 %v3214, 16
    %v3217 = vcvt.s32.f32 %v3215
    %v3218 = vcvt.s32.f32 %v3216
    %3219 = vmin.xlane.f32.xlu0 %v3218
    %v3220 = vpop.xlane.xlu0 %3219
    %vm3221 = vcmp.eq.f32.partialorder %v3218, %v3220
    %v3222 = vsel %vm3221, %v3217, inf
    %3223 = vmin.xlane.f32.xlu0 %v3222
    %v3224 = vpop.xlane.xlu0 %3223
    %v3225 = vcvt.f32.s32 %v3224
    %v3226 = vcvt.f32.s32 %v3220
    %v3227 = vshll.u32 %v3226, 16
    %v3228 = vadd.s32 %v3227, %v3225
    %vm3229 = vcmp.lt.s32.totalorder %v2413, %v2414
    %v3230 = vsel %vm3229, %v2413, %v2414
    %vm3231 = vcmp.lt.s32.totalorder %v3230, %v2415
    %v3232 = vsel %vm3231, %v3230, %v2415
    %vm3233 = vcmp.lt.s32.totalorder %v3232, %v2416
    %v3234 = vsel %vm3233, %v3232, %v2416
    %v3235 = vand.u32 %v3234, 65535
    %v3236 = vshra.s32 %v3234, 16
    %v3237 = vcvt.s32.f32 %v3235
    %v3238 = vcvt.s32.f32 %v3236
    %3239 = vmin.xlane.f32.xlu0 %v3238
    %v3240 = vpop.xlane.xlu0 %3239
    %vm3241 = vcmp.eq.f32.partialorder %v3238, %v3240
    %v3242 = vsel %vm3241, %v3237, inf
    %3243 = vmin.xlane.f32.xlu0 %v3242
    %v3244 = vpop.xlane.xlu0 %3243
    %v3245 = vcvt.f32.s32 %v3244
    %v3246 = vcvt.f32.s32 %v3240
    %v3247 = vshll.u32 %v3246, 16
    %v3248 = vadd.s32 %v3247, %v3245
    %vm3249 = vcmp.lt.s32.totalorder %v2417, %v2418
    %v3250 = vsel %vm3249, %v2417, %v2418
    %vm3251 = vcmp.lt.s32.totalorder %v3250, %v2419
    %v3252 = vsel %vm3251, %v3250, %v2419
    %vm3253 = vcmp.lt.s32.totalorder %v3252, %v2420
    %v3254 = vsel %vm3253, %v3252, %v2420
    %v3255 = vand.u32 %v3254, 65535
    %v3256 = vshra.s32 %v3254, 16
    %v3257 = vcvt.s32.f32 %v3255
    %v3258 = vcvt.s32.f32 %v3256
    %3259 = vmin.xlane.f32.xlu0 %v3258
    %v3260 = vpop.xlane.xlu0 %3259
    %vm3261 = vcmp.eq.f32.partialorder %v3258, %v3260
    %v3262 = vsel %vm3261, %v3257, inf
    %3263 = vmin.xlane.f32.xlu0 %v3262
    %v3264 = vpop.xlane.xlu0 %3263
    %v3265 = vcvt.f32.s32 %v3264
    %v3266 = vcvt.f32.s32 %v3260
    %v3267 = vshll.u32 %v3266, 16
    %v3268 = vadd.s32 %v3267, %v3265
    %vm3269 = vcmp.lt.s32.totalorder %v2421, %v2422
    %v3270 = vsel %vm3269, %v2421, %v2422
    %vm3271 = vcmp.lt.s32.totalorder %v3270, %v2423
    %v3272 = vsel %vm3271, %v3270, %v2423
    %vm3273 = vcmp.lt.s32.totalorder %v3272, %v2424
    %v3274 = vsel %vm3273, %v3272, %v2424
    %v3275 = vand.u32 %v3274, 65535
    %v3276 = vshra.s32 %v3274, 16
    %v3277 = vcvt.s32.f32 %v3275
    %v3278 = vcvt.s32.f32 %v3276
    %3279 = vmin.xlane.f32.xlu0 %v3278
    %v3280 = vpop.xlane.xlu0 %3279
    %vm3281 = vcmp.eq.f32.partialorder %v3278, %v3280
    %v3282 = vsel %vm3281, %v3277, inf
    %3283 = vmin.xlane.f32.xlu0 %v3282
    %v3284 = vpop.xlane.xlu0 %3283
    %v3285 = vcvt.f32.s32 %v3284
    %v3286 = vcvt.f32.s32 %v3280
    %v3287 = vshll.u32 %v3286, 16
    %v3288 = vadd.s32 %v3287, %v3285
    %vm3289 = vcmp.lt.s32.totalorder %v2425, %v2426
    %v3290 = vsel %vm3289, %v2425, %v2426
    %vm3291 = vcmp.lt.s32.totalorder %v3290, %v2427
    %v3292 = vsel %vm3291, %v3290, %v2427
    %vm3293 = vcmp.lt.s32.totalorder %v3292, %v2428
    %v3294 = vsel %vm3293, %v3292, %v2428
    %v3295 = vand.u32 %v3294, 65535
    %v3296 = vshra.s32 %v3294, 16
    %v3297 = vcvt.s32.f32 %v3295
    %v3298 = vcvt.s32.f32 %v3296
    %3299 = vmin.xlane.f32.xlu0 %v3298
    %v3300 = vpop.xlane.xlu0 %3299
    %vm3301 = vcmp.eq.f32.partialorder %v3298, %v3300
    %v3302 = vsel %vm3301, %v3297, inf
    %3303 = vmin.xlane.f32.xlu0 %v3302
    %v3304 = vpop.xlane.xlu0 %3303
    %v3305 = vcvt.f32.s32 %v3304
    %v3306 = vcvt.f32.s32 %v3300
    %v3307 = vshll.u32 %v3306, 16
    %v3308 = vadd.s32 %v3307, %v3305
    %vm3309 = vcmp.lt.s32.totalorder %v2429, %v2430
    %v3310 = vsel %vm3309, %v2429, %v2430
    %vm3311 = vcmp.lt.s32.totalorder %v3310, %v2431
    %v3312 = vsel %vm3311, %v3310, %v2431
    %vm3313 = vcmp.lt.s32.totalorder %v3312, %v2432
    %v3314 = vsel %vm3313, %v3312, %v2432
    %v3315 = vand.u32 %v3314, 65535
    %v3316 = vshra.s32 %v3314, 16
    %v3317 = vcvt.s32.f32 %v3315
    %v3318 = vcvt.s32.f32 %v3316
    %3319 = vmin.xlane.f32.xlu0 %v3318
    %v3320 = vpop.xlane.xlu0 %3319
    %vm3321 = vcmp.eq.f32.partialorder %v3318, %v3320
    %v3322 = vsel %vm3321, %v3317, inf
    %3323 = vmin.xlane.f32.xlu0 %v3322
    %v3324 = vpop.xlane.xlu0 %3323
    %v3325 = vcvt.f32.s32 %v3324
    %v3326 = vcvt.f32.s32 %v3320
    %v3327 = vshll.u32 %v3326, 16
    %v3328 = vadd.s32 %v3327, %v3325
    %vm3329 = vcmp.lt.s32.totalorder %v2433, %v2434
    %v3330 = vsel %vm3329, %v2433, %v2434
    %vm3331 = vcmp.lt.s32.totalorder %v3330, %v2435
    %v3332 = vsel %vm3331, %v3330, %v2435
    %vm3333 = vcmp.lt.s32.totalorder %v3332, %v2436
    %v3334 = vsel %vm3333, %v3332, %v2436
    %v3335 = vand.u32 %v3334, 65535
    %v3336 = vshra.s32 %v3334, 16
    %v3337 = vcvt.s32.f32 %v3335
    %v3338 = vcvt.s32.f32 %v3336
    %3339 = vmin.xlane.f32.xlu0 %v3338
    %v3340 = vpop.xlane.xlu0 %3339
    %vm3341 = vcmp.eq.f32.partialorder %v3338, %v3340
    %v3342 = vsel %vm3341, %v3337, inf
    %3343 = vmin.xlane.f32.xlu0 %v3342
    %v3344 = vpop.xlane.xlu0 %3343
    %v3345 = vcvt.f32.s32 %v3344
    %v3346 = vcvt.f32.s32 %v3340
    %v3347 = vshll.u32 %v3346, 16
    %v3348 = vadd.s32 %v3347, %v3345
    %vm3349 = vcmp.lt.s32.totalorder %v2437, %v2438
    %v3350 = vsel %vm3349, %v2437, %v2438
    %vm3351 = vcmp.lt.s32.totalorder %v3350, %v2439
    %v3352 = vsel %vm3351, %v3350, %v2439
    %vm3353 = vcmp.lt.s32.totalorder %v3352, %v2440
    %v3354 = vsel %vm3353, %v3352, %v2440
    %v3355 = vand.u32 %v3354, 65535
    %v3356 = vshra.s32 %v3354, 16
    %v3357 = vcvt.s32.f32 %v3355
    %v3358 = vcvt.s32.f32 %v3356
    %3359 = vmin.xlane.f32.xlu0 %v3358
    %v3360 = vpop.xlane.xlu0 %3359
    %vm3361 = vcmp.eq.f32.partialorder %v3358, %v3360
    %v3362 = vsel %vm3361, %v3357, inf
    %3363 = vmin.xlane.f32.xlu0 %v3362
    %v3364 = vpop.xlane.xlu0 %3363
    %v3365 = vcvt.f32.s32 %v3364
    %v3366 = vcvt.f32.s32 %v3360
    %v3367 = vshll.u32 %v3366, 16
    %v3368 = vadd.s32 %v3367, %v3365
    %vm3369 = vcmp.lt.s32.totalorder %v2441, %v2442
    %v3370 = vsel %vm3369, %v2441, %v2442
    %vm3371 = vcmp.lt.s32.totalorder %v3370, %v2443
    %v3372 = vsel %vm3371, %v3370, %v2443
    %vm3373 = vcmp.lt.s32.totalorder %v3372, %v2444
    %v3374 = vsel %vm3373, %v3372, %v2444
    %v3375 = vand.u32 %v3374, 65535
    %v3376 = vshra.s32 %v3374, 16
    %v3377 = vcvt.s32.f32 %v3375
    %v3378 = vcvt.s32.f32 %v3376
    %3379 = vmin.xlane.f32.xlu0 %v3378
    %v3380 = vpop.xlane.xlu0 %3379
    %vm3381 = vcmp.eq.f32.partialorder %v3378, %v3380
    %v3382 = vsel %vm3381, %v3377, inf
    %3383 = vmin.xlane.f32.xlu0 %v3382
    %v3384 = vpop.xlane.xlu0 %3383
    %v3385 = vcvt.f32.s32 %v3384
    %v3386 = vcvt.f32.s32 %v3380
    %v3387 = vshll.u32 %v3386, 16
    %v3388 = vadd.s32 %v3387, %v3385
    %vm3389 = vcmp.lt.s32.totalorder %v2445, %v2446
    %v3390 = vsel %vm3389, %v2445, %v2446
    %vm3391 = vcmp.lt.s32.totalorder %v3390, %v2447
    %v3392 = vsel %vm3391, %v3390, %v2447
    %vm3393 = vcmp.lt.s32.totalorder %v3392, %v2448
    %v3394 = vsel %vm3393, %v3392, %v2448
    %v3395 = vand.u32 %v3394, 65535
    %v3396 = vshra.s32 %v3394, 16
    %v3397 = vcvt.s32.f32 %v3395
    %v3398 = vcvt.s32.f32 %v3396
    %3399 = vmin.xlane.f32.xlu0 %v3398
    %v3400 = vpop.xlane.xlu0 %3399
    %vm3401 = vcmp.eq.f32.partialorder %v3398, %v3400
    %v3402 = vsel %vm3401, %v3397, inf
    %3403 = vmin.xlane.f32.xlu0 %v3402
    %v3404 = vpop.xlane.xlu0 %3403
    %v3405 = vcvt.f32.s32 %v3404
    %v3406 = vcvt.f32.s32 %v3400
    %v3407 = vshll.u32 %v3406, 16
    %v3408 = vadd.s32 %v3407, %v3405
    %vm3409 = vcmp.lt.s32.totalorder %v2449, %v2450
    %v3410 = vsel %vm3409, %v2449, %v2450
    %vm3411 = vcmp.lt.s32.totalorder %v3410, %v2451
    %v3412 = vsel %vm3411, %v3410, %v2451
    %vm3413 = vcmp.lt.s32.totalorder %v3412, %v2452
    %v3414 = vsel %vm3413, %v3412, %v2452
    %v3415 = vand.u32 %v3414, 65535
    %v3416 = vshra.s32 %v3414, 16
    %v3417 = vcvt.s32.f32 %v3415
    %v3418 = vcvt.s32.f32 %v3416
    %3419 = vmin.xlane.f32.xlu0 %v3418
    %v3420 = vpop.xlane.xlu0 %3419
    %vm3421 = vcmp.eq.f32.partialorder %v3418, %v3420
    %v3422 = vsel %vm3421, %v3417, inf
    %3423 = vmin.xlane.f32.xlu0 %v3422
    %v3424 = vpop.xlane.xlu0 %3423
    %v3425 = vcvt.f32.s32 %v3424
    %v3426 = vcvt.f32.s32 %v3420
    %v3427 = vshll.u32 %v3426, 16
    %v3428 = vadd.s32 %v3427, %v3425
    %vm3429 = vcmp.lt.s32.totalorder %v2453, %v2454
    %v3430 = vsel %vm3429, %v2453, %v2454
    %vm3431 = vcmp.lt.s32.totalorder %v3430, %v2455
    %v3432 = vsel %vm3431, %v3430, %v2455
    %vm3433 = vcmp.lt.s32.totalorder %v3432, %v2456
    %v3434 = vsel %vm3433, %v3432, %v2456
    %v3435 = vand.u32 %v3434, 65535
    %v3436 = vshra.s32 %v3434, 16
    %v3437 = vcvt.s32.f32 %v3435
    %v3438 = vcvt.s32.f32 %v3436
    %3439 = vmin.xlane.f32.xlu0 %v3438
    %v3440 = vpop.xlane.xlu0 %3439
    %vm3441 = vcmp.eq.f32.partialorder %v3438, %v3440
    %v3442 = vsel %vm3441, %v3437, inf
    %3443 = vmin.xlane.f32.xlu0 %v3442
    %v3444 = vpop.xlane.xlu0 %3443
    %v3445 = vcvt.f32.s32 %v3444
    %v3446 = vcvt.f32.s32 %v3440
    %v3447 = vshll.u32 %v3446, 16
    %v3448 = vadd.s32 %v3447, %v3445
    %vm3449 = vcmp.lt.s32.totalorder %v2457, %v2458
    %v3450 = vsel %vm3449, %v2457, %v2458
    %vm3451 = vcmp.lt.s32.totalorder %v3450, %v2459
    %v3452 = vsel %vm3451, %v3450, %v2459
    %vm3453 = vcmp.lt.s32.totalorder %v3452, %v2460
    %v3454 = vsel %vm3453, %v3452, %v2460
    %v3455 = vand.u32 %v3454, 65535
    %v3456 = vshra.s32 %v3454, 16
    %v3457 = vcvt.s32.f32 %v3455
    %v3458 = vcvt.s32.f32 %v3456
    %3459 = vmin.xlane.f32.xlu0 %v3458
    %v3460 = vpop.xlane.xlu0 %3459
    %vm3461 = vcmp.eq.f32.partialorder %v3458, %v3460
    %v3462 = vsel %vm3461, %v3457, inf
    %3463 = vmin.xlane.f32.xlu0 %v3462
    %v3464 = vpop.xlane.xlu0 %3463
    %v3465 = vcvt.f32.s32 %v3464
    %v3466 = vcvt.f32.s32 %v3460
    %v3467 = vshll.u32 %v3466, 16
    %v3468 = vadd.s32 %v3467, %v3465
    %vm3469 = vcmp.lt.s32.totalorder %v2461, %v2462
    %v3470 = vsel %vm3469, %v2461, %v2462
    %vm3471 = vcmp.lt.s32.totalorder %v3470, %v2463
    %v3472 = vsel %vm3471, %v3470, %v2463
    %vm3473 = vcmp.lt.s32.totalorder %v3472, %v2464
    %v3474 = vsel %vm3473, %v3472, %v2464
    %v3475 = vand.u32 %v3474, 65535
    %v3476 = vshra.s32 %v3474, 16
    %v3477 = vcvt.s32.f32 %v3475
    %v3478 = vcvt.s32.f32 %v3476
    %3479 = vmin.xlane.f32.xlu0 %v3478
    %v3480 = vpop.xlane.xlu0 %3479
    %vm3481 = vcmp.eq.f32.partialorder %v3478, %v3480
    %v3482 = vsel %vm3481, %v3477, inf
    %3483 = vmin.xlane.f32.xlu0 %v3482
    %v3484 = vpop.xlane.xlu0 %3483
    %v3485 = vcvt.f32.s32 %v3484
    %v3486 = vcvt.f32.s32 %v3480
    %v3487 = vshll.u32 %v3486, 16
    %v3488 = vadd.s32 %v3487, %v3485
    %vm3489 = vcmp.lt.s32.totalorder %v2465, %v2466
    %v3490 = vsel %vm3489, %v2465, %v2466
    %vm3491 = vcmp.lt.s32.totalorder %v3490, %v2467
    %v3492 = vsel %vm3491, %v3490, %v2467
    %vm3493 = vcmp.lt.s32.totalorder %v3492, %v2468
    %v3494 = vsel %vm3493, %v3492, %v2468
    %v3495 = vand.u32 %v3494, 65535
    %v3496 = vshra.s32 %v3494, 16
    %v3497 = vcvt.s32.f32 %v3495
    %v3498 = vcvt.s32.f32 %v3496
    %3499 = vmin.xlane.f32.xlu0 %v3498
    %v3500 = vpop.xlane.xlu0 %3499
    %vm3501 = vcmp.eq.f32.partialorder %v3498, %v3500
    %v3502 = vsel %vm3501, %v3497, inf
    %3503 = vmin.xlane.f32.xlu0 %v3502
    %v3504 = vpop.xlane.xlu0 %3503
    %v3505 = vcvt.f32.s32 %v3504
    %v3506 = vcvt.f32.s32 %v3500
    %v3507 = vshll.u32 %v3506, 16
    %v3508 = vadd.s32 %v3507, %v3505
    %vm3509 = vcmp.lt.s32.totalorder %v2469, %v2470
    %v3510 = vsel %vm3509, %v2469, %v2470
    %vm3511 = vcmp.lt.s32.totalorder %v3510, %v2471
    %v3512 = vsel %vm3511, %v3510, %v2471
    %vm3513 = vcmp.lt.s32.totalorder %v3512, %v2472
    %v3514 = vsel %vm3513, %v3512, %v2472
    %v3515 = vand.u32 %v3514, 65535
    %v3516 = vshra.s32 %v3514, 16
    %v3517 = vcvt.s32.f32 %v3515
    %v3518 = vcvt.s32.f32 %v3516
    %3519 = vmin.xlane.f32.xlu0 %v3518
    %v3520 = vpop.xlane.xlu0 %3519
    %vm3521 = vcmp.eq.f32.partialorder %v3518, %v3520
    %v3522 = vsel %vm3521, %v3517, inf
    %3523 = vmin.xlane.f32.xlu0 %v3522
    %v3524 = vpop.xlane.xlu0 %3523
    %v3525 = vcvt.f32.s32 %v3524
    %v3526 = vcvt.f32.s32 %v3520
    %v3527 = vshll.u32 %v3526, 16
    %v3528 = vadd.s32 %v3527, %v3525
    %vm3529 = vcmp.lt.s32.totalorder %v2473, %v2474
    %v3530 = vsel %vm3529, %v2473, %v2474
    %vm3531 = vcmp.lt.s32.totalorder %v3530, %v2475
    %v3532 = vsel %vm3531, %v3530, %v2475
    %vm3533 = vcmp.lt.s32.totalorder %v3532, %v2476
    %v3534 = vsel %vm3533, %v3532, %v2476
    %v3535 = vand.u32 %v3534, 65535
    %v3536 = vshra.s32 %v3534, 16
    %v3537 = vcvt.s32.f32 %v3535
    %v3538 = vcvt.s32.f32 %v3536
    %3539 = vmin.xlane.f32.xlu0 %v3538
    %v3540 = vpop.xlane.xlu0 %3539
    %vm3541 = vcmp.eq.f32.partialorder %v3538, %v3540
    %v3542 = vsel %vm3541, %v3537, inf
    %3543 = vmin.xlane.f32.xlu0 %v3542
    %v3544 = vpop.xlane.xlu0 %3543
    %v3545 = vcvt.f32.s32 %v3544
    %v3546 = vcvt.f32.s32 %v3540
    %v3547 = vshll.u32 %v3546, 16
    %v3548 = vadd.s32 %v3547, %v3545
    %vm3549 = vcmp.lt.s32.totalorder %v2477, %v2478
    %v3550 = vsel %vm3549, %v2477, %v2478
    %vm3551 = vcmp.lt.s32.totalorder %v3550, %v2479
    %v3552 = vsel %vm3551, %v3550, %v2479
    %vm3553 = vcmp.lt.s32.totalorder %v3552, %v2480
    %v3554 = vsel %vm3553, %v3552, %v2480
    %v3555 = vand.u32 %v3554, 65535
    %v3556 = vshra.s32 %v3554, 16
    %v3557 = vcvt.s32.f32 %v3555
    %v3558 = vcvt.s32.f32 %v3556
    %3559 = vmin.xlane.f32.xlu0 %v3558
    %v3560 = vpop.xlane.xlu0 %3559
    %vm3561 = vcmp.eq.f32.partialorder %v3558, %v3560
    %v3562 = vsel %vm3561, %v3557, inf
    %3563 = vmin.xlane.f32.xlu0 %v3562
    %v3564 = vpop.xlane.xlu0 %3563
    %v3565 = vcvt.f32.s32 %v3564
    %v3566 = vcvt.f32.s32 %v3560
    %v3567 = vshll.u32 %v3566, 16
    %v3568 = vadd.s32 %v3567, %v3565
    %vm3569 = vcmp.lt.s32.totalorder %v2481, %v2482
    %v3570 = vsel %vm3569, %v2481, %v2482
    %vm3571 = vcmp.lt.s32.totalorder %v3570, %v2483
    %v3572 = vsel %vm3571, %v3570, %v2483
    %vm3573 = vcmp.lt.s32.totalorder %v3572, %v2484
    %v3574 = vsel %vm3573, %v3572, %v2484
    %v3575 = vand.u32 %v3574, 65535
    %v3576 = vshra.s32 %v3574, 16
    %v3577 = vcvt.s32.f32 %v3575
    %v3578 = vcvt.s32.f32 %v3576
    %3579 = vmin.xlane.f32.xlu0 %v3578
    %v3580 = vpop.xlane.xlu0 %3579
    %vm3581 = vcmp.eq.f32.partialorder %v3578, %v3580
    %v3582 = vsel %vm3581, %v3577, inf
    %3583 = vmin.xlane.f32.xlu0 %v3582
    %v3584 = vpop.xlane.xlu0 %3583
    %v3585 = vcvt.f32.s32 %v3584
    %v3586 = vcvt.f32.s32 %v3580
    %v3587 = vshll.u32 %v3586, 16
    %v3588 = vadd.s32 %v3587, %v3585
    %vm3589 = vcmp.lt.s32.totalorder %v2485, %v2486
    %v3590 = vsel %vm3589, %v2485, %v2486
    %vm3591 = vcmp.lt.s32.totalorder %v3590, %v2487
    %v3592 = vsel %vm3591, %v3590, %v2487
    %vm3593 = vcmp.lt.s32.totalorder %v3592, %v2488
    %v3594 = vsel %vm3593, %v3592, %v2488
    %v3595 = vand.u32 %v3594, 65535
    %v3596 = vshra.s32 %v3594, 16
    %v3597 = vcvt.s32.f32 %v3595
    %v3598 = vcvt.s32.f32 %v3596
    %3599 = vmin.xlane.f32.xlu0 %v3598
    %v3600 = vpop.xlane.xlu0 %3599
    %vm3601 = vcmp.eq.f32.partialorder %v3598, %v3600
    %v3602 = vsel %vm3601, %v3597, inf
    %3603 = vmin.xlane.f32.xlu0 %v3602
    %v3604 = vpop.xlane.xlu0 %3603
    %v3605 = vcvt.f32.s32 %v3604
    %v3606 = vcvt.f32.s32 %v3600
    %v3607 = vshll.u32 %v3606, 16
    %v3608 = vadd.s32 %v3607, %v3605
    %vm3609 = vcmp.lt.s32.totalorder %v2489, %v2490
    %v3610 = vsel %vm3609, %v2489, %v2490
    %vm3611 = vcmp.lt.s32.totalorder %v3610, %v2491
    %v3612 = vsel %vm3611, %v3610, %v2491
    %vm3613 = vcmp.lt.s32.totalorder %v3612, %v2492
    %v3614 = vsel %vm3613, %v3612, %v2492
    %v3615 = vand.u32 %v3614, 65535
    %v3616 = vshra.s32 %v3614, 16
    %v3617 = vcvt.s32.f32 %v3615
    %v3618 = vcvt.s32.f32 %v3616
    %3619 = vmin.xlane.f32.xlu0 %v3618
    %v3620 = vpop.xlane.xlu0 %3619
    %vm3621 = vcmp.eq.f32.partialorder %v3618, %v3620
    %v3622 = vsel %vm3621, %v3617, inf
    %3623 = vmin.xlane.f32.xlu0 %v3622
    %v3624 = vpop.xlane.xlu0 %3623
    %v3625 = vcvt.f32.s32 %v3624
    %v3626 = vcvt.f32.s32 %v3620
    %v3627 = vshll.u32 %v3626, 16
    %v3628 = vadd.s32 %v3627, %v3625
    %vm3629 = vcmp.lt.s32.totalorder %v2493, %v2494
    %v3630 = vsel %vm3629, %v2493, %v2494
    %vm3631 = vcmp.lt.s32.totalorder %v3630, %v2495
    %v3632 = vsel %vm3631, %v3630, %v2495
    %vm3633 = vcmp.lt.s32.totalorder %v3632, %v2496
    %v3634 = vsel %vm3633, %v3632, %v2496
    %v3635 = vand.u32 %v3634, 65535
    %v3636 = vshra.s32 %v3634, 16
    %v3637 = vcvt.s32.f32 %v3635
    %v3638 = vcvt.s32.f32 %v3636
    %3639 = vmin.xlane.f32.xlu0 %v3638
    %v3640 = vpop.xlane.xlu0 %3639
    %vm3641 = vcmp.eq.f32.partialorder %v3638, %v3640
    %v3642 = vsel %vm3641, %v3637, inf
    %3643 = vmin.xlane.f32.xlu0 %v3642
    %v3644 = vpop.xlane.xlu0 %3643
    %v3645 = vcvt.f32.s32 %v3644
    %v3646 = vcvt.f32.s32 %v3640
    %v3647 = vshll.u32 %v3646, 16
    %v3648 = vadd.s32 %v3647, %v3645
    %vm3649 = vcmp.lt.s32.totalorder %v2497, %v2498
    %v3650 = vsel %vm3649, %v2497, %v2498
    %vm3651 = vcmp.lt.s32.totalorder %v3650, %v2499
    %v3652 = vsel %vm3651, %v3650, %v2499
    %vm3653 = vcmp.lt.s32.totalorder %v3652, %v2500
    %v3654 = vsel %vm3653, %v3652, %v2500
    %v3655 = vand.u32 %v3654, 65535
    %v3656 = vshra.s32 %v3654, 16
    %v3657 = vcvt.s32.f32 %v3655
    %v3658 = vcvt.s32.f32 %v3656
    %3659 = vmin.xlane.f32.xlu0 %v3658
    %v3660 = vpop.xlane.xlu0 %3659
    %vm3661 = vcmp.eq.f32.partialorder %v3658, %v3660
    %v3662 = vsel %vm3661, %v3657, inf
    %3663 = vmin.xlane.f32.xlu0 %v3662
    %v3664 = vpop.xlane.xlu0 %3663
    %v3665 = vcvt.f32.s32 %v3664
    %v3666 = vcvt.f32.s32 %v3660
    %v3667 = vshll.u32 %v3666, 16
    %v3668 = vadd.s32 %v3667, %v3665
    %vm3669 = vcmp.lt.s32.totalorder %v2501, %v2502
    %v3670 = vsel %vm3669, %v2501, %v2502
    %vm3671 = vcmp.lt.s32.totalorder %v3670, %v2503
    %v3672 = vsel %vm3671, %v3670, %v2503
    %vm3673 = vcmp.lt.s32.totalorder %v3672, %v2504
    %v3674 = vsel %vm3673, %v3672, %v2504
    %v3675 = vand.u32 %v3674, 65535
    %v3676 = vshra.s32 %v3674, 16
    %v3677 = vcvt.s32.f32 %v3675
    %v3678 = vcvt.s32.f32 %v3676
    %3679 = vmin.xlane.f32.xlu0 %v3678
    %v3680 = vpop.xlane.xlu0 %3679
    %vm3681 = vcmp.eq.f32.partialorder %v3678, %v3680
    %v3682 = vsel %vm3681, %v3677, inf
    %3683 = vmin.xlane.f32.xlu0 %v3682
    %v3684 = vpop.xlane.xlu0 %3683
    %v3685 = vcvt.f32.s32 %v3684
    %v3686 = vcvt.f32.s32 %v3680
    %v3687 = vshll.u32 %v3686, 16
    %v3688 = vadd.s32 %v3687, %v3685
    %vm3689 = vcmp.lt.s32.totalorder %v2505, %v2506
    %v3690 = vsel %vm3689, %v2505, %v2506
    %vm3691 = vcmp.lt.s32.totalorder %v3690, %v2507
    %v3692 = vsel %vm3691, %v3690, %v2507
    %vm3693 = vcmp.lt.s32.totalorder %v3692, %v2508
    %v3694 = vsel %vm3693, %v3692, %v2508
    %v3695 = vand.u32 %v3694, 65535
    %v3696 = vshra.s32 %v3694, 16
    %v3697 = vcvt.s32.f32 %v3695
    %v3698 = vcvt.s32.f32 %v3696
    %3699 = vmin.xlane.f32.xlu0 %v3698
    %v3700 = vpop.xlane.xlu0 %3699
    %vm3701 = vcmp.eq.f32.partialorder %v3698, %v3700
    %v3702 = vsel %vm3701, %v3697, inf
    %3703 = vmin.xlane.f32.xlu0 %v3702
    %v3704 = vpop.xlane.xlu0 %3703
    %v3705 = vcvt.f32.s32 %v3704
    %v3706 = vcvt.f32.s32 %v3700
    %v3707 = vshll.u32 %v3706, 16
    %v3708 = vadd.s32 %v3707, %v3705
    %vm3709 = vcmp.lt.s32.totalorder %v2509, %v2510
    %v3710 = vsel %vm3709, %v2509, %v2510
    %vm3711 = vcmp.lt.s32.totalorder %v3710, %v2511
    %v3712 = vsel %vm3711, %v3710, %v2511
    %vm3713 = vcmp.lt.s32.totalorder %v3712, %v2512
    %v3714 = vsel %vm3713, %v3712, %v2512
    %v3715 = vand.u32 %v3714, 65535
    %v3716 = vshra.s32 %v3714, 16
    %v3717 = vcvt.s32.f32 %v3715
    %v3718 = vcvt.s32.f32 %v3716
    %3719 = vmin.xlane.f32.xlu0 %v3718
    %v3720 = vpop.xlane.xlu0 %3719
    %vm3721 = vcmp.eq.f32.partialorder %v3718, %v3720
    %v3722 = vsel %vm3721, %v3717, inf
    %3723 = vmin.xlane.f32.xlu0 %v3722
    %v3724 = vpop.xlane.xlu0 %3723
    %v3725 = vcvt.f32.s32 %v3724
    %v3726 = vcvt.f32.s32 %v3720
    %v3727 = vshll.u32 %v3726, 16
    %v3728 = vadd.s32 %v3727, %v3725
    %vm3729 = vcmp.lt.s32.totalorder %v2513, %v2514
    %v3730 = vsel %vm3729, %v2513, %v2514
    %vm3731 = vcmp.lt.s32.totalorder %v3730, %v2515
    %v3732 = vsel %vm3731, %v3730, %v2515
    %vm3733 = vcmp.lt.s32.totalorder %v3732, %v2516
    %v3734 = vsel %vm3733, %v3732, %v2516
    %v3735 = vand.u32 %v3734, 65535
    %v3736 = vshra.s32 %v3734, 16
    %v3737 = vcvt.s32.f32 %v3735
    %v3738 = vcvt.s32.f32 %v3736
    %3739 = vmin.xlane.f32.xlu0 %v3738
    %v3740 = vpop.xlane.xlu0 %3739
    %vm3741 = vcmp.eq.f32.partialorder %v3738, %v3740
    %v3742 = vsel %vm3741, %v3737, inf
    %3743 = vmin.xlane.f32.xlu0 %v3742
    %v3744 = vpop.xlane.xlu0 %3743
    %v3745 = vcvt.f32.s32 %v3744
    %v3746 = vcvt.f32.s32 %v3740
    %v3747 = vshll.u32 %v3746, 16
    %v3748 = vadd.s32 %v3747, %v3745
    %vm3749 = vcmp.lt.s32.totalorder %v2517, %v2518
    %v3750 = vsel %vm3749, %v2517, %v2518
    %vm3751 = vcmp.lt.s32.totalorder %v3750, %v2519
    %v3752 = vsel %vm3751, %v3750, %v2519
    %vm3753 = vcmp.lt.s32.totalorder %v3752, %v2520
    %v3754 = vsel %vm3753, %v3752, %v2520
    %v3755 = vand.u32 %v3754, 65535
    %v3756 = vshra.s32 %v3754, 16
    %v3757 = vcvt.s32.f32 %v3755
    %v3758 = vcvt.s32.f32 %v3756
    %3759 = vmin.xlane.f32.xlu0 %v3758
    %v3760 = vpop.xlane.xlu0 %3759
    %vm3761 = vcmp.eq.f32.partialorder %v3758, %v3760
    %v3762 = vsel %vm3761, %v3757, inf
    %3763 = vmin.xlane.f32.xlu0 %v3762
    %v3764 = vpop.xlane.xlu0 %3763
    %v3765 = vcvt.f32.s32 %v3764
    %v3766 = vcvt.f32.s32 %v3760
    %v3767 = vshll.u32 %v3766, 16
    %v3768 = vadd.s32 %v3767, %v3765
    %vm3769 = vcmp.lt.s32.totalorder %v2521, %v2522
    %v3770 = vsel %vm3769, %v2521, %v2522
    %vm3771 = vcmp.lt.s32.totalorder %v3770, %v2523
    %v3772 = vsel %vm3771, %v3770, %v2523
    %vm3773 = vcmp.lt.s32.totalorder %v3772, %v2524
    %v3774 = vsel %vm3773, %v3772, %v2524
    %v3775 = vand.u32 %v3774, 65535
    %v3776 = vshra.s32 %v3774, 16
    %v3777 = vcvt.s32.f32 %v3775
    %v3778 = vcvt.s32.f32 %v3776
    %3779 = vmin.xlane.f32.xlu0 %v3778
    %v3780 = vpop.xlane.xlu0 %3779
    %vm3781 = vcmp.eq.f32.partialorder %v3778, %v3780
    %v3782 = vsel %vm3781, %v3777, inf
    %3783 = vmin.xlane.f32.xlu0 %v3782
    %v3784 = vpop.xlane.xlu0 %3783
    %v3785 = vcvt.f32.s32 %v3784
    %v3786 = vcvt.f32.s32 %v3780
    %v3787 = vshll.u32 %v3786, 16
    %v3788 = vadd.s32 %v3787, %v3785
    %vm3789 = vcmp.lt.s32.totalorder %v2525, %v2526
    %v3790 = vsel %vm3789, %v2525, %v2526
    %vm3791 = vcmp.lt.s32.totalorder %v3790, %v2527
    %v3792 = vsel %vm3791, %v3790, %v2527
    %vm3793 = vcmp.lt.s32.totalorder %v3792, %v2528
    %v3794 = vsel %vm3793, %v3792, %v2528
    %v3795 = vand.u32 %v3794, 65535
    %v3796 = vshra.s32 %v3794, 16
    %v3797 = vcvt.s32.f32 %v3795
    %v3798 = vcvt.s32.f32 %v3796
    %3799 = vmin.xlane.f32.xlu0 %v3798
    %v3800 = vpop.xlane.xlu0 %3799
    %vm3801 = vcmp.eq.f32.partialorder %v3798, %v3800
    %v3802 = vsel %vm3801, %v3797, inf
    %3803 = vmin.xlane.f32.xlu0 %v3802
    %v3804 = vpop.xlane.xlu0 %3803
    %v3805 = vcvt.f32.s32 %v3804
    %v3806 = vcvt.f32.s32 %v3800
    %v3807 = vshll.u32 %v3806, 16
    %v3808 = vadd.s32 %v3807, %v3805
    %vm3809 = vcmp.eq.s32.totalorder %v2013, %v2548
    %vm3810 = vcmp.eq.s32.totalorder %v2014, %v2548
    %vm3811 = vcmp.eq.s32.totalorder %v2015, %v2548
    %vm3812 = vcmp.eq.s32.totalorder %v2016, %v2548
    %vm3813 = vcmp.eq.s32.totalorder %v2013, %v2568
    %vm3814 = vcmp.eq.s32.totalorder %v2014, %v2568
    %vm3815 = vcmp.eq.s32.totalorder %v2015, %v2568
    %vm3816 = vcmp.eq.s32.totalorder %v2016, %v2568
    %vm3817 = vcmp.eq.s32.totalorder %v2013, %v2588
    %vm3818 = vcmp.eq.s32.totalorder %v2014, %v2588
    %vm3819 = vcmp.eq.s32.totalorder %v2015, %v2588
    %vm3820 = vcmp.eq.s32.totalorder %v2016, %v2588
    %vm3821 = vcmp.eq.s32.totalorder %v2013, %v2608
    %vm3822 = vcmp.eq.s32.totalorder %v2014, %v2608
    %vm3823 = vcmp.eq.s32.totalorder %v2015, %v2608
    %vm3824 = vcmp.eq.s32.totalorder %v2016, %v2608
    %vm3825 = vcmp.eq.s32.totalorder %v2013, %v2628
    %vm3826 = vcmp.eq.s32.totalorder %v2014, %v2628
    %vm3827 = vcmp.eq.s32.totalorder %v2015, %v2628
    %vm3828 = vcmp.eq.s32.totalorder %v2016, %v2628
    %vm3829 = vcmp.eq.s32.totalorder %v2013, %v2648
    %vm3830 = vcmp.eq.s32.totalorder %v2014, %v2648
    %vm3831 = vcmp.eq.s32.totalorder %v2015, %v2648
    %vm3832 = vcmp.eq.s32.totalorder %v2016, %v2648
    %vm3833 = vcmp.eq.s32.totalorder %v2013, %v2668
    %vm3834 = vcmp.eq.s32.totalorder %v2014, %v2668
    %vm3835 = vcmp.eq.s32.totalorder %v2015, %v2668
    %vm3836 = vcmp.eq.s32.totalorder %v2016, %v2668
    %vm3837 = vcmp.eq.s32.totalorder %v2013, %v2688
    %vm3838 = vcmp.eq.s32.totalorder %v2014, %v2688
    %vm3839 = vcmp.eq.s32.totalorder %v2015, %v2688
    %vm3840 = vcmp.eq.s32.totalorder %v2016, %v2688
    %vm3841 = vcmp.eq.s32.totalorder %v2013, %v2708
    %vm3842 = vcmp.eq.s32.totalorder %v2014, %v2708
    %vm3843 = vcmp.eq.s32.totalorder %v2015, %v2708
    %vm3844 = vcmp.eq.s32.totalorder %v2016, %v2708
    %vm3845 = vcmp.eq.s32.totalorder %v2013, %v2728
    %vm3846 = vcmp.eq.s32.totalorder %v2014, %v2728
    %vm3847 = vcmp.eq.s32.totalorder %v2015, %v2728
    %vm3848 = vcmp.eq.s32.totalorder %v2016, %v2728
    %vm3849 = vcmp.eq.s32.totalorder %v2013, %v2748
    %vm3850 = vcmp.eq.s32.totalorder %v2014, %v2748
    %vm3851 = vcmp.eq.s32.totalorder %v2015, %v2748
    %vm3852 = vcmp.eq.s32.totalorder %v2016, %v2748
    %vm3853 = vcmp.eq.s32.totalorder %v2013, %v2768
    %vm3854 = vcmp.eq.s32.totalorder %v2014, %v2768
    %vm3855 = vcmp.eq.s32.totalorder %v2015, %v2768
    %vm3856 = vcmp.eq.s32.totalorder %v2016, %v2768
    %vm3857 = vcmp.eq.s32.totalorder %v2013, %v2788
    %vm3858 = vcmp.eq.s32.totalorder %v2014, %v2788
    %vm3859 = vcmp.eq.s32.totalorder %v2015, %v2788
    %vm3860 = vcmp.eq.s32.totalorder %v2016, %v2788
    %vm3861 = vcmp.eq.s32.totalorder %v2013, %v2808
    %vm3862 = vcmp.eq.s32.totalorder %v2014, %v2808
    %vm3863 = vcmp.eq.s32.totalorder %v2015, %v2808
    %vm3864 = vcmp.eq.s32.totalorder %v2016, %v2808
    %vm3865 = vcmp.eq.s32.totalorder %v2013, %v2828
    %vm3866 = vcmp.eq.s32.totalorder %v2014, %v2828
    %vm3867 = vcmp.eq.s32.totalorder %v2015, %v2828
    %vm3868 = vcmp.eq.s32.totalorder %v2016, %v2828
    %vm3869 = vcmp.eq.s32.totalorder %v2013, %v2848
    %vm3870 = vcmp.eq.s32.totalorder %v2014, %v2848
    %vm3871 = vcmp.eq.s32.totalorder %v2015, %v2848
    %vm3872 = vcmp.eq.s32.totalorder %v2016, %v2848
    %vm3873 = vcmp.eq.s32.totalorder %v2013, %v2868
    %vm3874 = vcmp.eq.s32.totalorder %v2014, %v2868
    %vm3875 = vcmp.eq.s32.totalorder %v2015, %v2868
    %vm3876 = vcmp.eq.s32.totalorder %v2016, %v2868
    %vm3877 = vcmp.eq.s32.totalorder %v2013, %v2888
    %vm3878 = vcmp.eq.s32.totalorder %v2014, %v2888
    %vm3879 = vcmp.eq.s32.totalorder %v2015, %v2888
    %vm3880 = vcmp.eq.s32.totalorder %v2016, %v2888
    %vm3881 = vcmp.eq.s32.totalorder %v2013, %v2908
    %vm3882 = vcmp.eq.s32.totalorder %v2014, %v2908
    %vm3883 = vcmp.eq.s32.totalorder %v2015, %v2908
    %vm3884 = vcmp.eq.s32.totalorder %v2016, %v2908
    %vm3885 = vcmp.eq.s32.totalorder %v2013, %v2928
    %vm3886 = vcmp.eq.s32.totalorder %v2014, %v2928
    %vm3887 = vcmp.eq.s32.totalorder %v2015, %v2928
    %vm3888 = vcmp.eq.s32.totalorder %v2016, %v2928
    %vm3889 = vcmp.eq.s32.totalorder %v2013, %v2948
    %vm3890 = vcmp.eq.s32.totalorder %v2014, %v2948
    %vm3891 = vcmp.eq.s32.totalorder %v2015, %v2948
    %vm3892 = vcmp.eq.s32.totalorder %v2016, %v2948
    %vm3893 = vcmp.eq.s32.totalorder %v2013, %v2968
    %vm3894 = vcmp.eq.s32.totalorder %v2014, %v2968
    %vm3895 = vcmp.eq.s32.totalorder %v2015, %v2968
    %vm3896 = vcmp.eq.s32.totalorder %v2016, %v2968
    %vm3897 = vcmp.eq.s32.totalorder %v2013, %v2988
    %vm3898 = vcmp.eq.s32.totalorder %v2014, %v2988
    %vm3899 = vcmp.eq.s32.totalorder %v2015, %v2988
    %vm3900 = vcmp.eq.s32.totalorder %v2016, %v2988
    %vm3901 = vcmp.eq.s32.totalorder %v2013, %v3008
    %vm3902 = vcmp.eq.s32.totalorder %v2014, %v3008
    %vm3903 = vcmp.eq.s32.totalorder %v2015, %v3008
    %vm3904 = vcmp.eq.s32.totalorder %v2016, %v3008
    %vm3905 = vcmp.eq.s32.totalorder %v2013, %v3028
    %vm3906 = vcmp.eq.s32.totalorder %v2014, %v3028
    %vm3907 = vcmp.eq.s32.totalorder %v2015, %v3028
    %vm3908 = vcmp.eq.s32.totalorder %v2016, %v3028
    %vm3909 = vcmp.eq.s32.totalorder %v2013, %v3048
    %vm3910 = vcmp.eq.s32.totalorder %v2014, %v3048
    %vm3911 = vcmp.eq.s32.totalorder %v2015, %v3048
    %vm3912 = vcmp.eq.s32.totalorder %v2016, %v3048
    %vm3913 = vcmp.eq.s32.totalorder %v2013, %v3068
    %vm3914 = vcmp.eq.s32.totalorder %v2014, %v3068
    %vm3915 = vcmp.eq.s32.totalorder %v2015, %v3068
    %vm3916 = vcmp.eq.s32.totalorder %v2016, %v3068
    %vm3917 = vcmp.eq.s32.totalorder %v2013, %v3088
    %vm3918 = vcmp.eq.s32.totalorder %v2014, %v3088
    %vm3919 = vcmp.eq.s32.totalorder %v2015, %v3088
    %vm3920 = vcmp.eq.s32.totalorder %v2016, %v3088
    %vm3921 = vcmp.eq.s32.totalorder %v2013, %v3108
    %vm3922 = vcmp.eq.s32.totalorder %v2014, %v3108
    %vm3923 = vcmp.eq.s32.totalorder %v2015, %v3108
    %vm3924 = vcmp.eq.s32.totalorder %v2016, %v3108
    %vm3925 = vcmp.eq.s32.totalorder %v2013, %v3128
    %vm3926 = vcmp.eq.s32.totalorder %v2014, %v3128
    %vm3927 = vcmp.eq.s32.totalorder %v2015, %v3128
    %vm3928 = vcmp.eq.s32.totalorder %v2016, %v3128
    %vm3929 = vcmp.eq.s32.totalorder %v2013, %v3148
    %vm3930 = vcmp.eq.s32.totalorder %v2014, %v3148
    %vm3931 = vcmp.eq.s32.totalorder %v2015, %v3148
    %vm3932 = vcmp.eq.s32.totalorder %v2016, %v3148
    %vm3933 = vcmp.eq.s32.totalorder %v2013, %v3168
    %vm3934 = vcmp.eq.s32.totalorder %v2014, %v3168
    %vm3935 = vcmp.eq.s32.totalorder %v2015, %v3168
    %vm3936 = vcmp.eq.s32.totalorder %v2016, %v3168
    %vm3937 = vcmp.eq.s32.totalorder %v2013, %v3188
    %vm3938 = vcmp.eq.s32.totalorder %v2014, %v3188
    %vm3939 = vcmp.eq.s32.totalorder %v2015, %v3188
    %vm3940 = vcmp.eq.s32.totalorder %v2016, %v3188
    %vm3941 = vcmp.eq.s32.totalorder %v2013, %v3208
    %vm3942 = vcmp.eq.s32.totalorder %v2014, %v3208
    %vm3943 = vcmp.eq.s32.totalorder %v2015, %v3208
    %vm3944 = vcmp.eq.s32.totalorder %v2016, %v3208
    %vm3945 = vcmp.eq.s32.totalorder %v2013, %v3228
    %vm3946 = vcmp.eq.s32.totalorder %v2014, %v3228
    %vm3947 = vcmp.eq.s32.totalorder %v2015, %v3228
    %vm3948 = vcmp.eq.s32.totalorder %v2016, %v3228
    %vm3949 = vcmp.eq.s32.totalorder %v2013, %v3248
    %vm3950 = vcmp.eq.s32.totalorder %v2014, %v3248
    %vm3951 = vcmp.eq.s32.totalorder %v2015, %v3248
    %vm3952 = vcmp.eq.s32.totalorder %v2016, %v3248
    %vm3953 = vcmp.eq.s32.totalorder %v2013, %v3268
    %vm3954 = vcmp.eq.s32.totalorder %v2014, %v3268
    %vm3955 = vcmp.eq.s32.totalorder %v2015, %v3268
    %vm3956 = vcmp.eq.s32.totalorder %v2016, %v3268
    %vm3957 = vcmp.eq.s32.totalorder %v2013, %v3288
    %vm3958 = vcmp.eq.s32.totalorder %v2014, %v3288
    %vm3959 = vcmp.eq.s32.totalorder %v2015, %v3288
    %vm3960 = vcmp.eq.s32.totalorder %v2016, %v3288
    %vm3961 = vcmp.eq.s32.totalorder %v2013, %v3308
    %vm3962 = vcmp.eq.s32.totalorder %v2014, %v3308
    %vm3963 = vcmp.eq.s32.totalorder %v2015, %v3308
    %vm3964 = vcmp.eq.s32.totalorder %v2016, %v3308
    %vm3965 = vcmp.eq.s32.totalorder %v2013, %v3328
    %vm3966 = vcmp.eq.s32.totalorder %v2014, %v3328
    %vm3967 = vcmp.eq.s32.totalorder %v2015, %v3328
    %vm3968 = vcmp.eq.s32.totalorder %v2016, %v3328
    %vm3969 = vcmp.eq.s32.totalorder %v2013, %v3348
    %vm3970 = vcmp.eq.s32.totalorder %v2014, %v3348
    %vm3971 = vcmp.eq.s32.totalorder %v2015, %v3348
    %vm3972 = vcmp.eq.s32.totalorder %v2016, %v3348
    %vm3973 = vcmp.eq.s32.totalorder %v2013, %v3368
    %vm3974 = vcmp.eq.s32.totalorder %v2014, %v3368
    %vm3975 = vcmp.eq.s32.totalorder %v2015, %v3368
    %vm3976 = vcmp.eq.s32.totalorder %v2016, %v3368
    %vm3977 = vcmp.eq.s32.totalorder %v2013, %v3388
    %vm3978 = vcmp.eq.s32.totalorder %v2014, %v3388
    %vm3979 = vcmp.eq.s32.totalorder %v2015, %v3388
    %vm3980 = vcmp.eq.s32.totalorder %v2016, %v3388
    %vm3981 = vcmp.eq.s32.totalorder %v2013, %v3408
    %vm3982 = vcmp.eq.s32.totalorder %v2014, %v3408
    %vm3983 = vcmp.eq.s32.totalorder %v2015, %v3408
    %vm3984 = vcmp.eq.s32.totalorder %v2016, %v3408
    %vm3985 = vcmp.eq.s32.totalorder %v2013, %v3428
    %vm3986 = vcmp.eq.s32.totalorder %v2014, %v3428
    %vm3987 = vcmp.eq.s32.totalorder %v2015, %v3428
    %vm3988 = vcmp.eq.s32.totalorder %v2016, %v3428
    %vm3989 = vcmp.eq.s32.totalorder %v2013, %v3448
    %vm3990 = vcmp.eq.s32.totalorder %v2014, %v3448
    %vm3991 = vcmp.eq.s32.totalorder %v2015, %v3448
    %vm3992 = vcmp.eq.s32.totalorder %v2016, %v3448
    %vm3993 = vcmp.eq.s32.totalorder %v2013, %v3468
    %vm3994 = vcmp.eq.s32.totalorder %v2014, %v3468
    %vm3995 = vcmp.eq.s32.totalorder %v2015, %v3468
    %vm3996 = vcmp.eq.s32.totalorder %v2016, %v3468
    %vm3997 = vcmp.eq.s32.totalorder %v2013, %v3488
    %vm3998 = vcmp.eq.s32.totalorder %v2014, %v3488
    %vm3999 = vcmp.eq.s32.totalorder %v2015, %v3488
    %vm4000 = vcmp.eq.s32.totalorder %v2016, %v3488
    %vm4001 = vcmp.eq.s32.totalorder %v2013, %v3508
    %vm4002 = vcmp.eq.s32.totalorder %v2014, %v3508
    %vm4003 = vcmp.eq.s32.totalorder %v2015, %v3508
    %vm4004 = vcmp.eq.s32.totalorder %v2016, %v3508
    %vm4005 = vcmp.eq.s32.totalorder %v2013, %v3528
    %vm4006 = vcmp.eq.s32.totalorder %v2014, %v3528
    %vm4007 = vcmp.eq.s32.totalorder %v2015, %v3528
    %vm4008 = vcmp.eq.s32.totalorder %v2016, %v3528
    %vm4009 = vcmp.eq.s32.totalorder %v2013, %v3548
    %vm4010 = vcmp.eq.s32.totalorder %v2014, %v3548
    %vm4011 = vcmp.eq.s32.totalorder %v2015, %v3548
    %vm4012 = vcmp.eq.s32.totalorder %v2016, %v3548
    %vm4013 = vcmp.eq.s32.totalorder %v2013, %v3568
    %vm4014 = vcmp.eq.s32.totalorder %v2014, %v3568
    %vm4015 = vcmp.eq.s32.totalorder %v2015, %v3568
    %vm4016 = vcmp.eq.s32.totalorder %v2016, %v3568
    %vm4017 = vcmp.eq.s32.totalorder %v2013, %v3588
    %vm4018 = vcmp.eq.s32.totalorder %v2014, %v3588
    %vm4019 = vcmp.eq.s32.totalorder %v2015, %v3588
    %vm4020 = vcmp.eq.s32.totalorder %v2016, %v3588
    %vm4021 = vcmp.eq.s32.totalorder %v2013, %v3608
    %vm4022 = vcmp.eq.s32.totalorder %v2014, %v3608
    %vm4023 = vcmp.eq.s32.totalorder %v2015, %v3608
    %vm4024 = vcmp.eq.s32.totalorder %v2016, %v3608
    %vm4025 = vcmp.eq.s32.totalorder %v2013, %v3628
    %vm4026 = vcmp.eq.s32.totalorder %v2014, %v3628
    %vm4027 = vcmp.eq.s32.totalorder %v2015, %v3628
    %vm4028 = vcmp.eq.s32.totalorder %v2016, %v3628
    %vm4029 = vcmp.eq.s32.totalorder %v2013, %v3648
    %vm4030 = vcmp.eq.s32.totalorder %v2014, %v3648
    %vm4031 = vcmp.eq.s32.totalorder %v2015, %v3648
    %vm4032 = vcmp.eq.s32.totalorder %v2016, %v3648
    %vm4033 = vcmp.eq.s32.totalorder %v2013, %v3668
    %vm4034 = vcmp.eq.s32.totalorder %v2014, %v3668
    %vm4035 = vcmp.eq.s32.totalorder %v2015, %v3668
    %vm4036 = vcmp.eq.s32.totalorder %v2016, %v3668
    %vm4037 = vcmp.eq.s32.totalorder %v2013, %v3688
    %vm4038 = vcmp.eq.s32.totalorder %v2014, %v3688
    %vm4039 = vcmp.eq.s32.totalorder %v2015, %v3688
    %vm4040 = vcmp.eq.s32.totalorder %v2016, %v3688
    %vm4041 = vcmp.eq.s32.totalorder %v2013, %v3708
    %vm4042 = vcmp.eq.s32.totalorder %v2014, %v3708
    %vm4043 = vcmp.eq.s32.totalorder %v2015, %v3708
    %vm4044 = vcmp.eq.s32.totalorder %v2016, %v3708
    %vm4045 = vcmp.eq.s32.totalorder %v2013, %v3728
    %vm4046 = vcmp.eq.s32.totalorder %v2014, %v3728
    %vm4047 = vcmp.eq.s32.totalorder %v2015, %v3728
    %vm4048 = vcmp.eq.s32.totalorder %v2016, %v3728
    %vm4049 = vcmp.eq.s32.totalorder %v2013, %v3748
    %vm4050 = vcmp.eq.s32.totalorder %v2014, %v3748
    %vm4051 = vcmp.eq.s32.totalorder %v2015, %v3748
    %vm4052 = vcmp.eq.s32.totalorder %v2016, %v3748
    %vm4053 = vcmp.eq.s32.totalorder %v2013, %v3768
    %vm4054 = vcmp.eq.s32.totalorder %v2014, %v3768
    %vm4055 = vcmp.eq.s32.totalorder %v2015, %v3768
    %vm4056 = vcmp.eq.s32.totalorder %v2016, %v3768
    %vm4057 = vcmp.eq.s32.totalorder %v2013, %v3788
    %vm4058 = vcmp.eq.s32.totalorder %v2014, %v3788
    %vm4059 = vcmp.eq.s32.totalorder %v2015, %v3788
    %vm4060 = vcmp.eq.s32.totalorder %v2016, %v3788
    %vm4061 = vcmp.eq.s32.totalorder %v2013, %v3808
    %vm4062 = vcmp.eq.s32.totalorder %v2014, %v3808
    %vm4063 = vcmp.eq.s32.totalorder %v2015, %v3808
    %vm4064 = vcmp.eq.s32.totalorder %v2016, %v3808
    %v4065 = vsel %vm3809, 1, 0
    %v4066 = vsel %vm3810, 1, 0
    %v4067 = vsel %vm3811, 1, 0
    %v4068 = vsel %vm3812, 1, 0
    %v4069 = vsel %vm3813, 1, 0
    %v4070 = vsel %vm3814, 1, 0
    %v4071 = vsel %vm3815, 1, 0
    %v4072 = vsel %vm3816, 1, 0
    %v4073 = vsel %vm3817, 1, 0
    %v4074 = vsel %vm3818, 1, 0
    %v4075 = vsel %vm3819, 1, 0
    %v4076 = vsel %vm3820, 1, 0
    %v4077 = vsel %vm3821, 1, 0
    %v4078 = vsel %vm3822, 1, 0
    %v4079 = vsel %vm3823, 1, 0
    %v4080 = vsel %vm3824, 1, 0
    %v4081 = vsel %vm3825, 1, 0
    %v4082 = vsel %vm3826, 1, 0
    %v4083 = vsel %vm3827, 1, 0
    %v4084 = vsel %vm3828, 1, 0
    %v4085 = vsel %vm3829, 1, 0
    %v4086 = vsel %vm3830, 1, 0
    %v4087 = vsel %vm3831, 1, 0
    %v4088 = vsel %vm3832, 1, 0
    %v4089 = vsel %vm3833, 1, 0
    %v4090 = vsel %vm3834, 1, 0
    %v4091 = vsel %vm3835, 1, 0
    %v4092 = vsel %vm3836, 1, 0
    %v4093 = vsel %vm3837, 1, 0
    %v4094 = vsel %vm3838, 1, 0
    %v4095 = vsel %vm3839, 1, 0
    %v4096 = vsel %vm3840, 1, 0
    %v4097 = vsel %vm3841, 1, 0
    %v4098 = vsel %vm3842, 1, 0
    %v4099 = vsel %vm3843, 1, 0
    %v4100 = vsel %vm3844, 1, 0
    %v4101 = vsel %vm3845, 1, 0
    %v4102 = vsel %vm3846, 1, 0
    %v4103 = vsel %vm3847, 1, 0
    %v4104 = vsel %vm3848, 1, 0
    %v4105 = vsel %vm3849, 1, 0
    %v4106 = vsel %vm3850, 1, 0
    %v4107 = vsel %vm3851, 1, 0
    %v4108 = vsel %vm3852, 1, 0
    %v4109 = vsel %vm3853, 1, 0
    %v4110 = vsel %vm3854, 1, 0
    %v4111 = vsel %vm3855, 1, 0
    %v4112 = vsel %vm3856, 1, 0
    %v4113 = vsel %vm3857, 1, 0
    %v4114 = vsel %vm3858, 1, 0
    %v4115 = vsel %vm3859, 1, 0
    %v4116 = vsel %vm3860, 1, 0
    %v4117 = vsel %vm3861, 1, 0
    %v4118 = vsel %vm3862, 1, 0
    %v4119 = vsel %vm3863, 1, 0
    %v4120 = vsel %vm3864, 1, 0
    %v4121 = vsel %vm3865, 1, 0
    %v4122 = vsel %vm3866, 1, 0
    %v4123 = vsel %vm3867, 1, 0
    %v4124 = vsel %vm3868, 1, 0
    %v4125 = vsel %vm3869, 1, 0
    %v4126 = vsel %vm3870, 1, 0
    %v4127 = vsel %vm3871, 1, 0
    %v4128 = vsel %vm3872, 1, 0
    %v4129 = vsel %vm3873, 1, 0
    %v4130 = vsel %vm3874, 1, 0
    %v4131 = vsel %vm3875, 1, 0
    %v4132 = vsel %vm3876, 1, 0
    %v4133 = vsel %vm3877, 1, 0
    %v4134 = vsel %vm3878, 1, 0
    %v4135 = vsel %vm3879, 1, 0
    %v4136 = vsel %vm3880, 1, 0
    %v4137 = vsel %vm3881, 1, 0
    %v4138 = vsel %vm3882, 1, 0
    %v4139 = vsel %vm3883, 1, 0
    %v4140 = vsel %vm3884, 1, 0
    %v4141 = vsel %vm3885, 1, 0
    %v4142 = vsel %vm3886, 1, 0
    %v4143 = vsel %vm3887, 1, 0
    %v4144 = vsel %vm3888, 1, 0
    %v4145 = vsel %vm3889, 1, 0
    %v4146 = vsel %vm3890, 1, 0
    %v4147 = vsel %vm3891, 1, 0
    %v4148 = vsel %vm3892, 1, 0
    %v4149 = vsel %vm3893, 1, 0
    %v4150 = vsel %vm3894, 1, 0
    %v4151 = vsel %vm3895, 1, 0
    %v4152 = vsel %vm3896, 1, 0
    %v4153 = vsel %vm3897, 1, 0
    %v4154 = vsel %vm3898, 1, 0
    %v4155 = vsel %vm3899, 1, 0
    %v4156 = vsel %vm3900, 1, 0
    %v4157 = vsel %vm3901, 1, 0
    %v4158 = vsel %vm3902, 1, 0
    %v4159 = vsel %vm3903, 1, 0
    %v4160 = vsel %vm3904, 1, 0
    %v4161 = vsel %vm3905, 1, 0
    %v4162 = vsel %vm3906, 1, 0
    %v4163 = vsel %vm3907, 1, 0
    %v4164 = vsel %vm3908, 1, 0
    %v4165 = vsel %vm3909, 1, 0
    %v4166 = vsel %vm3910, 1, 0
    %v4167 = vsel %vm3911, 1, 0
    %v4168 = vsel %vm3912, 1, 0
    %v4169 = vsel %vm3913, 1, 0
    %v4170 = vsel %vm3914, 1, 0
    %v4171 = vsel %vm3915, 1, 0
    %v4172 = vsel %vm3916, 1, 0
    %v4173 = vsel %vm3917, 1, 0
    %v4174 = vsel %vm3918, 1, 0
    %v4175 = vsel %vm3919, 1, 0
    %v4176 = vsel %vm3920, 1, 0
    %v4177 = vsel %vm3921, 1, 0
    %v4178 = vsel %vm3922, 1, 0
    %v4179 = vsel %vm3923, 1, 0
    %v4180 = vsel %vm3924, 1, 0
    %v4181 = vsel %vm3925, 1, 0
    %v4182 = vsel %vm3926, 1, 0
    %v4183 = vsel %vm3927, 1, 0
    %v4184 = vsel %vm3928, 1, 0
    %v4185 = vsel %vm3929, 1, 0
    %v4186 = vsel %vm3930, 1, 0
    %v4187 = vsel %vm3931, 1, 0
    %v4188 = vsel %vm3932, 1, 0
    %v4189 = vsel %vm3933, 1, 0
    %v4190 = vsel %vm3934, 1, 0
    %v4191 = vsel %vm3935, 1, 0
    %v4192 = vsel %vm3936, 1, 0
    %v4193 = vsel %vm3937, 1, 0
    %v4194 = vsel %vm3938, 1, 0
    %v4195 = vsel %vm3939, 1, 0
    %v4196 = vsel %vm3940, 1, 0
    %v4197 = vsel %vm3941, 1, 0
    %v4198 = vsel %vm3942, 1, 0
    %v4199 = vsel %vm3943, 1, 0
    %v4200 = vsel %vm3944, 1, 0
    %v4201 = vsel %vm3945, 1, 0
    %v4202 = vsel %vm3946, 1, 0
    %v4203 = vsel %vm3947, 1, 0
    %v4204 = vsel %vm3948, 1, 0
    %v4205 = vsel %vm3949, 1, 0
    %v4206 = vsel %vm3950, 1, 0
    %v4207 = vsel %vm3951, 1, 0
    %v4208 = vsel %vm3952, 1, 0
    %v4209 = vsel %vm3953, 1, 0
    %v4210 = vsel %vm3954, 1, 0
    %v4211 = vsel %vm3955, 1, 0
    %v4212 = vsel %vm3956, 1, 0
    %v4213 = vsel %vm3957, 1, 0
    %v4214 = vsel %vm3958, 1, 0
    %v4215 = vsel %vm3959, 1, 0
    %v4216 = vsel %vm3960, 1, 0
    %v4217 = vsel %vm3961, 1, 0
    %v4218 = vsel %vm3962, 1, 0
    %v4219 = vsel %vm3963, 1, 0
    %v4220 = vsel %vm3964, 1, 0
    %v4221 = vsel %vm3965, 1, 0
    %v4222 = vsel %vm3966, 1, 0
    %v4223 = vsel %vm3967, 1, 0
    %v4224 = vsel %vm3968, 1, 0
    %v4225 = vsel %vm3969, 1, 0
    %v4226 = vsel %vm3970, 1, 0
    %v4227 = vsel %vm3971, 1, 0
    %v4228 = vsel %vm3972, 1, 0
    %v4229 = vsel %vm3973, 1, 0
    %v4230 = vsel %vm3974, 1, 0
    %v4231 = vsel %vm3975, 1, 0
    %v4232 = vsel %vm3976, 1, 0
    %v4233 = vsel %vm3977, 1, 0
    %v4234 = vsel %vm3978, 1, 0
    %v4235 = vsel %vm3979, 1, 0
    %v4236 = vsel %vm3980, 1, 0
    %v4237 = vsel %vm3981, 1, 0
    %v4238 = vsel %vm3982, 1, 0
    %v4239 = vsel %vm3983, 1, 0
    %v4240 = vsel %vm3984, 1, 0
    %v4241 = vsel %vm3985, 1, 0
    %v4242 = vsel %vm3986, 1, 0
    %v4243 = vsel %vm3987, 1, 0
    %v4244 = vsel %vm3988, 1, 0
    %v4245 = vsel %vm3989, 1, 0
    %v4246 = vsel %vm3990, 1, 0
    %v4247 = vsel %vm3991, 1, 0
    %v4248 = vsel %vm3992, 1, 0
    %v4249 = vsel %vm3993, 1, 0
    %v4250 = vsel %vm3994, 1, 0
    %v4251 = vsel %vm3995, 1, 0
    %v4252 = vsel %vm3996, 1, 0
    %v4253 = vsel %vm3997, 1, 0
    %v4254 = vsel %vm3998, 1, 0
    %v4255 = vsel %vm3999, 1, 0
    %v4256 = vsel %vm4000, 1, 0
    %v4257 = vsel %vm4001, 1, 0
    %v4258 = vsel %vm4002, 1, 0
    %v4259 = vsel %vm4003, 1, 0
    %v4260 = vsel %vm4004, 1, 0
    %v4261 = vsel %vm4005, 1, 0
    %v4262 = vsel %vm4006, 1, 0
    %v4263 = vsel %vm4007, 1, 0
    %v4264 = vsel %vm4008, 1, 0
    %v4265 = vsel %vm4009, 1, 0
    %v4266 = vsel %vm4010, 1, 0
    %v4267 = vsel %vm4011, 1, 0
    %v4268 = vsel %vm4012, 1, 0
    %v4269 = vsel %vm4013, 1, 0
    %v4270 = vsel %vm4014, 1, 0
    %v4271 = vsel %vm4015, 1, 0
    %v4272 = vsel %vm4016, 1, 0
    %v4273 = vsel %vm4017, 1, 0
    %v4274 = vsel %vm4018, 1, 0
    %v4275 = vsel %vm4019, 1, 0
    %v4276 = vsel %vm4020, 1, 0
    %v4277 = vsel %vm4021, 1, 0
    %v4278 = vsel %vm4022, 1, 0
    %v4279 = vsel %vm4023, 1, 0
    %v4280 = vsel %vm4024, 1, 0
    %v4281 = vsel %vm4025, 1, 0
    %v4282 = vsel %vm4026, 1, 0
    %v4283 = vsel %vm4027, 1, 0
    %v4284 = vsel %vm4028, 1, 0
    %v4285 = vsel %vm4029, 1, 0
    %v4286 = vsel %vm4030, 1, 0
    %v4287 = vsel %vm4031, 1, 0
    %v4288 = vsel %vm4032, 1, 0
    %v4289 = vsel %vm4033, 1, 0
    %v4290 = vsel %vm4034, 1, 0
    %v4291 = vsel %vm4035, 1, 0
    %v4292 = vsel %vm4036, 1, 0
    %v4293 = vsel %vm4037, 1, 0
    %v4294 = vsel %vm4038, 1, 0
    %v4295 = vsel %vm4039, 1, 0
    %v4296 = vsel %vm4040, 1, 0
    %v4297 = vsel %vm4041, 1, 0
    %v4298 = vsel %vm4042, 1, 0
    %v4299 = vsel %vm4043, 1, 0
    %v4300 = vsel %vm4044, 1, 0
    %v4301 = vsel %vm4045, 1, 0
    %v4302 = vsel %vm4046, 1, 0
    %v4303 = vsel %vm4047, 1, 0
    %v4304 = vsel %vm4048, 1, 0
    %v4305 = vsel %vm4049, 1, 0
    %v4306 = vsel %vm4050, 1, 0
    %v4307 = vsel %vm4051, 1, 0
    %v4308 = vsel %vm4052, 1, 0
    %v4309 = vsel %vm4053, 1, 0
    %v4310 = vsel %vm4054, 1, 0
    %v4311 = vsel %vm4055, 1, 0
    %v4312 = vsel %vm4056, 1, 0
    %v4313 = vsel %vm4057, 1, 0
    %v4314 = vsel %vm4058, 1, 0
    %v4315 = vsel %vm4059, 1, 0
    %v4316 = vsel %vm4060, 1, 0
    %v4317 = vsel %vm4061, 1, 0
    %v4318 = vsel %vm4062, 1, 0
    %v4319 = vsel %vm4063, 1, 0
    %v4320 = vsel %vm4064, 1, 0
    %v4321 = vcvt.s32.f32 %v4065
    %v4322 = vcvt.s32.f32 %v4066
    %v4323 = vcvt.s32.f32 %v4067
    %v4324 = vcvt.s32.f32 %v4068
    %v4325 = vcvt.s32.f32 %v4069
    %v4326 = vcvt.s32.f32 %v4070
    %v4327 = vcvt.s32.f32 %v4071
    %v4328 = vcvt.s32.f32 %v4072
    %v4329 = vcvt.s32.f32 %v4073
    %v4330 = vcvt.s32.f32 %v4074
    %v4331 = vcvt.s32.f32 %v4075
    %v4332 = vcvt.s32.f32 %v4076
    %v4333 = vcvt.s32.f32 %v4077
    %v4334 = vcvt.s32.f32 %v4078
    %v4335 = vcvt.s32.f32 %v4079
    %v4336 = vcvt.s32.f32 %v4080
    %v4337 = vcvt.s32.f32 %v4081
    %v4338 = vcvt.s32.f32 %v4082
    %v4339 = vcvt.s32.f32 %v4083
    %v4340 = vcvt.s32.f32 %v4084
    %v4341 = vcvt.s32.f32 %v4085
    %v4342 = vcvt.s32.f32 %v4086
    %v4343 = vcvt.s32.f32 %v4087
    %v4344 = vcvt.s32.f32 %v4088
    %v4345 = vcvt.s32.f32 %v4089
    %v4346 = vcvt.s32.f32 %v4090
    %v4347 = vcvt.s32.f32 %v4091
    %v4348 = vcvt.s32.f32 %v4092
    %v4349 = vcvt.s32.f32 %v4093
    %v4350 = vcvt.s32.f32 %v4094
    %v4351 = vcvt.s32.f32 %v4095
    %v4352 = vcvt.s32.f32 %v4096
    %v4353 = vcvt.s32.f32 %v4097
    %v4354 = vcvt.s32.f32 %v4098
    %v4355 = vcvt.s32.f32 %v4099
    %v4356 = vcvt.s32.f32 %v4100
    %v4357 = vcvt.s32.f32 %v4101
    %v4358 = vcvt.s32.f32 %v4102
    %v4359 = vcvt.s32.f32 %v4103
    %v4360 = vcvt.s32.f32 %v4104
    %v4361 = vcvt.s32.f32 %v4105
    %v4362 = vcvt.s32.f32 %v4106
    %v4363 = vcvt.s32.f32 %v4107
    %v4364 = vcvt.s32.f32 %v4108
    %v4365 = vcvt.s32.f32 %v4109
    %v4366 = vcvt.s32.f32 %v4110
    %v4367 = vcvt.s32.f32 %v4111
    %v4368 = vcvt.s32.f32 %v4112
    %v4369 = vcvt.s32.f32 %v4113
    %v4370 = vcvt.s32.f32 %v4114
    %v4371 = vcvt.s32.f32 %v4115
    %v4372 = vcvt.s32.f32 %v4116
    %v4373 = vcvt.s32.f32 %v4117
    %v4374 = vcvt.s32.f32 %v4118
    %v4375 = vcvt.s32.f32 %v4119
    %v4376 = vcvt.s32.f32 %v4120
    %v4377 = vcvt.s32.f32 %v4121
    %v4378 = vcvt.s32.f32 %v4122
    %v4379 = vcvt.s32.f32 %v4123
    %v4380 = vcvt.s32.f32 %v4124
    %v4381 = vcvt.s32.f32 %v4125
    %v4382 = vcvt.s32.f32 %v4126
    %v4383 = vcvt.s32.f32 %v4127
    %v4384 = vcvt.s32.f32 %v4128
    %v4385 = vcvt.s32.f32 %v4129
    %v4386 = vcvt.s32.f32 %v4130
    %v4387 = vcvt.s32.f32 %v4131
    %v4388 = vcvt.s32.f32 %v4132
    %v4389 = vcvt.s32.f32 %v4133
    %v4390 = vcvt.s32.f32 %v4134
    %v4391 = vcvt.s32.f32 %v4135
    %v4392 = vcvt.s32.f32 %v4136
    %v4393 = vcvt.s32.f32 %v4137
    %v4394 = vcvt.s32.f32 %v4138
    %v4395 = vcvt.s32.f32 %v4139
    %v4396 = vcvt.s32.f32 %v4140
    %v4397 = vcvt.s32.f32 %v4141
    %v4398 = vcvt.s32.f32 %v4142
    %v4399 = vcvt.s32.f32 %v4143
    %v4400 = vcvt.s32.f32 %v4144
    %v4401 = vcvt.s32.f32 %v4145
    %v4402 = vcvt.s32.f32 %v4146
    %v4403 = vcvt.s32.f32 %v4147
    %v4404 = vcvt.s32.f32 %v4148
    %v4405 = vcvt.s32.f32 %v4149
    %v4406 = vcvt.s32.f32 %v4150
    %v4407 = vcvt.s32.f32 %v4151
    %v4408 = vcvt.s32.f32 %v4152
    %v4409 = vcvt.s32.f32 %v4153
    %v4410 = vcvt.s32.f32 %v4154
    %v4411 = vcvt.s32.f32 %v4155
    %v4412 = vcvt.s32.f32 %v4156
    %v4413 = vcvt.s32.f32 %v4157
    %v4414 = vcvt.s32.f32 %v4158
    %v4415 = vcvt.s32.f32 %v4159
    %v4416 = vcvt.s32.f32 %v4160
    %v4417 = vcvt.s32.f32 %v4161
    %v4418 = vcvt.s32.f32 %v4162
    %v4419 = vcvt.s32.f32 %v4163
    %v4420 = vcvt.s32.f32 %v4164
    %v4421 = vcvt.s32.f32 %v4165
    %v4422 = vcvt.s32.f32 %v4166
    %v4423 = vcvt.s32.f32 %v4167
    %v4424 = vcvt.s32.f32 %v4168
    %v4425 = vcvt.s32.f32 %v4169
    %v4426 = vcvt.s32.f32 %v4170
    %v4427 = vcvt.s32.f32 %v4171
    %v4428 = vcvt.s32.f32 %v4172
    %v4429 = vcvt.s32.f32 %v4173
    %v4430 = vcvt.s32.f32 %v4174
    %v4431 = vcvt.s32.f32 %v4175
    %v4432 = vcvt.s32.f32 %v4176
    %v4433 = vcvt.s32.f32 %v4177
    %v4434 = vcvt.s32.f32 %v4178
    %v4435 = vcvt.s32.f32 %v4179
    %v4436 = vcvt.s32.f32 %v4180
    %v4437 = vcvt.s32.f32 %v4181
    %v4438 = vcvt.s32.f32 %v4182
    %v4439 = vcvt.s32.f32 %v4183
    %v4440 = vcvt.s32.f32 %v4184
    %v4441 = vcvt.s32.f32 %v4185
    %v4442 = vcvt.s32.f32 %v4186
    %v4443 = vcvt.s32.f32 %v4187
    %v4444 = vcvt.s32.f32 %v4188
    %v4445 = vcvt.s32.f32 %v4189
    %v4446 = vcvt.s32.f32 %v4190
    %v4447 = vcvt.s32.f32 %v4191
    %v4448 = vcvt.s32.f32 %v4192
    %v4449 = vcvt.s32.f32 %v4193
    %v4450 = vcvt.s32.f32 %v4194
    %v4451 = vcvt.s32.f32 %v4195
    %v4452 = vcvt.s32.f32 %v4196
    %v4453 = vcvt.s32.f32 %v4197
    %v4454 = vcvt.s32.f32 %v4198
    %v4455 = vcvt.s32.f32 %v4199
    %v4456 = vcvt.s32.f32 %v4200
    %v4457 = vcvt.s32.f32 %v4201
    %v4458 = vcvt.s32.f32 %v4202
    %v4459 = vcvt.s32.f32 %v4203
    %v4460 = vcvt.s32.f32 %v4204
    %v4461 = vcvt.s32.f32 %v4205
    %v4462 = vcvt.s32.f32 %v4206
    %v4463 = vcvt.s32.f32 %v4207
    %v4464 = vcvt.s32.f32 %v4208
    %v4465 = vcvt.s32.f32 %v4209
    %v4466 = vcvt.s32.f32 %v4210
    %v4467 = vcvt.s32.f32 %v4211
    %v4468 = vcvt.s32.f32 %v4212
    %v4469 = vcvt.s32.f32 %v4213
    %v4470 = vcvt.s32.f32 %v4214
    %v4471 = vcvt.s32.f32 %v4215
    %v4472 = vcvt.s32.f32 %v4216
    %v4473 = vcvt.s32.f32 %v4217
    %v4474 = vcvt.s32.f32 %v4218
    %v4475 = vcvt.s32.f32 %v4219
    %v4476 = vcvt.s32.f32 %v4220
    %v4477 = vcvt.s32.f32 %v4221
    %v4478 = vcvt.s32.f32 %v4222
    %v4479 = vcvt.s32.f32 %v4223
    %v4480 = vcvt.s32.f32 %v4224
    %v4481 = vcvt.s32.f32 %v4225
    %v4482 = vcvt.s32.f32 %v4226
    %v4483 = vcvt.s32.f32 %v4227
    %v4484 = vcvt.s32.f32 %v4228
    %v4485 = vcvt.s32.f32 %v4229
    %v4486 = vcvt.s32.f32 %v4230
    %v4487 = vcvt.s32.f32 %v4231
    %v4488 = vcvt.s32.f32 %v4232
    %v4489 = vcvt.s32.f32 %v4233
    %v4490 = vcvt.s32.f32 %v4234
    %v4491 = vcvt.s32.f32 %v4235
    %v4492 = vcvt.s32.f32 %v4236
    %v4493 = vcvt.s32.f32 %v4237
    %v4494 = vcvt.s32.f32 %v4238
    %v4495 = vcvt.s32.f32 %v4239
    %v4496 = vcvt.s32.f32 %v4240
    %v4497 = vcvt.s32.f32 %v4241
    %v4498 = vcvt.s32.f32 %v4242
    %v4499 = vcvt.s32.f32 %v4243
    %v4500 = vcvt.s32.f32 %v4244
    %v4501 = vcvt.s32.f32 %v4245
    %v4502 = vcvt.s32.f32 %v4246
    %v4503 = vcvt.s32.f32 %v4247
    %v4504 = vcvt.s32.f32 %v4248
    %v4505 = vcvt.s32.f32 %v4249
    %v4506 = vcvt.s32.f32 %v4250
    %v4507 = vcvt.s32.f32 %v4251
    %v4508 = vcvt.s32.f32 %v4252
    %v4509 = vcvt.s32.f32 %v4253
    %v4510 = vcvt.s32.f32 %v4254
    %v4511 = vcvt.s32.f32 %v4255
    %v4512 = vcvt.s32.f32 %v4256
    %v4513 = vcvt.s32.f32 %v4257
    %v4514 = vcvt.s32.f32 %v4258
    %v4515 = vcvt.s32.f32 %v4259
    %v4516 = vcvt.s32.f32 %v4260
    %v4517 = vcvt.s32.f32 %v4261
    %v4518 = vcvt.s32.f32 %v4262
    %v4519 = vcvt.s32.f32 %v4263
    %v4520 = vcvt.s32.f32 %v4264
    %v4521 = vcvt.s32.f32 %v4265
    %v4522 = vcvt.s32.f32 %v4266
    %v4523 = vcvt.s32.f32 %v4267
    %v4524 = vcvt.s32.f32 %v4268
    %v4525 = vcvt.s32.f32 %v4269
    %v4526 = vcvt.s32.f32 %v4270
    %v4527 = vcvt.s32.f32 %v4271
    %v4528 = vcvt.s32.f32 %v4272
    %v4529 = vcvt.s32.f32 %v4273
    %v4530 = vcvt.s32.f32 %v4274
    %v4531 = vcvt.s32.f32 %v4275
    %v4532 = vcvt.s32.f32 %v4276
    %v4533 = vcvt.s32.f32 %v4277
    %v4534 = vcvt.s32.f32 %v4278
    %v4535 = vcvt.s32.f32 %v4279
    %v4536 = vcvt.s32.f32 %v4280
    %v4537 = vcvt.s32.f32 %v4281
    %v4538 = vcvt.s32.f32 %v4282
    %v4539 = vcvt.s32.f32 %v4283
    %v4540 = vcvt.s32.f32 %v4284
    %v4541 = vcvt.s32.f32 %v4285
    %v4542 = vcvt.s32.f32 %v4286
    %v4543 = vcvt.s32.f32 %v4287
    %v4544 = vcvt.s32.f32 %v4288
    %v4545 = vcvt.s32.f32 %v4289
    %v4546 = vcvt.s32.f32 %v4290
    %v4547 = vcvt.s32.f32 %v4291
    %v4548 = vcvt.s32.f32 %v4292
    %v4549 = vcvt.s32.f32 %v4293
    %v4550 = vcvt.s32.f32 %v4294
    %v4551 = vcvt.s32.f32 %v4295
    %v4552 = vcvt.s32.f32 %v4296
    %v4553 = vcvt.s32.f32 %v4297
    %v4554 = vcvt.s32.f32 %v4298
    %v4555 = vcvt.s32.f32 %v4299
    %v4556 = vcvt.s32.f32 %v4300
    %v4557 = vcvt.s32.f32 %v4301
    %v4558 = vcvt.s32.f32 %v4302
    %v4559 = vcvt.s32.f32 %v4303
    %v4560 = vcvt.s32.f32 %v4304
    %v4561 = vcvt.s32.f32 %v4305
    %v4562 = vcvt.s32.f32 %v4306
    %v4563 = vcvt.s32.f32 %v4307
    %v4564 = vcvt.s32.f32 %v4308
    %v4565 = vcvt.s32.f32 %v4309
    %v4566 = vcvt.s32.f32 %v4310
    %v4567 = vcvt.s32.f32 %v4311
    %v4568 = vcvt.s32.f32 %v4312
    %v4569 = vcvt.s32.f32 %v4313
    %v4570 = vcvt.s32.f32 %v4314
    %v4571 = vcvt.s32.f32 %v4315
    %v4572 = vcvt.s32.f32 %v4316
    %v4573 = vcvt.s32.f32 %v4317
    %v4574 = vcvt.s32.f32 %v4318
    %v4575 = vcvt.s32.f32 %v4319
    %v4576 = vcvt.s32.f32 %v4320
    %4577 = vmatpush.msra.mxu0 %v156
    %4578 = vmatpush.msra.mxu0 %v155
    %4579 = vmatpush.msra.mxu0 %v154
    %4580 = vmatpush.msra.mxu0 %v153
    %4581 = vmatpush.msra.mxu0 %v152
    %4582 = vmatpush.msra.mxu0 %v151
    %4583 = vmatpush.msra.mxu0 %v150
    %4584 = vmatpush.msra.mxu0 %v149
    %4585 = vmatpush.msra.mxu0 %v148
    %4586 = vmatpush.msra.mxu0 %v147
    %4587 = vmatpush.msra.mxu0 %v146
    %4588 = vmatpush.msra.mxu0 %v145
    %4589 = vmatpush.msra.mxu0 %v144
    %4590 = vmatpush.msra.mxu0 %v143
    %4591 = vmatpush.msra.mxu0 %v142
    %4592 = vmatpush.msra.mxu0 %v141
    %4593 = vmatmul.f32.gmra.mxu0 %v4321
    %v4594 = vpop.f32.mrf.mxu0
    %v4595 = vadd.f32 0.0, %v4594
    %4596 = vmatmul.f32.gmra.mxu0 %v4325
    %v4597 = vpop.f32.mrf.mxu0
    %v4598 = vadd.f32 0.0, %v4597
    %4599 = vmatmul.f32.gmra.mxu0 %v4329
    %v4600 = vpop.f32.mrf.mxu0
    %v4601 = vadd.f32 0.0, %v4600
    %4602 = vmatmul.f32.gmra.mxu0 %v4333
    %v4603 = vpop.f32.mrf.mxu0
    %v4604 = vadd.f32 0.0, %v4603
    %4605 = vmatmul.f32.gmra.mxu0 %v4337
    %v4606 = vpop.f32.mrf.mxu0
    %v4607 = vadd.f32 0.0, %v4606
    %4608 = vmatmul.f32.gmra.mxu0 %v4341
    %v4609 = vpop.f32.mrf.mxu0
    %v4610 = vadd.f32 0.0, %v4609
    %4611 = vmatmul.f32.gmra.mxu0 %v4345
    %v4612 = vpop.f32.mrf.mxu0
    %v4613 = vadd.f32 0.0, %v4612
    %4614 = vmatmul.f32.gmra.mxu0 %v4349
    %v4615 = vpop.f32.mrf.mxu0
    %v4616 = vadd.f32 0.0, %v4615
    %4617 = vmatmul.f32.gmra.mxu0 %v4353
    %v4618 = vpop.f32.mrf.mxu0
    %v4619 = vadd.f32 0.0, %v4618
    %4620 = vmatmul.f32.gmra.mxu0 %v4357
    %v4621 = vpop.f32.mrf.mxu0
    %v4622 = vadd.f32 0.0, %v4621
    %4623 = vmatmul.f32.gmra.mxu0 %v4361
    %v4624 = vpop.f32.mrf.mxu0
    %v4625 = vadd.f32 0.0, %v4624
    %4626 = vmatmul.f32.gmra.mxu0 %v4365
    %v4627 = vpop.f32.mrf.mxu0
    %v4628 = vadd.f32 0.0, %v4627
    %4629 = vmatmul.f32.gmra.mxu0 %v4369
    %v4630 = vpop.f32.mrf.mxu0
    %v4631 = vadd.f32 0.0, %v4630
    %4632 = vmatmul.f32.gmra.mxu0 %v4373
    %v4633 = vpop.f32.mrf.mxu0
    %v4634 = vadd.f32 0.0, %v4633
    %4635 = vmatmul.f32.gmra.mxu0 %v4377
    %v4636 = vpop.f32.mrf.mxu0
    %v4637 = vadd.f32 0.0, %v4636
    %4638 = vmatmul.f32.gmra.mxu0 %v4381
    %v4639 = vpop.f32.mrf.mxu0
    %v4640 = vadd.f32 0.0, %v4639
    %4641 = vmatmul.f32.gmra.mxu0 %v4385
    %v4642 = vpop.f32.mrf.mxu0
    %v4643 = vadd.f32 0.0, %v4642
    %4644 = vmatmul.f32.gmra.mxu0 %v4389
    %v4645 = vpop.f32.mrf.mxu0
    %v4646 = vadd.f32 0.0, %v4645
    %4647 = vmatmul.f32.gmra.mxu0 %v4393
    %v4648 = vpop.f32.mrf.mxu0
    %v4649 = vadd.f32 0.0, %v4648
    %4650 = vmatmul.f32.gmra.mxu0 %v4397
    %v4651 = vpop.f32.mrf.mxu0
    %v4652 = vadd.f32 0.0, %v4651
    %4653 = vmatmul.f32.gmra.mxu0 %v4401
    %v4654 = vpop.f32.mrf.mxu0
    %v4655 = vadd.f32 0.0, %v4654
    %4656 = vmatmul.f32.gmra.mxu0 %v4405
    %v4657 = vpop.f32.mrf.mxu0
    %v4658 = vadd.f32 0.0, %v4657
    %4659 = vmatmul.f32.gmra.mxu0 %v4409
    %v4660 = vpop.f32.mrf.mxu0
    %v4661 = vadd.f32 0.0, %v4660
    %4662 = vmatmul.f32.gmra.mxu0 %v4413
    %v4663 = vpop.f32.mrf.mxu0
    %v4664 = vadd.f32 0.0, %v4663
    %4665 = vmatmul.f32.gmra.mxu0 %v4417
    %v4666 = vpop.f32.mrf.mxu0
    %v4667 = vadd.f32 0.0, %v4666
    %4668 = vmatmul.f32.gmra.mxu0 %v4421
    %v4669 = vpop.f32.mrf.mxu0
    %v4670 = vadd.f32 0.0, %v4669
    %4671 = vmatmul.f32.gmra.mxu0 %v4425
    %v4672 = vpop.f32.mrf.mxu0
    %v4673 = vadd.f32 0.0, %v4672
    %4674 = vmatmul.f32.gmra.mxu0 %v4429
    %v4675 = vpop.f32.mrf.mxu0
    %v4676 = vadd.f32 0.0, %v4675
    %4677 = vmatmul.f32.gmra.mxu0 %v4433
    %v4678 = vpop.f32.mrf.mxu0
    %v4679 = vadd.f32 0.0, %v4678
    %4680 = vmatmul.f32.gmra.mxu0 %v4437
    %v4681 = vpop.f32.mrf.mxu0
    %v4682 = vadd.f32 0.0, %v4681
    %4683 = vmatmul.f32.gmra.mxu0 %v4441
    %v4684 = vpop.f32.mrf.mxu0
    %v4685 = vadd.f32 0.0, %v4684
    %4686 = vmatmul.f32.gmra.mxu0 %v4445
    %v4687 = vpop.f32.mrf.mxu0
    %v4688 = vadd.f32 0.0, %v4687
    %4689 = vmatmul.f32.gmra.mxu0 %v4449
    %v4690 = vpop.f32.mrf.mxu0
    %v4691 = vadd.f32 0.0, %v4690
    %4692 = vmatmul.f32.gmra.mxu0 %v4453
    %v4693 = vpop.f32.mrf.mxu0
    %v4694 = vadd.f32 0.0, %v4693
    %4695 = vmatmul.f32.gmra.mxu0 %v4457
    %v4696 = vpop.f32.mrf.mxu0
    %v4697 = vadd.f32 0.0, %v4696
    %4698 = vmatmul.f32.gmra.mxu0 %v4461
    %v4699 = vpop.f32.mrf.mxu0
    %v4700 = vadd.f32 0.0, %v4699
    %4701 = vmatmul.f32.gmra.mxu0 %v4465
    %v4702 = vpop.f32.mrf.mxu0
    %v4703 = vadd.f32 0.0, %v4702
    %4704 = vmatmul.f32.gmra.mxu0 %v4469
    %v4705 = vpop.f32.mrf.mxu0
    %v4706 = vadd.f32 0.0, %v4705
    %4707 = vmatmul.f32.gmra.mxu0 %v4473
    %v4708 = vpop.f32.mrf.mxu0
    %v4709 = vadd.f32 0.0, %v4708
    %4710 = vmatmul.f32.gmra.mxu0 %v4477
    %v4711 = vpop.f32.mrf.mxu0
    %v4712 = vadd.f32 0.0, %v4711
    %4713 = vmatmul.f32.gmra.mxu0 %v4481
    %v4714 = vpop.f32.mrf.mxu0
    %v4715 = vadd.f32 0.0, %v4714
    %4716 = vmatmul.f32.gmra.mxu0 %v4485
    %v4717 = vpop.f32.mrf.mxu0
    %v4718 = vadd.f32 0.0, %v4717
    %4719 = vmatmul.f32.gmra.mxu0 %v4489
    %v4720 = vpop.f32.mrf.mxu0
    %v4721 = vadd.f32 0.0, %v4720
    %4722 = vmatmul.f32.gmra.mxu0 %v4493
    %v4723 = vpop.f32.mrf.mxu0
    %v4724 = vadd.f32 0.0, %v4723
    %4725 = vmatmul.f32.gmra.mxu0 %v4497
    %v4726 = vpop.f32.mrf.mxu0
    %v4727 = vadd.f32 0.0, %v4726
    %4728 = vmatmul.f32.gmra.mxu0 %v4501
    %v4729 = vpop.f32.mrf.mxu0
    %v4730 = vadd.f32 0.0, %v4729
    %4731 = vmatmul.f32.gmra.mxu0 %v4505
    %v4732 = vpop.f32.mrf.mxu0
    %v4733 = vadd.f32 0.0, %v4732
    %4734 = vmatmul.f32.gmra.mxu0 %v4509
    %v4735 = vpop.f32.mrf.mxu0
    %v4736 = vadd.f32 0.0, %v4735
    %4737 = vmatmul.f32.gmra.mxu0 %v4513
    %v4738 = vpop.f32.mrf.mxu0
    %v4739 = vadd.f32 0.0, %v4738
    %4740 = vmatmul.f32.gmra.mxu0 %v4517
    %v4741 = vpop.f32.mrf.mxu0
    %v4742 = vadd.f32 0.0, %v4741
    %4743 = vmatmul.f32.gmra.mxu0 %v4521
    %v4744 = vpop.f32.mrf.mxu0
    %v4745 = vadd.f32 0.0, %v4744
    %4746 = vmatmul.f32.gmra.mxu0 %v4525
    %v4747 = vpop.f32.mrf.mxu0
    %v4748 = vadd.f32 0.0, %v4747
    %4749 = vmatmul.f32.gmra.mxu0 %v4529
    %v4750 = vpop.f32.mrf.mxu0
    %v4751 = vadd.f32 0.0, %v4750
    %4752 = vmatmul.f32.gmra.mxu0 %v4533
    %v4753 = vpop.f32.mrf.mxu0
    %v4754 = vadd.f32 0.0, %v4753
    %4755 = vmatmul.f32.gmra.mxu0 %v4537
    %v4756 = vpop.f32.mrf.mxu0
    %v4757 = vadd.f32 0.0, %v4756
    %4758 = vmatmul.f32.gmra.mxu0 %v4541
    %v4759 = vpop.f32.mrf.mxu0
    %v4760 = vadd.f32 0.0, %v4759
    %4761 = vmatmul.f32.gmra.mxu0 %v4545
    %v4762 = vpop.f32.mrf.mxu0
    %v4763 = vadd.f32 0.0, %v4762
    %4764 = vmatmul.f32.gmra.mxu0 %v4549
    %v4765 = vpop.f32.mrf.mxu0
    %v4766 = vadd.f32 0.0, %v4765
    %4767 = vmatmul.f32.gmra.mxu0 %v4553
    %v4768 = vpop.f32.mrf.mxu0
    %v4769 = vadd.f32 0.0, %v4768
    %4770 = vmatmul.f32.gmra.mxu0 %v4557
    %v4771 = vpop.f32.mrf.mxu0
    %v4772 = vadd.f32 0.0, %v4771
    %4773 = vmatmul.f32.gmra.mxu0 %v4561
    %v4774 = vpop.f32.mrf.mxu0
    %v4775 = vadd.f32 0.0, %v4774
    %4776 = vmatmul.f32.gmra.mxu0 %v4565
    %v4777 = vpop.f32.mrf.mxu0
    %v4778 = vadd.f32 0.0, %v4777
    %4779 = vmatmul.f32.gmra.mxu0 %v4569
    %v4780 = vpop.f32.mrf.mxu0
    %v4781 = vadd.f32 0.0, %v4780
    %4782 = vmatmul.f32.gmra.mxu0 %v4573
    %v4783 = vpop.f32.mrf.mxu0
    %v4784 = vadd.f32 0.0, %v4783
    %4785 = vdwg.mxu0
    %4786 = vmatpush.msra.mxu0 %v172
    %4787 = vmatpush.msra.mxu0 %v171
    %4788 = vmatpush.msra.mxu0 %v170
    %4789 = vmatpush.msra.mxu0 %v169
    %4790 = vmatpush.msra.mxu0 %v168
    %4791 = vmatpush.msra.mxu0 %v167
    %4792 = vmatpush.msra.mxu0 %v166
    %4793 = vmatpush.msra.mxu0 %v165
    %4794 = vmatpush.msra.mxu0 %v164
    %4795 = vmatpush.msra.mxu0 %v163
    %4796 = vmatpush.msra.mxu0 %v162
    %4797 = vmatpush.msra.mxu0 %v161
    %4798 = vmatpush.msra.mxu0 %v160
    %4799 = vmatpush.msra.mxu0 %v159
    %4800 = vmatpush.msra.mxu0 %v158
    %4801 = vmatpush.msra.mxu0 %v157
    %4802 = vmatmul.f32.gmra.mxu0 %v4322
    %v4803 = vpop.f32.mrf.mxu0
    %v4804 = vadd.f32 %v4595, %v4803
    %4805 = vmatmul.f32.gmra.mxu0 %v4326
    %v4806 = vpop.f32.mrf.mxu0
    %v4807 = vadd.f32 %v4598, %v4806
    %4808 = vmatmul.f32.gmra.mxu0 %v4330
    %v4809 = vpop.f32.mrf.mxu0
    %v4810 = vadd.f32 %v4601, %v4809
    %4811 = vmatmul.f32.gmra.mxu0 %v4334
    %v4812 = vpop.f32.mrf.mxu0
    %v4813 = vadd.f32 %v4604, %v4812
    %4814 = vmatmul.f32.gmra.mxu0 %v4338
    %v4815 = vpop.f32.mrf.mxu0
    %v4816 = vadd.f32 %v4607, %v4815
    %4817 = vmatmul.f32.gmra.mxu0 %v4342
    %v4818 = vpop.f32.mrf.mxu0
    %v4819 = vadd.f32 %v4610, %v4818
    %4820 = vmatmul.f32.gmra.mxu0 %v4346
    %v4821 = vpop.f32.mrf.mxu0
    %v4822 = vadd.f32 %v4613, %v4821
    %4823 = vmatmul.f32.gmra.mxu0 %v4350
    %v4824 = vpop.f32.mrf.mxu0
    %v4825 = vadd.f32 %v4616, %v4824
    %4826 = vmatmul.f32.gmra.mxu0 %v4354
    %v4827 = vpop.f32.mrf.mxu0
    %v4828 = vadd.f32 %v4619, %v4827
    %4829 = vmatmul.f32.gmra.mxu0 %v4358
    %v4830 = vpop.f32.mrf.mxu0
    %v4831 = vadd.f32 %v4622, %v4830
    %4832 = vmatmul.f32.gmra.mxu0 %v4362
    %v4833 = vpop.f32.mrf.mxu0
    %v4834 = vadd.f32 %v4625, %v4833
    %4835 = vmatmul.f32.gmra.mxu0 %v4366
    %v4836 = vpop.f32.mrf.mxu0
    %v4837 = vadd.f32 %v4628, %v4836
    %4838 = vmatmul.f32.gmra.mxu0 %v4370
    %v4839 = vpop.f32.mrf.mxu0
    %v4840 = vadd.f32 %v4631, %v4839
    %4841 = vmatmul.f32.gmra.mxu0 %v4374
    %v4842 = vpop.f32.mrf.mxu0
    %v4843 = vadd.f32 %v4634, %v4842
    %4844 = vmatmul.f32.gmra.mxu0 %v4378
    %v4845 = vpop.f32.mrf.mxu0
    %v4846 = vadd.f32 %v4637, %v4845
    %4847 = vmatmul.f32.gmra.mxu0 %v4382
    %v4848 = vpop.f32.mrf.mxu0
    %v4849 = vadd.f32 %v4640, %v4848
    %4850 = vmatmul.f32.gmra.mxu0 %v4386
    %v4851 = vpop.f32.mrf.mxu0
    %v4852 = vadd.f32 %v4643, %v4851
    %4853 = vmatmul.f32.gmra.mxu0 %v4390
    %v4854 = vpop.f32.mrf.mxu0
    %v4855 = vadd.f32 %v4646, %v4854
    %4856 = vmatmul.f32.gmra.mxu0 %v4394
    %v4857 = vpop.f32.mrf.mxu0
    %v4858 = vadd.f32 %v4649, %v4857
    %4859 = vmatmul.f32.gmra.mxu0 %v4398
    %v4860 = vpop.f32.mrf.mxu0
    %v4861 = vadd.f32 %v4652, %v4860
    %4862 = vmatmul.f32.gmra.mxu0 %v4402
    %v4863 = vpop.f32.mrf.mxu0
    %v4864 = vadd.f32 %v4655, %v4863
    %4865 = vmatmul.f32.gmra.mxu0 %v4406
    %v4866 = vpop.f32.mrf.mxu0
    %v4867 = vadd.f32 %v4658, %v4866
    %4868 = vmatmul.f32.gmra.mxu0 %v4410
    %v4869 = vpop.f32.mrf.mxu0
    %v4870 = vadd.f32 %v4661, %v4869
    %4871 = vmatmul.f32.gmra.mxu0 %v4414
    %v4872 = vpop.f32.mrf.mxu0
    %v4873 = vadd.f32 %v4664, %v4872
    %4874 = vmatmul.f32.gmra.mxu0 %v4418
    %v4875 = vpop.f32.mrf.mxu0
    %v4876 = vadd.f32 %v4667, %v4875
    %4877 = vmatmul.f32.gmra.mxu0 %v4422
    %v4878 = vpop.f32.mrf.mxu0
    %v4879 = vadd.f32 %v4670, %v4878
    %4880 = vmatmul.f32.gmra.mxu0 %v4426
    %v4881 = vpop.f32.mrf.mxu0
    %v4882 = vadd.f32 %v4673, %v4881
    %4883 = vmatmul.f32.gmra.mxu0 %v4430
    %v4884 = vpop.f32.mrf.mxu0
    %v4885 = vadd.f32 %v4676, %v4884
    %4886 = vmatmul.f32.gmra.mxu0 %v4434
    %v4887 = vpop.f32.mrf.mxu0
    %v4888 = vadd.f32 %v4679, %v4887
    %4889 = vmatmul.f32.gmra.mxu0 %v4438
    %v4890 = vpop.f32.mrf.mxu0
    %v4891 = vadd.f32 %v4682, %v4890
    %4892 = vmatmul.f32.gmra.mxu0 %v4442
    %v4893 = vpop.f32.mrf.mxu0
    %v4894 = vadd.f32 %v4685, %v4893
    %4895 = vmatmul.f32.gmra.mxu0 %v4446
    %v4896 = vpop.f32.mrf.mxu0
    %v4897 = vadd.f32 %v4688, %v4896
    %4898 = vmatmul.f32.gmra.mxu0 %v4450
    %v4899 = vpop.f32.mrf.mxu0
    %v4900 = vadd.f32 %v4691, %v4899
    %4901 = vmatmul.f32.gmra.mxu0 %v4454
    %v4902 = vpop.f32.mrf.mxu0
    %v4903 = vadd.f32 %v4694, %v4902
    %4904 = vmatmul.f32.gmra.mxu0 %v4458
    %v4905 = vpop.f32.mrf.mxu0
    %v4906 = vadd.f32 %v4697, %v4905
    %4907 = vmatmul.f32.gmra.mxu0 %v4462
    %v4908 = vpop.f32.mrf.mxu0
    %v4909 = vadd.f32 %v4700, %v4908
    %4910 = vmatmul.f32.gmra.mxu0 %v4466
    %v4911 = vpop.f32.mrf.mxu0
    %v4912 = vadd.f32 %v4703, %v4911
    %4913 = vmatmul.f32.gmra.mxu0 %v4470
    %v4914 = vpop.f32.mrf.mxu0
    %v4915 = vadd.f32 %v4706, %v4914
    %4916 = vmatmul.f32.gmra.mxu0 %v4474
    %v4917 = vpop.f32.mrf.mxu0
    %v4918 = vadd.f32 %v4709, %v4917
    %4919 = vmatmul.f32.gmra.mxu0 %v4478
    %v4920 = vpop.f32.mrf.mxu0
    %v4921 = vadd.f32 %v4712, %v4920
    %4922 = vmatmul.f32.gmra.mxu0 %v4482
    %v4923 = vpop.f32.mrf.mxu0
    %v4924 = vadd.f32 %v4715, %v4923
    %4925 = vmatmul.f32.gmra.mxu0 %v4486
    %v4926 = vpop.f32.mrf.mxu0
    %v4927 = vadd.f32 %v4718, %v4926
    %4928 = vmatmul.f32.gmra.mxu0 %v4490
    %v4929 = vpop.f32.mrf.mxu0
    %v4930 = vadd.f32 %v4721, %v4929
    %4931 = vmatmul.f32.gmra.mxu0 %v4494
    %v4932 = vpop.f32.mrf.mxu0
    %v4933 = vadd.f32 %v4724, %v4932
    %4934 = vmatmul.f32.gmra.mxu0 %v4498
    %v4935 = vpop.f32.mrf.mxu0
    %v4936 = vadd.f32 %v4727, %v4935
    %4937 = vmatmul.f32.gmra.mxu0 %v4502
    %v4938 = vpop.f32.mrf.mxu0
    %v4939 = vadd.f32 %v4730, %v4938
    %4940 = vmatmul.f32.gmra.mxu0 %v4506
    %v4941 = vpop.f32.mrf.mxu0
    %v4942 = vadd.f32 %v4733, %v4941
    %4943 = vmatmul.f32.gmra.mxu0 %v4510
    %v4944 = vpop.f32.mrf.mxu0
    %v4945 = vadd.f32 %v4736, %v4944
    %4946 = vmatmul.f32.gmra.mxu0 %v4514
    %v4947 = vpop.f32.mrf.mxu0
    %v4948 = vadd.f32 %v4739, %v4947
    %4949 = vmatmul.f32.gmra.mxu0 %v4518
    %v4950 = vpop.f32.mrf.mxu0
    %v4951 = vadd.f32 %v4742, %v4950
    %4952 = vmatmul.f32.gmra.mxu0 %v4522
    %v4953 = vpop.f32.mrf.mxu0
    %v4954 = vadd.f32 %v4745, %v4953
    %4955 = vmatmul.f32.gmra.mxu0 %v4526
    %v4956 = vpop.f32.mrf.mxu0
    %v4957 = vadd.f32 %v4748, %v4956
    %4958 = vmatmul.f32.gmra.mxu0 %v4530
    %v4959 = vpop.f32.mrf.mxu0
    %v4960 = vadd.f32 %v4751, %v4959
    %4961 = vmatmul.f32.gmra.mxu0 %v4534
    %v4962 = vpop.f32.mrf.mxu0
    %v4963 = vadd.f32 %v4754, %v4962
    %4964 = vmatmul.f32.gmra.mxu0 %v4538
    %v4965 = vpop.f32.mrf.mxu0
    %v4966 = vadd.f32 %v4757, %v4965
    %4967 = vmatmul.f32.gmra.mxu0 %v4542
    %v4968 = vpop.f32.mrf.mxu0
    %v4969 = vadd.f32 %v4760, %v4968
    %4970 = vmatmul.f32.gmra.mxu0 %v4546
    %v4971 = vpop.f32.mrf.mxu0
    %v4972 = vadd.f32 %v4763, %v4971
    %4973 = vmatmul.f32.gmra.mxu0 %v4550
    %v4974 = vpop.f32.mrf.mxu0
    %v4975 = vadd.f32 %v4766, %v4974
    %4976 = vmatmul.f32.gmra.mxu0 %v4554
    %v4977 = vpop.f32.mrf.mxu0
    %v4978 = vadd.f32 %v4769, %v4977
    %4979 = vmatmul.f32.gmra.mxu0 %v4558
    %v4980 = vpop.f32.mrf.mxu0
    %v4981 = vadd.f32 %v4772, %v4980
    %4982 = vmatmul.f32.gmra.mxu0 %v4562
    %v4983 = vpop.f32.mrf.mxu0
    %v4984 = vadd.f32 %v4775, %v4983
    %4985 = vmatmul.f32.gmra.mxu0 %v4566
    %v4986 = vpop.f32.mrf.mxu0
    %v4987 = vadd.f32 %v4778, %v4986
    %4988 = vmatmul.f32.gmra.mxu0 %v4570
    %v4989 = vpop.f32.mrf.mxu0
    %v4990 = vadd.f32 %v4781, %v4989
    %4991 = vmatmul.f32.gmra.mxu0 %v4574
    %v4992 = vpop.f32.mrf.mxu0
    %v4993 = vadd.f32 %v4784, %v4992
    %4994 = vdwg.mxu0
    %4995 = vmatpush.msra.mxu0 %v188
    %4996 = vmatpush.msra.mxu0 %v187
    %4997 = vmatpush.msra.mxu0 %v186
    %4998 = vmatpush.msra.mxu0 %v185
    %4999 = vmatpush.msra.mxu0 %v184
    %5000 = vmatpush.msra.mxu0 %v183
    %5001 = vmatpush.msra.mxu0 %v182
    %5002 = vmatpush.msra.mxu0 %v181
    %5003 = vmatpush.msra.mxu0 %v180
    %5004 = vmatpush.msra.mxu0 %v179
    %5005 = vmatpush.msra.mxu0 %v178
    %5006 = vmatpush.msra.mxu0 %v177
    %5007 = vmatpush.msra.mxu0 %v176
    %5008 = vmatpush.msra.mxu0 %v175
    %5009 = vmatpush.msra.mxu0 %v174
    %5010 = vmatpush.msra.mxu0 %v173
    %5011 = vmatmul.f32.gmra.mxu0 %v4323
    %v5012 = vpop.f32.mrf.mxu0
    %v5013 = vadd.f32 %v4804, %v5012
    %5014 = vmatmul.f32.gmra.mxu0 %v4327
    %v5015 = vpop.f32.mrf.mxu0
    %v5016 = vadd.f32 %v4807, %v5015
    %5017 = vmatmul.f32.gmra.mxu0 %v4331
    %v5018 = vpop.f32.mrf.mxu0
    %v5019 = vadd.f32 %v4810, %v5018
    %5020 = vmatmul.f32.gmra.mxu0 %v4335
    %v5021 = vpop.f32.mrf.mxu0
    %v5022 = vadd.f32 %v4813, %v5021
    %5023 = vmatmul.f32.gmra.mxu0 %v4339
    %v5024 = vpop.f32.mrf.mxu0
    %v5025 = vadd.f32 %v4816, %v5024
    %5026 = vmatmul.f32.gmra.mxu0 %v4343
    %v5027 = vpop.f32.mrf.mxu0
    %v5028 = vadd.f32 %v4819, %v5027
    %5029 = vmatmul.f32.gmra.mxu0 %v4347
    %v5030 = vpop.f32.mrf.mxu0
    %v5031 = vadd.f32 %v4822, %v5030
    %5032 = vmatmul.f32.gmra.mxu0 %v4351
    %v5033 = vpop.f32.mrf.mxu0
    %v5034 = vadd.f32 %v4825, %v5033
    %5035 = vmatmul.f32.gmra.mxu0 %v4355
    %v5036 = vpop.f32.mrf.mxu0
    %v5037 = vadd.f32 %v4828, %v5036
    %5038 = vmatmul.f32.gmra.mxu0 %v4359
    %v5039 = vpop.f32.mrf.mxu0
    %v5040 = vadd.f32 %v4831, %v5039
    %5041 = vmatmul.f32.gmra.mxu0 %v4363
    %v5042 = vpop.f32.mrf.mxu0
    %v5043 = vadd.f32 %v4834, %v5042
    %5044 = vmatmul.f32.gmra.mxu0 %v4367
    %v5045 = vpop.f32.mrf.mxu0
    %v5046 = vadd.f32 %v4837, %v5045
    %5047 = vmatmul.f32.gmra.mxu0 %v4371
    %v5048 = vpop.f32.mrf.mxu0
    %v5049 = vadd.f32 %v4840, %v5048
    %5050 = vmatmul.f32.gmra.mxu0 %v4375
    %v5051 = vpop.f32.mrf.mxu0
    %v5052 = vadd.f32 %v4843, %v5051
    %5053 = vmatmul.f32.gmra.mxu0 %v4379
    %v5054 = vpop.f32.mrf.mxu0
    %v5055 = vadd.f32 %v4846, %v5054
    %5056 = vmatmul.f32.gmra.mxu0 %v4383
    %v5057 = vpop.f32.mrf.mxu0
    %v5058 = vadd.f32 %v4849, %v5057
    %5059 = vmatmul.f32.gmra.mxu0 %v4387
    %v5060 = vpop.f32.mrf.mxu0
    %v5061 = vadd.f32 %v4852, %v5060
    %5062 = vmatmul.f32.gmra.mxu0 %v4391
    %v5063 = vpop.f32.mrf.mxu0
    %v5064 = vadd.f32 %v4855, %v5063
    %5065 = vmatmul.f32.gmra.mxu0 %v4395
    %v5066 = vpop.f32.mrf.mxu0
    %v5067 = vadd.f32 %v4858, %v5066
    %5068 = vmatmul.f32.gmra.mxu0 %v4399
    %v5069 = vpop.f32.mrf.mxu0
    %v5070 = vadd.f32 %v4861, %v5069
    %5071 = vmatmul.f32.gmra.mxu0 %v4403
    %v5072 = vpop.f32.mrf.mxu0
    %v5073 = vadd.f32 %v4864, %v5072
    %5074 = vmatmul.f32.gmra.mxu0 %v4407
    %v5075 = vpop.f32.mrf.mxu0
    %v5076 = vadd.f32 %v4867, %v5075
    %5077 = vmatmul.f32.gmra.mxu0 %v4411
    %v5078 = vpop.f32.mrf.mxu0
    %v5079 = vadd.f32 %v4870, %v5078
    %5080 = vmatmul.f32.gmra.mxu0 %v4415
    %v5081 = vpop.f32.mrf.mxu0
    %v5082 = vadd.f32 %v4873, %v5081
    %5083 = vmatmul.f32.gmra.mxu0 %v4419
    %v5084 = vpop.f32.mrf.mxu0
    %v5085 = vadd.f32 %v4876, %v5084
    %5086 = vmatmul.f32.gmra.mxu0 %v4423
    %v5087 = vpop.f32.mrf.mxu0
    %v5088 = vadd.f32 %v4879, %v5087
    %5089 = vmatmul.f32.gmra.mxu0 %v4427
    %v5090 = vpop.f32.mrf.mxu0
    %v5091 = vadd.f32 %v4882, %v5090
    %5092 = vmatmul.f32.gmra.mxu0 %v4431
    %v5093 = vpop.f32.mrf.mxu0
    %v5094 = vadd.f32 %v4885, %v5093
    %5095 = vmatmul.f32.gmra.mxu0 %v4435
    %v5096 = vpop.f32.mrf.mxu0
    %v5097 = vadd.f32 %v4888, %v5096
    %5098 = vmatmul.f32.gmra.mxu0 %v4439
    %v5099 = vpop.f32.mrf.mxu0
    %v5100 = vadd.f32 %v4891, %v5099
    %5101 = vmatmul.f32.gmra.mxu0 %v4443
    %v5102 = vpop.f32.mrf.mxu0
    %v5103 = vadd.f32 %v4894, %v5102
    %5104 = vmatmul.f32.gmra.mxu0 %v4447
    %v5105 = vpop.f32.mrf.mxu0
    %v5106 = vadd.f32 %v4897, %v5105
    %5107 = vmatmul.f32.gmra.mxu0 %v4451
    %v5108 = vpop.f32.mrf.mxu0
    %v5109 = vadd.f32 %v4900, %v5108
    %5110 = vmatmul.f32.gmra.mxu0 %v4455
    %v5111 = vpop.f32.mrf.mxu0
    %v5112 = vadd.f32 %v4903, %v5111
    %5113 = vmatmul.f32.gmra.mxu0 %v4459
    %v5114 = vpop.f32.mrf.mxu0
    %v5115 = vadd.f32 %v4906, %v5114
    %5116 = vmatmul.f32.gmra.mxu0 %v4463
    %v5117 = vpop.f32.mrf.mxu0
    %v5118 = vadd.f32 %v4909, %v5117
    %5119 = vmatmul.f32.gmra.mxu0 %v4467
    %v5120 = vpop.f32.mrf.mxu0
    %v5121 = vadd.f32 %v4912, %v5120
    %5122 = vmatmul.f32.gmra.mxu0 %v4471
    %v5123 = vpop.f32.mrf.mxu0
    %v5124 = vadd.f32 %v4915, %v5123
    %5125 = vmatmul.f32.gmra.mxu0 %v4475
    %v5126 = vpop.f32.mrf.mxu0
    %v5127 = vadd.f32 %v4918, %v5126
    %5128 = vmatmul.f32.gmra.mxu0 %v4479
    %v5129 = vpop.f32.mrf.mxu0
    %v5130 = vadd.f32 %v4921, %v5129
    %5131 = vmatmul.f32.gmra.mxu0 %v4483
    %v5132 = vpop.f32.mrf.mxu0
    %v5133 = vadd.f32 %v4924, %v5132
    %5134 = vmatmul.f32.gmra.mxu0 %v4487
    %v5135 = vpop.f32.mrf.mxu0
    %v5136 = vadd.f32 %v4927, %v5135
    %5137 = vmatmul.f32.gmra.mxu0 %v4491
    %v5138 = vpop.f32.mrf.mxu0
    %v5139 = vadd.f32 %v4930, %v5138
    %5140 = vmatmul.f32.gmra.mxu0 %v4495
    %v5141 = vpop.f32.mrf.mxu0
    %v5142 = vadd.f32 %v4933, %v5141
    %5143 = vmatmul.f32.gmra.mxu0 %v4499
    %v5144 = vpop.f32.mrf.mxu0
    %v5145 = vadd.f32 %v4936, %v5144
    %5146 = vmatmul.f32.gmra.mxu0 %v4503
    %v5147 = vpop.f32.mrf.mxu0
    %v5148 = vadd.f32 %v4939, %v5147
    %5149 = vmatmul.f32.gmra.mxu0 %v4507
    %v5150 = vpop.f32.mrf.mxu0
    %v5151 = vadd.f32 %v4942, %v5150
    %5152 = vmatmul.f32.gmra.mxu0 %v4511
    %v5153 = vpop.f32.mrf.mxu0
    %v5154 = vadd.f32 %v4945, %v5153
    %5155 = vmatmul.f32.gmra.mxu0 %v4515
    %v5156 = vpop.f32.mrf.mxu0
    %v5157 = vadd.f32 %v4948, %v5156
    %5158 = vmatmul.f32.gmra.mxu0 %v4519
    %v5159 = vpop.f32.mrf.mxu0
    %v5160 = vadd.f32 %v4951, %v5159
    %5161 = vmatmul.f32.gmra.mxu0 %v4523
    %v5162 = vpop.f32.mrf.mxu0
    %v5163 = vadd.f32 %v4954, %v5162
    %5164 = vmatmul.f32.gmra.mxu0 %v4527
    %v5165 = vpop.f32.mrf.mxu0
    %v5166 = vadd.f32 %v4957, %v5165
    %5167 = vmatmul.f32.gmra.mxu0 %v4531
    %v5168 = vpop.f32.mrf.mxu0
    %v5169 = vadd.f32 %v4960, %v5168
    %5170 = vmatmul.f32.gmra.mxu0 %v4535
    %v5171 = vpop.f32.mrf.mxu0
    %v5172 = vadd.f32 %v4963, %v5171
    %5173 = vmatmul.f32.gmra.mxu0 %v4539
    %v5174 = vpop.f32.mrf.mxu0
    %v5175 = vadd.f32 %v4966, %v5174
    %5176 = vmatmul.f32.gmra.mxu0 %v4543
    %v5177 = vpop.f32.mrf.mxu0
    %v5178 = vadd.f32 %v4969, %v5177
    %5179 = vmatmul.f32.gmra.mxu0 %v4547
    %v5180 = vpop.f32.mrf.mxu0
    %v5181 = vadd.f32 %v4972, %v5180
    %5182 = vmatmul.f32.gmra.mxu0 %v4551
    %v5183 = vpop.f32.mrf.mxu0
    %v5184 = vadd.f32 %v4975, %v5183
    %5185 = vmatmul.f32.gmra.mxu0 %v4555
    %v5186 = vpop.f32.mrf.mxu0
    %v5187 = vadd.f32 %v4978, %v5186
    %5188 = vmatmul.f32.gmra.mxu0 %v4559
    %v5189 = vpop.f32.mrf.mxu0
    %v5190 = vadd.f32 %v4981, %v5189
    %5191 = vmatmul.f32.gmra.mxu0 %v4563
    %v5192 = vpop.f32.mrf.mxu0
    %v5193 = vadd.f32 %v4984, %v5192
    %5194 = vmatmul.f32.gmra.mxu0 %v4567
    %v5195 = vpop.f32.mrf.mxu0
    %v5196 = vadd.f32 %v4987, %v5195
    %5197 = vmatmul.f32.gmra.mxu0 %v4571
    %v5198 = vpop.f32.mrf.mxu0
    %v5199 = vadd.f32 %v4990, %v5198
    %5200 = vmatmul.f32.gmra.mxu0 %v4575
    %v5201 = vpop.f32.mrf.mxu0
    %v5202 = vadd.f32 %v4993, %v5201
    %5203 = vdwg.mxu0
    %5204 = vmatpush.msra.mxu0 %v204
    %5205 = vmatpush.msra.mxu0 %v203
    %5206 = vmatpush.msra.mxu0 %v202
    %5207 = vmatpush.msra.mxu0 %v201
    %5208 = vmatpush.msra.mxu0 %v200
    %5209 = vmatpush.msra.mxu0 %v199
    %5210 = vmatpush.msra.mxu0 %v198
    %5211 = vmatpush.msra.mxu0 %v197
    %5212 = vmatpush.msra.mxu0 %v196
    %5213 = vmatpush.msra.mxu0 %v195
    %5214 = vmatpush.msra.mxu0 %v194
    %5215 = vmatpush.msra.mxu0 %v193
    %5216 = vmatpush.msra.mxu0 %v192
    %5217 = vmatpush.msra.mxu0 %v191
    %5218 = vmatpush.msra.mxu0 %v190
    %5219 = vmatpush.msra.mxu0 %v189
    %5220 = vmatmul.f32.gmra.mxu0 %v4324
    %v5221 = vpop.f32.mrf.mxu0
    %v5222 = vadd.f32 %v5013, %v5221
    %5223 = vmatmul.f32.gmra.mxu0 %v4328
    %v5224 = vpop.f32.mrf.mxu0
    %v5225 = vadd.f32 %v5016, %v5224
    %5226 = vmatmul.f32.gmra.mxu0 %v4332
    %v5227 = vpop.f32.mrf.mxu0
    %v5228 = vadd.f32 %v5019, %v5227
    %5229 = vmatmul.f32.gmra.mxu0 %v4336
    %v5230 = vpop.f32.mrf.mxu0
    %v5231 = vadd.f32 %v5022, %v5230
    %5232 = vmatmul.f32.gmra.mxu0 %v4340
    %v5233 = vpop.f32.mrf.mxu0
    %v5234 = vadd.f32 %v5025, %v5233
    %5235 = vmatmul.f32.gmra.mxu0 %v4344
    %v5236 = vpop.f32.mrf.mxu0
    %v5237 = vadd.f32 %v5028, %v5236
    %5238 = vmatmul.f32.gmra.mxu0 %v4348
    %v5239 = vpop.f32.mrf.mxu0
    %v5240 = vadd.f32 %v5031, %v5239
    %5241 = vmatmul.f32.gmra.mxu0 %v4352
    %v5242 = vpop.f32.mrf.mxu0
    %v5243 = vadd.f32 %v5034, %v5242
    %5244 = vmatmul.f32.gmra.mxu0 %v4356
    %v5245 = vpop.f32.mrf.mxu0
    %v5246 = vadd.f32 %v5037, %v5245
    %5247 = vmatmul.f32.gmra.mxu0 %v4360
    %v5248 = vpop.f32.mrf.mxu0
    %v5249 = vadd.f32 %v5040, %v5248
    %5250 = vmatmul.f32.gmra.mxu0 %v4364
    %v5251 = vpop.f32.mrf.mxu0
    %v5252 = vadd.f32 %v5043, %v5251
    %5253 = vmatmul.f32.gmra.mxu0 %v4368
    %v5254 = vpop.f32.mrf.mxu0
    %v5255 = vadd.f32 %v5046, %v5254
    %5256 = vmatmul.f32.gmra.mxu0 %v4372
    %v5257 = vpop.f32.mrf.mxu0
    %v5258 = vadd.f32 %v5049, %v5257
    %5259 = vmatmul.f32.gmra.mxu0 %v4376
    %v5260 = vpop.f32.mrf.mxu0
    %v5261 = vadd.f32 %v5052, %v5260
    %5262 = vmatmul.f32.gmra.mxu0 %v4380
    %v5263 = vpop.f32.mrf.mxu0
    %v5264 = vadd.f32 %v5055, %v5263
    %5265 = vmatmul.f32.gmra.mxu0 %v4384
    %v5266 = vpop.f32.mrf.mxu0
    %v5267 = vadd.f32 %v5058, %v5266
    %5268 = vmatmul.f32.gmra.mxu0 %v4388
    %v5269 = vpop.f32.mrf.mxu0
    %v5270 = vadd.f32 %v5061, %v5269
    %5271 = vmatmul.f32.gmra.mxu0 %v4392
    %v5272 = vpop.f32.mrf.mxu0
    %v5273 = vadd.f32 %v5064, %v5272
    %5274 = vmatmul.f32.gmra.mxu0 %v4396
    %v5275 = vpop.f32.mrf.mxu0
    %v5276 = vadd.f32 %v5067, %v5275
    %5277 = vmatmul.f32.gmra.mxu0 %v4400
    %v5278 = vpop.f32.mrf.mxu0
    %v5279 = vadd.f32 %v5070, %v5278
    %5280 = vmatmul.f32.gmra.mxu0 %v4404
    %v5281 = vpop.f32.mrf.mxu0
    %v5282 = vadd.f32 %v5073, %v5281
    %5283 = vmatmul.f32.gmra.mxu0 %v4408
    %v5284 = vpop.f32.mrf.mxu0
    %v5285 = vadd.f32 %v5076, %v5284
    %5286 = vmatmul.f32.gmra.mxu0 %v4412
    %v5287 = vpop.f32.mrf.mxu0
    %v5288 = vadd.f32 %v5079, %v5287
    %5289 = vmatmul.f32.gmra.mxu0 %v4416
    %v5290 = vpop.f32.mrf.mxu0
    %v5291 = vadd.f32 %v5082, %v5290
    %5292 = vmatmul.f32.gmra.mxu0 %v4420
    %v5293 = vpop.f32.mrf.mxu0
    %v5294 = vadd.f32 %v5085, %v5293
    %5295 = vmatmul.f32.gmra.mxu0 %v4424
    %v5296 = vpop.f32.mrf.mxu0
    %v5297 = vadd.f32 %v5088, %v5296
    %5298 = vmatmul.f32.gmra.mxu0 %v4428
    %v5299 = vpop.f32.mrf.mxu0
    %v5300 = vadd.f32 %v5091, %v5299
    %5301 = vmatmul.f32.gmra.mxu0 %v4432
    %v5302 = vpop.f32.mrf.mxu0
    %v5303 = vadd.f32 %v5094, %v5302
    %5304 = vmatmul.f32.gmra.mxu0 %v4436
    %v5305 = vpop.f32.mrf.mxu0
    %v5306 = vadd.f32 %v5097, %v5305
    %5307 = vmatmul.f32.gmra.mxu0 %v4440
    %v5308 = vpop.f32.mrf.mxu0
    %v5309 = vadd.f32 %v5100, %v5308
    %5310 = vmatmul.f32.gmra.mxu0 %v4444
    %v5311 = vpop.f32.mrf.mxu0
    %v5312 = vadd.f32 %v5103, %v5311
    %5313 = vmatmul.f32.gmra.mxu0 %v4448
    %v5314 = vpop.f32.mrf.mxu0
    %v5315 = vadd.f32 %v5106, %v5314
    %5316 = vmatmul.f32.gmra.mxu0 %v4452
    %v5317 = vpop.f32.mrf.mxu0
    %v5318 = vadd.f32 %v5109, %v5317
    %5319 = vmatmul.f32.gmra.mxu0 %v4456
    %v5320 = vpop.f32.mrf.mxu0
    %v5321 = vadd.f32 %v5112, %v5320
    %5322 = vmatmul.f32.gmra.mxu0 %v4460
    %v5323 = vpop.f32.mrf.mxu0
    %v5324 = vadd.f32 %v5115, %v5323
    %5325 = vmatmul.f32.gmra.mxu0 %v4464
    %v5326 = vpop.f32.mrf.mxu0
    %v5327 = vadd.f32 %v5118, %v5326
    %5328 = vmatmul.f32.gmra.mxu0 %v4468
    %v5329 = vpop.f32.mrf.mxu0
    %v5330 = vadd.f32 %v5121, %v5329
    %5331 = vmatmul.f32.gmra.mxu0 %v4472
    %v5332 = vpop.f32.mrf.mxu0
    %v5333 = vadd.f32 %v5124, %v5332
    %5334 = vmatmul.f32.gmra.mxu0 %v4476
    %v5335 = vpop.f32.mrf.mxu0
    %v5336 = vadd.f32 %v5127, %v5335
    %5337 = vmatmul.f32.gmra.mxu0 %v4480
    %v5338 = vpop.f32.mrf.mxu0
    %v5339 = vadd.f32 %v5130, %v5338
    %5340 = vmatmul.f32.gmra.mxu0 %v4484
    %v5341 = vpop.f32.mrf.mxu0
    %v5342 = vadd.f32 %v5133, %v5341
    %5343 = vmatmul.f32.gmra.mxu0 %v4488
    %v5344 = vpop.f32.mrf.mxu0
    %v5345 = vadd.f32 %v5136, %v5344
    %5346 = vmatmul.f32.gmra.mxu0 %v4492
    %v5347 = vpop.f32.mrf.mxu0
    %v5348 = vadd.f32 %v5139, %v5347
    %5349 = vmatmul.f32.gmra.mxu0 %v4496
    %v5350 = vpop.f32.mrf.mxu0
    %v5351 = vadd.f32 %v5142, %v5350
    %5352 = vmatmul.f32.gmra.mxu0 %v4500
    %v5353 = vpop.f32.mrf.mxu0
    %v5354 = vadd.f32 %v5145, %v5353
    %5355 = vmatmul.f32.gmra.mxu0 %v4504
    %v5356 = vpop.f32.mrf.mxu0
    %v5357 = vadd.f32 %v5148, %v5356
    %5358 = vmatmul.f32.gmra.mxu0 %v4508
    %v5359 = vpop.f32.mrf.mxu0
    %v5360 = vadd.f32 %v5151, %v5359
    %5361 = vmatmul.f32.gmra.mxu0 %v4512
    %v5362 = vpop.f32.mrf.mxu0
    %v5363 = vadd.f32 %v5154, %v5362
    %5364 = vmatmul.f32.gmra.mxu0 %v4516
    %v5365 = vpop.f32.mrf.mxu0
    %v5366 = vadd.f32 %v5157, %v5365
    %5367 = vmatmul.f32.gmra.mxu0 %v4520
    %v5368 = vpop.f32.mrf.mxu0
    %v5369 = vadd.f32 %v5160, %v5368
    %5370 = vmatmul.f32.gmra.mxu0 %v4524
    %v5371 = vpop.f32.mrf.mxu0
    %v5372 = vadd.f32 %v5163, %v5371
    %5373 = vmatmul.f32.gmra.mxu0 %v4528
    %v5374 = vpop.f32.mrf.mxu0
    %v5375 = vadd.f32 %v5166, %v5374
    %5376 = vmatmul.f32.gmra.mxu0 %v4532
    %v5377 = vpop.f32.mrf.mxu0
    %v5378 = vadd.f32 %v5169, %v5377
    %5379 = vmatmul.f32.gmra.mxu0 %v4536
    %v5380 = vpop.f32.mrf.mxu0
    %v5381 = vadd.f32 %v5172, %v5380
    %5382 = vmatmul.f32.gmra.mxu0 %v4540
    %v5383 = vpop.f32.mrf.mxu0
    %v5384 = vadd.f32 %v5175, %v5383
    %5385 = vmatmul.f32.gmra.mxu0 %v4544
    %v5386 = vpop.f32.mrf.mxu0
    %v5387 = vadd.f32 %v5178, %v5386
    %5388 = vmatmul.f32.gmra.mxu0 %v4548
    %v5389 = vpop.f32.mrf.mxu0
    %v5390 = vadd.f32 %v5181, %v5389
    %5391 = vmatmul.f32.gmra.mxu0 %v4552
    %v5392 = vpop.f32.mrf.mxu0
    %v5393 = vadd.f32 %v5184, %v5392
    %5394 = vmatmul.f32.gmra.mxu0 %v4556
    %v5395 = vpop.f32.mrf.mxu0
    %v5396 = vadd.f32 %v5187, %v5395
    %5397 = vmatmul.f32.gmra.mxu0 %v4560
    %v5398 = vpop.f32.mrf.mxu0
    %v5399 = vadd.f32 %v5190, %v5398
    %5400 = vmatmul.f32.gmra.mxu0 %v4564
    %v5401 = vpop.f32.mrf.mxu0
    %v5402 = vadd.f32 %v5193, %v5401
    %5403 = vmatmul.f32.gmra.mxu0 %v4568
    %v5404 = vpop.f32.mrf.mxu0
    %v5405 = vadd.f32 %v5196, %v5404
    %5406 = vmatmul.f32.gmra.mxu0 %v4572
    %v5407 = vpop.f32.mrf.mxu0
    %v5408 = vadd.f32 %v5199, %v5407
    %5409 = vmatmul.f32.gmra.mxu0 %v4576
    %v5410 = vpop.f32.mrf.mxu0
    %v5411 = vadd.f32 %v5202, %v5410
    %5412 = vdwg.mxu0
    %5413 = vst.msk [vmem:[%s57] sm:$0xff] %vm205, %v5222
    %5414 = vst.msk [vmem:[%s57 + $0x8] sm:$0xff] %vm205, %v5225
    %5415 = vst.msk [vmem:[%s57 + $0x10] sm:$0xff] %vm205, %v5228
    %5416 = vst.msk [vmem:[%s57 + $0x18] sm:$0xff] %vm205, %v5231
    %5417 = vst.msk [vmem:[%s57 + $0x20] sm:$0xff] %vm205, %v5234
    %5418 = vst.msk [vmem:[%s57 + $0x28] sm:$0xff] %vm205, %v5237
    %5419 = vst.msk [vmem:[%s57 + $0x30] sm:$0xff] %vm205, %v5240
    %5420 = vst.msk [vmem:[%s57 + $0x38] sm:$0xff] %vm205, %v5243
    %5421 = vst.msk [vmem:[%s57 + $0x40] sm:$0xff] %vm205, %v5246
    %5422 = vst.msk [vmem:[%s57 + $0x48] sm:$0xff] %vm205, %v5249
    %5423 = vst.msk [vmem:[%s57 + $0x50] sm:$0xff] %vm205, %v5252
    %5424 = vst.msk [vmem:[%s57 + $0x58] sm:$0xff] %vm205, %v5255
    %5425 = vst.msk [vmem:[%s57 + $0x60] sm:$0xff] %vm205, %v5258
    %5426 = vst.msk [vmem:[%s57 + $0x68] sm:$0xff] %vm205, %v5261
    %5427 = vst.msk [vmem:[%s57 + $0x70] sm:$0xff] %vm205, %v5264
    %5428 = vst.msk [vmem:[%s57 + $0x78] sm:$0xff] %vm205, %v5267
    %5429 = vst.msk [vmem:[%s57 + $0x80] sm:$0xff] %vm205, %v5270
    %5430 = vst.msk [vmem:[%s57 + $0x88] sm:$0xff] %vm205, %v5273
    %5431 = vst.msk [vmem:[%s57 + $0x90] sm:$0xff] %vm205, %v5276
    %5432 = vst.msk [vmem:[%s57 + $0x98] sm:$0xff] %vm205, %v5279
    %5433 = vst.msk [vmem:[%s57 + $0xa0] sm:$0xff] %vm205, %v5282
    %5434 = vst.msk [vmem:[%s57 + $0xa8] sm:$0xff] %vm205, %v5285
    %5435 = vst.msk [vmem:[%s57 + $0xb0] sm:$0xff] %vm205, %v5288
    %5436 = vst.msk [vmem:[%s57 + $0xb8] sm:$0xff] %vm205, %v5291
    %5437 = vst.msk [vmem:[%s57 + $0xc0] sm:$0xff] %vm205, %v5294
    %5438 = vst.msk [vmem:[%s57 + $0xc8] sm:$0xff] %vm205, %v5297
    %5439 = vst.msk [vmem:[%s57 + $0xd0] sm:$0xff] %vm205, %v5300
    %5440 = vst.msk [vmem:[%s57 + $0xd8] sm:$0xff] %vm205, %v5303
    %5441 = vst.msk [vmem:[%s57 + $0xe0] sm:$0xff] %vm205, %v5306
    %5442 = vst.msk [vmem:[%s57 + $0xe8] sm:$0xff] %vm205, %v5309
    %5443 = vst.msk [vmem:[%s57 + $0xf0] sm:$0xff] %vm205, %v5312
    %5444 = vst.msk [vmem:[%s57 + $0xf8] sm:$0xff] %vm205, %v5315
    %5445 = vst.msk [vmem:[%s57 + $0x100] sm:$0xff] %vm205, %v5318
    %5446 = vst.msk [vmem:[%s57 + $0x108] sm:$0xff] %vm205, %v5321
    %5447 = vst.msk [vmem:[%s57 + $0x110] sm:$0xff] %vm205, %v5324
    %5448 = vst.msk [vmem:[%s57 + $0x118] sm:$0xff] %vm205, %v5327
    %5449 = vst.msk [vmem:[%s57 + $0x120] sm:$0xff] %vm205, %v5330
    %5450 = vst.msk [vmem:[%s57 + $0x128] sm:$0xff] %vm205, %v5333
    %5451 = vst.msk [vmem:[%s57 + $0x130] sm:$0xff] %vm205, %v5336
    %5452 = vst.msk [vmem:[%s57 + $0x138] sm:$0xff] %vm205, %v5339
    %5453 = vst.msk [vmem:[%s57 + $0x140] sm:$0xff] %vm205, %v5342
    %5454 = vst.msk [vmem:[%s57 + $0x148] sm:$0xff] %vm205, %v5345
    %5455 = vst.msk [vmem:[%s57 + $0x150] sm:$0xff] %vm205, %v5348
    %5456 = vst.msk [vmem:[%s57 + $0x158] sm:$0xff] %vm205, %v5351
    %5457 = vst.msk [vmem:[%s57 + $0x160] sm:$0xff] %vm205, %v5354
    %5458 = vst.msk [vmem:[%s57 + $0x168] sm:$0xff] %vm205, %v5357
    %5459 = vst.msk [vmem:[%s57 + $0x170] sm:$0xff] %vm205, %v5360
    %5460 = vst.msk [vmem:[%s57 + $0x178] sm:$0xff] %vm205, %v5363
    %5461 = vst.msk [vmem:[%s57 + $0x180] sm:$0xff] %vm205, %v5366
    %5462 = vst.msk [vmem:[%s57 + $0x188] sm:$0xff] %vm205, %v5369
    %5463 = vst.msk [vmem:[%s57 + $0x190] sm:$0xff] %vm205, %v5372
    %5464 = vst.msk [vmem:[%s57 + $0x198] sm:$0xff] %vm205, %v5375
    %5465 = vst.msk [vmem:[%s57 + $0x1a0] sm:$0xff] %vm205, %v5378
    %5466 = vst.msk [vmem:[%s57 + $0x1a8] sm:$0xff] %vm205, %v5381
    %5467 = vst.msk [vmem:[%s57 + $0x1b0] sm:$0xff] %vm205, %v5384
    %5468 = vst.msk [vmem:[%s57 + $0x1b8] sm:$0xff] %vm205, %v5387
    %5469 = vst.msk [vmem:[%s57 + $0x1c0] sm:$0xff] %vm205, %v5390
    %5470 = vst.msk [vmem:[%s57 + $0x1c8] sm:$0xff] %vm205, %v5393
    %5471 = vst.msk [vmem:[%s57 + $0x1d0] sm:$0xff] %vm205, %v5396
    %5472 = vst.msk [vmem:[%s57 + $0x1d8] sm:$0xff] %vm205, %v5399
    %5473 = vst.msk [vmem:[%s57 + $0x1e0] sm:$0xff] %vm205, %v5402
    %5474 = vst.msk [vmem:[%s57 + $0x1e8] sm:$0xff] %vm205, %v5405
    %5475 = vst.msk [vmem:[%s57 + $0x1f0] sm:$0xff] %vm205, %v5408
    %5476 = vst.msk [vmem:[%s57 + $0x1f8] sm:$0xff] %vm205, %v5411
    %v5477 = vperm.slane %v2548, 0
    %v5478 = vperm.slane %v2548, 1
    %v5479 = vperm.slane %v2548, 2
    %v5480 = vperm.slane %v2548, 3
    %v5481 = vperm.slane %v2548, 4
    %v5482 = vperm.slane %v2548, 5
    %v5483 = vperm.slane %v2548, 6
    %v5484 = vperm.slane %v2548, 7
    %v5485 = vperm.slane %v2568, 0
    %v5486 = vperm.slane %v2568, 1
    %v5487 = vperm.slane %v2568, 2
    %v5488 = vperm.slane %v2568, 3
    %v5489 = vperm.slane %v2568, 4
    %v5490 = vperm.slane %v2568, 5
    %v5491 = vperm.slane %v2568, 6
    %v5492 = vperm.slane %v2568, 7
    %v5493 = vperm.slane %v2588, 0
    %v5494 = vperm.slane %v2588, 1
    %v5495 = vperm.slane %v2588, 2
    %v5496 = vperm.slane %v2588, 3
    %v5497 = vperm.slane %v2588, 4
    %v5498 = vperm.slane %v2588, 5
    %v5499 = vperm.slane %v2588, 6
    %v5500 = vperm.slane %v2588, 7
    %v5501 = vperm.slane %v2608, 0
    %v5502 = vperm.slane %v2608, 1
    %v5503 = vperm.slane %v2608, 2
    %v5504 = vperm.slane %v2608, 3
    %v5505 = vperm.slane %v2608, 4
    %v5506 = vperm.slane %v2608, 5
    %v5507 = vperm.slane %v2608, 6
    %v5508 = vperm.slane %v2608, 7
    %v5509 = vperm.slane %v2628, 0
    %v5510 = vperm.slane %v2628, 1
    %v5511 = vperm.slane %v2628, 2
    %v5512 = vperm.slane %v2628, 3
    %v5513 = vperm.slane %v2628, 4
    %v5514 = vperm.slane %v2628, 5
    %v5515 = vperm.slane %v2628, 6
    %v5516 = vperm.slane %v2628, 7
    %v5517 = vperm.slane %v2648, 0
    %v5518 = vperm.slane %v2648, 1
    %v5519 = vperm.slane %v2648, 2
    %v5520 = vperm.slane %v2648, 3
    %v5521 = vperm.slane %v2648, 4
    %v5522 = vperm.slane %v2648, 5
    %v5523 = vperm.slane %v2648, 6
    %v5524 = vperm.slane %v2648, 7
    %v5525 = vperm.slane %v2668, 0
    %v5526 = vperm.slane %v2668, 1
    %v5527 = vperm.slane %v2668, 2
    %v5528 = vperm.slane %v2668, 3
    %v5529 = vperm.slane %v2668, 4
    %v5530 = vperm.slane %v2668, 5
    %v5531 = vperm.slane %v2668, 6
    %v5532 = vperm.slane %v2668, 7
    %v5533 = vperm.slane %v2688, 0
    %v5534 = vperm.slane %v2688, 1
    %v5535 = vperm.slane %v2688, 2
    %v5536 = vperm.slane %v2688, 3
    %v5537 = vperm.slane %v2688, 4
    %v5538 = vperm.slane %v2688, 5
    %v5539 = vperm.slane %v2688, 6
    %v5540 = vperm.slane %v2688, 7
    %v5541 = vperm.slane %v2708, 0
    %v5542 = vperm.slane %v2708, 1
    %v5543 = vperm.slane %v2708, 2
    %v5544 = vperm.slane %v2708, 3
    %v5545 = vperm.slane %v2708, 4
    %v5546 = vperm.slane %v2708, 5
    %v5547 = vperm.slane %v2708, 6
    %v5548 = vperm.slane %v2708, 7
    %v5549 = vperm.slane %v2728, 0
    %v5550 = vperm.slane %v2728, 1
    %v5551 = vperm.slane %v2728, 2
    %v5552 = vperm.slane %v2728, 3
    %v5553 = vperm.slane %v2728, 4
    %v5554 = vperm.slane %v2728, 5
    %v5555 = vperm.slane %v2728, 6
    %v5556 = vperm.slane %v2728, 7
    %v5557 = vperm.slane %v2748, 0
    %v5558 = vperm.slane %v2748, 1
    %v5559 = vperm.slane %v2748, 2
    %v5560 = vperm.slane %v2748, 3
    %v5561 = vperm.slane %v2748, 4
    %v5562 = vperm.slane %v2748, 5
    %v5563 = vperm.slane %v2748, 6
    %v5564 = vperm.slane %v2748, 7
    %v5565 = vperm.slane %v2768, 0
    %v5566 = vperm.slane %v2768, 1
    %v5567 = vperm.slane %v2768, 2
    %v5568 = vperm.slane %v2768, 3
    %v5569 = vperm.slane %v2768, 4
    %v5570 = vperm.slane %v2768, 5
    %v5571 = vperm.slane %v2768, 6
    %v5572 = vperm.slane %v2768, 7
    %v5573 = vperm.slane %v2788, 0
    %v5574 = vperm.slane %v2788, 1
    %v5575 = vperm.slane %v2788, 2
    %v5576 = vperm.slane %v2788, 3
    %v5577 = vperm.slane %v2788, 4
    %v5578 = vperm.slane %v2788, 5
    %v5579 = vperm.slane %v2788, 6
    %v5580 = vperm.slane %v2788, 7
    %v5581 = vperm.slane %v2808, 0
    %v5582 = vperm.slane %v2808, 1
    %v5583 = vperm.slane %v2808, 2
    %v5584 = vperm.slane %v2808, 3
    %v5585 = vperm.slane %v2808, 4
    %v5586 = vperm.slane %v2808, 5
    %v5587 = vperm.slane %v2808, 6
    %v5588 = vperm.slane %v2808, 7
    %v5589 = vperm.slane %v2828, 0
    %v5590 = vperm.slane %v2828, 1
    %v5591 = vperm.slane %v2828, 2
    %v5592 = vperm.slane %v2828, 3
    %v5593 = vperm.slane %v2828, 4
    %v5594 = vperm.slane %v2828, 5
    %v5595 = vperm.slane %v2828, 6
    %v5596 = vperm.slane %v2828, 7
    %v5597 = vperm.slane %v2848, 0
    %v5598 = vperm.slane %v2848, 1
    %v5599 = vperm.slane %v2848, 2
    %v5600 = vperm.slane %v2848, 3
    %v5601 = vperm.slane %v2848, 4
    %v5602 = vperm.slane %v2848, 5
    %v5603 = vperm.slane %v2848, 6
    %v5604 = vperm.slane %v2848, 7
    %v5605 = vperm.slane %v2868, 0
    %v5606 = vperm.slane %v2868, 1
    %v5607 = vperm.slane %v2868, 2
    %v5608 = vperm.slane %v2868, 3
    %v5609 = vperm.slane %v2868, 4
    %v5610 = vperm.slane %v2868, 5
    %v5611 = vperm.slane %v2868, 6
    %v5612 = vperm.slane %v2868, 7
    %v5613 = vperm.slane %v2888, 0
    %v5614 = vperm.slane %v2888, 1
    %v5615 = vperm.slane %v2888, 2
    %v5616 = vperm.slane %v2888, 3
    %v5617 = vperm.slane %v2888, 4
    %v5618 = vperm.slane %v2888, 5
    %v5619 = vperm.slane %v2888, 6
    %v5620 = vperm.slane %v2888, 7
    %v5621 = vperm.slane %v2908, 0
    %v5622 = vperm.slane %v2908, 1
    %v5623 = vperm.slane %v2908, 2
    %v5624 = vperm.slane %v2908, 3
    %v5625 = vperm.slane %v2908, 4
    %v5626 = vperm.slane %v2908, 5
    %v5627 = vperm.slane %v2908, 6
    %v5628 = vperm.slane %v2908, 7
    %v5629 = vperm.slane %v2928, 0
    %v5630 = vperm.slane %v2928, 1
    %v5631 = vperm.slane %v2928, 2
    %v5632 = vperm.slane %v2928, 3
    %v5633 = vperm.slane %v2928, 4
    %v5634 = vperm.slane %v2928, 5
    %v5635 = vperm.slane %v2928, 6
    %v5636 = vperm.slane %v2928, 7
    %v5637 = vperm.slane %v2948, 0
    %v5638 = vperm.slane %v2948, 1
    %v5639 = vperm.slane %v2948, 2
    %v5640 = vperm.slane %v2948, 3
    %v5641 = vperm.slane %v2948, 4
    %v5642 = vperm.slane %v2948, 5
    %v5643 = vperm.slane %v2948, 6
    %v5644 = vperm.slane %v2948, 7
    %v5645 = vperm.slane %v2968, 0
    %v5646 = vperm.slane %v2968, 1
    %v5647 = vperm.slane %v2968, 2
    %v5648 = vperm.slane %v2968, 3
    %v5649 = vperm.slane %v2968, 4
    %v5650 = vperm.slane %v2968, 5
    %v5651 = vperm.slane %v2968, 6
    %v5652 = vperm.slane %v2968, 7
    %v5653 = vperm.slane %v2988, 0
    %v5654 = vperm.slane %v2988, 1
    %v5655 = vperm.slane %v2988, 2
    %v5656 = vperm.slane %v2988, 3
    %v5657 = vperm.slane %v2988, 4
    %v5658 = vperm.slane %v2988, 5
    %v5659 = vperm.slane %v2988, 6
    %v5660 = vperm.slane %v2988, 7
    %v5661 = vperm.slane %v3008, 0
    %v5662 = vperm.slane %v3008, 1
    %v5663 = vperm.slane %v3008, 2
    %v5664 = vperm.slane %v3008, 3
    %v5665 = vperm.slane %v3008, 4
    %v5666 = vperm.slane %v3008, 5
    %v5667 = vperm.slane %v3008, 6
    %v5668 = vperm.slane %v3008, 7
    %v5669 = vperm.slane %v3028, 0
    %v5670 = vperm.slane %v3028, 1
    %v5671 = vperm.slane %v3028, 2
    %v5672 = vperm.slane %v3028, 3
    %v5673 = vperm.slane %v3028, 4
    %v5674 = vperm.slane %v3028, 5
    %v5675 = vperm.slane %v3028, 6
    %v5676 = vperm.slane %v3028, 7
    %v5677 = vperm.slane %v3048, 0
    %v5678 = vperm.slane %v3048, 1
    %v5679 = vperm.slane %v3048, 2
    %v5680 = vperm.slane %v3048, 3
    %v5681 = vperm.slane %v3048, 4
    %v5682 = vperm.slane %v3048, 5
    %v5683 = vperm.slane %v3048, 6
    %v5684 = vperm.slane %v3048, 7
    %v5685 = vperm.slane %v3068, 0
    %v5686 = vperm.slane %v3068, 1
    %v5687 = vperm.slane %v3068, 2
    %v5688 = vperm.slane %v3068, 3
    %v5689 = vperm.slane %v3068, 4
    %v5690 = vperm.slane %v3068, 5
    %v5691 = vperm.slane %v3068, 6
    %v5692 = vperm.slane %v3068, 7
    %v5693 = vperm.slane %v3088, 0
    %v5694 = vperm.slane %v3088, 1
    %v5695 = vperm.slane %v3088, 2
    %v5696 = vperm.slane %v3088, 3
    %v5697 = vperm.slane %v3088, 4
    %v5698 = vperm.slane %v3088, 5
    %v5699 = vperm.slane %v3088, 6
    %v5700 = vperm.slane %v3088, 7
    %v5701 = vperm.slane %v3108, 0
    %v5702 = vperm.slane %v3108, 1
    %v5703 = vperm.slane %v3108, 2
    %v5704 = vperm.slane %v3108, 3
    %v5705 = vperm.slane %v3108, 4
    %v5706 = vperm.slane %v3108, 5
    %v5707 = vperm.slane %v3108, 6
    %v5708 = vperm.slane %v3108, 7
    %v5709 = vperm.slane %v3128, 0
    %v5710 = vperm.slane %v3128, 1
    %v5711 = vperm.slane %v3128, 2
    %v5712 = vperm.slane %v3128, 3
    %v5713 = vperm.slane %v3128, 4
    %v5714 = vperm.slane %v3128, 5
    %v5715 = vperm.slane %v3128, 6
    %v5716 = vperm.slane %v3128, 7
    %v5717 = vperm.slane %v3148, 0
    %v5718 = vperm.slane %v3148, 1
    %v5719 = vperm.slane %v3148, 2
    %v5720 = vperm.slane %v3148, 3
    %v5721 = vperm.slane %v3148, 4
    %v5722 = vperm.slane %v3148, 5
    %v5723 = vperm.slane %v3148, 6
    %v5724 = vperm.slane %v3148, 7
    %v5725 = vperm.slane %v3168, 0
    %v5726 = vperm.slane %v3168, 1
    %v5727 = vperm.slane %v3168, 2
    %v5728 = vperm.slane %v3168, 3
    %v5729 = vperm.slane %v3168, 4
    %v5730 = vperm.slane %v3168, 5
    %v5731 = vperm.slane %v3168, 6
    %v5732 = vperm.slane %v3168, 7
    %v5733 = vperm.slane %v3188, 0
    %v5734 = vperm.slane %v3188, 1
    %v5735 = vperm.slane %v3188, 2
    %v5736 = vperm.slane %v3188, 3
    %v5737 = vperm.slane %v3188, 4
    %v5738 = vperm.slane %v3188, 5
    %v5739 = vperm.slane %v3188, 6
    %v5740 = vperm.slane %v3188, 7
    %v5741 = vperm.slane %v3208, 0
    %v5742 = vperm.slane %v3208, 1
    %v5743 = vperm.slane %v3208, 2
    %v5744 = vperm.slane %v3208, 3
    %v5745 = vperm.slane %v3208, 4
    %v5746 = vperm.slane %v3208, 5
    %v5747 = vperm.slane %v3208, 6
    %v5748 = vperm.slane %v3208, 7
    %v5749 = vperm.slane %v3228, 0
    %v5750 = vperm.slane %v3228, 1
    %v5751 = vperm.slane %v3228, 2
    %v5752 = vperm.slane %v3228, 3
    %v5753 = vperm.slane %v3228, 4
    %v5754 = vperm.slane %v3228, 5
    %v5755 = vperm.slane %v3228, 6
    %v5756 = vperm.slane %v3228, 7
    %v5757 = vperm.slane %v3248, 0
    %v5758 = vperm.slane %v3248, 1
    %v5759 = vperm.slane %v3248, 2
    %v5760 = vperm.slane %v3248, 3
    %v5761 = vperm.slane %v3248, 4
    %v5762 = vperm.slane %v3248, 5
    %v5763 = vperm.slane %v3248, 6
    %v5764 = vperm.slane %v3248, 7
    %v5765 = vperm.slane %v3268, 0
    %v5766 = vperm.slane %v3268, 1
    %v5767 = vperm.slane %v3268, 2
    %v5768 = vperm.slane %v3268, 3
    %v5769 = vperm.slane %v3268, 4
    %v5770 = vperm.slane %v3268, 5
    %v5771 = vperm.slane %v3268, 6
    %v5772 = vperm.slane %v3268, 7
    %v5773 = vperm.slane %v3288, 0
    %v5774 = vperm.slane %v3288, 1
    %v5775 = vperm.slane %v3288, 2
    %v5776 = vperm.slane %v3288, 3
    %v5777 = vperm.slane %v3288, 4
    %v5778 = vperm.slane %v3288, 5
    %v5779 = vperm.slane %v3288, 6
    %v5780 = vperm.slane %v3288, 7
    %v5781 = vperm.slane %v3308, 0
    %v5782 = vperm.slane %v3308, 1
    %v5783 = vperm.slane %v3308, 2
    %v5784 = vperm.slane %v3308, 3
    %v5785 = vperm.slane %v3308, 4
    %v5786 = vperm.slane %v3308, 5
    %v5787 = vperm.slane %v3308, 6
    %v5788 = vperm.slane %v3308, 7
    %v5789 = vperm.slane %v3328, 0
    %v5790 = vperm.slane %v3328, 1
    %v5791 = vperm.slane %v3328, 2
    %v5792 = vperm.slane %v3328, 3
    %v5793 = vperm.slane %v3328, 4
    %v5794 = vperm.slane %v3328, 5
    %v5795 = vperm.slane %v3328, 6
    %v5796 = vperm.slane %v3328, 7
    %v5797 = vperm.slane %v3348, 0
    %v5798 = vperm.slane %v3348, 1
    %v5799 = vperm.slane %v3348, 2
    %v5800 = vperm.slane %v3348, 3
    %v5801 = vperm.slane %v3348, 4
    %v5802 = vperm.slane %v3348, 5
    %v5803 = vperm.slane %v3348, 6
    %v5804 = vperm.slane %v3348, 7
    %v5805 = vperm.slane %v3368, 0
    %v5806 = vperm.slane %v3368, 1
    %v5807 = vperm.slane %v3368, 2
    %v5808 = vperm.slane %v3368, 3
    %v5809 = vperm.slane %v3368, 4
    %v5810 = vperm.slane %v3368, 5
    %v5811 = vperm.slane %v3368, 6
    %v5812 = vperm.slane %v3368, 7
    %v5813 = vperm.slane %v3388, 0
    %v5814 = vperm.slane %v3388, 1
    %v5815 = vperm.slane %v3388, 2
    %v5816 = vperm.slane %v3388, 3
    %v5817 = vperm.slane %v3388, 4
    %v5818 = vperm.slane %v3388, 5
    %v5819 = vperm.slane %v3388, 6
    %v5820 = vperm.slane %v3388, 7
    %v5821 = vperm.slane %v3408, 0
    %v5822 = vperm.slane %v3408, 1
    %v5823 = vperm.slane %v3408, 2
    %v5824 = vperm.slane %v3408, 3
    %v5825 = vperm.slane %v3408, 4
    %v5826 = vperm.slane %v3408, 5
    %v5827 = vperm.slane %v3408, 6
    %v5828 = vperm.slane %v3408, 7
    %v5829 = vperm.slane %v3428, 0
    %v5830 = vperm.slane %v3428, 1
    %v5831 = vperm.slane %v3428, 2
    %v5832 = vperm.slane %v3428, 3
    %v5833 = vperm.slane %v3428, 4
    %v5834 = vperm.slane %v3428, 5
    %v5835 = vperm.slane %v3428, 6
    %v5836 = vperm.slane %v3428, 7
    %v5837 = vperm.slane %v3448, 0
    %v5838 = vperm.slane %v3448, 1
    %v5839 = vperm.slane %v3448, 2
    %v5840 = vperm.slane %v3448, 3
    %v5841 = vperm.slane %v3448, 4
    %v5842 = vperm.slane %v3448, 5
    %v5843 = vperm.slane %v3448, 6
    %v5844 = vperm.slane %v3448, 7
    %v5845 = vperm.slane %v3468, 0
    %v5846 = vperm.slane %v3468, 1
    %v5847 = vperm.slane %v3468, 2
    %v5848 = vperm.slane %v3468, 3
    %v5849 = vperm.slane %v3468, 4
    %v5850 = vperm.slane %v3468, 5
    %v5851 = vperm.slane %v3468, 6
    %v5852 = vperm.slane %v3468, 7
    %v5853 = vperm.slane %v3488, 0
    %v5854 = vperm.slane %v3488, 1
    %v5855 = vperm.slane %v3488, 2
    %v5856 = vperm.slane %v3488, 3
    %v5857 = vperm.slane %v3488, 4
    %v5858 = vperm.slane %v3488, 5
    %v5859 = vperm.slane %v3488, 6
    %v5860 = vperm.slane %v3488, 7
    %v5861 = vperm.slane %v3508, 0
    %v5862 = vperm.slane %v3508, 1
    %v5863 = vperm.slane %v3508, 2
    %v5864 = vperm.slane %v3508, 3
    %v5865 = vperm.slane %v3508, 4
    %v5866 = vperm.slane %v3508, 5
    %v5867 = vperm.slane %v3508, 6
    %v5868 = vperm.slane %v3508, 7
    %v5869 = vperm.slane %v3528, 0
    %v5870 = vperm.slane %v3528, 1
    %v5871 = vperm.slane %v3528, 2
    %v5872 = vperm.slane %v3528, 3
    %v5873 = vperm.slane %v3528, 4
    %v5874 = vperm.slane %v3528, 5
    %v5875 = vperm.slane %v3528, 6
    %v5876 = vperm.slane %v3528, 7
    %v5877 = vperm.slane %v3548, 0
    %v5878 = vperm.slane %v3548, 1
    %v5879 = vperm.slane %v3548, 2
    %v5880 = vperm.slane %v3548, 3
    %v5881 = vperm.slane %v3548, 4
    %v5882 = vperm.slane %v3548, 5
    %v5883 = vperm.slane %v3548, 6
    %v5884 = vperm.slane %v3548, 7
    %v5885 = vperm.slane %v3568, 0
    %v5886 = vperm.slane %v3568, 1
    %v5887 = vperm.slane %v3568, 2
    %v5888 = vperm.slane %v3568, 3
    %v5889 = vperm.slane %v3568, 4
    %v5890 = vperm.slane %v3568, 5
    %v5891 = vperm.slane %v3568, 6
    %v5892 = vperm.slane %v3568, 7
    %v5893 = vperm.slane %v3588, 0
    %v5894 = vperm.slane %v3588, 1
    %v5895 = vperm.slane %v3588, 2
    %v5896 = vperm.slane %v3588, 3
    %v5897 = vperm.slane %v3588, 4
    %v5898 = vperm.slane %v3588, 5
    %v5899 = vperm.slane %v3588, 6
    %v5900 = vperm.slane %v3588, 7
    %v5901 = vperm.slane %v3608, 0
    %v5902 = vperm.slane %v3608, 1
    %v5903 = vperm.slane %v3608, 2
    %v5904 = vperm.slane %v3608, 3
    %v5905 = vperm.slane %v3608, 4
    %v5906 = vperm.slane %v3608, 5
    %v5907 = vperm.slane %v3608, 6
    %v5908 = vperm.slane %v3608, 7
    %v5909 = vperm.slane %v3628, 0
    %v5910 = vperm.slane %v3628, 1
    %v5911 = vperm.slane %v3628, 2
    %v5912 = vperm.slane %v3628, 3
    %v5913 = vperm.slane %v3628, 4
    %v5914 = vperm.slane %v3628, 5
    %v5915 = vperm.slane %v3628, 6
    %v5916 = vperm.slane %v3628, 7
    %v5917 = vperm.slane %v3648, 0
    %v5918 = vperm.slane %v3648, 1
    %v5919 = vperm.slane %v3648, 2
    %v5920 = vperm.slane %v3648, 3
    %v5921 = vperm.slane %v3648, 4
    %v5922 = vperm.slane %v3648, 5
    %v5923 = vperm.slane %v3648, 6
    %v5924 = vperm.slane %v3648, 7
    %v5925 = vperm.slane %v3668, 0
    %v5926 = vperm.slane %v3668, 1
    %v5927 = vperm.slane %v3668, 2
    %v5928 = vperm.slane %v3668, 3
    %v5929 = vperm.slane %v3668, 4
    %v5930 = vperm.slane %v3668, 5
    %v5931 = vperm.slane %v3668, 6
    %v5932 = vperm.slane %v3668, 7
    %v5933 = vperm.slane %v3688, 0
    %v5934 = vperm.slane %v3688, 1
    %v5935 = vperm.slane %v3688, 2
    %v5936 = vperm.slane %v3688, 3
    %v5937 = vperm.slane %v3688, 4
    %v5938 = vperm.slane %v3688, 5
    %v5939 = vperm.slane %v3688, 6
    %v5940 = vperm.slane %v3688, 7
    %v5941 = vperm.slane %v3708, 0
    %v5942 = vperm.slane %v3708, 1
    %v5943 = vperm.slane %v3708, 2
    %v5944 = vperm.slane %v3708, 3
    %v5945 = vperm.slane %v3708, 4
    %v5946 = vperm.slane %v3708, 5
    %v5947 = vperm.slane %v3708, 6
    %v5948 = vperm.slane %v3708, 7
    %v5949 = vperm.slane %v3728, 0
    %v5950 = vperm.slane %v3728, 1
    %v5951 = vperm.slane %v3728, 2
    %v5952 = vperm.slane %v3728, 3
    %v5953 = vperm.slane %v3728, 4
    %v5954 = vperm.slane %v3728, 5
    %v5955 = vperm.slane %v3728, 6
    %v5956 = vperm.slane %v3728, 7
    %v5957 = vperm.slane %v3748, 0
    %v5958 = vperm.slane %v3748, 1
    %v5959 = vperm.slane %v3748, 2
    %v5960 = vperm.slane %v3748, 3
    %v5961 = vperm.slane %v3748, 4
    %v5962 = vperm.slane %v3748, 5
    %v5963 = vperm.slane %v3748, 6
    %v5964 = vperm.slane %v3748, 7
    %v5965 = vperm.slane %v3768, 0
    %v5966 = vperm.slane %v3768, 1
    %v5967 = vperm.slane %v3768, 2
    %v5968 = vperm.slane %v3768, 3
    %v5969 = vperm.slane %v3768, 4
    %v5970 = vperm.slane %v3768, 5
    %v5971 = vperm.slane %v3768, 6
    %v5972 = vperm.slane %v3768, 7
    %v5973 = vperm.slane %v3788, 0
    %v5974 = vperm.slane %v3788, 1
    %v5975 = vperm.slane %v3788, 2
    %v5976 = vperm.slane %v3788, 3
    %v5977 = vperm.slane %v3788, 4
    %v5978 = vperm.slane %v3788, 5
    %v5979 = vperm.slane %v3788, 6
    %v5980 = vperm.slane %v3788, 7
    %v5981 = vperm.slane %v3808, 0
    %v5982 = vperm.slane %v3808, 1
    %v5983 = vperm.slane %v3808, 2
    %v5984 = vperm.slane %v3808, 3
    %v5985 = vperm.slane %v3808, 4
    %v5986 = vperm.slane %v3808, 5
    %v5987 = vperm.slane %v3808, 6
    %v5988 = vperm.slane %v3808, 7
    %5989 = vst [vmem:[#allocation1] ss:$9 sm:$0xff] %v5477
    %s5990 = scalar_lea.vmem [#allocation1], 1
    %5991 = vst [vmem:[%s5990] ss:$9 sm:$0xff] %v5478
    %s5992 = scalar_lea.vmem [#allocation1], 2
    %5993 = vst [vmem:[%s5992] ss:$9 sm:$0xff] %v5479
    %s5994 = scalar_lea.vmem [#allocation1], 3
    %5995 = vst [vmem:[%s5994] ss:$9 sm:$0xff] %v5480
    %s5996 = scalar_lea.vmem [#allocation1], 4
    %5997 = vst [vmem:[%s5996] ss:$9 sm:$0xff] %v5481
    %s5998 = scalar_lea.vmem [#allocation1], 5
    %5999 = vst [vmem:[%s5998] ss:$9 sm:$0xff] %v5482
    %s6000 = scalar_lea.vmem [#allocation1], 6
    %6001 = vst [vmem:[%s6000] ss:$9 sm:$0xff] %v5483
    %s6002 = scalar_lea.vmem [#allocation1], 7
    %6003 = vst [vmem:[%s6002] ss:$9 sm:$0xff] %v5484
    %v6004 = vld [vmem:[#allocation1] sm:$0xff]
    %6005 = vst [vmem:[#allocation1] ss:$9 sm:$0xff] %v5485
    %6006 = vst [vmem:[%s5990] ss:$9 sm:$0xff] %v5486
    %6007 = vst [vmem:[%s5992] ss:$9 sm:$0xff] %v5487
    %6008 = vst [vmem:[%s5994] ss:$9 sm:$0xff] %v5488
    %6009 = vst [vmem:[%s5996] ss:$9 sm:$0xff] %v5489
    %6010 = vst [vmem:[%s5998] ss:$9 sm:$0xff] %v5490
    %6011 = vst [vmem:[%s6000] ss:$9 sm:$0xff] %v5491
    %6012 = vst [vmem:[%s6002] ss:$9 sm:$0xff] %v5492
    %v6013 = vld [vmem:[#allocation1] sm:$0xff]
    %6014 = vst [vmem:[#allocation1] ss:$9 sm:$0xff] %v5493
    %6015 = vst [vmem:[%s5990] ss:$9 sm:$0xff] %v5494
    %6016 = vst [vmem:[%s5992] ss:$9 sm:$0xff] %v5495
    %6017 = vst [vmem:[%s5994] ss:$9 sm:$0xff] %v5496
    %6018 = vst [vmem:[%s5996] ss:$9 sm:$0xff] %v5497
    %6019 = vst [vmem:[%s5998] ss:$9 sm:$0xff] %v5498
    %6020 = vst [vmem:[%s6000] ss:$9 sm:$0xff] %v5499
    %6021 = vst [vmem:[%s6002] ss:$9 sm:$0xff] %v5500
    %v6022 = vld [vmem:[#allocation1] sm:$0xff]
    %6023 = vst [vmem:[#allocation1] ss:$9 sm:$0xff] %v5501
    %6024 = vst [vmem:[%s5990] ss:$9 sm:$0xff] %v5502
    %6025 = vst [vmem:[%s5992] ss:$9 sm:$0xff] %v5503
    %6026 = vst [vmem:[%s5994] ss:$9 sm:$0xff] %v5504
    %6027 = vst [vmem:[%s5996] ss:$9 sm:$0xff] %v5505
    %6028 = vst [vmem:[%s5998] ss:$9 sm:$0xff] %v5506
    %6029 = vst [vmem:[%s6000] ss:$9 sm:$0xff] %v5507
    %6030 = vst [vmem:[%s6002] ss:$9 sm:$0xff] %v5508
    %v6031 = vld [vmem:[#allocation1] sm:$0xff]
    %6032 = vst [vmem:[#allocation1] ss:$9 sm:$0xff] %v5509
    %6033 = vst [vmem:[%s5990] ss:$9 sm:$0xff] %v5510
    %6034 = vst [vmem:[%s5992] ss:$9 sm:$0xff] %v5511
    %6035 = vst [vmem:[%s5994] ss:$9 sm:$0xff] %v5512
    %6036 = vst [vmem:[%s5996] ss:$9 sm:$0xff] %v5513
    %6037 = vst [vmem:[%s5998] ss:$9 sm:$0xff] %v5514
    %6038 = vst [vmem:[%s6000] ss:$9 sm:$0xff] %v5515
    %6039 = vst [vmem:[%s6002] ss:$9 sm:$0xff] %v5516
    %v6040 = vld [vmem:[#allocation1] sm:$0xff]
    %6041 = vst [vmem:[#allocation1] ss:$9 sm:$0xff] %v5517
    %6042 = vst [vmem:[%s5990] ss:$9 sm:$0xff] %v5518
    %6043 = vst [vmem:[%s5992] ss:$9 sm:$0xff] %v5519
    %6044 = vst [vmem:[%s5994] ss:$9 sm:$0xff] %v5520
    %6045 = vst [vmem:[%s5996] ss:$9 sm:$0xff] %v5521
    %6046 = vst [vmem:[%s5998] ss:$9 sm:$0xff] %v5522
    %6047 = vst [vmem:[%s6000] ss:$9 sm:$0xff] %v5523
    %6048 = vst [vmem:[%s6002] ss:$9 sm:$0xff] %v5524
    %v6049 = vld [vmem:[#allocation1] sm:$0xff]
    %6050 = vst [vmem:[#allocation1] ss:$9 sm:$0xff] %v5525
    %6051 = vst [vmem:[%s5990] ss:$9 sm:$0xff] %v5526
    %6052 = vst [vmem:[%s5992] ss:$9 sm:$0xff] %v5527
    %6053 = vst [vmem:[%s5994] ss:$9 sm:$0xff] %v5528
    %6054 = vst [vmem:[%s5996] ss:$9 sm:$0xff] %v5529
    %6055 = vst [vmem:[%s5998] ss:$9 sm:$0xff] %v5530
    %6056 = vst [vmem:[%s6000] ss:$9 sm:$0xff] %v5531
    %6057 = vst [vmem:[%s6002] ss:$9 sm:$0xff] %v5532
    %v6058 = vld [vmem:[#allocation1] sm:$0xff]
    %6059 = vst [vmem:[#allocation1] ss:$9 sm:$0xff] %v5533
    %6060 = vst [vmem:[%s5990] ss:$9 sm:$0xff] %v5534
    %6061 = vst [vmem:[%s5992] ss:$9 sm:$0xff] %v5535
    %6062 = vst [vmem:[%s5994] ss:$9 sm:$0xff] %v5536
    %6063 = vst [vmem:[%s5996] ss:$9 sm:$0xff] %v5537
    %6064 = vst [vmem:[%s5998] ss:$9 sm:$0xff] %v5538
    %6065 = vst [vmem:[%s6000] ss:$9 sm:$0xff] %v5539
    %6066 = vst [vmem:[%s6002] ss:$9 sm:$0xff] %v5540
    %v6067 = vld [vmem:[#allocation1] sm:$0xff]
    %6068 = vst [vmem:[#allocation1] ss:$9 sm:$0xff] %v5541
    %6069 = vst [vmem:[%s5990] ss:$9 sm:$0xff] %v5542
    %6070 = vst [vmem:[%s5992] ss:$9 sm:$0xff] %v5543
    %6071 = vst [vmem:[%s5994] ss:$9 sm:$0xff] %v5544
    %6072 = vst [vmem:[%s5996] ss:$9 sm:$0xff] %v5545
    %6073 = vst [vmem:[%s5998] ss:$9 sm:$0xff] %v5546
    %6074 = vst [vmem:[%s6000] ss:$9 sm:$0xff] %v5547
    %6075 = vst [vmem:[%s6002] ss:$9 sm:$0xff] %v5548
    %v6076 = vld [vmem:[#allocation1] sm:$0xff]
    %6077 = vst [vmem:[#allocation1] ss:$9 sm:$0xff] %v5549
    %6078 = vst [vmem:[%s5990] ss:$9 sm:$0xff] %v5550
    %6079 = vst [vmem:[%s5992] ss:$9 sm:$0xff] %v5551
    %6080 = vst [vmem:[%s5994] ss:$9 sm:$0xff] %v5552
    %6081 = vst [vmem:[%s5996] ss:$9 sm:$0xff] %v5553
    %6082 = vst [vmem:[%s5998] ss:$9 sm:$0xff] %v5554
    %6083 = vst [vmem:[%s6000] ss:$9 sm:$0xff] %v5555
    %6084 = vst [vmem:[%s6002] ss:$9 sm:$0xff] %v5556
    %v6085 = vld [vmem:[#allocation1] sm:$0xff]
    %6086 = vst [vmem:[#allocation1] ss:$9 sm:$0xff] %v5557
    %6087 = vst [vmem:[%s5990] ss:$9 sm:$0xff] %v5558
    %6088 = vst [vmem:[%s5992] ss:$9 sm:$0xff] %v5559
    %6089 = vst [vmem:[%s5994] ss:$9 sm:$0xff] %v5560
    %6090 = vst [vmem:[%s5996] ss:$9 sm:$0xff] %v5561
    %6091 = vst [vmem:[%s5998] ss:$9 sm:$0xff] %v5562
    %6092 = vst [vmem:[%s6000] ss:$9 sm:$0xff] %v5563
    %6093 = vst [vmem:[%s6002] ss:$9 sm:$0xff] %v5564
    %v6094 = vld [vmem:[#allocation1] sm:$0xff]
    %6095 = vst [vmem:[#allocation1] ss:$9 sm:$0xff] %v5565
    %6096 = vst [vmem:[%s5990] ss:$9 sm:$0xff] %v5566
    %6097 = vst [vmem:[%s5992] ss:$9 sm:$0xff] %v5567
    %6098 = vst [vmem:[%s5994] ss:$9 sm:$0xff] %v5568
    %6099 = vst [vmem:[%s5996] ss:$9 sm:$0xff] %v5569
    %6100 = vst [vmem:[%s5998] ss:$9 sm:$0xff] %v5570
    %6101 = vst [vmem:[%s6000] ss:$9 sm:$0xff] %v5571
    %6102 = vst [vmem:[%s6002] ss:$9 sm:$0xff] %v5572
    %v6103 = vld [vmem:[#allocation1] sm:$0xff]
    %6104 = vst [vmem:[#allocation1] ss:$9 sm:$0xff] %v5573
    %6105 = vst [vmem:[%s5990] ss:$9 sm:$0xff] %v5574
    %6106 = vst [vmem:[%s5992] ss:$9 sm:$0xff] %v5575
    %6107 = vst [vmem:[%s5994] ss:$9 sm:$0xff] %v5576
    %6108 = vst [vmem:[%s5996] ss:$9 sm:$0xff] %v5577
    %6109 = vst [vmem:[%s5998] ss:$9 sm:$0xff] %v5578
    %6110 = vst [vmem:[%s6000] ss:$9 sm:$0xff] %v5579
    %6111 = vst [vmem:[%s6002] ss:$9 sm:$0xff] %v5580
    %v6112 = vld [vmem:[#allocation1] sm:$0xff]
    %6113 = vst [vmem:[#allocation1] ss:$9 sm:$0xff] %v5581
    %6114 = vst [vmem:[%s5990] ss:$9 sm:$0xff] %v5582
    %6115 = vst [vmem:[%s5992] ss:$9 sm:$0xff] %v5583
    %6116 = vst [vmem:[%s5994] ss:$9 sm:$0xff] %v5584
    %6117 = vst [vmem:[%s5996] ss:$9 sm:$0xff] %v5585
    %6118 = vst [vmem:[%s5998] ss:$9 sm:$0xff] %v5586
    %6119 = vst [vmem:[%s6000] ss:$9 sm:$0xff] %v5587
    %6120 = vst [vmem:[%s6002] ss:$9 sm:$0xff] %v5588
    %v6121 = vld [vmem:[#allocation1] sm:$0xff]
    %6122 = vst [vmem:[#allocation1] ss:$9 sm:$0xff] %v5589
    %6123 = vst [vmem:[%s5990] ss:$9 sm:$0xff] %v5590
    %6124 = vst [vmem:[%s5992] ss:$9 sm:$0xff] %v5591
    %6125 = vst [vmem:[%s5994] ss:$9 sm:$0xff] %v5592
    %6126 = vst [vmem:[%s5996] ss:$9 sm:$0xff] %v5593
    %6127 = vst [vmem:[%s5998] ss:$9 sm:$0xff] %v5594
    %6128 = vst [vmem:[%s6000] ss:$9 sm:$0xff] %v5595
    %6129 = vst [vmem:[%s6002] ss:$9 sm:$0xff] %v5596
    %v6130 = vld [vmem:[#allocation1] sm:$0xff]
    %6131 = vst [vmem:[#allocation1] ss:$9 sm:$0xff] %v5597
    %6132 = vst [vmem:[%s5990] ss:$9 sm:$0xff] %v5598
    %6133 = vst [vmem:[%s5992] ss:$9 sm:$0xff] %v5599
    %6134 = vst [vmem:[%s5994] ss:$9 sm:$0xff] %v5600
    %6135 = vst [vmem:[%s5996] ss:$9 sm:$0xff] %v5601
    %6136 = vst [vmem:[%s5998] ss:$9 sm:$0xff] %v5602
    %6137 = vst [vmem:[%s6000] ss:$9 sm:$0xff] %v5603
    %6138 = vst [vmem:[%s6002] ss:$9 sm:$0xff] %v5604
    %v6139 = vld [vmem:[#allocation1] sm:$0xff]
    %6140 = vst [vmem:[#allocation1] ss:$9 sm:$0xff] %v5605
    %6141 = vst [vmem:[%s5990] ss:$9 sm:$0xff] %v5606
    %6142 = vst [vmem:[%s5992] ss:$9 sm:$0xff] %v5607
    %6143 = vst [vmem:[%s5994] ss:$9 sm:$0xff] %v5608
    %6144 = vst [vmem:[%s5996] ss:$9 sm:$0xff] %v5609
    %6145 = vst [vmem:[%s5998] ss:$9 sm:$0xff] %v5610
    %6146 = vst [vmem:[%s6000] ss:$9 sm:$0xff] %v5611
    %6147 = vst [vmem:[%s6002] ss:$9 sm:$0xff] %v5612
    %v6148 = vld [vmem:[#allocation1] sm:$0xff]
    %6149 = vst [vmem:[#allocation1] ss:$9 sm:$0xff] %v5613
    %6150 = vst [vmem:[%s5990] ss:$9 sm:$0xff] %v5614
    %6151 = vst [vmem:[%s5992] ss:$9 sm:$0xff] %v5615
    %6152 = vst [vmem:[%s5994] ss:$9 sm:$0xff] %v5616
    %6153 = vst [vmem:[%s5996] ss:$9 sm:$0xff] %v5617
    %6154 = vst [vmem:[%s5998] ss:$9 sm:$0xff] %v5618
    %6155 = vst [vmem:[%s6000] ss:$9 sm:$0xff] %v5619
    %6156 = vst [vmem:[%s6002] ss:$9 sm:$0xff] %v5620
    %v6157 = vld [vmem:[#allocation1] sm:$0xff]
    %6158 = vst [vmem:[#allocation1] ss:$9 sm:$0xff] %v5621
    %6159 = vst [vmem:[%s5990] ss:$9 sm:$0xff] %v5622
    %6160 = vst [vmem:[%s5992] ss:$9 sm:$0xff] %v5623
    %6161 = vst [vmem:[%s5994] ss:$9 sm:$0xff] %v5624
    %6162 = vst [vmem:[%s5996] ss:$9 sm:$0xff] %v5625
    %6163 = vst [vmem:[%s5998] ss:$9 sm:$0xff] %v5626
    %6164 = vst [vmem:[%s6000] ss:$9 sm:$0xff] %v5627
    %6165 = vst [vmem:[%s6002] ss:$9 sm:$0xff] %v5628
    %v6166 = vld [vmem:[#allocation1] sm:$0xff]
    %6167 = vst [vmem:[#allocation1] ss:$9 sm:$0xff] %v5629
    %6168 = vst [vmem:[%s5990] ss:$9 sm:$0xff] %v5630
    %6169 = vst [vmem:[%s5992] ss:$9 sm:$0xff] %v5631
    %6170 = vst [vmem:[%s5994] ss:$9 sm:$0xff] %v5632
    %6171 = vst [vmem:[%s5996] ss:$9 sm:$0xff] %v5633
    %6172 = vst [vmem:[%s5998] ss:$9 sm:$0xff] %v5634
    %6173 = vst [vmem:[%s6000] ss:$9 sm:$0xff] %v5635
    %6174 = vst [vmem:[%s6002] ss:$9 sm:$0xff] %v5636
    %v6175 = vld [vmem:[#allocation1] sm:$0xff]
    %6176 = vst [vmem:[#allocation1] ss:$9 sm:$0xff] %v5637
    %6177 = vst [vmem:[%s5990] ss:$9 sm:$0xff] %v5638
    %6178 = vst [vmem:[%s5992] ss:$9 sm:$0xff] %v5639
    %6179 = vst [vmem:[%s5994] ss:$9 sm:$0xff] %v5640
    %6180 = vst [vmem:[%s5996] ss:$9 sm:$0xff] %v5641
    %6181 = vst [vmem:[%s5998] ss:$9 sm:$0xff] %v5642
    %6182 = vst [vmem:[%s6000] ss:$9 sm:$0xff] %v5643
    %6183 = vst [vmem:[%s6002] ss:$9 sm:$0xff] %v5644
    %v6184 = vld [vmem:[#allocation1] sm:$0xff]
    %6185 = vst [vmem:[#allocation1] ss:$9 sm:$0xff] %v5645
    %6186 = vst [vmem:[%s5990] ss:$9 sm:$0xff] %v5646
    %6187 = vst [vmem:[%s5992] ss:$9 sm:$0xff] %v5647
    %6188 = vst [vmem:[%s5994] ss:$9 sm:$0xff] %v5648
    %6189 = vst [vmem:[%s5996] ss:$9 sm:$0xff] %v5649
    %6190 = vst [vmem:[%s5998] ss:$9 sm:$0xff] %v5650
    %6191 = vst [vmem:[%s6000] ss:$9 sm:$0xff] %v5651
    %6192 = vst [vmem:[%s6002] ss:$9 sm:$0xff] %v5652
    %v6193 = vld [vmem:[#allocation1] sm:$0xff]
    %6194 = vst [vmem:[#allocation1] ss:$9 sm:$0xff] %v5653
    %6195 = vst [vmem:[%s5990] ss:$9 sm:$0xff] %v5654
    %6196 = vst [vmem:[%s5992] ss:$9 sm:$0xff] %v5655
    %6197 = vst [vmem:[%s5994] ss:$9 sm:$0xff] %v5656
    %6198 = vst [vmem:[%s5996] ss:$9 sm:$0xff] %v5657
    %6199 = vst [vmem:[%s5998] ss:$9 sm:$0xff] %v5658
    %6200 = vst [vmem:[%s6000] ss:$9 sm:$0xff] %v5659
    %6201 = vst [vmem:[%s6002] ss:$9 sm:$0xff] %v5660
    %v6202 = vld [vmem:[#allocation1] sm:$0xff]
    %6203 = vst [vmem:[#allocation1] ss:$9 sm:$0xff] %v5661
    %6204 = vst [vmem:[%s5990] ss:$9 sm:$0xff] %v5662
    %6205 = vst [vmem:[%s5992] ss:$9 sm:$0xff] %v5663
    %6206 = vst [vmem:[%s5994] ss:$9 sm:$0xff] %v5664
    %6207 = vst [vmem:[%s5996] ss:$9 sm:$0xff] %v5665
    %6208 = vst [vmem:[%s5998] ss:$9 sm:$0xff] %v5666
    %6209 = vst [vmem:[%s6000] ss:$9 sm:$0xff] %v5667
    %6210 = vst [vmem:[%s6002] ss:$9 sm:$0xff] %v5668
    %v6211 = vld [vmem:[#allocation1] sm:$0xff]
    %6212 = vst [vmem:[#allocation1] ss:$9 sm:$0xff] %v5669
    %6213 = vst [vmem:[%s5990] ss:$9 sm:$0xff] %v5670
    %6214 = vst [vmem:[%s5992] ss:$9 sm:$0xff] %v5671
    %6215 = vst [vmem:[%s5994] ss:$9 sm:$0xff] %v5672
    %6216 = vst [vmem:[%s5996] ss:$9 sm:$0xff] %v5673
    %6217 = vst [vmem:[%s5998] ss:$9 sm:$0xff] %v5674
    %6218 = vst [vmem:[%s6000] ss:$9 sm:$0xff] %v5675
    %6219 = vst [vmem:[%s6002] ss:$9 sm:$0xff] %v5676
    %v6220 = vld [vmem:[#allocation1] sm:$0xff]
    %6221 = vst [vmem:[#allocation1] ss:$9 sm:$0xff] %v5677
    %6222 = vst [vmem:[%s5990] ss:$9 sm:$0xff] %v5678
    %6223 = vst [vmem:[%s5992] ss:$9 sm:$0xff] %v5679
    %6224 = vst [vmem:[%s5994] ss:$9 sm:$0xff] %v5680
    %6225 = vst [vmem:[%s5996] ss:$9 sm:$0xff] %v5681
    %6226 = vst [vmem:[%s5998] ss:$9 sm:$0xff] %v5682
    %6227 = vst [vmem:[%s6000] ss:$9 sm:$0xff] %v5683
    %6228 = vst [vmem:[%s6002] ss:$9 sm:$0xff] %v5684
    %v6229 = vld [vmem:[#allocation1] sm:$0xff]
    %6230 = vst [vmem:[#allocation1] ss:$9 sm:$0xff] %v5685
    %6231 = vst [vmem:[%s5990] ss:$9 sm:$0xff] %v5686
    %6232 = vst [vmem:[%s5992] ss:$9 sm:$0xff] %v5687
    %6233 = vst [vmem:[%s5994] ss:$9 sm:$0xff] %v5688
    %6234 = vst [vmem:[%s5996] ss:$9 sm:$0xff] %v5689
    %6235 = vst [vmem:[%s5998] ss:$9 sm:$0xff] %v5690
    %6236 = vst [vmem:[%s6000] ss:$9 sm:$0xff] %v5691
    %6237 = vst [vmem:[%s6002] ss:$9 sm:$0xff] %v5692
    %v6238 = vld [vmem:[#allocation1] sm:$0xff]
    %6239 = vst [vmem:[#allocation1] ss:$9 sm:$0xff] %v5693
    %6240 = vst [vmem:[%s5990] ss:$9 sm:$0xff] %v5694
    %6241 = vst [vmem:[%s5992] ss:$9 sm:$0xff] %v5695
    %6242 = vst [vmem:[%s5994] ss:$9 sm:$0xff] %v5696
    %6243 = vst [vmem:[%s5996] ss:$9 sm:$0xff] %v5697
    %6244 = vst [vmem:[%s5998] ss:$9 sm:$0xff] %v5698
    %6245 = vst [vmem:[%s6000] ss:$9 sm:$0xff] %v5699
    %6246 = vst [vmem:[%s6002] ss:$9 sm:$0xff] %v5700
    %v6247 = vld [vmem:[#allocation1] sm:$0xff]
    %6248 = vst [vmem:[#allocation1] ss:$9 sm:$0xff] %v5701
    %6249 = vst [vmem:[%s5990] ss:$9 sm:$0xff] %v5702
    %6250 = vst [vmem:[%s5992] ss:$9 sm:$0xff] %v5703
    %6251 = vst [vmem:[%s5994] ss:$9 sm:$0xff] %v5704
    %6252 = vst [vmem:[%s5996] ss:$9 sm:$0xff] %v5705
    %6253 = vst [vmem:[%s5998] ss:$9 sm:$0xff] %v5706
    %6254 = vst [vmem:[%s6000] ss:$9 sm:$0xff] %v5707
    %6255 = vst [vmem:[%s6002] ss:$9 sm:$0xff] %v5708
    %v6256 = vld [vmem:[#allocation1] sm:$0xff]
    %6257 = vst [vmem:[#allocation1] ss:$9 sm:$0xff] %v5709
    %6258 = vst [vmem:[%s5990] ss:$9 sm:$0xff] %v5710
    %6259 = vst [vmem:[%s5992] ss:$9 sm:$0xff] %v5711
    %6260 = vst [vmem:[%s5994] ss:$9 sm:$0xff] %v5712
    %6261 = vst [vmem:[%s5996] ss:$9 sm:$0xff] %v5713
    %6262 = vst [vmem:[%s5998] ss:$9 sm:$0xff] %v5714
    %6263 = vst [vmem:[%s6000] ss:$9 sm:$0xff] %v5715
    %6264 = vst [vmem:[%s6002] ss:$9 sm:$0xff] %v5716
    %v6265 = vld [vmem:[#allocation1] sm:$0xff]
    %6266 = vst [vmem:[#allocation1] ss:$9 sm:$0xff] %v5717
    %6267 = vst [vmem:[%s5990] ss:$9 sm:$0xff] %v5718
    %6268 = vst [vmem:[%s5992] ss:$9 sm:$0xff] %v5719
    %6269 = vst [vmem:[%s5994] ss:$9 sm:$0xff] %v5720
    %6270 = vst [vmem:[%s5996] ss:$9 sm:$0xff] %v5721
    %6271 = vst [vmem:[%s5998] ss:$9 sm:$0xff] %v5722
    %6272 = vst [vmem:[%s6000] ss:$9 sm:$0xff] %v5723
    %6273 = vst [vmem:[%s6002] ss:$9 sm:$0xff] %v5724
    %v6274 = vld [vmem:[#allocation1] sm:$0xff]
    %6275 = vst [vmem:[#allocation1] ss:$9 sm:$0xff] %v5725
    %6276 = vst [vmem:[%s5990] ss:$9 sm:$0xff] %v5726
    %6277 = vst [vmem:[%s5992] ss:$9 sm:$0xff] %v5727
    %6278 = vst [vmem:[%s5994] ss:$9 sm:$0xff] %v5728
    %6279 = vst [vmem:[%s5996] ss:$9 sm:$0xff] %v5729
    %6280 = vst [vmem:[%s5998] ss:$9 sm:$0xff] %v5730
    %6281 = vst [vmem:[%s6000] ss:$9 sm:$0xff] %v5731
    %6282 = vst [vmem:[%s6002] ss:$9 sm:$0xff] %v5732
    %v6283 = vld [vmem:[#allocation1] sm:$0xff]
    %6284 = vst [vmem:[#allocation1] ss:$9 sm:$0xff] %v5733
    %6285 = vst [vmem:[%s5990] ss:$9 sm:$0xff] %v5734
    %6286 = vst [vmem:[%s5992] ss:$9 sm:$0xff] %v5735
    %6287 = vst [vmem:[%s5994] ss:$9 sm:$0xff] %v5736
    %6288 = vst [vmem:[%s5996] ss:$9 sm:$0xff] %v5737
    %6289 = vst [vmem:[%s5998] ss:$9 sm:$0xff] %v5738
    %6290 = vst [vmem:[%s6000] ss:$9 sm:$0xff] %v5739
    %6291 = vst [vmem:[%s6002] ss:$9 sm:$0xff] %v5740
    %v6292 = vld [vmem:[#allocation1] sm:$0xff]
    %6293 = vst [vmem:[#allocation1] ss:$9 sm:$0xff] %v5741
    %6294 = vst [vmem:[%s5990] ss:$9 sm:$0xff] %v5742
    %6295 = vst [vmem:[%s5992] ss:$9 sm:$0xff] %v5743
    %6296 = vst [vmem:[%s5994] ss:$9 sm:$0xff] %v5744
    %6297 = vst [vmem:[%s5996] ss:$9 sm:$0xff] %v5745
    %6298 = vst [vmem:[%s5998] ss:$9 sm:$0xff] %v5746
    %6299 = vst [vmem:[%s6000] ss:$9 sm:$0xff] %v5747
    %6300 = vst [vmem:[%s6002] ss:$9 sm:$0xff] %v5748
    %v6301 = vld [vmem:[#allocation1] sm:$0xff]
    %6302 = vst [vmem:[#allocation1] ss:$9 sm:$0xff] %v5749
    %6303 = vst [vmem:[%s5990] ss:$9 sm:$0xff] %v5750
    %6304 = vst [vmem:[%s5992] ss:$9 sm:$0xff] %v5751
    %6305 = vst [vmem:[%s5994] ss:$9 sm:$0xff] %v5752
    %6306 = vst [vmem:[%s5996] ss:$9 sm:$0xff] %v5753
    %6307 = vst [vmem:[%s5998] ss:$9 sm:$0xff] %v5754
    %6308 = vst [vmem:[%s6000] ss:$9 sm:$0xff] %v5755
    %6309 = vst [vmem:[%s6002] ss:$9 sm:$0xff] %v5756
    %v6310 = vld [vmem:[#allocation1] sm:$0xff]
    %6311 = vst [vmem:[#allocation1] ss:$9 sm:$0xff] %v5757
    %6312 = vst [vmem:[%s5990] ss:$9 sm:$0xff] %v5758
    %6313 = vst [vmem:[%s5992] ss:$9 sm:$0xff] %v5759
    %6314 = vst [vmem:[%s5994] ss:$9 sm:$0xff] %v5760
    %6315 = vst [vmem:[%s5996] ss:$9 sm:$0xff] %v5761
    %6316 = vst [vmem:[%s5998] ss:$9 sm:$0xff] %v5762
    %6317 = vst [vmem:[%s6000] ss:$9 sm:$0xff] %v5763
    %6318 = vst [vmem:[%s6002] ss:$9 sm:$0xff] %v5764
    %v6319 = vld [vmem:[#allocation1] sm:$0xff]
    %6320 = vst [vmem:[#allocation1] ss:$9 sm:$0xff] %v5765
    %6321 = vst [vmem:[%s5990] ss:$9 sm:$0xff] %v5766
    %6322 = vst [vmem:[%s5992] ss:$9 sm:$0xff] %v5767
    %6323 = vst [vmem:[%s5994] ss:$9 sm:$0xff] %v5768
    %6324 = vst [vmem:[%s5996] ss:$9 sm:$0xff] %v5769
    %6325 = vst [vmem:[%s5998] ss:$9 sm:$0xff] %v5770
    %6326 = vst [vmem:[%s6000] ss:$9 sm:$0xff] %v5771
    %6327 = vst [vmem:[%s6002] ss:$9 sm:$0xff] %v5772
    %v6328 = vld [vmem:[#allocation1] sm:$0xff]
    %6329 = vst [vmem:[#allocation1] ss:$9 sm:$0xff] %v5773
    %6330 = vst [vmem:[%s5990] ss:$9 sm:$0xff] %v5774
    %6331 = vst [vmem:[%s5992] ss:$9 sm:$0xff] %v5775
    %6332 = vst [vmem:[%s5994] ss:$9 sm:$0xff] %v5776
    %6333 = vst [vmem:[%s5996] ss:$9 sm:$0xff] %v5777
    %6334 = vst [vmem:[%s5998] ss:$9 sm:$0xff] %v5778
    %6335 = vst [vmem:[%s6000] ss:$9 sm:$0xff] %v5779
    %6336 = vst [vmem:[%s6002] ss:$9 sm:$0xff] %v5780
    %v6337 = vld [vmem:[#allocation1] sm:$0xff]
    %6338 = vst [vmem:[#allocation1] ss:$9 sm:$0xff] %v5781
    %6339 = vst [vmem:[%s5990] ss:$9 sm:$0xff] %v5782
    %6340 = vst [vmem:[%s5992] ss:$9 sm:$0xff] %v5783
    %6341 = vst [vmem:[%s5994] ss:$9 sm:$0xff] %v5784
    %6342 = vst [vmem:[%s5996] ss:$9 sm:$0xff] %v5785
    %6343 = vst [vmem:[%s5998] ss:$9 sm:$0xff] %v5786
    %6344 = vst [vmem:[%s6000] ss:$9 sm:$0xff] %v5787
    %6345 = vst [vmem:[%s6002] ss:$9 sm:$0xff] %v5788
    %v6346 = vld [vmem:[#allocation1] sm:$0xff]
    %6347 = vst [vmem:[#allocation1] ss:$9 sm:$0xff] %v5789
    %6348 = vst [vmem:[%s5990] ss:$9 sm:$0xff] %v5790
    %6349 = vst [vmem:[%s5992] ss:$9 sm:$0xff] %v5791
    %6350 = vst [vmem:[%s5994] ss:$9 sm:$0xff] %v5792
    %6351 = vst [vmem:[%s5996] ss:$9 sm:$0xff] %v5793
    %6352 = vst [vmem:[%s5998] ss:$9 sm:$0xff] %v5794
    %6353 = vst [vmem:[%s6000] ss:$9 sm:$0xff] %v5795
    %6354 = vst [vmem:[%s6002] ss:$9 sm:$0xff] %v5796
    %v6355 = vld [vmem:[#allocation1] sm:$0xff]
    %6356 = vst [vmem:[#allocation1] ss:$9 sm:$0xff] %v5797
    %6357 = vst [vmem:[%s5990] ss:$9 sm:$0xff] %v5798
    %6358 = vst [vmem:[%s5992] ss:$9 sm:$0xff] %v5799
    %6359 = vst [vmem:[%s5994] ss:$9 sm:$0xff] %v5800
    %6360 = vst [vmem:[%s5996] ss:$9 sm:$0xff] %v5801
    %6361 = vst [vmem:[%s5998] ss:$9 sm:$0xff] %v5802
    %6362 = vst [vmem:[%s6000] ss:$9 sm:$0xff] %v5803
    %6363 = vst [vmem:[%s6002] ss:$9 sm:$0xff] %v5804
    %v6364 = vld [vmem:[#allocation1] sm:$0xff]
    %6365 = vst [vmem:[#allocation1] ss:$9 sm:$0xff] %v5805
    %6366 = vst [vmem:[%s5990] ss:$9 sm:$0xff] %v5806
    %6367 = vst [vmem:[%s5992] ss:$9 sm:$0xff] %v5807
    %6368 = vst [vmem:[%s5994] ss:$9 sm:$0xff] %v5808
    %6369 = vst [vmem:[%s5996] ss:$9 sm:$0xff] %v5809
    %6370 = vst [vmem:[%s5998] ss:$9 sm:$0xff] %v5810
    %6371 = vst [vmem:[%s6000] ss:$9 sm:$0xff] %v5811
    %6372 = vst [vmem:[%s6002] ss:$9 sm:$0xff] %v5812
    %v6373 = vld [vmem:[#allocation1] sm:$0xff]
    %6374 = vst [vmem:[#allocation1] ss:$9 sm:$0xff] %v5813
    %6375 = vst [vmem:[%s5990] ss:$9 sm:$0xff] %v5814
    %6376 = vst [vmem:[%s5992] ss:$9 sm:$0xff] %v5815
    %6377 = vst [vmem:[%s5994] ss:$9 sm:$0xff] %v5816
    %6378 = vst [vmem:[%s5996] ss:$9 sm:$0xff] %v5817
    %6379 = vst [vmem:[%s5998] ss:$9 sm:$0xff] %v5818
    %6380 = vst [vmem:[%s6000] ss:$9 sm:$0xff] %v5819
    %6381 = vst [vmem:[%s6002] ss:$9 sm:$0xff] %v5820
    %v6382 = vld [vmem:[#allocation1] sm:$0xff]
    %6383 = vst [vmem:[#allocation1] ss:$9 sm:$0xff] %v5821
    %6384 = vst [vmem:[%s5990] ss:$9 sm:$0xff] %v5822
    %6385 = vst [vmem:[%s5992] ss:$9 sm:$0xff] %v5823
    %6386 = vst [vmem:[%s5994] ss:$9 sm:$0xff] %v5824
    %6387 = vst [vmem:[%s5996] ss:$9 sm:$0xff] %v5825
    %6388 = vst [vmem:[%s5998] ss:$9 sm:$0xff] %v5826
    %6389 = vst [vmem:[%s6000] ss:$9 sm:$0xff] %v5827
    %6390 = vst [vmem:[%s6002] ss:$9 sm:$0xff] %v5828
    %v6391 = vld [vmem:[#allocation1] sm:$0xff]
    %6392 = vst [vmem:[#allocation1] ss:$9 sm:$0xff] %v5829
    %6393 = vst [vmem:[%s5990] ss:$9 sm:$0xff] %v5830
    %6394 = vst [vmem:[%s5992] ss:$9 sm:$0xff] %v5831
    %6395 = vst [vmem:[%s5994] ss:$9 sm:$0xff] %v5832
    %6396 = vst [vmem:[%s5996] ss:$9 sm:$0xff] %v5833
    %6397 = vst [vmem:[%s5998] ss:$9 sm:$0xff] %v5834
    %6398 = vst [vmem:[%s6000] ss:$9 sm:$0xff] %v5835
    %6399 = vst [vmem:[%s6002] ss:$9 sm:$0xff] %v5836
    %v6400 = vld [vmem:[#allocation1] sm:$0xff]
    %6401 = vst [vmem:[#allocation1] ss:$9 sm:$0xff] %v5837
    %6402 = vst [vmem:[%s5990] ss:$9 sm:$0xff] %v5838
    %6403 = vst [vmem:[%s5992] ss:$9 sm:$0xff] %v5839
    %6404 = vst [vmem:[%s5994] ss:$9 sm:$0xff] %v5840
    %6405 = vst [vmem:[%s5996] ss:$9 sm:$0xff] %v5841
    %6406 = vst [vmem:[%s5998] ss:$9 sm:$0xff] %v5842
    %6407 = vst [vmem:[%s6000] ss:$9 sm:$0xff] %v5843
    %6408 = vst [vmem:[%s6002] ss:$9 sm:$0xff] %v5844
    %v6409 = vld [vmem:[#allocation1] sm:$0xff]
    %6410 = vst [vmem:[#allocation1] ss:$9 sm:$0xff] %v5845
    %6411 = vst [vmem:[%s5990] ss:$9 sm:$0xff] %v5846
    %6412 = vst [vmem:[%s5992] ss:$9 sm:$0xff] %v5847
    %6413 = vst [vmem:[%s5994] ss:$9 sm:$0xff] %v5848
    %6414 = vst [vmem:[%s5996] ss:$9 sm:$0xff] %v5849
    %6415 = vst [vmem:[%s5998] ss:$9 sm:$0xff] %v5850
    %6416 = vst [vmem:[%s6000] ss:$9 sm:$0xff] %v5851
    %6417 = vst [vmem:[%s6002] ss:$9 sm:$0xff] %v5852
    %v6418 = vld [vmem:[#allocation1] sm:$0xff]
    %6419 = vst [vmem:[#allocation1] ss:$9 sm:$0xff] %v5853
    %6420 = vst [vmem:[%s5990] ss:$9 sm:$0xff] %v5854
    %6421 = vst [vmem:[%s5992] ss:$9 sm:$0xff] %v5855
    %6422 = vst [vmem:[%s5994] ss:$9 sm:$0xff] %v5856
    %6423 = vst [vmem:[%s5996] ss:$9 sm:$0xff] %v5857
    %6424 = vst [vmem:[%s5998] ss:$9 sm:$0xff] %v5858
    %6425 = vst [vmem:[%s6000] ss:$9 sm:$0xff] %v5859
    %6426 = vst [vmem:[%s6002] ss:$9 sm:$0xff] %v5860
    %v6427 = vld [vmem:[#allocation1] sm:$0xff]
    %6428 = vst [vmem:[#allocation1] ss:$9 sm:$0xff] %v5861
    %6429 = vst [vmem:[%s5990] ss:$9 sm:$0xff] %v5862
    %6430 = vst [vmem:[%s5992] ss:$9 sm:$0xff] %v5863
    %6431 = vst [vmem:[%s5994] ss:$9 sm:$0xff] %v5864
    %6432 = vst [vmem:[%s5996] ss:$9 sm:$0xff] %v5865
    %6433 = vst [vmem:[%s5998] ss:$9 sm:$0xff] %v5866
    %6434 = vst [vmem:[%s6000] ss:$9 sm:$0xff] %v5867
    %6435 = vst [vmem:[%s6002] ss:$9 sm:$0xff] %v5868
    %v6436 = vld [vmem:[#allocation1] sm:$0xff]
    %6437 = vst [vmem:[#allocation1] ss:$9 sm:$0xff] %v5869
    %6438 = vst [vmem:[%s5990] ss:$9 sm:$0xff] %v5870
    %6439 = vst [vmem:[%s5992] ss:$9 sm:$0xff] %v5871
    %6440 = vst [vmem:[%s5994] ss:$9 sm:$0xff] %v5872
    %6441 = vst [vmem:[%s5996] ss:$9 sm:$0xff] %v5873
    %6442 = vst [vmem:[%s5998] ss:$9 sm:$0xff] %v5874
    %6443 = vst [vmem:[%s6000] ss:$9 sm:$0xff] %v5875
    %6444 = vst [vmem:[%s6002] ss:$9 sm:$0xff] %v5876
    %v6445 = vld [vmem:[#allocation1] sm:$0xff]
    %6446 = vst [vmem:[#allocation1] ss:$9 sm:$0xff] %v5877
    %6447 = vst [vmem:[%s5990] ss:$9 sm:$0xff] %v5878
    %6448 = vst [vmem:[%s5992] ss:$9 sm:$0xff] %v5879
    %6449 = vst [vmem:[%s5994] ss:$9 sm:$0xff] %v5880
    %6450 = vst [vmem:[%s5996] ss:$9 sm:$0xff] %v5881
    %6451 = vst [vmem:[%s5998] ss:$9 sm:$0xff] %v5882
    %6452 = vst [vmem:[%s6000] ss:$9 sm:$0xff] %v5883
    %6453 = vst [vmem:[%s6002] ss:$9 sm:$0xff] %v5884
    %v6454 = vld [vmem:[#allocation1] sm:$0xff]
    %6455 = vst [vmem:[#allocation1] ss:$9 sm:$0xff] %v5885
    %6456 = vst [vmem:[%s5990] ss:$9 sm:$0xff] %v5886
    %6457 = vst [vmem:[%s5992] ss:$9 sm:$0xff] %v5887
    %6458 = vst [vmem:[%s5994] ss:$9 sm:$0xff] %v5888
    %6459 = vst [vmem:[%s5996] ss:$9 sm:$0xff] %v5889
    %6460 = vst [vmem:[%s5998] ss:$9 sm:$0xff] %v5890
    %6461 = vst [vmem:[%s6000] ss:$9 sm:$0xff] %v5891
    %6462 = vst [vmem:[%s6002] ss:$9 sm:$0xff] %v5892
    %v6463 = vld [vmem:[#allocation1] sm:$0xff]
    %6464 = vst [vmem:[#allocation1] ss:$9 sm:$0xff] %v5893
    %6465 = vst [vmem:[%s5990] ss:$9 sm:$0xff] %v5894
    %6466 = vst [vmem:[%s5992] ss:$9 sm:$0xff] %v5895
    %6467 = vst [vmem:[%s5994] ss:$9 sm:$0xff] %v5896
    %6468 = vst [vmem:[%s5996] ss:$9 sm:$0xff] %v5897
    %6469 = vst [vmem:[%s5998] ss:$9 sm:$0xff] %v5898
    %6470 = vst [vmem:[%s6000] ss:$9 sm:$0xff] %v5899
    %6471 = vst [vmem:[%s6002] ss:$9 sm:$0xff] %v5900
    %v6472 = vld [vmem:[#allocation1] sm:$0xff]
    %6473 = vst [vmem:[#allocation1] ss:$9 sm:$0xff] %v5901
    %6474 = vst [vmem:[%s5990] ss:$9 sm:$0xff] %v5902
    %6475 = vst [vmem:[%s5992] ss:$9 sm:$0xff] %v5903
    %6476 = vst [vmem:[%s5994] ss:$9 sm:$0xff] %v5904
    %6477 = vst [vmem:[%s5996] ss:$9 sm:$0xff] %v5905
    %6478 = vst [vmem:[%s5998] ss:$9 sm:$0xff] %v5906
    %6479 = vst [vmem:[%s6000] ss:$9 sm:$0xff] %v5907
    %6480 = vst [vmem:[%s6002] ss:$9 sm:$0xff] %v5908
    %v6481 = vld [vmem:[#allocation1] sm:$0xff]
    %6482 = vst [vmem:[#allocation1] ss:$9 sm:$0xff] %v5909
    %6483 = vst [vmem:[%s5990] ss:$9 sm:$0xff] %v5910
    %6484 = vst [vmem:[%s5992] ss:$9 sm:$0xff] %v5911
    %6485 = vst [vmem:[%s5994] ss:$9 sm:$0xff] %v5912
    %6486 = vst [vmem:[%s5996] ss:$9 sm:$0xff] %v5913
    %6487 = vst [vmem:[%s5998] ss:$9 sm:$0xff] %v5914
    %6488 = vst [vmem:[%s6000] ss:$9 sm:$0xff] %v5915
    %6489 = vst [vmem:[%s6002] ss:$9 sm:$0xff] %v5916
    %v6490 = vld [vmem:[#allocation1] sm:$0xff]
    %6491 = vst [vmem:[#allocation1] ss:$9 sm:$0xff] %v5917
    %6492 = vst [vmem:[%s5990] ss:$9 sm:$0xff] %v5918
    %6493 = vst [vmem:[%s5992] ss:$9 sm:$0xff] %v5919
    %6494 = vst [vmem:[%s5994] ss:$9 sm:$0xff] %v5920
    %6495 = vst [vmem:[%s5996] ss:$9 sm:$0xff] %v5921
    %6496 = vst [vmem:[%s5998] ss:$9 sm:$0xff] %v5922
    %6497 = vst [vmem:[%s6000] ss:$9 sm:$0xff] %v5923
    %6498 = vst [vmem:[%s6002] ss:$9 sm:$0xff] %v5924
    %v6499 = vld [vmem:[#allocation1] sm:$0xff]
    %6500 = vst [vmem:[#allocation1] ss:$9 sm:$0xff] %v5925
    %6501 = vst [vmem:[%s5990] ss:$9 sm:$0xff] %v5926
    %6502 = vst [vmem:[%s5992] ss:$9 sm:$0xff] %v5927
    %6503 = vst [vmem:[%s5994] ss:$9 sm:$0xff] %v5928
    %6504 = vst [vmem:[%s5996] ss:$9 sm:$0xff] %v5929
    %6505 = vst [vmem:[%s5998] ss:$9 sm:$0xff] %v5930
    %6506 = vst [vmem:[%s6000] ss:$9 sm:$0xff] %v5931
    %6507 = vst [vmem:[%s6002] ss:$9 sm:$0xff] %v5932
    %v6508 = vld [vmem:[#allocation1] sm:$0xff]
    %6509 = vst [vmem:[#allocation1] ss:$9 sm:$0xff] %v5933
    %6510 = vst [vmem:[%s5990] ss:$9 sm:$0xff] %v5934
    %6511 = vst [vmem:[%s5992] ss:$9 sm:$0xff] %v5935
    %6512 = vst [vmem:[%s5994] ss:$9 sm:$0xff] %v5936
    %6513 = vst [vmem:[%s5996] ss:$9 sm:$0xff] %v5937
    %6514 = vst [vmem:[%s5998] ss:$9 sm:$0xff] %v5938
    %6515 = vst [vmem:[%s6000] ss:$9 sm:$0xff] %v5939
    %6516 = vst [vmem:[%s6002] ss:$9 sm:$0xff] %v5940
    %v6517 = vld [vmem:[#allocation1] sm:$0xff]
    %6518 = vst [vmem:[#allocation1] ss:$9 sm:$0xff] %v5941
    %6519 = vst [vmem:[%s5990] ss:$9 sm:$0xff] %v5942
    %6520 = vst [vmem:[%s5992] ss:$9 sm:$0xff] %v5943
    %6521 = vst [vmem:[%s5994] ss:$9 sm:$0xff] %v5944
    %6522 = vst [vmem:[%s5996] ss:$9 sm:$0xff] %v5945
    %6523 = vst [vmem:[%s5998] ss:$9 sm:$0xff] %v5946
    %6524 = vst [vmem:[%s6000] ss:$9 sm:$0xff] %v5947
    %6525 = vst [vmem:[%s6002] ss:$9 sm:$0xff] %v5948
    %v6526 = vld [vmem:[#allocation1] sm:$0xff]
    %6527 = vst [vmem:[#allocation1] ss:$9 sm:$0xff] %v5949
    %6528 = vst [vmem:[%s5990] ss:$9 sm:$0xff] %v5950
    %6529 = vst [vmem:[%s5992] ss:$9 sm:$0xff] %v5951
    %6530 = vst [vmem:[%s5994] ss:$9 sm:$0xff] %v5952
    %6531 = vst [vmem:[%s5996] ss:$9 sm:$0xff] %v5953
    %6532 = vst [vmem:[%s5998] ss:$9 sm:$0xff] %v5954
    %6533 = vst [vmem:[%s6000] ss:$9 sm:$0xff] %v5955
    %6534 = vst [vmem:[%s6002] ss:$9 sm:$0xff] %v5956
    %v6535 = vld [vmem:[#allocation1] sm:$0xff]
    %6536 = vst [vmem:[#allocation1] ss:$9 sm:$0xff] %v5957
    %6537 = vst [vmem:[%s5990] ss:$9 sm:$0xff] %v5958
    %6538 = vst [vmem:[%s5992] ss:$9 sm:$0xff] %v5959
    %6539 = vst [vmem:[%s5994] ss:$9 sm:$0xff] %v5960
    %6540 = vst [vmem:[%s5996] ss:$9 sm:$0xff] %v5961
    %6541 = vst [vmem:[%s5998] ss:$9 sm:$0xff] %v5962
    %6542 = vst [vmem:[%s6000] ss:$9 sm:$0xff] %v5963
    %6543 = vst [vmem:[%s6002] ss:$9 sm:$0xff] %v5964
    %v6544 = vld [vmem:[#allocation1] sm:$0xff]
    %6545 = vst [vmem:[#allocation1] ss:$9 sm:$0xff] %v5965
    %6546 = vst [vmem:[%s5990] ss:$9 sm:$0xff] %v5966
    %6547 = vst [vmem:[%s5992] ss:$9 sm:$0xff] %v5967
    %6548 = vst [vmem:[%s5994] ss:$9 sm:$0xff] %v5968
    %6549 = vst [vmem:[%s5996] ss:$9 sm:$0xff] %v5969
    %6550 = vst [vmem:[%s5998] ss:$9 sm:$0xff] %v5970
    %6551 = vst [vmem:[%s6000] ss:$9 sm:$0xff] %v5971
    %6552 = vst [vmem:[%s6002] ss:$9 sm:$0xff] %v5972
    %v6553 = vld [vmem:[#allocation1] sm:$0xff]
    %6554 = vst [vmem:[#allocation1] ss:$9 sm:$0xff] %v5973
    %6555 = vst [vmem:[%s5990] ss:$9 sm:$0xff] %v5974
    %6556 = vst [vmem:[%s5992] ss:$9 sm:$0xff] %v5975
    %6557 = vst [vmem:[%s5994] ss:$9 sm:$0xff] %v5976
    %6558 = vst [vmem:[%s5996] ss:$9 sm:$0xff] %v5977
    %6559 = vst [vmem:[%s5998] ss:$9 sm:$0xff] %v5978
    %6560 = vst [vmem:[%s6000] ss:$9 sm:$0xff] %v5979
    %6561 = vst [vmem:[%s6002] ss:$9 sm:$0xff] %v5980
    %v6562 = vld [vmem:[#allocation1] sm:$0xff]
    %6563 = vst [vmem:[#allocation1] ss:$9 sm:$0xff] %v5981
    %6564 = vst [vmem:[%s5990] ss:$9 sm:$0xff] %v5982
    %6565 = vst [vmem:[%s5992] ss:$9 sm:$0xff] %v5983
    %6566 = vst [vmem:[%s5994] ss:$9 sm:$0xff] %v5984
    %6567 = vst [vmem:[%s5996] ss:$9 sm:$0xff] %v5985
    %6568 = vst [vmem:[%s5998] ss:$9 sm:$0xff] %v5986
    %6569 = vst [vmem:[%s6000] ss:$9 sm:$0xff] %v5987
    %6570 = vst [vmem:[%s6002] ss:$9 sm:$0xff] %v5988
    %v6571 = vld [vmem:[#allocation1] sm:$0xff]
    %6572 = vset.pattern.permute.xlu0 0
    %6573 = vperm.xlu0 %6572, %v6004
    %v6574 = vpop.permute.xlu0 %6573
    %6575 = vset.pattern.permute.xlu0 0
    %6576 = vperm.xlu0 %6575, %v6013
    %v6577 = vpop.permute.xlu0 %6576
    %6578 = vset.pattern.permute.xlu0 0
    %6579 = vperm.xlu0 %6578, %v6022
    %v6580 = vpop.permute.xlu0 %6579
    %6581 = vset.pattern.permute.xlu0 0
    %6582 = vperm.xlu0 %6581, %v6031
    %v6583 = vpop.permute.xlu0 %6582
    %6584 = vset.pattern.permute.xlu0 0
    %6585 = vperm.xlu0 %6584, %v6040
    %v6586 = vpop.permute.xlu0 %6585
    %6587 = vset.pattern.permute.xlu0 0
    %6588 = vperm.xlu0 %6587, %v6049
    %v6589 = vpop.permute.xlu0 %6588
    %6590 = vset.pattern.permute.xlu0 0
    %6591 = vperm.xlu0 %6590, %v6058
    %v6592 = vpop.permute.xlu0 %6591
    %6593 = vset.pattern.permute.xlu0 0
    %6594 = vperm.xlu0 %6593, %v6067
    %v6595 = vpop.permute.xlu0 %6594
    %6596 = vset.pattern.permute.xlu0 0
    %6597 = vperm.xlu0 %6596, %v6076
    %v6598 = vpop.permute.xlu0 %6597
    %6599 = vset.pattern.permute.xlu0 0
    %6600 = vperm.xlu0 %6599, %v6085
    %v6601 = vpop.permute.xlu0 %6600
    %6602 = vset.pattern.permute.xlu0 0
    %6603 = vperm.xlu0 %6602, %v6094
    %v6604 = vpop.permute.xlu0 %6603
    %6605 = vset.pattern.permute.xlu0 0
    %6606 = vperm.xlu0 %6605, %v6103
    %v6607 = vpop.permute.xlu0 %6606
    %6608 = vset.pattern.permute.xlu0 0
    %6609 = vperm.xlu0 %6608, %v6112
    %v6610 = vpop.permute.xlu0 %6609
    %6611 = vset.pattern.permute.xlu0 0
    %6612 = vperm.xlu0 %6611, %v6121
    %v6613 = vpop.permute.xlu0 %6612
    %6614 = vset.pattern.permute.xlu0 0
    %6615 = vperm.xlu0 %6614, %v6130
    %v6616 = vpop.permute.xlu0 %6615
    %6617 = vset.pattern.permute.xlu0 0
    %6618 = vperm.xlu0 %6617, %v6139
    %v6619 = vpop.permute.xlu0 %6618
    %6620 = vset.pattern.permute.xlu0 0
    %6621 = vperm.xlu0 %6620, %v6148
    %v6622 = vpop.permute.xlu0 %6621
    %6623 = vset.pattern.permute.xlu0 0
    %6624 = vperm.xlu0 %6623, %v6157
    %v6625 = vpop.permute.xlu0 %6624
    %6626 = vset.pattern.permute.xlu0 0
    %6627 = vperm.xlu0 %6626, %v6166
    %v6628 = vpop.permute.xlu0 %6627
    %6629 = vset.pattern.permute.xlu0 0
    %6630 = vperm.xlu0 %6629, %v6175
    %v6631 = vpop.permute.xlu0 %6630
    %6632 = vset.pattern.permute.xlu0 0
    %6633 = vperm.xlu0 %6632, %v6184
    %v6634 = vpop.permute.xlu0 %6633
    %6635 = vset.pattern.permute.xlu0 0
    %6636 = vperm.xlu0 %6635, %v6193
    %v6637 = vpop.permute.xlu0 %6636
    %6638 = vset.pattern.permute.xlu0 0
    %6639 = vperm.xlu0 %6638, %v6202
    %v6640 = vpop.permute.xlu0 %6639
    %6641 = vset.pattern.permute.xlu0 0
    %6642 = vperm.xlu0 %6641, %v6211
    %v6643 = vpop.permute.xlu0 %6642
    %6644 = vset.pattern.permute.xlu0 0
    %6645 = vperm.xlu0 %6644, %v6220
    %v6646 = vpop.permute.xlu0 %6645
    %6647 = vset.pattern.permute.xlu0 0
    %6648 = vperm.xlu0 %6647, %v6229
    %v6649 = vpop.permute.xlu0 %6648
    %6650 = vset.pattern.permute.xlu0 0
    %6651 = vperm.xlu0 %6650, %v6238
    %v6652 = vpop.permute.xlu0 %6651
    %6653 = vset.pattern.permute.xlu0 0
    %6654 = vperm.xlu0 %6653, %v6247
    %v6655 = vpop.permute.xlu0 %6654
    %6656 = vset.pattern.permute.xlu0 0
    %6657 = vperm.xlu0 %6656, %v6256
    %v6658 = vpop.permute.xlu0 %6657
    %6659 = vset.pattern.permute.xlu0 0
    %6660 = vperm.xlu0 %6659, %v6265
    %v6661 = vpop.permute.xlu0 %6660
    %6662 = vset.pattern.permute.xlu0 0
    %6663 = vperm.xlu0 %6662, %v6274
    %v6664 = vpop.permute.xlu0 %6663
    %6665 = vset.pattern.permute.xlu0 0
    %6666 = vperm.xlu0 %6665, %v6283
    %v6667 = vpop.permute.xlu0 %6666
    %6668 = vset.pattern.permute.xlu0 0
    %6669 = vperm.xlu0 %6668, %v6292
    %v6670 = vpop.permute.xlu0 %6669
    %6671 = vset.pattern.permute.xlu0 0
    %6672 = vperm.xlu0 %6671, %v6301
    %v6673 = vpop.permute.xlu0 %6672
    %6674 = vset.pattern.permute.xlu0 0
    %6675 = vperm.xlu0 %6674, %v6310
    %v6676 = vpop.permute.xlu0 %6675
    %6677 = vset.pattern.permute.xlu0 0
    %6678 = vperm.xlu0 %6677, %v6319
    %v6679 = vpop.permute.xlu0 %6678
    %6680 = vset.pattern.permute.xlu0 0
    %6681 = vperm.xlu0 %6680, %v6328
    %v6682 = vpop.permute.xlu0 %6681
    %6683 = vset.pattern.permute.xlu0 0
    %6684 = vperm.xlu0 %6683, %v6337
    %v6685 = vpop.permute.xlu0 %6684
    %6686 = vset.pattern.permute.xlu0 0
    %6687 = vperm.xlu0 %6686, %v6346
    %v6688 = vpop.permute.xlu0 %6687
    %6689 = vset.pattern.permute.xlu0 0
    %6690 = vperm.xlu0 %6689, %v6355
    %v6691 = vpop.permute.xlu0 %6690
    %6692 = vset.pattern.permute.xlu0 0
    %6693 = vperm.xlu0 %6692, %v6364
    %v6694 = vpop.permute.xlu0 %6693
    %6695 = vset.pattern.permute.xlu0 0
    %6696 = vperm.xlu0 %6695, %v6373
    %v6697 = vpop.permute.xlu0 %6696
    %6698 = vset.pattern.permute.xlu0 0
    %6699 = vperm.xlu0 %6698, %v6382
    %v6700 = vpop.permute.xlu0 %6699
    %6701 = vset.pattern.permute.xlu0 0
    %6702 = vperm.xlu0 %6701, %v6391
    %v6703 = vpop.permute.xlu0 %6702
    %6704 = vset.pattern.permute.xlu0 0
    %6705 = vperm.xlu0 %6704, %v6400
    %v6706 = vpop.permute.xlu0 %6705
    %6707 = vset.pattern.permute.xlu0 0
    %6708 = vperm.xlu0 %6707, %v6409
    %v6709 = vpop.permute.xlu0 %6708
    %6710 = vset.pattern.permute.xlu0 0
    %6711 = vperm.xlu0 %6710, %v6418
    %v6712 = vpop.permute.xlu0 %6711
    %6713 = vset.pattern.permute.xlu0 0
    %6714 = vperm.xlu0 %6713, %v6427
    %v6715 = vpop.permute.xlu0 %6714
    %6716 = vset.pattern.permute.xlu0 0
    %6717 = vperm.xlu0 %6716, %v6436
    %v6718 = vpop.permute.xlu0 %6717
    %6719 = vset.pattern.permute.xlu0 0
    %6720 = vperm.xlu0 %6719, %v6445
    %v6721 = vpop.permute.xlu0 %6720
    %6722 = vset.pattern.permute.xlu0 0
    %6723 = vperm.xlu0 %6722, %v6454
    %v6724 = vpop.permute.xlu0 %6723
    %6725 = vset.pattern.permute.xlu0 0
    %6726 = vperm.xlu0 %6725, %v6463
    %v6727 = vpop.permute.xlu0 %6726
    %6728 = vset.pattern.permute.xlu0 0
    %6729 = vperm.xlu0 %6728, %v6472
    %v6730 = vpop.permute.xlu0 %6729
    %6731 = vset.pattern.permute.xlu0 0
    %6732 = vperm.xlu0 %6731, %v6481
    %v6733 = vpop.permute.xlu0 %6732
    %6734 = vset.pattern.permute.xlu0 0
    %6735 = vperm.xlu0 %6734, %v6490
    %v6736 = vpop.permute.xlu0 %6735
    %6737 = vset.pattern.permute.xlu0 0
    %6738 = vperm.xlu0 %6737, %v6499
    %v6739 = vpop.permute.xlu0 %6738
    %6740 = vset.pattern.permute.xlu0 0
    %6741 = vperm.xlu0 %6740, %v6508
    %v6742 = vpop.permute.xlu0 %6741
    %6743 = vset.pattern.permute.xlu0 0
    %6744 = vperm.xlu0 %6743, %v6517
    %v6745 = vpop.permute.xlu0 %6744
    %6746 = vset.pattern.permute.xlu0 0
    %6747 = vperm.xlu0 %6746, %v6526
    %v6748 = vpop.permute.xlu0 %6747
    %6749 = vset.pattern.permute.xlu0 0
    %6750 = vperm.xlu0 %6749, %v6535
    %v6751 = vpop.permute.xlu0 %6750
    %6752 = vset.pattern.permute.xlu0 0
    %6753 = vperm.xlu0 %6752, %v6544
    %v6754 = vpop.permute.xlu0 %6753
    %6755 = vset.pattern.permute.xlu0 0
    %6756 = vperm.xlu0 %6755, %v6553
    %v6757 = vpop.permute.xlu0 %6756
    %6758 = vset.pattern.permute.xlu0 0
    %6759 = vperm.xlu0 %6758, %v6562
    %v6760 = vpop.permute.xlu0 %6759
    %6761 = vset.pattern.permute.xlu0 0
    %6762 = vperm.xlu0 %6761, %v6571
    %v6763 = vpop.permute.xlu0 %6762
    %v6764 = vperm.slane %v6574, %v2013
    %v6765 = vadd.s32 %v2013, 4294967288
    %v6766 = vperm.slane %v6577, %v6765
    %vm6767 = vcmask 130112
    %v6768 = vsel %vm6767, %v6766, %v6764
    %v6769 = vadd.s32 %v2013, 4294967280
    %v6770 = vperm.slane %v6580, %v6769
    %vm6771 = vcmask 195712
    %v6772 = vsel %vm6771, %v6770, %v6768
    %v6773 = vadd.s32 %v2013, 4294967272
    %v6774 = vperm.slane %v6583, %v6773
    %vm6775 = vcmask 261312
    %v6776 = vsel %vm6775, %v6774, %v6772
    %v6777 = vadd.s32 %v2013, 4294967264
    %v6778 = vperm.slane %v6586, %v6777
    %vm6779 = vcmask 326912
    %v6780 = vsel %vm6779, %v6778, %v6776
    %v6781 = vadd.s32 %v2013, 4294967256
    %v6782 = vperm.slane %v6589, %v6781
    %vm6783 = vcmask 392512
    %v6784 = vsel %vm6783, %v6782, %v6780
    %v6785 = vadd.s32 %v2013, 4294967248
    %v6786 = vperm.slane %v6592, %v6785
    %vm6787 = vcmask 458112
    %v6788 = vsel %vm6787, %v6786, %v6784
    %v6789 = vadd.s32 %v2013, 4294967240
    %v6790 = vperm.slane %v6595, %v6789
    %vm6791 = vcmask 523712
    %v6792 = vsel %vm6791, %v6790, %v6788
    %v6793 = vadd.s32 %v2013, 4294967232
    %v6794 = vperm.slane %v6598, %v6793
    %vm6795 = vcmask 589312
    %v6796 = vsel %vm6795, %v6794, %v6792
    %v6797 = vadd.s32 %v2013, 4294967224
    %v6798 = vperm.slane %v6601, %v6797
    %vm6799 = vcmask 654912
    %v6800 = vsel %vm6799, %v6798, %v6796
    %v6801 = vadd.s32 %v2013, 4294967216
    %v6802 = vperm.slane %v6604, %v6801
    %vm6803 = vcmask 720512
    %v6804 = vsel %vm6803, %v6802, %v6800
    %v6805 = vadd.s32 %v2013, 4294967208
    %v6806 = vperm.slane %v6607, %v6805
    %vm6807 = vcmask 786112
    %v6808 = vsel %vm6807, %v6806, %v6804
    %v6809 = vadd.s32 %v2013, 4294967200
    %v6810 = vperm.slane %v6610, %v6809
    %vm6811 = vcmask 851712
    %v6812 = vsel %vm6811, %v6810, %v6808
    %v6813 = vadd.s32 %v2013, 4294967192
    %v6814 = vperm.slane %v6613, %v6813
    %vm6815 = vcmask 917312
    %v6816 = vsel %vm6815, %v6814, %v6812
    %v6817 = vadd.s32 %v2013, 4294967184
    %v6818 = vperm.slane %v6616, %v6817
    %vm6819 = vcmask 982912
    %v6820 = vsel %vm6819, %v6818, %v6816
    %v6821 = vadd.s32 %v2013, 4294967176
    %v6822 = vperm.slane %v6619, %v6821
    %vm6823 = vcmask 1048512
    %v6824 = vsel %vm6823, %v6822, %v6820
    %v6825 = vperm.slane %v6622, %v2013
    %v6826 = vperm.slane %v6625, %v6765
    %v6827 = vsel %vm6767, %v6826, %v6825
    %v6828 = vperm.slane %v6628, %v6769
    %v6829 = vsel %vm6771, %v6828, %v6827
    %v6830 = vperm.slane %v6631, %v6773
    %v6831 = vsel %vm6775, %v6830, %v6829
    %v6832 = vperm.slane %v6634, %v6777
    %v6833 = vsel %vm6779, %v6832, %v6831
    %v6834 = vperm.slane %v6637, %v6781
    %v6835 = vsel %vm6783, %v6834, %v6833
    %v6836 = vperm.slane %v6640, %v6785
    %v6837 = vsel %vm6787, %v6836, %v6835
    %v6838 = vperm.slane %v6643, %v6789
    %v6839 = vsel %vm6791, %v6838, %v6837
    %v6840 = vperm.slane %v6646, %v6793
    %v6841 = vsel %vm6795, %v6840, %v6839
    %v6842 = vperm.slane %v6649, %v6797
    %v6843 = vsel %vm6799, %v6842, %v6841
    %v6844 = vperm.slane %v6652, %v6801
    %v6845 = vsel %vm6803, %v6844, %v6843
    %v6846 = vperm.slane %v6655, %v6805
    %v6847 = vsel %vm6807, %v6846, %v6845
    %v6848 = vperm.slane %v6658, %v6809
    %v6849 = vsel %vm6811, %v6848, %v6847
    %v6850 = vperm.slane %v6661, %v6813
    %v6851 = vsel %vm6815, %v6850, %v6849
    %v6852 = vperm.slane %v6664, %v6817
    %v6853 = vsel %vm6819, %v6852, %v6851
    %v6854 = vperm.slane %v6667, %v6821
    %v6855 = vsel %vm6823, %v6854, %v6853
    %v6856 = vperm.slane %v6670, %v2013
    %v6857 = vperm.slane %v6673, %v6765
    %v6858 = vsel %vm6767, %v6857, %v6856
    %v6859 = vperm.slane %v6676, %v6769
    %v6860 = vsel %vm6771, %v6859, %v6858
    %v6861 = vperm.slane %v6679, %v6773
    %v6862 = vsel %vm6775, %v6861, %v6860
    %v6863 = vperm.slane %v6682, %v6777
    %v6864 = vsel %vm6779, %v6863, %v6862
    %v6865 = vperm.slane %v6685, %v6781
    %v6866 = vsel %vm6783, %v6865, %v6864
    %v6867 = vperm.slane %v6688, %v6785
    %v6868 = vsel %vm6787, %v6867, %v6866
    %v6869 = vperm.slane %v6691, %v6789
    %v6870 = vsel %vm6791, %v6869, %v6868
    %v6871 = vperm.slane %v6694, %v6793
    %v6872 = vsel %vm6795, %v6871, %v6870
    %v6873 = vperm.slane %v6697, %v6797
    %v6874 = vsel %vm6799, %v6873, %v6872
    %v6875 = vperm.slane %v6700, %v6801
    %v6876 = vsel %vm6803, %v6875, %v6874
    %v6877 = vperm.slane %v6703, %v6805
    %v6878 = vsel %vm6807, %v6877, %v6876
    %v6879 = vperm.slane %v6706, %v6809
    %v6880 = vsel %vm6811, %v6879, %v6878
    %v6881 = vperm.slane %v6709, %v6813
    %v6882 = vsel %vm6815, %v6881, %v6880
    %v6883 = vperm.slane %v6712, %v6817
    %v6884 = vsel %vm6819, %v6883, %v6882
    %v6885 = vperm.slane %v6715, %v6821
    %v6886 = vsel %vm6823, %v6885, %v6884
    %v6887 = vperm.slane %v6718, %v2013
    %v6888 = vperm.slane %v6721, %v6765
    %v6889 = vsel %vm6767, %v6888, %v6887
    %v6890 = vperm.slane %v6724, %v6769
    %v6891 = vsel %vm6771, %v6890, %v6889
    %v6892 = vperm.slane %v6727, %v6773
    %v6893 = vsel %vm6775, %v6892, %v6891
    %v6894 = vperm.slane %v6730, %v6777
    %v6895 = vsel %vm6779, %v6894, %v6893
    %v6896 = vperm.slane %v6733, %v6781
    %v6897 = vsel %vm6783, %v6896, %v6895
    %v6898 = vperm.slane %v6736, %v6785
    %v6899 = vsel %vm6787, %v6898, %v6897
    %v6900 = vperm.slane %v6739, %v6789
    %v6901 = vsel %vm6791, %v6900, %v6899
    %v6902 = vperm.slane %v6742, %v6793
    %v6903 = vsel %vm6795, %v6902, %v6901
    %v6904 = vperm.slane %v6745, %v6797
    %v6905 = vsel %vm6799, %v6904, %v6903
    %v6906 = vperm.slane %v6748, %v6801
    %v6907 = vsel %vm6803, %v6906, %v6905
    %v6908 = vperm.slane %v6751, %v6805
    %v6909 = vsel %vm6807, %v6908, %v6907
    %v6910 = vperm.slane %v6754, %v6809
    %v6911 = vsel %vm6811, %v6910, %v6909
    %v6912 = vperm.slane %v6757, %v6813
    %v6913 = vsel %vm6815, %v6912, %v6911
    %v6914 = vperm.slane %v6760, %v6817
    %v6915 = vsel %vm6819, %v6914, %v6913
    %v6916 = vperm.slane %v6763, %v6821
    %v6917 = vsel %vm6823, %v6916, %v6915
    %v6918 = vrot.slane %v6855, 7
    %v6919 = vrot.slane %v6886, 6
    %v6920 = vrot.slane %v6917, 5
    %vm6921 = vcmask 1040384
    %v6922 = vsel %vm6921, %v6824, %v6918
    %vm6923 = vcmask 1042434
    %v6924 = vsel %vm6923, %v6919, %v6920
    %vm6925 = vcmask 1041408
    %v6926 = vsel %vm6925, %v6922, %v6924
    %v6927 = vlaneseq
    %vm6928 = vcmp.ge.s32.totalorder %v6927, 0
    %vm6929 = vcmp.lt.s32.totalorder %v6927, 512
    %vm6930 = vmand %vm6928, %vm6929
    %6931 = vst.msk [vmem:[%s64] sm:$0xf] %vm6930, %v6926
    %v6932 = vsub.f32 %v5222, %v77
    %v6933 = vsub.f32 %v5225, %v78
    %v6934 = vsub.f32 %v5228, %v79
    %v6935 = vsub.f32 %v5231, %v80
    %v6936 = vsub.f32 %v5234, %v81
    %v6937 = vsub.f32 %v5237, %v82
    %v6938 = vsub.f32 %v5240, %v83
    %v6939 = vsub.f32 %v5243, %v84
    %v6940 = vsub.f32 %v5246, %v85
    %v6941 = vsub.f32 %v5249, %v86
    %v6942 = vsub.f32 %v5252, %v87
    %v6943 = vsub.f32 %v5255, %v88
    %v6944 = vsub.f32 %v5258, %v89
    %v6945 = vsub.f32 %v5261, %v90
    %v6946 = vsub.f32 %v5264, %v91
    %v6947 = vsub.f32 %v5267, %v92
    %v6948 = vsub.f32 %v5270, %v93
    %v6949 = vsub.f32 %v5273, %v94
    %v6950 = vsub.f32 %v5276, %v95
    %v6951 = vsub.f32 %v5279, %v96
    %v6952 = vsub.f32 %v5282, %v97
    %v6953 = vsub.f32 %v5285, %v98
    %v6954 = vsub.f32 %v5288, %v99
    %v6955 = vsub.f32 %v5291, %v100
    %v6956 = vsub.f32 %v5294, %v101
    %v6957 = vsub.f32 %v5297, %v102
    %v6958 = vsub.f32 %v5300, %v103
    %v6959 = vsub.f32 %v5303, %v104
    %v6960 = vsub.f32 %v5306, %v105
    %v6961 = vsub.f32 %v5309, %v106
    %v6962 = vsub.f32 %v5312, %v107
    %v6963 = vsub.f32 %v5315, %v108
    %v6964 = vsub.f32 %v5318, %v109
    %v6965 = vsub.f32 %v5321, %v110
    %v6966 = vsub.f32 %v5324, %v111
    %v6967 = vsub.f32 %v5327, %v112
    %v6968 = vsub.f32 %v5330, %v113
    %v6969 = vsub.f32 %v5333, %v114
    %v6970 = vsub.f32 %v5336, %v115
    %v6971 = vsub.f32 %v5339, %v116
    %v6972 = vsub.f32 %v5342, %v117
    %v6973 = vsub.f32 %v5345, %v118
    %v6974 = vsub.f32 %v5348, %v119
    %v6975 = vsub.f32 %v5351, %v120
    %v6976 = vsub.f32 %v5354, %v121
    %v6977 = vsub.f32 %v5357, %v122
    %v6978 = vsub.f32 %v5360, %v123
    %v6979 = vsub.f32 %v5363, %v124
    %v6980 = vsub.f32 %v5366, %v125
    %v6981 = vsub.f32 %v5369, %v126
    %v6982 = vsub.f32 %v5372, %v127
    %v6983 = vsub.f32 %v5375, %v128
    %v6984 = vsub.f32 %v5378, %v129
    %v6985 = vsub.f32 %v5381, %v130
    %v6986 = vsub.f32 %v5384, %v131
    %v6987 = vsub.f32 %v5387, %v132
    %v6988 = vsub.f32 %v5390, %v133
    %v6989 = vsub.f32 %v5393, %v134
    %v6990 = vsub.f32 %v5396, %v135
    %v6991 = vsub.f32 %v5399, %v136
    %v6992 = vsub.f32 %v5402, %v137
    %v6993 = vsub.f32 %v5405, %v138
    %v6994 = vsub.f32 %v5408, %v139
    %v6995 = vsub.f32 %v5411, %v140
    %v6996 = vmul.f32 %v6932, %v6932
    %v6997 = vmul.f32 %v6933, %v6933
    %v6998 = vmul.f32 %v6934, %v6934
    %v6999 = vmul.f32 %v6935, %v6935
    %v7000 = vmul.f32 %v6936, %v6936
    %v7001 = vmul.f32 %v6937, %v6937
    %v7002 = vmul.f32 %v6938, %v6938
    %v7003 = vmul.f32 %v6939, %v6939
    %v7004 = vmul.f32 %v6940, %v6940
    %v7005 = vmul.f32 %v6941, %v6941
    %v7006 = vmul.f32 %v6942, %v6942
    %v7007 = vmul.f32 %v6943, %v6943
    %v7008 = vmul.f32 %v6944, %v6944
    %v7009 = vmul.f32 %v6945, %v6945
    %v7010 = vmul.f32 %v6946, %v6946
    %v7011 = vmul.f32 %v6947, %v6947
    %v7012 = vmul.f32 %v6948, %v6948
    %v7013 = vmul.f32 %v6949, %v6949
    %v7014 = vmul.f32 %v6950, %v6950
    %v7015 = vmul.f32 %v6951, %v6951
    %v7016 = vmul.f32 %v6952, %v6952
    %v7017 = vmul.f32 %v6953, %v6953
    %v7018 = vmul.f32 %v6954, %v6954
    %v7019 = vmul.f32 %v6955, %v6955
    %v7020 = vmul.f32 %v6956, %v6956
    %v7021 = vmul.f32 %v6957, %v6957
    %v7022 = vmul.f32 %v6958, %v6958
    %v7023 = vmul.f32 %v6959, %v6959
    %v7024 = vmul.f32 %v6960, %v6960
    %v7025 = vmul.f32 %v6961, %v6961
    %v7026 = vmul.f32 %v6962, %v6962
    %v7027 = vmul.f32 %v6963, %v6963
    %v7028 = vmul.f32 %v6964, %v6964
    %v7029 = vmul.f32 %v6965, %v6965
    %v7030 = vmul.f32 %v6966, %v6966
    %v7031 = vmul.f32 %v6967, %v6967
    %v7032 = vmul.f32 %v6968, %v6968
    %v7033 = vmul.f32 %v6969, %v6969
    %v7034 = vmul.f32 %v6970, %v6970
    %v7035 = vmul.f32 %v6971, %v6971
    %v7036 = vmul.f32 %v6972, %v6972
    %v7037 = vmul.f32 %v6973, %v6973
    %v7038 = vmul.f32 %v6974, %v6974
    %v7039 = vmul.f32 %v6975, %v6975
    %v7040 = vmul.f32 %v6976, %v6976
    %v7041 = vmul.f32 %v6977, %v6977
    %v7042 = vmul.f32 %v6978, %v6978
    %v7043 = vmul.f32 %v6979, %v6979
    %v7044 = vmul.f32 %v6980, %v6980
    %v7045 = vmul.f32 %v6981, %v6981
    %v7046 = vmul.f32 %v6982, %v6982
    %v7047 = vmul.f32 %v6983, %v6983
    %v7048 = vmul.f32 %v6984, %v6984
    %v7049 = vmul.f32 %v6985, %v6985
    %v7050 = vmul.f32 %v6986, %v6986
    %v7051 = vmul.f32 %v6987, %v6987
    %v7052 = vmul.f32 %v6988, %v6988
    %v7053 = vmul.f32 %v6989, %v6989
    %v7054 = vmul.f32 %v6990, %v6990
    %v7055 = vmul.f32 %v6991, %v6991
    %v7056 = vmul.f32 %v6992, %v6992
    %v7057 = vmul.f32 %v6993, %v6993
    %v7058 = vmul.f32 %v6994, %v6994
    %v7059 = vmul.f32 %v6995, %v6995
    %v7060 = vld [vmem:[#allocation2] sm:$0x1]
    %7061 = vmatpush.msra.mxu0 %v7011
    %7062 = vmatpush.msra.mxu0 %v7010
    %7063 = vmatpush.msra.mxu0 %v7009
    %7064 = vmatpush.msra.mxu0 %v7008
    %7065 = vmatpush.msra.mxu0 %v7007
    %7066 = vmatpush.msra.mxu0 %v7006
    %7067 = vmatpush.msra.mxu0 %v7005
    %7068 = vmatpush.msra.mxu0 %v7004
    %7069 = vmatpush.msra.mxu0 %v7003
    %7070 = vmatpush.msra.mxu0 %v7002
    %7071 = vmatpush.msra.mxu0 %v7001
    %7072 = vmatpush.msra.mxu0 %v7000
    %7073 = vmatpush.msra.mxu0 %v6999
    %7074 = vmatpush.msra.mxu0 %v6998
    %7075 = vmatpush.msra.mxu0 %v6997
    %7076 = vmatpush.msra.mxu0 %v6996
    %7077 = vmatmul.f32.gmra.mxu0 1.0
    %v7078 = vpop.f32.mrf.mxu0
    %v7079 = vadd.f32 0.0, %v7078
    %7080 = vdwg.mxu0
    %7081 = vmatpush.msra.mxu0 %v7027
    %7082 = vmatpush.msra.mxu0 %v7026
    %7083 = vmatpush.msra.mxu0 %v7025
    %7084 = vmatpush.msra.mxu0 %v7024
    %7085 = vmatpush.msra.mxu0 %v7023
    %7086 = vmatpush.msra.mxu0 %v7022
    %7087 = vmatpush.msra.mxu0 %v7021
    %7088 = vmatpush.msra.mxu0 %v7020
    %7089 = vmatpush.msra.mxu0 %v7019
    %7090 = vmatpush.msra.mxu0 %v7018
    %7091 = vmatpush.msra.mxu0 %v7017
    %7092 = vmatpush.msra.mxu0 %v7016
    %7093 = vmatpush.msra.mxu0 %v7015
    %7094 = vmatpush.msra.mxu0 %v7014
    %7095 = vmatpush.msra.mxu0 %v7013
    %7096 = vmatpush.msra.mxu0 %v7012
    %7097 = vmatmul.f32.gmra.mxu0 1.0
    %v7098 = vpop.f32.mrf.mxu0
    %v7099 = vadd.f32 %v7079, %v7098
    %7100 = vdwg.mxu0
    %7101 = vmatpush.msra.mxu0 %v7043
    %7102 = vmatpush.msra.mxu0 %v7042
    %7103 = vmatpush.msra.mxu0 %v7041
    %7104 = vmatpush.msra.mxu0 %v7040
    %7105 = vmatpush.msra.mxu0 %v7039
    %7106 = vmatpush.msra.mxu0 %v7038
    %7107 = vmatpush.msra.mxu0 %v7037
    %7108 = vmatpush.msra.mxu0 %v7036
    %7109 = vmatpush.msra.mxu0 %v7035
    %7110 = vmatpush.msra.mxu0 %v7034
    %7111 = vmatpush.msra.mxu0 %v7033
    %7112 = vmatpush.msra.mxu0 %v7032
    %7113 = vmatpush.msra.mxu0 %v7031
    %7114 = vmatpush.msra.mxu0 %v7030
    %7115 = vmatpush.msra.mxu0 %v7029
    %7116 = vmatpush.msra.mxu0 %v7028
    %7117 = vmatmul.f32.gmra.mxu0 1.0
    %v7118 = vpop.f32.mrf.mxu0
    %v7119 = vadd.f32 %v7099, %v7118
    %7120 = vdwg.mxu0
    %7121 = vmatpush.msra.mxu0 %v7059
    %7122 = vmatpush.msra.mxu0 %v7058
    %7123 = vmatpush.msra.mxu0 %v7057
    %7124 = vmatpush.msra.mxu0 %v7056
    %7125 = vmatpush.msra.mxu0 %v7055
    %7126 = vmatpush.msra.mxu0 %v7054
    %7127 = vmatpush.msra.mxu0 %v7053
    %7128 = vmatpush.msra.mxu0 %v7052
    %7129 = vmatpush.msra.mxu0 %v7051
    %7130 = vmatpush.msra.mxu0 %v7050
    %7131 = vmatpush.msra.mxu0 %v7049
    %7132 = vmatpush.msra.mxu0 %v7048
    %7133 = vmatpush.msra.mxu0 %v7047
    %7134 = vmatpush.msra.mxu0 %v7046
    %7135 = vmatpush.msra.mxu0 %v7045
    %7136 = vmatpush.msra.mxu0 %v7044
    %7137 = vmatmul.f32.gmra.mxu0 1.0
    %v7138 = vpop.f32.mrf.mxu0
    %v7139 = vadd.f32 %v7119, %v7138
    %7140 = vdwg.mxu0
    %v7141 = vadd.f32 %v7060, %v7139
    %vm7142 = vcmask 516096
    %7143 = vst.msk [vmem:[#allocation2] sm:$0x1] %vm7142, %v7141
    %v7144 = vld [vmem:[#allocation3] sm:$0xf]
    %7145 = vmatpush.msra.mxu0 %v4381
    %7146 = vmatpush.msra.mxu0 %v4377
    %7147 = vmatpush.msra.mxu0 %v4373
    %7148 = vmatpush.msra.mxu0 %v4369
    %7149 = vmatpush.msra.mxu0 %v4365
    %7150 = vmatpush.msra.mxu0 %v4361
    %7151 = vmatpush.msra.mxu0 %v4357
    %7152 = vmatpush.msra.mxu0 %v4353
    %7153 = vmatpush.msra.mxu0 %v4349
    %7154 = vmatpush.msra.mxu0 %v4345
    %7155 = vmatpush.msra.mxu0 %v4341
    %7156 = vmatpush.msra.mxu0 %v4337
    %7157 = vmatpush.msra.mxu0 %v4333
    %7158 = vmatpush.msra.mxu0 %v4329
    %7159 = vmatpush.msra.mxu0 %v4325
    %7160 = vmatpush.msra.mxu0 %v4321
    %7161 = vmatmul.f32.gmra.mxu0 1.0
    %v7162 = vpop.f32.mrf.mxu0
    %v7163 = vadd.f32 0.0, %v7162
    %7164 = vdwg.mxu0
    %7165 = vmatpush.msra.mxu0 %v4445
    %7166 = vmatpush.msra.mxu0 %v4441
    %7167 = vmatpush.msra.mxu0 %v4437
    %7168 = vmatpush.msra.mxu0 %v4433
    %7169 = vmatpush.msra.mxu0 %v4429
    %7170 = vmatpush.msra.mxu0 %v4425
    %7171 = vmatpush.msra.mxu0 %v4421
    %7172 = vmatpush.msra.mxu0 %v4417
    %7173 = vmatpush.msra.mxu0 %v4413
    %7174 = vmatpush.msra.mxu0 %v4409
    %7175 = vmatpush.msra.mxu0 %v4405
    %7176 = vmatpush.msra.mxu0 %v4401
    %7177 = vmatpush.msra.mxu0 %v4397
    %7178 = vmatpush.msra.mxu0 %v4393
    %7179 = vmatpush.msra.mxu0 %v4389
    %7180 = vmatpush.msra.mxu0 %v4385
    %7181 = vmatmul.f32.gmra.mxu0 1.0
    %v7182 = vpop.f32.mrf.mxu0
    %v7183 = vadd.f32 %v7163, %v7182
    %7184 = vdwg.mxu0
    %7185 = vmatpush.msra.mxu0 %v4509
    %7186 = vmatpush.msra.mxu0 %v4505
    %7187 = vmatpush.msra.mxu0 %v4501
    %7188 = vmatpush.msra.mxu0 %v4497
    %7189 = vmatpush.msra.mxu0 %v4493
    %7190 = vmatpush.msra.mxu0 %v4489
    %7191 = vmatpush.msra.mxu0 %v4485
    %7192 = vmatpush.msra.mxu0 %v4481
    %7193 = vmatpush.msra.mxu0 %v4477
    %7194 = vmatpush.msra.mxu0 %v4473
    %7195 = vmatpush.msra.mxu0 %v4469
    %7196 = vmatpush.msra.mxu0 %v4465
    %7197 = vmatpush.msra.mxu0 %v4461
    %7198 = vmatpush.msra.mxu0 %v4457
    %7199 = vmatpush.msra.mxu0 %v4453
    %7200 = vmatpush.msra.mxu0 %v4449
    %7201 = vmatmul.f32.gmra.mxu0 1.0
    %v7202 = vpop.f32.mrf.mxu0
    %v7203 = vadd.f32 %v7183, %v7202
    %7204 = vdwg.mxu0
    %7205 = vmatpush.msra.mxu0 %v4573
    %7206 = vmatpush.msra.mxu0 %v4569
    %7207 = vmatpush.msra.mxu0 %v4565
    %7208 = vmatpush.msra.mxu0 %v4561
    %7209 = vmatpush.msra.mxu0 %v4557
    %7210 = vmatpush.msra.mxu0 %v4553
    %7211 = vmatpush.msra.mxu0 %v4549
    %7212 = vmatpush.msra.mxu0 %v4545
    %7213 = vmatpush.msra.mxu0 %v4541
    %7214 = vmatpush.msra.mxu0 %v4537
    %7215 = vmatpush.msra.mxu0 %v4533
    %7216 = vmatpush.msra.mxu0 %v4529
    %7217 = vmatpush.msra.mxu0 %v4525
    %7218 = vmatpush.msra.mxu0 %v4521
    %7219 = vmatpush.msra.mxu0 %v4517
    %7220 = vmatpush.msra.mxu0 %v4513
    %7221 = vmatmul.f32.gmra.mxu0 1.0
    %v7222 = vpop.f32.mrf.mxu0
    %v7223 = vadd.f32 %v7203, %v7222
    %7224 = vdwg.mxu0
    %7225 = vmatpush.msra.mxu0 %v4382
    %7226 = vmatpush.msra.mxu0 %v4378
    %7227 = vmatpush.msra.mxu0 %v4374
    %7228 = vmatpush.msra.mxu0 %v4370
    %7229 = vmatpush.msra.mxu0 %v4366
    %7230 = vmatpush.msra.mxu0 %v4362
    %7231 = vmatpush.msra.mxu0 %v4358
    %7232 = vmatpush.msra.mxu0 %v4354
    %7233 = vmatpush.msra.mxu0 %v4350
    %7234 = vmatpush.msra.mxu0 %v4346
    %7235 = vmatpush.msra.mxu0 %v4342
    %7236 = vmatpush.msra.mxu0 %v4338
    %7237 = vmatpush.msra.mxu0 %v4334
    %7238 = vmatpush.msra.mxu0 %v4330
    %7239 = vmatpush.msra.mxu0 %v4326
    %7240 = vmatpush.msra.mxu0 %v4322
    %7241 = vmatmul.f32.gmra.mxu0 1.0
    %v7242 = vpop.f32.mrf.mxu0
    %v7243 = vadd.f32 0.0, %v7242
    %7244 = vdwg.mxu0
    %7245 = vmatpush.msra.mxu0 %v4446
    %7246 = vmatpush.msra.mxu0 %v4442
    %7247 = vmatpush.msra.mxu0 %v4438
    %7248 = vmatpush.msra.mxu0 %v4434
    %7249 = vmatpush.msra.mxu0 %v4430
    %7250 = vmatpush.msra.mxu0 %v4426
    %7251 = vmatpush.msra.mxu0 %v4422
    %7252 = vmatpush.msra.mxu0 %v4418
    %7253 = vmatpush.msra.mxu0 %v4414
    %7254 = vmatpush.msra.mxu0 %v4410
    %7255 = vmatpush.msra.mxu0 %v4406
    %7256 = vmatpush.msra.mxu0 %v4402
    %7257 = vmatpush.msra.mxu0 %v4398
    %7258 = vmatpush.msra.mxu0 %v4394
    %7259 = vmatpush.msra.mxu0 %v4390
    %7260 = vmatpush.msra.mxu0 %v4386
    %7261 = vmatmul.f32.gmra.mxu0 1.0
    %v7262 = vpop.f32.mrf.mxu0
    %v7263 = vadd.f32 %v7243, %v7262
    %7264 = vdwg.mxu0
    %7265 = vmatpush.msra.mxu0 %v4510
    %7266 = vmatpush.msra.mxu0 %v4506
    %7267 = vmatpush.msra.mxu0 %v4502
    %7268 = vmatpush.msra.mxu0 %v4498
    %7269 = vmatpush.msra.mxu0 %v4494
    %7270 = vmatpush.msra.mxu0 %v4490
    %7271 = vmatpush.msra.mxu0 %v4486
    %7272 = vmatpush.msra.mxu0 %v4482
    %7273 = vmatpush.msra.mxu0 %v4478
    %7274 = vmatpush.msra.mxu0 %v4474
    %7275 = vmatpush.msra.mxu0 %v4470
    %7276 = vmatpush.msra.mxu0 %v4466
    %7277 = vmatpush.msra.mxu0 %v4462
    %7278 = vmatpush.msra.mxu0 %v4458
    %7279 = vmatpush.msra.mxu0 %v4454
    %7280 = vmatpush.msra.mxu0 %v4450
    %7281 = vmatmul.f32.gmra.mxu0 1.0
    %v7282 = vpop.f32.mrf.mxu0
    %v7283 = vadd.f32 %v7263, %v7282
    %7284 = vdwg.mxu0
    %7285 = vmatpush.msra.mxu0 %v4574
    %7286 = vmatpush.msra.mxu0 %v4570
    %7287 = vmatpush.msra.mxu0 %v4566
    %7288 = vmatpush.msra.mxu0 %v4562
    %7289 = vmatpush.msra.mxu0 %v4558
    %7290 = vmatpush.msra.mxu0 %v4554
    %7291 = vmatpush.msra.mxu0 %v4550
    %7292 = vmatpush.msra.mxu0 %v4546
    %7293 = vmatpush.msra.mxu0 %v4542
    %7294 = vmatpush.msra.mxu0 %v4538
    %7295 = vmatpush.msra.mxu0 %v4534
    %7296 = vmatpush.msra.mxu0 %v4530
    %7297 = vmatpush.msra.mxu0 %v4526
    %7298 = vmatpush.msra.mxu0 %v4522
    %7299 = vmatpush.msra.mxu0 %v4518
    %7300 = vmatpush.msra.mxu0 %v4514
    %7301 = vmatmul.f32.gmra.mxu0 1.0
    %v7302 = vpop.f32.mrf.mxu0
    %v7303 = vadd.f32 %v7283, %v7302
    %7304 = vdwg.mxu0
    %7305 = vmatpush.msra.mxu0 %v4383
    %7306 = vmatpush.msra.mxu0 %v4379
    %7307 = vmatpush.msra.mxu0 %v4375
    %7308 = vmatpush.msra.mxu0 %v4371
    %7309 = vmatpush.msra.mxu0 %v4367
    %7310 = vmatpush.msra.mxu0 %v4363
    %7311 = vmatpush.msra.mxu0 %v4359
    %7312 = vmatpush.msra.mxu0 %v4355
    %7313 = vmatpush.msra.mxu0 %v4351
    %7314 = vmatpush.msra.mxu0 %v4347
    %7315 = vmatpush.msra.mxu0 %v4343
    %7316 = vmatpush.msra.mxu0 %v4339
    %7317 = vmatpush.msra.mxu0 %v4335
    %7318 = vmatpush.msra.mxu0 %v4331
    %7319 = vmatpush.msra.mxu0 %v4327
    %7320 = vmatpush.msra.mxu0 %v4323
    %7321 = vmatmul.f32.gmra.mxu0 1.0
    %v7322 = vpop.f32.mrf.mxu0
    %v7323 = vadd.f32 0.0, %v7322
    %7324 = vdwg.mxu0
    %7325 = vmatpush.msra.mxu0 %v4447
    %7326 = vmatpush.msra.mxu0 %v4443
    %7327 = vmatpush.msra.mxu0 %v4439
    %7328 = vmatpush.msra.mxu0 %v4435
    %7329 = vmatpush.msra.mxu0 %v4431
    %7330 = vmatpush.msra.mxu0 %v4427
    %7331 = vmatpush.msra.mxu0 %v4423
    %7332 = vmatpush.msra.mxu0 %v4419
    %7333 = vmatpush.msra.mxu0 %v4415
    %7334 = vmatpush.msra.mxu0 %v4411
    %7335 = vmatpush.msra.mxu0 %v4407
    %7336 = vmatpush.msra.mxu0 %v4403
    %7337 = vmatpush.msra.mxu0 %v4399
    %7338 = vmatpush.msra.mxu0 %v4395
    %7339 = vmatpush.msra.mxu0 %v4391
    %7340 = vmatpush.msra.mxu0 %v4387
    %7341 = vmatmul.f32.gmra.mxu0 1.0
    %v7342 = vpop.f32.mrf.mxu0
    %v7343 = vadd.f32 %v7323, %v7342
    %7344 = vdwg.mxu0
    %7345 = vmatpush.msra.mxu0 %v4511
    %7346 = vmatpush.msra.mxu0 %v4507
    %7347 = vmatpush.msra.mxu0 %v4503
    %7348 = vmatpush.msra.mxu0 %v4499
    %7349 = vmatpush.msra.mxu0 %v4495
    %7350 = vmatpush.msra.mxu0 %v4491
    %7351 = vmatpush.msra.mxu0 %v4487
    %7352 = vmatpush.msra.mxu0 %v4483
    %7353 = vmatpush.msra.mxu0 %v4479
    %7354 = vmatpush.msra.mxu0 %v4475
    %7355 = vmatpush.msra.mxu0 %v4471
    %7356 = vmatpush.msra.mxu0 %v4467
    %7357 = vmatpush.msra.mxu0 %v4463
    %7358 = vmatpush.msra.mxu0 %v4459
    %7359 = vmatpush.msra.mxu0 %v4455
    %7360 = vmatpush.msra.mxu0 %v4451
    %7361 = vmatmul.f32.gmra.mxu0 1.0
    %v7362 = vpop.f32.mrf.mxu0
    %v7363 = vadd.f32 %v7343, %v7362
    %7364 = vdwg.mxu0
    %7365 = vmatpush.msra.mxu0 %v4575
    %7366 = vmatpush.msra.mxu0 %v4571
    %7367 = vmatpush.msra.mxu0 %v4567
    %7368 = vmatpush.msra.mxu0 %v4563
    %7369 = vmatpush.msra.mxu0 %v4559
    %7370 = vmatpush.msra.mxu0 %v4555
    %7371 = vmatpush.msra.mxu0 %v4551
    %7372 = vmatpush.msra.mxu0 %v4547
    %7373 = vmatpush.msra.mxu0 %v4543
    %7374 = vmatpush.msra.mxu0 %v4539
    %7375 = vmatpush.msra.mxu0 %v4535
    %7376 = vmatpush.msra.mxu0 %v4531
    %7377 = vmatpush.msra.mxu0 %v4527
    %7378 = vmatpush.msra.mxu0 %v4523
    %7379 = vmatpush.msra.mxu0 %v4519
    %7380 = vmatpush.msra.mxu0 %v4515
    %7381 = vmatmul.f32.gmra.mxu0 1.0
    %v7382 = vpop.f32.mrf.mxu0
    %v7383 = vadd.f32 %v7363, %v7382
    %7384 = vdwg.mxu0
    %7385 = vmatpush.msra.mxu0 %v4384
    %7386 = vmatpush.msra.mxu0 %v4380
    %7387 = vmatpush.msra.mxu0 %v4376
    %7388 = vmatpush.msra.mxu0 %v4372
    %7389 = vmatpush.msra.mxu0 %v4368
    %7390 = vmatpush.msra.mxu0 %v4364
    %7391 = vmatpush.msra.mxu0 %v4360
    %7392 = vmatpush.msra.mxu0 %v4356
    %7393 = vmatpush.msra.mxu0 %v4352
    %7394 = vmatpush.msra.mxu0 %v4348
    %7395 = vmatpush.msra.mxu0 %v4344
    %7396 = vmatpush.msra.mxu0 %v4340
    %7397 = vmatpush.msra.mxu0 %v4336
    %7398 = vmatpush.msra.mxu0 %v4332
    %7399 = vmatpush.msra.mxu0 %v4328
    %7400 = vmatpush.msra.mxu0 %v4324
    %7401 = vmatmul.f32.gmra.mxu0 1.0
    %v7402 = vpop.f32.mrf.mxu0
    %v7403 = vadd.f32 0.0, %v7402
    %7404 = vdwg.mxu0
    %7405 = vmatpush.msra.mxu0 %v4448
    %7406 = vmatpush.msra.mxu0 %v4444
    %7407 = vmatpush.msra.mxu0 %v4440
    %7408 = vmatpush.msra.mxu0 %v4436
    %7409 = vmatpush.msra.mxu0 %v4432
    %7410 = vmatpush.msra.mxu0 %v4428
    %7411 = vmatpush.msra.mxu0 %v4424
    %7412 = vmatpush.msra.mxu0 %v4420
    %7413 = vmatpush.msra.mxu0 %v4416
    %7414 = vmatpush.msra.mxu0 %v4412
    %7415 = vmatpush.msra.mxu0 %v4408
    %7416 = vmatpush.msra.mxu0 %v4404
    %7417 = vmatpush.msra.mxu0 %v4400
    %7418 = vmatpush.msra.mxu0 %v4396
    %7419 = vmatpush.msra.mxu0 %v4392
    %7420 = vmatpush.msra.mxu0 %v4388
    %7421 = vmatmul.f32.gmra.mxu0 1.0
    %v7422 = vpop.f32.mrf.mxu0
    %v7423 = vadd.f32 %v7403, %v7422
    %7424 = vdwg.mxu0
    %7425 = vmatpush.msra.mxu0 %v4512
    %7426 = vmatpush.msra.mxu0 %v4508
    %7427 = vmatpush.msra.mxu0 %v4504
    %7428 = vmatpush.msra.mxu0 %v4500
    %7429 = vmatpush.msra.mxu0 %v4496
    %7430 = vmatpush.msra.mxu0 %v4492
    %7431 = vmatpush.msra.mxu0 %v4488
    %7432 = vmatpush.msra.mxu0 %v4484
    %7433 = vmatpush.msra.mxu0 %v4480
    %7434 = vmatpush.msra.mxu0 %v4476
    %7435 = vmatpush.msra.mxu0 %v4472
    %7436 = vmatpush.msra.mxu0 %v4468
    %7437 = vmatpush.msra.mxu0 %v4464
    %7438 = vmatpush.msra.mxu0 %v4460
    %7439 = vmatpush.msra.mxu0 %v4456
    %7440 = vmatpush.msra.mxu0 %v4452
    %7441 = vmatmul.f32.gmra.mxu0 1.0
    %v7442 = vpop.f32.mrf.mxu0
    %v7443 = vadd.f32 %v7423, %v7442
    %7444 = vdwg.mxu0
    %7445 = vmatpush.msra.mxu0 %v4576
    %7446 = vmatpush.msra.mxu0 %v4572
    %7447 = vmatpush.msra.mxu0 %v4568
    %7448 = vmatpush.msra.mxu0 %v4564
    %7449 = vmatpush.msra.mxu0 %v4560
    %7450 = vmatpush.msra.mxu0 %v4556
    %7451 = vmatpush.msra.mxu0 %v4552
    %7452 = vmatpush.msra.mxu0 %v4548
    %7453 = vmatpush.msra.mxu0 %v4544
    %7454 = vmatpush.msra.mxu0 %v4540
    %7455 = vmatpush.msra.mxu0 %v4536
    %7456 = vmatpush.msra.mxu0 %v4532
    %7457 = vmatpush.msra.mxu0 %v4528
    %7458 = vmatpush.msra.mxu0 %v4524
    %7459 = vmatpush.msra.mxu0 %v4520
    %7460 = vmatpush.msra.mxu0 %v4516
    %7461 = vmatmul.f32.gmra.mxu0 1.0
    %v7462 = vpop.f32.mrf.mxu0
    %v7463 = vadd.f32 %v7443, %v7462
    %7464 = vdwg.mxu0
    %v7469 = vrot.slane %v7303, 7
    %v7470 = vrot.slane %v7383, 6
    %v7471 = vrot.slane %v7463, 5
    %v7472 = vsel %vm6921, %v7223, %v7469
    %v7473 = vsel %vm6923, %v7470, %v7471
    %v7474 = vsel %vm6925, %v7472, %v7473
    %v7476 = vadd.f32 %v7144, %v7474
    %7477 = vst.msk [vmem:[#allocation3] sm:$0xf] %vm6930, %v7476
    // Predicated region
    $region18: #{_vq_forward.1} parent=1 // pred_check
      %p7478 = pneg %p66
    $region19: #{_vq_forward.1} parent=1 // pred_check_branch
      %7480 = sbr.rel (%p7478) target = $region21
    $region20: #{_vq_forward.1} parent=1 // pred_region
      %v7481 = vld [vmem:[#allocation2] sm:$0x1]
      %v7482 = vsel %vm7142, %v7481, 0.0
      %7483 = vadd.xlane.f32.xlu0 %v7482
      %v7484 = vpop.xlane.xlu0 %7483
      %vm7485 = vcmask 0
      %7486 = vst.msk [vmem:[#allocation4] sm:$0x1] %vm7485, %v7484
      %v7487 = vld [vmem:[#allocation3] sm:$0xf]
      %7488 = vst.msk [vmem:[%s6] sm:$0xf] %vm6930, %v7487
    $region21: #{_vq_forward.1} parent=1 // pred_fallthru
      _
    %s7489 = sadd.s32 0, 0
    %s7490 = smul.u32 64, %s7489
    %p7491 = scmp.lt.s32.totalorder %s7490, 63
    %s7492 = scalar_select %p7491, %s7490, 63
    %s7493 = smul.addr %s7492, 8
    %s7494 = scalar_lea.vmem %s3, %s7493
    %s7495 = sadd.s32 0, 0
    %p7496 = scmp.lt.s32.totalorder %s7495, 0
    %s7497 = scalar_select %p7496, %s7495, 0
    %s7498 = smul.addr %s7497, 4
    %s7499 = scalar_lea.vmem %s4, %s7498
    // Predicated region
    $region22: #{_vq_forward.1} parent=1 // pred_check
      _
    $region23: #{_vq_forward.1} parent=1 // pred_check_branch
      %7501 = sbr.rel (0) target = $region25
    $region24: #{_vq_forward.1} parent=1 // pred_region
      %s7502 = sadd.s32 0, 0
      %s7503 = smul.u32 64, %s7502
    $region25: #{_vq_forward.1} parent=1 // pred_fallthru
      _
    // Predicated region
    $region26: #{_vq_forward.1} parent=1 // pred_check
      _
    $region27: #{_vq_forward.1} parent=1 // pred_check_branch
      %7505 = sbr.rel (0) target = $region29
    $region28: #{_vq_forward.1} parent=1 // pred_region
      %s7506 = sadd.s32 0, 0
    $region29: #{_vq_forward.1} parent=1 // pred_fallthru
      _
    // Predicated region
    $region30: #{_vq_forward.1} parent=1 // pred_check
      _
    $region31: #{_vq_forward.1} parent=1 // pred_check_branch
      %7508 = sbr.rel (0) target = $region33
    $region32: #{_vq_forward.1} parent=1 // pred_region
      %7510 = vsyncadd [#allocation5], 0
      %s7512 = sshll.u32 [#allocation4], 4
      %s7513 = int_to_ptr.vmem [resolvable:$true] %s7512
      %s7514 = sshll.u32 %s5, 4
      %s7515 = int_to_ptr.hbm [resolvable:$true] %s7514
      %7517 = dma.vmem_to_hbm [thread:$0]  %s7513, 16, %s7515, [#allocation5]
    $region33: #{_vq_forward.1} parent=1 // pred_fallthru
      _
    // Predicated region
    $region34: #{_vq_forward.1} parent=1 // pred_check
      _
    $region35: #{_vq_forward.1} parent=1 // pred_check_branch
      %7519 = sbr.rel (0) target = $region37
    $region36: #{_vq_forward.1} parent=1 // pred_region
      _
    $region37: #{_vq_forward.1} parent=1 // pred_fallthru
      _
    // Predicated region
    $region38: #{_vq_forward.1} parent=1 // pred_check
      _
    $region39: #{_vq_forward.1} parent=1 // pred_check_branch
      %7521 = sbr.rel (0) target = $region41
    $region40: #{_vq_forward.1} parent=1 // pred_region
      %s7522 = sadd.s32 0, 0
      %s7523 = smul.u32 64, %s7522
      %p7524 = scmp.lt.s32.totalorder %s7523, 63
      %s7525 = scalar_select %p7524, %s7523, 63
      %s7526 = smul.addr %s7525, 8
      %s7527 = scalar_lea.vmem %s3, %s7526
    $region41: #{_vq_forward.1} parent=1 // pred_fallthru
      _
    // Predicated region
    $region42: #{_vq_forward.1} parent=1 // pred_check
      _
    $region43: #{_vq_forward.1} parent=1 // pred_check_branch
      %7529 = sbr.rel (0) target = $region45
    $region44: #{_vq_forward.1} parent=1 // pred_region
      %s7530 = sadd.s32 0, 0
      %p7531 = scmp.lt.s32.totalorder %s7530, 0
      %s7532 = scalar_select %p7531, %s7530, 0
      %s7533 = smul.addr %s7532, 4
      %s7534 = scalar_lea.vmem %s4, %s7533
    $region45: #{_vq_forward.1} parent=1 // pred_fallthru
      _
    // Predicated region
    $region46: #{_vq_forward.1} parent=1 // pred_check
      _
    $region47: #{_vq_forward.1} parent=1 // pred_check_branch
      %7536 = sbr.rel (0) target = $region49
    $region48: #{_vq_forward.1} parent=1 // pred_region
      %7538 = dma.done [#allocation5], 16
    $region49: #{_vq_forward.1} parent=1 // pred_fallthru
      _
    // Predicated region
    $region50: #{_vq_forward.1} parent=1 // pred_check
      _
    $region51: #{_vq_forward.1} parent=1 // pred_check_branch
      %7540 = sbr.rel (0) target = $region53
    $region52: #{_vq_forward.1} parent=1 // pred_region
      _
    $region53: #{_vq_forward.1} parent=1 // pred_fallthru
      _
    %7541 = vsyncpa [#allocation5], 1

</llo_original>
